<compile_context>
chip_gen: v7x
topology: tpu7x:2x2x1
jax: 0.10.0
libtpu: 0.0.40
codegen_flags: <defaults>
</compile_context>

<pallas_src>
import math
from functools import partial

import jax
import jax.numpy as jnp
from jax.experimental import pallas as pl
from jax.experimental.pallas import tpu as pltpu

# ----- module hyper-parameters (from the PyTorch source) -----
D_MODEL = 64
D_K = D_V = 64
D_FF = 512
N_HEADS = 1
HLA_MAX_LEN = 34
PEP_MAX_LEN = 15
TGT_LEN = PEP_MAX_LEN + HLA_MAX_LEN          # 49
SEQ_PAD = 64                                 # 49 padded to a multiple of 8 sublanes
ATTN_PAD = 128                               # lane-dense key axis for attn output
LN_EPS = 1e-5
NEG_INF = -1e9
# MXU-input precision. jnp.float32 keeps strict parity with the f32 reference;
# set to jnp.bfloat16 on v6e/v7x for higher MXU throughput and halved DMA bytes
# (accumulation stays f32; LayerNorm/softmax stay f32) — relax tolerances then.
MXU_DTYPE = jnp.float32


def _layernorm(x):
    """LayerNorm over last dim, gamma=1, beta=0, eps=1e-5 (PyTorch default)."""
    mean = jnp.mean(x, axis=-1, keepdims=True)
    var = jnp.mean(jnp.square(x - mean), axis=-1, keepdims=True)
    return (x - mean) * jax.lax.rsqrt(var + LN_EPS)


def decoder_layer_kernel(x_ref, pe_ref, wq_ref, wk_ref, wv_ref, wfc_ref,
                         w1_ref, w2_ref, out_ref, attn_ref, *, seq_len):
    """One block of BT sequences per grid step: pos-enc + MHA + FFN + 2x LN."""
    BT, SP, D = x_ref.shape
    KP = attn_ref.shape[-1]                  # 128 (lane-dense key axis)
    cdt = MXU_DTYPE
    f32 = jnp.float32

    # positional encoding (dropout == identity in eval mode)
    x3 = x_ref[...] + pe_ref[...][None, :, :]        # (BT, SP, D)
    xf = x3.reshape(BT * SP, D)                      # flat: MXU sees M = BT*SP

    # full-width projections (one wide matmul each; heads sliced afterwards)
    xm = xf.astype(cdt)
    q_full = jnp.dot(xm, wq_ref[...].astype(cdt), preferred_element_type=f32)
    k_full = jnp.dot(xm, wk_ref[...].astype(cdt), preferred_element_type=f32)
    v_full = jnp.dot(xm, wv_ref[...].astype(cdt), preferred_element_type=f32)
    q_full = q_full * (1.0 / math.sqrt(D_K))         # fold 1/sqrt(d_k) into Q

    # columns that are not real tokens: [seq_len, SP) are sequence-padding rows
    # reused as keys, [SP, KP) are the zero-padded keys added for lane density.
    col = jax.lax.broadcasted_iota(jnp.int32, (SP, KP), 1)
    key_invalid = (col >= seq_len)[None]             # (1, SP, KP)

    ctx_heads, attn_heads = [], []
    for h in range(N_HEADS):                         # static; H == 1 here
        q = q_full[:, h * D_K:(h + 1) * D_K].reshape(BT, SP, D_K)
        k = k_full[:, h * D_K:(h + 1) * D_K].reshape(BT, SP, D_K)
        v = v_full[:, h * D_V:(h + 1) * D_V].reshape(BT, SP, D_V)
        # zero-pad the key axis to KP=128 so scores / attn are lane-dense.
        k_pad = jnp.concatenate([k, jnp.zeros((BT, KP - SP, D_K), f32)], axis=1)
        v_pad = jnp.concatenate([v, jnp.zeros((BT, KP - SP, D_V), f32)], axis=1)

        # QK^T as a batched dot_general contracting d_k (no transpose of K).
        scores = jnp.einsum('bqd,bkd->bqk', q.astype(cdt), k_pad.astype(cdt),
                            preferred_element_type=f32)       # (BT, SP, KP)
        scores = jnp.where(key_invalid, NEG_INF, scores)       # masked_fill_
        m = jnp.max(scores, axis=-1, keepdims=True)
        e = jnp.exp(scores - m)
        denom = jnp.sum(e, axis=-1, keepdims=True)
        attn = e * pl.reciprocal(denom, approx=True)           # softmax(-1)
        attn_heads.append(attn)
        ctx_heads.append(jnp.einsum('bqk,bkd->bqd', attn.astype(cdt),
                                    v_pad.astype(cdt),
                                    preferred_element_type=f32))  # (BT, SP, dv)

    # lane-dense store: (BT, H, SP, 128); wrapper slices back to (S, S).
    if N_HEADS == 1:
        attn_ref[...] = attn_heads[0].reshape(BT, 1, SP, KP)
    else:
        attn_ref[...] = jnp.stack(attn_heads, axis=1)

    context = ctx_heads[0] if N_HEADS == 1 else jnp.concatenate(ctx_heads, -1)
    ctx_f = context.reshape(BT * SP, N_HEADS * D_V)
    mha = jnp.dot(ctx_f.astype(cdt), wfc_ref[...].astype(cdt),
                  preferred_element_type=f32)
    y = _layernorm(mha + xf)                                   # LN #1 (f32)

    # position-wise FFN: ReLU(y @ W1) @ W2
    h1 = jnp.maximum(jnp.dot(y.astype(cdt), w1_ref[...].astype(cdt),
                             preferred_element_type=f32), 0.0)
    ffn = jnp.dot(h1.astype(cdt), w2_ref[...].astype(cdt),
                  preferred_element_type=f32)
    out_ref[...] = _layernorm(ffn + y).reshape(BT, SP, D)      # LN #2


def make_positional_encoding(max_len, d_model):
    position = jnp.arange(max_len, dtype=jnp.float32)[:, None]
    div_term = jnp.exp(jnp.arange(0, d_model, 2, dtype=jnp.float32)
                       * (-math.log(10000.0) / d_model))
    pe = jnp.zeros((max_len, d_model), dtype=jnp.float32)
    pe = pe.at[:, 0::2].set(jnp.sin(position * div_term))
    pe = pe.at[:, 1::2].set(jnp.cos(position * div_term))
    return pe


def init_params(key):
    """Deterministic params; nn.Linear-style uniform(-1/sqrt(fan_in), ...).
    Stored PyTorch-style as (out, in); transposed to (in, out) before the call."""
    def linear_w(k, out_f, in_f):
        bound = 1.0 / math.sqrt(in_f)
        return jax.random.uniform(k, (out_f, in_f), jnp.float32, -bound, bound)

    ks = jax.random.split(key, 6)
    return {
        "W_Q": linear_w(ks[0], D_K * N_HEADS, D_MODEL),
        "W_K": linear_w(ks[1], D_K * N_HEADS, D_MODEL),
        "W_V": linear_w(ks[2], D_V * N_HEADS, D_MODEL),
        "fc":  linear_w(ks[3], D_MODEL, N_HEADS * D_V),
        "ffn1": linear_w(ks[4], D_FF, D_MODEL),
        "ffn2": linear_w(ks[5], D_MODEL, D_FF),
    }


@partial(jax.jit, static_argnames=("block_batch",))
def decoder_forward(dec_inputs, params, block_batch=8):
    """dec_inputs: [batch, tgt_len, d_model] f32.
    Returns (dec_outputs [B,S,D], dec_self_attn [B,H,S,S])."""
    B, S, D = dec_inputs.shape
    # pad seq -> SEQ_PAD (tile aligned) and batch -> multiple of block_batch
    Bp = pl.cdiv(B, block_batch) * block_batch
    x = jnp.pad(dec_inputs, ((0, Bp - B), (0, SEQ_PAD - S), (0, 0)))
    pe = make_positional_encoding(SEQ_PAD, D_MODEL)

    # pre-transpose weights to (in, out) so the kernel does plain x @ W
    wq, wk, wv = params["W_Q"].T, params["W_K"].T, params["W_V"].T
    wfc, w1, w2 = params["fc"].T, params["ffn1"].T, params["ffn2"].T

    const = lambda i: (0, 0)
    grid_spec = pltpu.PrefetchScalarGridSpec(
        num_scalar_prefetch=0,
        grid=(Bp // block_batch,),
        in_specs=[
            pl.BlockSpec((block_batch, SEQ_PAD, D), lambda i: (i, 0, 0)),  # x
            pl.BlockSpec((SEQ_PAD, D), const),                             # pe
            pl.BlockSpec((D, N_HEADS * D_K), const),                       # W_Q
            pl.BlockSpec((D, N_HEADS * D_K), const),                       # W_K
            pl.BlockSpec((D, N_HEADS * D_V), const),                       # W_V
            pl.BlockSpec((N_HEADS * D_V, D), const),                       # fc
            pl.BlockSpec((D, D_FF), const),                                # ffn1
            pl.BlockSpec((D_FF, D), const),                                # ffn2
        ],
        out_specs=[
            pl.BlockSpec((block_batch, SEQ_PAD, D), lambda i: (i, 0, 0)),
            pl.BlockSpec((block_batch, N_HEADS, SEQ_PAD, ATTN_PAD),
                         lambda i: (i, 0, 0, 0)),
        ],
    )
    out, attn = pl.pallas_call(
        partial(decoder_layer_kernel, seq_len=S),
        grid_spec=grid_spec,
        out_shape=(jax.ShapeDtypeStruct((Bp, SEQ_PAD, D), jnp.float32),
                   jax.ShapeDtypeStruct((Bp, N_HEADS, SEQ_PAD, ATTN_PAD),
                                        jnp.float32)),
        compiler_params=pltpu.CompilerParams(
            dimension_semantics=("parallel",)),
    )(x, pe, wq, wk, wv, wfc, w1, w2)
    return out[:B, :S, :], attn[:B, :, :S, :S]


def decoder_reference(dec_inputs, params):
    """Pure-JAX reference mirroring the PyTorch forward (eval mode)."""
    B, S, D = dec_inputs.shape
    pe = make_positional_encoding(S, D_MODEL)
    x = dec_inputs + pe[None]

    def heads(w):  # (H*dk, D) -> project and split heads -> (B,H,S,dk)
        y = jnp.einsum("bsd,ed->bse", x, w)
        return y.reshape(B, S, N_HEADS, -1).transpose(0, 2, 1, 3)

    Q, K, V = heads(params["W_Q"]), heads(params["W_K"]), heads(params["W_V"])
    scores = jnp.einsum("bhqk,bhmk->bhqm", Q, K) / math.sqrt(D_K)
    attn = jax.nn.softmax(scores, axis=-1)
    ctx = jnp.einsum("bhqm,bhmv->bhqv", attn, V)
    ctx = ctx.transpose(0, 2, 1, 3).reshape(B, S, N_HEADS * D_V)
    mha = jnp.einsum("bsv,dv->bsd", ctx, params["fc"])
    y = _layernorm(mha + x)
    h1 = jax.nn.relu(jnp.einsum("bsd,fd->bsf", y, params["ffn1"]))
    ffn = jnp.einsum("bsf,df->bsd", h1, params["ffn2"])
    return _layernorm(ffn + y), attn


if __name__ == "__main__":
    B = 16  # 2 grid steps of 8 sequences -> even grid keeps both v7x TCs busy
    key = jax.random.PRNGKey(0)
    k_in, k_par = jax.random.split(key)
    dec_inputs = jax.random.normal(k_in, (B, TGT_LEN, D_MODEL), dtype=jnp.float32)
    params = init_params(k_par)

    dec_out, dec_attn = decoder_forward(dec_inputs, params)
    jax.block_until_ready((dec_out, dec_attn))

    # mirror the module's return signature: (dec_outputs, [attn per layer])
    dec_self_attns = [dec_attn]

    ref_out, ref_attn = decoder_reference(dec_inputs, params)
    assert dec_out.shape == ref_out.shape and dec_attn.shape == ref_attn.shape
    # tolerances relaxed (per review) for the approx-reciprocal softmax path
    assert jnp.allclose(dec_out, ref_out, atol=1e-2, rtol=1e-2), \
        float(jnp.max(jnp.abs(dec_out - ref_out)))
    assert jnp.allclose(dec_attn, ref_attn, atol=1e-2, rtol=1e-2), \
        float(jnp.max(jnp.abs(dec_attn - ref_attn)))

    print("KERNEL_OK")
</pallas_src>

<mosaic_0001>
module attributes {stable_mosaic.version = 11 : i64} {
  func.func @decoder_layer_kernel(%arg0: i32, %arg1: memref<8x64x64xf32, #tpu.memory_space<vmem>>, %arg2: memref<64x64xf32, #tpu.memory_space<vmem>>, %arg3: memref<64x64xf32, #tpu.memory_space<vmem>>, %arg4: memref<64x64xf32, #tpu.memory_space<vmem>>, %arg5: memref<64x64xf32, #tpu.memory_space<vmem>>, %arg6: memref<64x64xf32, #tpu.memory_space<vmem>>, %arg7: memref<64x512xf32, #tpu.memory_space<vmem>>, %arg8: memref<512x64xf32, #tpu.memory_space<vmem>>, %arg9: memref<8x64x64xf32, #tpu.memory_space<vmem>>, %arg10: memref<8x1x64x128xf32, #tpu.memory_space<vmem>>) attributes {dimension_semantics = [#tpu.dimension_semantics<parallel>], iteration_bounds = array<i64: 2>, scalar_prefetch = 0 : i64, scratch_operands = 0 : i64, tpu.core_type = #tpu.core_type<tc>, window_params = [{transform_indices = @transform_0, window_bounds = array<i64: 8, 64, 64>}, {pipeline_mode = #tpu.pipeline_mode<synchronous>, transform_indices = @transform_1, window_bounds = array<i64: 64, 64>}, {pipeline_mode = #tpu.pipeline_mode<synchronous>, transform_indices = @transform_2, window_bounds = array<i64: 64, 64>}, {pipeline_mode = #tpu.pipeline_mode<synchronous>, transform_indices = @transform_3, window_bounds = array<i64: 64, 64>}, {pipeline_mode = #tpu.pipeline_mode<synchronous>, transform_indices = @transform_4, window_bounds = array<i64: 64, 64>}, {pipeline_mode = #tpu.pipeline_mode<synchronous>, transform_indices = @transform_5, window_bounds = array<i64: 64, 64>}, {pipeline_mode = #tpu.pipeline_mode<synchronous>, transform_indices = @transform_6, window_bounds = array<i64: 64, 512>}, {pipeline_mode = #tpu.pipeline_mode<synchronous>, transform_indices = @transform_7, window_bounds = array<i64: 512, 64>}, {transform_indices = @transform_8, window_bounds = array<i64: 8, 64, 64>}, {transform_indices = @transform_9, window_bounds = array<i64: 8, 1, 64, 128>}]} {
    %c0 = arith.constant 0 : index
    %c0_0 = arith.constant 0 : index
    %c0_1 = arith.constant 0 : index
    %0 = vector.load %arg1[%c0, %c0_0, %c0_1] : memref<8x64x64xf32, #tpu.memory_space<vmem>>, vector<8x64x64xf32>
    %c0_2 = arith.constant 0 : index
    %c0_3 = arith.constant 0 : index
    %1 = vector.load %arg2[%c0_2, %c0_3] : memref<64x64xf32, #tpu.memory_space<vmem>>, vector<64x64xf32>
    %2 = vector.shape_cast %1 : vector<64x64xf32> to vector<1x64x64xf32>
    %3 = vector.broadcast %2 : vector<1x64x64xf32> to vector<8x64x64xf32>
    %4 = arith.addf %0, %3 : vector<8x64x64xf32>
    %5 = vector.shape_cast %4 : vector<8x64x64xf32> to vector<512x64xf32>
    %c0_4 = arith.constant 0 : index
    %c0_5 = arith.constant 0 : index
    %6 = vector.load %arg3[%c0_4, %c0_5] : memref<64x64xf32, #tpu.memory_space<vmem>>, vector<64x64xf32>
    %cst = arith.constant dense<0.000000e+00> : vector<512x64xf32>
    %7 = tpu.matmul %5, %6, %cst {dimension_numbers = #tpu.dot_dimension_numbers<[1], [0], [0], [1], [0, 0, 1, 1], [], []>} : vector<512x64xf32>, vector<64x64xf32>, vector<512x64xf32> -> vector<512x64xf32>
    %c0_6 = arith.constant 0 : index
    %c0_7 = arith.constant 0 : index
    %8 = vector.load %arg4[%c0_6, %c0_7] : memref<64x64xf32, #tpu.memory_space<vmem>>, vector<64x64xf32>
    %cst_8 = arith.constant dense<0.000000e+00> : vector<512x64xf32>
    %9 = tpu.matmul %5, %8, %cst_8 {dimension_numbers = #tpu.dot_dimension_numbers<[1], [0], [0], [1], [0, 0, 1, 1], [], []>} : vector<512x64xf32>, vector<64x64xf32>, vector<512x64xf32> -> vector<512x64xf32>
    %c0_9 = arith.constant 0 : index
    %c0_10 = arith.constant 0 : index
    %10 = vector.load %arg5[%c0_9, %c0_10] : memref<64x64xf32, #tpu.memory_space<vmem>>, vector<64x64xf32>
    %cst_11 = arith.constant dense<0.000000e+00> : vector<512x64xf32>
    %11 = tpu.matmul %5, %10, %cst_11 {dimension_numbers = #tpu.dot_dimension_numbers<[1], [0], [0], [1], [0, 0, 1, 1], [], []>} : vector<512x64xf32>, vector<64x64xf32>, vector<512x64xf32> -> vector<512x64xf32>
    %cst_12 = arith.constant 1.250000e-01 : f32
    %12 = vector.broadcast %cst_12 : f32 to vector<512x64xf32>
    %13 = arith.mulf %7, %12 : vector<512x64xf32>
    %14 = tpu.iota {dimensions = array<i32: 1>} : vector<64x128xi32>
    %c49_i32 = arith.constant 49 : i32
    %15 = vector.broadcast %c49_i32 : i32 to vector<64x128xi32>
    %16 = arith.cmpi sge, %14, %15 : vector<64x128xi32>
    %17 = vector.shape_cast %16 : vector<64x128xi1> to vector<1x64x128xi1>
    %18 = vector.shape_cast %13 : vector<512x64xf32> to vector<8x64x64xf32>
    %19 = vector.shape_cast %9 : vector<512x64xf32> to vector<8x64x64xf32>
    %20 = vector.shape_cast %11 : vector<512x64xf32> to vector<8x64x64xf32>
    %cst_13 = arith.constant 0.000000e+00 : f32
    %21 = vector.broadcast %cst_13 : f32 to vector<8x64x64xf32>
    %22 = tpu.concatenate %19, %21 in 1 : vector<8x64x64xf32>, vector<8x64x64xf32> -> vector<8x128x64xf32>
    %cst_14 = arith.constant 0.000000e+00 : f32
    %23 = vector.broadcast %cst_14 : f32 to vector<8x64x64xf32>
    %24 = tpu.concatenate %20, %23 in 1 : vector<8x64x64xf32>, vector<8x64x64xf32> -> vector<8x128x64xf32>
    "tpu.trace_start"() <{level = 10 : i32, message = "bqd,bkd->bqk"}> : () -> ()
    %cst_15 = arith.constant dense<0.000000e+00> : vector<8x64x128xf32>
    %25 = tpu.matmul %18, %22, %cst_15 {dimension_numbers = #tpu.dot_dimension_numbers<[2], [2], [1], [1], [0, 0, 0, 1, 1, 1], [0], [0]>} : vector<8x64x64xf32>, vector<8x128x64xf32>, vector<8x64x128xf32> -> vector<8x64x128xf32>
    %cst_16 = arith.constant -1.000000e+09 : f32
    "tpu.trace_stop"() : () -> ()
    %26 = vector.shape_cast %17 : vector<1x64x128xi1> to vector<1x64x128xi1>
    %27 = vector.broadcast %26 : vector<1x64x128xi1> to vector<8x64x128xi1>
    %28 = vector.broadcast %cst_16 : f32 to vector<8x64x128xf32>
    %29 = arith.select %27, %28, %25 : vector<8x64x128xi1>, vector<8x64x128xf32>
    %cst_17 = arith.constant dense<0xFF800000> : vector<8x64xf32>
    %30 = vector.multi_reduction <maximumf>, %29, %cst_17 [2] : vector<8x64x128xf32> to vector<8x64xf32>
    %31 = vector.shape_cast %30 : vector<8x64xf32> to vector<8x64x1xf32>
    %32 = vector.broadcast %31 : vector<8x64x1xf32> to vector<8x64x128xf32>
    %33 = arith.subf %29, %32 : vector<8x64x128xf32>
    %34 = math.exp %33 : vector<8x64x128xf32>
    %cst_18 = arith.constant dense<0.000000e+00> : vector<8x64xf32>
    %35 = vector.multi_reduction <add>, %34, %cst_18 [2] : vector<8x64x128xf32> to vector<8x64xf32>
    %36 = vector.shape_cast %35 : vector<8x64xf32> to vector<8x64x1xf32>
    %37 = tpu.reciprocal %36 {approx = true} : vector<8x64x1xf32> -> vector<8x64x1xf32>
    %38 = vector.broadcast %37 : vector<8x64x1xf32> to vector<8x64x128xf32>
    %39 = arith.mulf %34, %38 : vector<8x64x128xf32>
    "tpu.trace_start"() <{level = 10 : i32, message = "bqk,bkd->bqd"}> : () -> ()
    %cst_19 = arith.constant dense<0.000000e+00> : vector<8x64x64xf32>
    %40 = tpu.matmul %39, %24, %cst_19 {dimension_numbers = #tpu.dot_dimension_numbers<[2], [1], [1], [2], [0, 0, 0, 1, 1, 2], [0], [0]>} : vector<8x64x128xf32>, vector<8x128x64xf32>, vector<8x64x64xf32> -> vector<8x64x64xf32>
    "tpu.trace_stop"() : () -> ()
    %41 = vector.shape_cast %39 : vector<8x64x128xf32> to vector<8x1x64x128xf32>
    %c0_20 = arith.constant 0 : index
    %c0_21 = arith.constant 0 : index
    %c0_22 = arith.constant 0 : index
    %c0_23 = arith.constant 0 : index
    %42 = vector.load %arg10[%c0_20, %c0_21, %c0_22, %c0_23] : memref<8x1x64x128xf32, #tpu.memory_space<vmem>>, vector<8x1x64x128xf32>
    tpu.vector_store %arg10[%c0_20, %c0_21, %c0_22, %c0_23], %41 {strides = array<i32>} : memref<8x1x64x128xf32, #tpu.memory_space<vmem>>, vector<8x1x64x128xf32>,
    %43 = vector.shape_cast %40 : vector<8x64x64xf32> to vector<512x64xf32>
    %c0_24 = arith.constant 0 : index
    %c0_25 = arith.constant 0 : index
    %44 = vector.load %arg6[%c0_24, %c0_25] : memref<64x64xf32, #tpu.memory_space<vmem>>, vector<64x64xf32>
    %cst_26 = arith.constant dense<0.000000e+00> : vector<512x64xf32>
    %45 = tpu.matmul %43, %44, %cst_26 {dimension_numbers = #tpu.dot_dimension_numbers<[1], [0], [0], [1], [0, 0, 1, 1], [], []>} : vector<512x64xf32>, vector<64x64xf32>, vector<512x64xf32> -> vector<512x64xf32>
    %46 = arith.addf %45, %5 : vector<512x64xf32>
    %cst_27 = arith.constant dense<0.000000e+00> : vector<512xf32>
    %47 = vector.multi_reduction <add>, %46, %cst_27 [1] : vector<512x64xf32> to vector<512xf32>
    %48 = vector.shape_cast %47 : vector<512xf32> to vector<512x1xf32>
    %cst_28 = arith.constant 6.400000e+01 : f32
    %49 = vector.broadcast %cst_28 : f32 to vector<512x1xf32>
    %50 = arith.divf %48, %49 : vector<512x1xf32>
    %51 = vector.broadcast %50 : vector<512x1xf32> to vector<512x64xf32>
    %52 = arith.subf %46, %51 : vector<512x64xf32>
    %53 = arith.mulf %52, %52 : vector<512x64xf32>
    %cst_29 = arith.constant dense<0.000000e+00> : vector<512xf32>
    %54 = vector.multi_reduction <add>, %53, %cst_29 [1] : vector<512x64xf32> to vector<512xf32>
    %55 = vector.shape_cast %54 : vector<512xf32> to vector<512x1xf32>
    %cst_30 = arith.constant 6.400000e+01 : f32
    %56 = vector.broadcast %cst_30 : f32 to vector<512x1xf32>
    %57 = arith.divf %55, %56 : vector<512x1xf32>
    %58 = vector.broadcast %50 : vector<512x1xf32> to vector<512x64xf32>
    %59 = arith.subf %46, %58 : vector<512x64xf32>
    %cst_31 = arith.constant 9.99999974E-6 : f32
    %60 = vector.broadcast %cst_31 : f32 to vector<512x1xf32>
    %61 = arith.addf %57, %60 : vector<512x1xf32>
    %62 = math.rsqrt %61 : vector<512x1xf32>
    %63 = vector.broadcast %62 : vector<512x1xf32> to vector<512x64xf32>
    %64 = arith.mulf %59, %63 : vector<512x64xf32>
    %c0_32 = arith.constant 0 : index
    %c0_33 = arith.constant 0 : index
    %65 = vector.load %arg7[%c0_32, %c0_33] : memref<64x512xf32, #tpu.memory_space<vmem>>, vector<64x512xf32>
    %cst_34 = arith.constant dense<0.000000e+00> : vector<512x512xf32>
    %66 = tpu.matmul %64, %65, %cst_34 {dimension_numbers = #tpu.dot_dimension_numbers<[1], [0], [0], [1], [0, 0, 1, 1], [], []>} : vector<512x64xf32>, vector<64x512xf32>, vector<512x512xf32> -> vector<512x512xf32>
    %cst_35 = arith.constant 0.000000e+00 : f32
    %67 = vector.broadcast %cst_35 : f32 to vector<512x512xf32>
    %68 = arith.maximumf %66, %67 : vector<512x512xf32>
    %c0_36 = arith.constant 0 : index
    %c0_37 = arith.constant 0 : index
    %69 = vector.load %arg8[%c0_36, %c0_37] : memref<512x64xf32, #tpu.memory_space<vmem>>, vector<512x64xf32>
    %cst_38 = arith.constant dense<0.000000e+00> : vector<512x64xf32>
    %70 = tpu.matmul %68, %69, %cst_38 {dimension_numbers = #tpu.dot_dimension_numbers<[1], [0], [0], [1], [0, 0, 1, 1], [], []>} : vector<512x512xf32>, vector<512x64xf32>, vector<512x64xf32> -> vector<512x64xf32>
    %71 = arith.addf %70, %64 : vector<512x64xf32>
    %cst_39 = arith.constant dense<0.000000e+00> : vector<512xf32>
    %72 = vector.multi_reduction <add>, %71, %cst_39 [1] : vector<512x64xf32> to vector<512xf32>
    %73 = vector.shape_cast %72 : vector<512xf32> to vector<512x1xf32>
    %cst_40 = arith.constant 6.400000e+01 : f32
    %74 = vector.broadcast %cst_40 : f32 to vector<512x1xf32>
    %75 = arith.divf %73, %74 : vector<512x1xf32>
    %76 = vector.broadcast %75 : vector<512x1xf32> to vector<512x64xf32>
    %77 = arith.subf %71, %76 : vector<512x64xf32>
    %78 = arith.mulf %77, %77 : vector<512x64xf32>
    %cst_41 = arith.constant dense<0.000000e+00> : vector<512xf32>
    %79 = vector.multi_reduction <add>, %78, %cst_41 [1] : vector<512x64xf32> to vector<512xf32>
    %80 = vector.shape_cast %79 : vector<512xf32> to vector<512x1xf32>
    %cst_42 = arith.constant 6.400000e+01 : f32
    %81 = vector.broadcast %cst_42 : f32 to vector<512x1xf32>
    %82 = arith.divf %80, %81 : vector<512x1xf32>
    %83 = vector.broadcast %75 : vector<512x1xf32> to vector<512x64xf32>
    %84 = arith.subf %71, %83 : vector<512x64xf32>
    %cst_43 = arith.constant 9.99999974E-6 : f32
    %85 = vector.broadcast %cst_43 : f32 to vector<512x1xf32>
    %86 = arith.addf %82, %85 : vector<512x1xf32>
    %87 = math.rsqrt %86 : vector<512x1xf32>
    %88 = vector.broadcast %87 : vector<512x1xf32> to vector<512x64xf32>
    %89 = arith.mulf %84, %88 : vector<512x64xf32>
    %90 = vector.shape_cast %89 : vector<512x64xf32> to vector<8x64x64xf32>
    %c0_44 = arith.constant 0 : index
    %c0_45 = arith.constant 0 : index
    %c0_46 = arith.constant 0 : index
    %91 = vector.load %arg9[%c0_44, %c0_45, %c0_46] : memref<8x64x64xf32, #tpu.memory_space<vmem>>, vector<8x64x64xf32>
    tpu.vector_store %arg9[%c0_44, %c0_45, %c0_46], %90 {strides = array<i32>} : memref<8x64x64xf32, #tpu.memory_space<vmem>>, vector<8x64x64xf32>,
    return
  }
  func.func @transform_0(%arg0: i32) -> (i32, i32, i32) {
    %c0_i32 = arith.constant 0 : i32
    %c0_i32_0 = arith.constant 0 : i32
    %c0_i32_1 = arith.constant 0 : i32
    return %arg0, %c0_i32, %c0_i32_0 : i32, i32, i32
  }
  func.func @transform_1(%arg0: i32) -> (i32, i32) {
    %c0_i32 = arith.constant 0 : i32
    %c0_i32_0 = arith.constant 0 : i32
    %c0_i32_1 = arith.constant 0 : i32
    return %c0_i32, %c0_i32_0 : i32, i32
  }
  func.func @transform_2(%arg0: i32) -> (i32, i32) {
    %c0_i32 = arith.constant 0 : i32
    %c0_i32_0 = arith.constant 0 : i32
    %c0_i32_1 = arith.constant 0 : i32
    return %c0_i32, %c0_i32_0 : i32, i32
  }
  func.func @transform_3(%arg0: i32) -> (i32, i32) {
    %c0_i32 = arith.constant 0 : i32
    %c0_i32_0 = arith.constant 0 : i32
    %c0_i32_1 = arith.constant 0 : i32
    return %c0_i32, %c0_i32_0 : i32, i32
  }
  func.func @transform_4(%arg0: i32) -> (i32, i32) {
    %c0_i32 = arith.constant 0 : i32
    %c0_i32_0 = arith.constant 0 : i32
    %c0_i32_1 = arith.constant 0 : i32
    return %c0_i32, %c0_i32_0 : i32, i32
  }
  func.func @transform_5(%arg0: i32) -> (i32, i32) {
    %c0_i32 = arith.constant 0 : i32
    %c0_i32_0 = arith.constant 0 : i32
    %c0_i32_1 = arith.constant 0 : i32
    return %c0_i32, %c0_i32_0 : i32, i32
  }
  func.func @transform_6(%arg0: i32) -> (i32, i32) {
    %c0_i32 = arith.constant 0 : i32
    %c0_i32_0 = arith.constant 0 : i32
    %c0_i32_1 = arith.constant 0 : i32
    return %c0_i32, %c0_i32_0 : i32, i32
  }
  func.func @transform_7(%arg0: i32) -> (i32, i32) {
    %c0_i32 = arith.constant 0 : i32
    %c0_i32_0 = arith.constant 0 : i32
    %c0_i32_1 = arith.constant 0 : i32
    return %c0_i32, %c0_i32_0 : i32, i32
  }
  func.func @transform_8(%arg0: i32) -> (i32, i32, i32) {
    %c0_i32 = arith.constant 0 : i32
    %c0_i32_0 = arith.constant 0 : i32
    %c0_i32_1 = arith.constant 0 : i32
    return %arg0, %c0_i32, %c0_i32_0 : i32, i32, i32
  }
  func.func @transform_9(%arg0: i32) -> (i32, i32, i32, i32) {
    %c0_i32 = arith.constant 0 : i32
    %c0_i32_0 = arith.constant 0 : i32
    %c0_i32_1 = arith.constant 0 : i32
    %c0_i32_2 = arith.constant 0 : i32
    return %arg0, %c0_i32, %c0_i32_0, %c0_i32_1 : i32, i32, i32, i32
  }
}

</mosaic_0001>

<llo_original>
// kernel: decoder_forward.1
$region0: #{decoder_forward.1}
  #allocation0 [shape = 'u32[]', space=smem, size = 0x4, offset = 0x4, fixed_abs, tag = 'smem constant byte address 0x4 - core index']
  #allocation1 [shape = 'u32[144,128]{1,0:T(1,128)}', space=vmem, size = 0x12000, scoped, tag = 'internal scratch']
  %s0 = inlined_call_operand.vmem [shape: f32[16,64,64], index: 0, kind: input, shape index: {}]
  %s1 = inlined_call_operand.vmem [shape: f32[64,64], index: 1, kind: input, shape index: {}]
  %s2 = inlined_call_operand.vmem [shape: f32[64,64], index: 2, kind: input, shape index: {}]
  %s3 = inlined_call_operand.vmem [shape: f32[64,64], index: 3, kind: input, shape index: {}]
  %s4 = inlined_call_operand.vmem [shape: f32[64,64], index: 4, kind: input, shape index: {}]
  %s5 = inlined_call_operand.vmem [shape: f32[64,64], index: 5, kind: input, shape index: {}]
  %s6 = inlined_call_operand.vmem [shape: f32[64,512], index: 6, kind: input, shape index: {}]
  %s7 = inlined_call_operand.vmem [shape: f32[512,64], index: 7, kind: input, shape index: {}]
  %s8 = inlined_call_operand.vmem [shape: f32[16,64,64], index: 8, kind: output, shape index: {0}]
  %s9 = inlined_call_operand.vmem [shape: f32[16,1,64,128], index: 9, kind: output, shape index: {1}]
  %10 = xla_tuple %s8, %s9
  %s11 = sld [smem:[#allocation0]]
  $region73: #{decoder_forward.1} parent=0
    _
  %s13 = ssub.s32 1, %s11
  %s14 = scalar_select 0, %s13, %s11
  loop: start=0, step=1, limit=4
  $region2: #{decoder_forward.1} parent=0 // loop_pre_header
    _
  $region3: #{decoder_forward.1} parent=0 // loop_header
    %s16 = sphi 0, %s20
    %p17 = scmp.ge.s32.totalorder %s16, 4
    %s26 = sphi 0, %s28
    %s29 = sphi 0, %s26
    %s30 = sphi 0, %s29
    %s46 = sphi 0, %s30
    %s50 = sphi 0, %s50
    %s52 = sphi 0, %s50
    %s53 = sphi 0, %s52
    %s67 = sphi 0, %s53
    %s71 = sphi 0, %s71
    %s73 = sphi 0, %s71
    %s74 = sphi 0, %s73
    %s88 = sphi 0, %s74
    %s92 = sphi 0, %s92
    %s94 = sphi 0, %s92
    %s95 = sphi 0, %s94
    %s109 = sphi 0, %s95
    %s113 = sphi 0, %s113
    %s115 = sphi 0, %s113
    %s116 = sphi 0, %s115
    %s130 = sphi 0, %s116
    %s134 = sphi 0, %s134
    %s136 = sphi 0, %s134
    %s137 = sphi 0, %s136
    %s151 = sphi 0, %s137
    %s155 = sphi 0, %s155
    %s157 = sphi 0, %s155
    %s158 = sphi 0, %s157
    %s172 = sphi 0, %s158
    %s176 = sphi 0, %s176
    %s178 = sphi 0, %s176
    %s179 = sphi 0, %s178
    %s193 = sphi 0, %s179
    %s199 = sphi 0, %s201
    %s202 = sphi 0, %s199
    %s203 = sphi 0, %s202
    %s219 = sphi 0, %s203
    %s225 = sphi 0, %s227
    %s228 = sphi 0, %s225
    %s229 = sphi 0, %s228
    %s245 = sphi 0, %s229
  $region4: #{decoder_forward.1} parent=0 // loop_header_branch
    %19 = sbr.rel (%p17) target = $region8
  $region5: #{decoder_forward.1} parent=0 // loop_body
    %s21 = ssub.s32 %s16, 1
    %s22 = ssub.s32 %s16, 2
    %s23 = sadd.s32 %s16, 1
    %s24 = ssub.s32 %s16, %s23
    %p25 = scmp.eq.s32.totalorder %s24, 0
    %s27 = sadd.s32 %s26, 1
    %s28 = scalar_select %p25, %s26, %s27
    %p31 = pneg %p25
    %p32 = scmp.eq.s32.totalorder %s16, 1
    %p33 = por %p31, %p32
    %p34 = scmp.ne.s32.totalorder %s26, %s29
    %p35 = scmp.eq.s32.totalorder %s16, 0
    %p36 = por %p34, %p35
    %p37 = scmp.ne.s32.totalorder %s26, %s29
    %p38 = scmp.eq.s32.totalorder %s21, 1
    %p39 = por %p37, %p38
    %p40 = scmp.ne.s32.totalorder %s29, %s30
    %p41 = scmp.eq.s32.totalorder %s21, 0
    %p42 = por %p40, %p41
    %p43 = scmp.ne.s32.totalorder %s29, %s30
    %p44 = scmp.eq.s32.totalorder %s22, 1
    %p45 = por %p43, %p44
    %p47 = scmp.ne.s32.totalorder %s30, %s46
    %p48 = scmp.eq.s32.totalorder %s22, 0
    %p49 = por %p47, %p48
    %s51 = sadd.s32 %s50, 1
    %p54 = scmp.eq.s32.totalorder %s16, 1
    %p55 = scmp.ne.s32.totalorder %s50, %s52
    %p56 = scmp.eq.s32.totalorder %s16, 0
    %p57 = por %p55, %p56
    %p58 = scmp.ne.s32.totalorder %s50, %s52
    %p59 = scmp.eq.s32.totalorder %s21, 1
    %p60 = por %p58, %p59
    %p61 = scmp.ne.s32.totalorder %s52, %s53
    %p62 = scmp.eq.s32.totalorder %s21, 0
    %p63 = por %p61, %p62
    %p64 = scmp.ne.s32.totalorder %s52, %s53
    %p65 = scmp.eq.s32.totalorder %s22, 1
    %p66 = por %p64, %p65
    %p68 = scmp.ne.s32.totalorder %s53, %s67
    %p69 = scmp.eq.s32.totalorder %s22, 0
    %p70 = por %p68, %p69
    %s72 = sadd.s32 %s71, 1
    %p75 = scmp.eq.s32.totalorder %s16, 1
    %p76 = scmp.ne.s32.totalorder %s71, %s73
    %p77 = scmp.eq.s32.totalorder %s16, 0
    %p78 = por %p76, %p77
    %p79 = scmp.ne.s32.totalorder %s71, %s73
    %p80 = scmp.eq.s32.totalorder %s21, 1
    %p81 = por %p79, %p80
    %p82 = scmp.ne.s32.totalorder %s73, %s74
    %p83 = scmp.eq.s32.totalorder %s21, 0
    %p84 = por %p82, %p83
    %p85 = scmp.ne.s32.totalorder %s73, %s74
    %p86 = scmp.eq.s32.totalorder %s22, 1
    %p87 = por %p85, %p86
    %p89 = scmp.ne.s32.totalorder %s74, %s88
    %p90 = scmp.eq.s32.totalorder %s22, 0
    %p91 = por %p89, %p90
    %s93 = sadd.s32 %s92, 1
    %p96 = scmp.eq.s32.totalorder %s16, 1
    %p97 = scmp.ne.s32.totalorder %s92, %s94
    %p98 = scmp.eq.s32.totalorder %s16, 0
    %p99 = por %p97, %p98
    %p100 = scmp.ne.s32.totalorder %s92, %s94
    %p101 = scmp.eq.s32.totalorder %s21, 1
    %p102 = por %p100, %p101
    %p103 = scmp.ne.s32.totalorder %s94, %s95
    %p104 = scmp.eq.s32.totalorder %s21, 0
    %p105 = por %p103, %p104
    %p106 = scmp.ne.s32.totalorder %s94, %s95
    %p107 = scmp.eq.s32.totalorder %s22, 1
    %p108 = por %p106, %p107
    %p110 = scmp.ne.s32.totalorder %s95, %s109
    %p111 = scmp.eq.s32.totalorder %s22, 0
    %p112 = por %p110, %p111
    %s114 = sadd.s32 %s113, 1
    %p117 = scmp.eq.s32.totalorder %s16, 1
    %p118 = scmp.ne.s32.totalorder %s113, %s115
    %p119 = scmp.eq.s32.totalorder %s16, 0
    %p120 = por %p118, %p119
    %p121 = scmp.ne.s32.totalorder %s113, %s115
    %p122 = scmp.eq.s32.totalorder %s21, 1
    %p123 = por %p121, %p122
    %p124 = scmp.ne.s32.totalorder %s115, %s116
    %p125 = scmp.eq.s32.totalorder %s21, 0
    %p126 = por %p124, %p125
    %p127 = scmp.ne.s32.totalorder %s115, %s116
    %p128 = scmp.eq.s32.totalorder %s22, 1
    %p129 = por %p127, %p128
    %p131 = scmp.ne.s32.totalorder %s116, %s130
    %p132 = scmp.eq.s32.totalorder %s22, 0
    %p133 = por %p131, %p132
    %s135 = sadd.s32 %s134, 1
    %p138 = scmp.eq.s32.totalorder %s16, 1
    %p139 = scmp.ne.s32.totalorder %s134, %s136
    %p140 = scmp.eq.s32.totalorder %s16, 0
    %p141 = por %p139, %p140
    %p142 = scmp.ne.s32.totalorder %s134, %s136
    %p143 = scmp.eq.s32.totalorder %s21, 1
    %p144 = por %p142, %p143
    %p145 = scmp.ne.s32.totalorder %s136, %s137
    %p146 = scmp.eq.s32.totalorder %s21, 0
    %p147 = por %p145, %p146
    %p148 = scmp.ne.s32.totalorder %s136, %s137
    %p149 = scmp.eq.s32.totalorder %s22, 1
    %p150 = por %p148, %p149
    %p152 = scmp.ne.s32.totalorder %s137, %s151
    %p153 = scmp.eq.s32.totalorder %s22, 0
    %p154 = por %p152, %p153
    %s156 = sadd.s32 %s155, 1
    %p159 = scmp.eq.s32.totalorder %s16, 1
    %p160 = scmp.ne.s32.totalorder %s155, %s157
    %p161 = scmp.eq.s32.totalorder %s16, 0
    %p162 = por %p160, %p161
    %p163 = scmp.ne.s32.totalorder %s155, %s157
    %p164 = scmp.eq.s32.totalorder %s21, 1
    %p165 = por %p163, %p164
    %p166 = scmp.ne.s32.totalorder %s157, %s158
    %p167 = scmp.eq.s32.totalorder %s21, 0
    %p168 = por %p166, %p167
    %p169 = scmp.ne.s32.totalorder %s157, %s158
    %p170 = scmp.eq.s32.totalorder %s22, 1
    %p171 = por %p169, %p170
    %p173 = scmp.ne.s32.totalorder %s158, %s172
    %p174 = scmp.eq.s32.totalorder %s22, 0
    %p175 = por %p173, %p174
    %s177 = sadd.s32 %s176, 1
    %p180 = scmp.eq.s32.totalorder %s16, 1
    %p181 = scmp.ne.s32.totalorder %s176, %s178
    %p182 = scmp.eq.s32.totalorder %s16, 0
    %p183 = por %p181, %p182
    %p184 = scmp.ne.s32.totalorder %s176, %s178
    %p185 = scmp.eq.s32.totalorder %s21, 1
    %p186 = por %p184, %p185
    %p187 = scmp.ne.s32.totalorder %s178, %s179
    %p188 = scmp.eq.s32.totalorder %s21, 0
    %p189 = por %p187, %p188
    %p190 = scmp.ne.s32.totalorder %s178, %s179
    %p191 = scmp.eq.s32.totalorder %s22, 1
    %p192 = por %p190, %p191
    %p194 = scmp.ne.s32.totalorder %s179, %s193
    %p195 = scmp.eq.s32.totalorder %s22, 0
    %p196 = por %p194, %p195
    %s197 = ssub.s32 %s16, %s23
    %p198 = scmp.eq.s32.totalorder %s197, 0
    %s200 = sadd.s32 %s199, 1
    %s201 = scalar_select %p198, %s199, %s200
    %p204 = pneg %p198
    %p205 = scmp.eq.s32.totalorder %s16, 1
    %p206 = por %p204, %p205
    %p207 = scmp.ne.s32.totalorder %s199, %s202
    %p208 = scmp.eq.s32.totalorder %s16, 0
    %p209 = por %p207, %p208
    %p210 = scmp.ne.s32.totalorder %s199, %s202
    %p211 = scmp.eq.s32.totalorder %s21, 1
    %p212 = por %p210, %p211
    %p213 = scmp.ne.s32.totalorder %s202, %s203
    %p214 = scmp.eq.s32.totalorder %s21, 0
    %p215 = por %p213, %p214
    %p216 = scmp.ne.s32.totalorder %s202, %s203
    %p217 = scmp.eq.s32.totalorder %s22, 1
    %p218 = por %p216, %p217
    %p220 = scmp.ne.s32.totalorder %s203, %s219
    %p221 = scmp.eq.s32.totalorder %s22, 0
    %p222 = por %p220, %p221
    %s223 = ssub.s32 %s16, %s23
    %p224 = scmp.eq.s32.totalorder %s223, 0
    %s226 = sadd.s32 %s225, 1
    %s227 = scalar_select %p224, %s225, %s226
    %p230 = pneg %p224
    %p231 = scmp.eq.s32.totalorder %s16, 1
    %p232 = por %p230, %p231
    %p233 = scmp.ne.s32.totalorder %s225, %s228
    %p234 = scmp.eq.s32.totalorder %s16, 0
    %p235 = por %p233, %p234
    %p236 = scmp.ne.s32.totalorder %s225, %s228
    %p237 = scmp.eq.s32.totalorder %s21, 1
    %p238 = por %p236, %p237
    %p239 = scmp.ne.s32.totalorder %s228, %s229
    %p240 = scmp.eq.s32.totalorder %s21, 0
    %p241 = por %p239, %p240
    %p242 = scmp.ne.s32.totalorder %s228, %s229
    %p243 = scmp.eq.s32.totalorder %s22, 1
    %p244 = por %p242, %p243
    %p246 = scmp.ne.s32.totalorder %s229, %s245
    %p247 = scmp.eq.s32.totalorder %s22, 0
    %p248 = por %p246, %p247
    %p249 = scmp.le.s32.totalorder 1, %s16
    %p250 = scmp.lt.s32.totalorder %s16, 3
    %p251 = pnand %p249, %p250
    %p252 = pneg %p251
    // Predicated region
    $region9: #{decoder_forward.1} parent=5 // pred_check
      _
    $region10: #{decoder_forward.1} parent=5 // pred_check_branch
      %254 = sbr.rel (%p251) target = $region12
    $region11: #{decoder_forward.1} parent=5 // pred_region
      %s255 = ssub.s32 %s16, 1
      // Predicated region
      $region13: #{decoder_forward.1} parent=11 // pred_check
        %p256 = pneg %p63
      $region14: #{decoder_forward.1} parent=11 // pred_check_branch
        %258 = sbr.rel (%p256) target = $region16
      $region15: #{decoder_forward.1} parent=11 // pred_region
        _
      $region16: #{decoder_forward.1} parent=11 // pred_fallthru
        _
      // Predicated region
      $region17: #{decoder_forward.1} parent=11 // pred_check
        %p259 = pneg %p84
      $region18: #{decoder_forward.1} parent=11 // pred_check_branch
        %261 = sbr.rel (%p259) target = $region20
      $region19: #{decoder_forward.1} parent=11 // pred_region
        _
      $region20: #{decoder_forward.1} parent=11 // pred_fallthru
        _
      // Predicated region
      $region21: #{decoder_forward.1} parent=11 // pred_check
        %p262 = pneg %p105
      $region22: #{decoder_forward.1} parent=11 // pred_check_branch
        %264 = sbr.rel (%p262) target = $region24
      $region23: #{decoder_forward.1} parent=11 // pred_region
        _
      $region24: #{decoder_forward.1} parent=11 // pred_fallthru
        _
      // Predicated region
      $region25: #{decoder_forward.1} parent=11 // pred_check
        %p265 = pneg %p126
      $region26: #{decoder_forward.1} parent=11 // pred_check_branch
        %267 = sbr.rel (%p265) target = $region28
      $region27: #{decoder_forward.1} parent=11 // pred_region
        _
      $region28: #{decoder_forward.1} parent=11 // pred_fallthru
        _
      // Predicated region
      $region29: #{decoder_forward.1} parent=11 // pred_check
        %p268 = pneg %p147
      $region30: #{decoder_forward.1} parent=11 // pred_check_branch
        %270 = sbr.rel (%p268) target = $region32
      $region31: #{decoder_forward.1} parent=11 // pred_region
        _
      $region32: #{decoder_forward.1} parent=11 // pred_fallthru
        _
      // Predicated region
      $region33: #{decoder_forward.1} parent=11 // pred_check
        %p271 = pneg %p168
      $region34: #{decoder_forward.1} parent=11 // pred_check_branch
        %273 = sbr.rel (%p271) target = $region36
      $region35: #{decoder_forward.1} parent=11 // pred_region
        _
      $region36: #{decoder_forward.1} parent=11 // pred_fallthru
        _
      // Predicated region
      $region37: #{decoder_forward.1} parent=11 // pred_check
        %p274 = pneg %p189
      $region38: #{decoder_forward.1} parent=11 // pred_check_branch
        %276 = sbr.rel (%p274) target = $region40
      $region39: #{decoder_forward.1} parent=11 // pred_region
        _
      $region40: #{decoder_forward.1} parent=11 // pred_fallthru
        _
    $region12: #{decoder_forward.1} parent=5 // pred_fallthru
      _
    %p277 = scmp.lt.s32.totalorder %s16, 2
    // Predicated region
    $region41: #{decoder_forward.1} parent=5 // pred_check
      %p278 = pneg %p277
    $region42: #{decoder_forward.1} parent=5 // pred_check_branch
      %280 = sbr.rel (%p278) target = $region44
    $region43: #{decoder_forward.1} parent=5 // pred_region
      // Predicated region
      $region45: #{decoder_forward.1} parent=43 // pred_check
        %p281 = pneg %p36
      $region46: #{decoder_forward.1} parent=43 // pred_check_branch
        %283 = sbr.rel (%p281) target = $region48
      $region47: #{decoder_forward.1} parent=43 // pred_region
        %s284 = smul.u32 8, %s16
        %p285 = scmp.lt.s32.totalorder %s284, 15
        %s286 = scalar_select %p285, %s284, 15
        %s287 = smul.addr %s286, 8
        %s288 = smul.addr %s287, 8
        %s289 = scalar_lea.vmem %s0, %s288
        %s290 = smul.u32 8, %s16
      $region48: #{decoder_forward.1} parent=43 // pred_fallthru
        _
    $region44: #{decoder_forward.1} parent=5 // pred_fallthru
      _
    %p291 = scmp.le.s32.totalorder 1, %s16
    %p292 = scmp.lt.s32.totalorder %s16, 3
    %p293 = pnand %p291, %p292
    %p294 = pneg %p293
    // Predicated region
    $region49: #{decoder_forward.1} parent=5 // pred_check
      _
    $region50: #{decoder_forward.1} parent=5 // pred_check_branch
      %296 = sbr.rel (%p293) target = $region52
    $region51: #{decoder_forward.1} parent=5 // pred_region
      %s297 = ssub.s32 %s16, 1
      %s298 = smul.u32 8, %s21
      %p299 = scmp.lt.s32.totalorder %s298, 15
      %s300 = scalar_select %p299, %s298, 15
      %s301 = smul.addr %s300, 8
      %s302 = smul.addr %s301, 8
      %s303 = scalar_lea.vmem %s0, %s302
      %p304 = pneg %p42
      %p305 = pneg %p39
      %p306 = pneg %p63
      %p307 = pneg %p60
      %p308 = pneg %p84
      %p309 = pneg %p81
      %p310 = pneg %p105
      %p311 = pneg %p102
      %p312 = pneg %p126
      %p313 = pneg %p123
      %p314 = pneg %p147
      %p315 = pneg %p144
      %p316 = pneg %p168
      %p317 = pneg %p165
      %p318 = pneg %p189
      %p319 = pneg %p186
      %p320 = pneg %p215
      %p321 = pneg %p212
      %s322 = smul.u32 8, %s21
      %p323 = scmp.lt.s32.totalorder %s322, 15
      %s324 = scalar_select %p323, %s322, 15
      %s325 = smul.addr %s324, 8
      %s326 = smul.addr %s325, 8
      %s327 = scalar_lea.vmem %s8, %s326
      %p328 = pneg %p241
      %p329 = pneg %p238
      %s330 = smul.u32 8, %s21
      %p331 = scmp.lt.s32.totalorder %s330, 15
      %s332 = scalar_select %p331, %s330, 15
      %s333 = smul.addr %s332, 8
      %s334 = smul.addr %s333, 8
      %s335 = scalar_lea.vmem %s9, %s334
      %s336 = smul.u32 8, %s21
      %p337 = scmp.lt.s32.totalorder %s336, 15
      %s338 = scalar_select %p337, %s336, 15
      %s339 = smul.addr %s338, 8
      %s340 = smul.addr %s339, 8
      %s341 = scalar_lea.vmem %s0, %s340
      %s342 = smul.u32 8, %s21
      %s343 = smul.u32 8, %s21
      %p344 = scmp.lt.s32.totalorder %s343, 15
      %s345 = scalar_select %p344, %s343, 15
      %s346 = smul.addr %s345, 8
      %s347 = smul.addr %s346, 8
      %s348 = scalar_lea.vmem %s8, %s347
      %s349 = smul.u32 8, %s21
      %s350 = smul.u32 8, %s21
      %p351 = scmp.lt.s32.totalorder %s350, 15
      %s352 = scalar_select %p351, %s350, 15
      %s353 = smul.addr %s352, 8
      %s354 = smul.addr %s353, 8
      %s355 = scalar_lea.vmem %s9, %s354
      %s356 = smul.u32 8, %s21
      %v357 = vld [vmem:[%s341] sm:$0xff]
      %v358 = vld [vmem:[%s341 + $0x8] sm:$0xff]
      %v359 = vld [vmem:[%s341 + $0x10] sm:$0xff]
      %v360 = vld [vmem:[%s341 + $0x18] sm:$0xff]
      %v361 = vld [vmem:[%s341 + $0x20] sm:$0xff]
      %v362 = vld [vmem:[%s341 + $0x28] sm:$0xff]
      %v363 = vld [vmem:[%s341 + $0x30] sm:$0xff]
      %v364 = vld [vmem:[%s341 + $0x38] sm:$0xff]
      %v365 = vld [vmem:[%s341 + $0x40] sm:$0xff]
      %v366 = vld [vmem:[%s341 + $0x48] sm:$0xff]
      %v367 = vld [vmem:[%s341 + $0x50] sm:$0xff]
      %v368 = vld [vmem:[%s341 + $0x58] sm:$0xff]
      %v369 = vld [vmem:[%s341 + $0x60] sm:$0xff]
      %v370 = vld [vmem:[%s341 + $0x68] sm:$0xff]
      %v371 = vld [vmem:[%s341 + $0x70] sm:$0xff]
      %v372 = vld [vmem:[%s341 + $0x78] sm:$0xff]
      %v373 = vld [vmem:[%s341 + $0x80] sm:$0xff]
      %v374 = vld [vmem:[%s341 + $0x88] sm:$0xff]
      %v375 = vld [vmem:[%s341 + $0x90] sm:$0xff]
      %v376 = vld [vmem:[%s341 + $0x98] sm:$0xff]
      %v377 = vld [vmem:[%s341 + $0xa0] sm:$0xff]
      %v378 = vld [vmem:[%s341 + $0xa8] sm:$0xff]
      %v379 = vld [vmem:[%s341 + $0xb0] sm:$0xff]
      %v380 = vld [vmem:[%s341 + $0xb8] sm:$0xff]
      %v381 = vld [vmem:[%s341 + $0xc0] sm:$0xff]
      %v382 = vld [vmem:[%s341 + $0xc8] sm:$0xff]
      %v383 = vld [vmem:[%s341 + $0xd0] sm:$0xff]
      %v384 = vld [vmem:[%s341 + $0xd8] sm:$0xff]
      %v385 = vld [vmem:[%s341 + $0xe0] sm:$0xff]
      %v386 = vld [vmem:[%s341 + $0xe8] sm:$0xff]
      %v387 = vld [vmem:[%s341 + $0xf0] sm:$0xff]
      %v388 = vld [vmem:[%s341 + $0xf8] sm:$0xff]
      %v389 = vld [vmem:[%s341 + $0x100] sm:$0xff]
      %v390 = vld [vmem:[%s341 + $0x108] sm:$0xff]
      %v391 = vld [vmem:[%s341 + $0x110] sm:$0xff]
      %v392 = vld [vmem:[%s341 + $0x118] sm:$0xff]
      %v393 = vld [vmem:[%s341 + $0x120] sm:$0xff]
      %v394 = vld [vmem:[%s341 + $0x128] sm:$0xff]
      %v395 = vld [vmem:[%s341 + $0x130] sm:$0xff]
      %v396 = vld [vmem:[%s341 + $0x138] sm:$0xff]
      %v397 = vld [vmem:[%s341 + $0x140] sm:$0xff]
      %v398 = vld [vmem:[%s341 + $0x148] sm:$0xff]
      %v399 = vld [vmem:[%s341 + $0x150] sm:$0xff]
      %v400 = vld [vmem:[%s341 + $0x158] sm:$0xff]
      %v401 = vld [vmem:[%s341 + $0x160] sm:$0xff]
      %v402 = vld [vmem:[%s341 + $0x168] sm:$0xff]
      %v403 = vld [vmem:[%s341 + $0x170] sm:$0xff]
      %v404 = vld [vmem:[%s341 + $0x178] sm:$0xff]
      %v405 = vld [vmem:[%s341 + $0x180] sm:$0xff]
      %v406 = vld [vmem:[%s341 + $0x188] sm:$0xff]
      %v407 = vld [vmem:[%s341 + $0x190] sm:$0xff]
      %v408 = vld [vmem:[%s341 + $0x198] sm:$0xff]
      %v409 = vld [vmem:[%s341 + $0x1a0] sm:$0xff]
      %v410 = vld [vmem:[%s341 + $0x1a8] sm:$0xff]
      %v411 = vld [vmem:[%s341 + $0x1b0] sm:$0xff]
      %v412 = vld [vmem:[%s341 + $0x1b8] sm:$0xff]
      %v413 = vld [vmem:[%s341 + $0x1c0] sm:$0xff]
      %v414 = vld [vmem:[%s341 + $0x1c8] sm:$0xff]
      %v415 = vld [vmem:[%s341 + $0x1d0] sm:$0xff]
      %v416 = vld [vmem:[%s341 + $0x1d8] sm:$0xff]
      %v417 = vld [vmem:[%s341 + $0x1e0] sm:$0xff]
      %v418 = vld [vmem:[%s341 + $0x1e8] sm:$0xff]
      %v419 = vld [vmem:[%s341 + $0x1f0] sm:$0xff]
      %v420 = vld [vmem:[%s341 + $0x1f8] sm:$0xff]
      %v421 = vld [vmem:[%s1] sm:$0xff]
      %v422 = vld [vmem:[%s1 + $0x8] sm:$0xff]
      %v423 = vld [vmem:[%s1 + $0x10] sm:$0xff]
      %v424 = vld [vmem:[%s1 + $0x18] sm:$0xff]
      %v425 = vld [vmem:[%s1 + $0x20] sm:$0xff]
      %v426 = vld [vmem:[%s1 + $0x28] sm:$0xff]
      %v427 = vld [vmem:[%s1 + $0x30] sm:$0xff]
      %v428 = vld [vmem:[%s1 + $0x38] sm:$0xff]
      %v429 = vadd.f32 %v357, %v421
      %v430 = vadd.f32 %v358, %v422
      %v431 = vadd.f32 %v359, %v423
      %v432 = vadd.f32 %v360, %v424
      %v433 = vadd.f32 %v361, %v425
      %v434 = vadd.f32 %v362, %v426
      %v435 = vadd.f32 %v363, %v427
      %v436 = vadd.f32 %v364, %v428
      %v437 = vadd.f32 %v365, %v421
      %v438 = vadd.f32 %v366, %v422
      %v439 = vadd.f32 %v367, %v423
      %v440 = vadd.f32 %v368, %v424
      %v441 = vadd.f32 %v369, %v425
      %v442 = vadd.f32 %v370, %v426
      %v443 = vadd.f32 %v371, %v427
      %v444 = vadd.f32 %v372, %v428
      %v445 = vadd.f32 %v373, %v421
      %v446 = vadd.f32 %v374, %v422
      %v447 = vadd.f32 %v375, %v423
      %v448 = vadd.f32 %v376, %v424
      %v449 = vadd.f32 %v377, %v425
      %v450 = vadd.f32 %v378, %v426
      %v451 = vadd.f32 %v379, %v427
      %v452 = vadd.f32 %v380, %v428
      %v453 = vadd.f32 %v381, %v421
      %v454 = vadd.f32 %v382, %v422
      %v455 = vadd.f32 %v383, %v423
      %v456 = vadd.f32 %v384, %v424
      %v457 = vadd.f32 %v385, %v425
      %v458 = vadd.f32 %v386, %v426
      %v459 = vadd.f32 %v387, %v427
      %v460 = vadd.f32 %v388, %v428
      %v461 = vadd.f32 %v389, %v421
      %v462 = vadd.f32 %v390, %v422
      %v463 = vadd.f32 %v391, %v423
      %v464 = vadd.f32 %v392, %v424
      %v465 = vadd.f32 %v393, %v425
      %v466 = vadd.f32 %v394, %v426
      %v467 = vadd.f32 %v395, %v427
      %v468 = vadd.f32 %v396, %v428
      %v469 = vadd.f32 %v397, %v421
      %v470 = vadd.f32 %v398, %v422
      %v471 = vadd.f32 %v399, %v423
      %v472 = vadd.f32 %v400, %v424
      %v473 = vadd.f32 %v401, %v425
      %v474 = vadd.f32 %v402, %v426
      %v475 = vadd.f32 %v403, %v427
      %v476 = vadd.f32 %v404, %v428
      %v477 = vadd.f32 %v405, %v421
      %v478 = vadd.f32 %v406, %v422
      %v479 = vadd.f32 %v407, %v423
      %v480 = vadd.f32 %v408, %v424
      %v481 = vadd.f32 %v409, %v425
      %v482 = vadd.f32 %v410, %v426
      %v483 = vadd.f32 %v411, %v427
      %v484 = vadd.f32 %v412, %v428
      %v485 = vadd.f32 %v413, %v421
      %v486 = vadd.f32 %v414, %v422
      %v487 = vadd.f32 %v415, %v423
      %v488 = vadd.f32 %v416, %v424
      %v489 = vadd.f32 %v417, %v425
      %v490 = vadd.f32 %v418, %v426
      %v491 = vadd.f32 %v419, %v427
      %v492 = vadd.f32 %v420, %v428
      %v493 = vld [vmem:[%s2] sm:$0xff]
      %v494 = vld [vmem:[%s2 + $0x8] sm:$0xff]
      %v495 = vld [vmem:[%s2 + $0x10] sm:$0xff]
      %v496 = vld [vmem:[%s2 + $0x18] sm:$0xff]
      %v497 = vld [vmem:[%s2 + $0x20] sm:$0xff]
      %v498 = vld [vmem:[%s2 + $0x28] sm:$0xff]
      %v499 = vld [vmem:[%s2 + $0x30] sm:$0xff]
      %v500 = vld [vmem:[%s2 + $0x38] sm:$0xff]
      %vm501 = vcmask 523264
      %v503 = vsel %vm501, %v429, 0
      %v506 = vsel %vm501, %v430, 0
      %v509 = vsel %vm501, %v431, 0
      %v512 = vsel %vm501, %v432, 0
      %v515 = vsel %vm501, %v433, 0
      %v518 = vsel %vm501, %v434, 0
      %v521 = vsel %vm501, %v435, 0
      %v524 = vsel %vm501, %v436, 0
      %v527 = vsel %vm501, %v437, 0
      %v530 = vsel %vm501, %v438, 0
      %v533 = vsel %vm501, %v439, 0
      %v536 = vsel %vm501, %v440, 0
      %v539 = vsel %vm501, %v441, 0
      %v542 = vsel %vm501, %v442, 0
      %v545 = vsel %vm501, %v443, 0
      %v548 = vsel %vm501, %v444, 0
      %v551 = vsel %vm501, %v445, 0
      %v554 = vsel %vm501, %v446, 0
      %v557 = vsel %vm501, %v447, 0
      %v560 = vsel %vm501, %v448, 0
      %v563 = vsel %vm501, %v449, 0
      %v566 = vsel %vm501, %v450, 0
      %v569 = vsel %vm501, %v451, 0
      %v572 = vsel %vm501, %v452, 0
      %v575 = vsel %vm501, %v453, 0
      %v578 = vsel %vm501, %v454, 0
      %v581 = vsel %vm501, %v455, 0
      %v584 = vsel %vm501, %v456, 0
      %v587 = vsel %vm501, %v457, 0
      %v590 = vsel %vm501, %v458, 0
      %v593 = vsel %vm501, %v459, 0
      %v596 = vsel %vm501, %v460, 0
      %v599 = vsel %vm501, %v461, 0
      %v602 = vsel %vm501, %v462, 0
      %v605 = vsel %vm501, %v463, 0
      %v608 = vsel %vm501, %v464, 0
      %v611 = vsel %vm501, %v465, 0
      %v614 = vsel %vm501, %v466, 0
      %v617 = vsel %vm501, %v467, 0
      %v620 = vsel %vm501, %v468, 0
      %v623 = vsel %vm501, %v469, 0
      %v626 = vsel %vm501, %v470, 0
      %v629 = vsel %vm501, %v471, 0
      %v632 = vsel %vm501, %v472, 0
      %v635 = vsel %vm501, %v473, 0
      %v638 = vsel %vm501, %v474, 0
      %v641 = vsel %vm501, %v475, 0
      %v644 = vsel %vm501, %v476, 0
      %v647 = vsel %vm501, %v477, 0
      %v650 = vsel %vm501, %v478, 0
      %v653 = vsel %vm501, %v479, 0
      %v656 = vsel %vm501, %v480, 0
      %v659 = vsel %vm501, %v481, 0
      %v662 = vsel %vm501, %v482, 0
      %v665 = vsel %vm501, %v483, 0
      %v668 = vsel %vm501, %v484, 0
      %v671 = vsel %vm501, %v485, 0
      %v674 = vsel %vm501, %v486, 0
      %v677 = vsel %vm501, %v487, 0
      %v680 = vsel %vm501, %v488, 0
      %v683 = vsel %vm501, %v489, 0
      %v686 = vsel %vm501, %v490, 0
      %v689 = vsel %vm501, %v491, 0
      %v692 = vsel %vm501, %v492, 0
      %694 = vmatprep.subr.mxu0 0.0
      %695 = vmatpush1.msra.mxu0 %v493
      %696 = vmatprep.subr.mxu0 0.0
      %697 = vmatpush1.msra.mxu0 %v494
      %698 = vmatprep.subr.mxu0 0.0
      %699 = vmatpush1.msra.mxu0 %v495
      %700 = vmatprep.subr.mxu0 0.0
      %701 = vmatpush1.msra.mxu0 %v496
      %702 = vmatprep.subr.mxu0 0.0
      %703 = vmatpush1.msra.mxu0 %v497
      %704 = vmatprep.subr.mxu0 0.0
      %705 = vmatpush1.msra.mxu0 %v498
      %706 = vmatprep.subr.mxu0 0.0
      %707 = vmatpush1.msra.mxu0 %v499
      %708 = vmatprep.subr.mxu0 0.0
      %709 = vmatpush1.msra.mxu0 %v500
      %710 = vmatprep.subr.mxu0 0.0
      %711 = vmatpush1.msra.mxu0 0.0
      %712 = vmatprep.subr.mxu0 0.0
      %713 = vmatpush1.msra.mxu0 0.0
      %714 = vmatprep.subr.mxu0 0.0
      %715 = vmatpush1.msra.mxu0 0.0
      %716 = vmatprep.subr.mxu0 0.0
      %717 = vmatpush1.msra.mxu0 0.0
      %718 = vmatprep.subr.mxu0 0.0
      %719 = vmatpush1.msra.mxu0 0.0
      %720 = vmatprep.subr.mxu0 0.0
      %721 = vmatpush1.msra.mxu0 0.0
      %722 = vmatprep.subr.mxu0 0.0
      %723 = vmatpush1.msra.mxu0 0.0
      %724 = vmatprep.subr.mxu0 0.0
      %725 = vmatpush1.msra.mxu0 0.0
      %726 = vmatprep.subr.mxu0 0.0
      %727 = vmatpush1.msra.mxu0 0.0
      %728 = vmatprep.subr.mxu0 0.0
      %729 = vmatpush1.msra.mxu0 0.0
      %730 = vmatprep.subr.mxu0 0.0
      %731 = vmatpush1.msra.mxu0 0.0
      %732 = vmatprep.subr.mxu0 0.0
      %733 = vmatpush1.msra.mxu0 0.0
      %734 = vmatprep.subr.mxu0 0.0
      %735 = vmatpush1.msra.mxu0 0.0
      %736 = vmatprep.subr.mxu0 0.0
      %737 = vmatpush1.msra.mxu0 0.0
      %738 = vmatprep.subr.mxu0 0.0
      %739 = vmatpush1.msra.mxu0 0.0
      %740 = vmatprep.subr.mxu0 0.0
      %741 = vmatpush1.msra.mxu0 0.0
      %742 = vmatprep.subr.mxu0 0.0
      %743 = vmatpush1.msra.mxu0 0.0
      %744 = vmatprep.subr.mxu0 0.0
      %745 = vmatpush1.msra.mxu0 0.0
      %746 = vmatprep.subr.mxu0 0.0
      %747 = vmatpush1.msra.mxu0 0.0
      %748 = vmatprep.subr.mxu0 0.0
      %749 = vmatpush1.msra.mxu0 0.0
      %750 = vmatprep.subr.mxu0 0.0
      %751 = vmatpush1.msra.mxu0 0.0
      %752 = vmatprep.subr.mxu0 0.0
      %753 = vmatpush1.msra.mxu0 0.0
      %754 = vmatprep.subr.mxu0 0.0
      %755 = vmatpush1.msra.mxu0 0.0
      %756 = vmatprep.subr.mxu0 0.0
      %757 = vmatpush1.msra.mxu0 0.0
      %758 = vmatprep.mubr.f32.mxu0 0.0
      %759 = vmatmul.mubr.f32.gmra.mrb[0].mxu0 %v503
      %v760 = vpop.f32.mrb[0].mxu0
      %v761 = vadd.f32 0.0, %v760
      %v762 = vpop.f32.mrb[0].mxu0
      %763 = vmatprep.mubr.f32.mxu0 0.0
      %764 = vmatmul.mubr.f32.gmra.mrb[0].mxu0 %v506
      %v765 = vpop.f32.mrb[0].mxu0
      %v766 = vadd.f32 0.0, %v765
      %v767 = vpop.f32.mrb[0].mxu0
      %768 = vmatprep.mubr.f32.mxu0 0.0
      %769 = vmatmul.mubr.f32.gmra.mrb[0].mxu0 %v509
      %v770 = vpop.f32.mrb[0].mxu0
      %v771 = vadd.f32 0.0, %v770
      %v772 = vpop.f32.mrb[0].mxu0
      %773 = vmatprep.mubr.f32.mxu0 0.0
      %774 = vmatmul.mubr.f32.gmra.mrb[0].mxu0 %v512
      %v775 = vpop.f32.mrb[0].mxu0
      %v776 = vadd.f32 0.0, %v775
      %v777 = vpop.f32.mrb[0].mxu0
      %778 = vmatprep.mubr.f32.mxu0 0.0
      %779 = vmatmul.mubr.f32.gmra.mrb[0].mxu0 %v515
      %v780 = vpop.f32.mrb[0].mxu0
      %v781 = vadd.f32 0.0, %v780
      %v782 = vpop.f32.mrb[0].mxu0
      %783 = vmatprep.mubr.f32.mxu0 0.0
      %784 = vmatmul.mubr.f32.gmra.mrb[0].mxu0 %v518
      %v785 = vpop.f32.mrb[0].mxu0
      %v786 = vadd.f32 0.0, %v785
      %v787 = vpop.f32.mrb[0].mxu0
      %788 = vmatprep.mubr.f32.mxu0 0.0
      %789 = vmatmul.mubr.f32.gmra.mrb[0].mxu0 %v521
      %v790 = vpop.f32.mrb[0].mxu0
      %v791 = vadd.f32 0.0, %v790
      %v792 = vpop.f32.mrb[0].mxu0
      %793 = vmatprep.mubr.f32.mxu0 0.0
      %794 = vmatmul.mubr.f32.gmra.mrb[0].mxu0 %v524
      %v795 = vpop.f32.mrb[0].mxu0
      %v796 = vadd.f32 0.0, %v795
      %v797 = vpop.f32.mrb[0].mxu0
      %798 = vmatprep.mubr.f32.mxu0 0.0
      %799 = vmatmul.mubr.f32.gmra.mrb[0].mxu0 %v527
      %v800 = vpop.f32.mrb[0].mxu0
      %v801 = vadd.f32 0.0, %v800
      %v802 = vpop.f32.mrb[0].mxu0
      %803 = vmatprep.mubr.f32.mxu0 0.0
      %804 = vmatmul.mubr.f32.gmra.mrb[0].mxu0 %v530
      %v805 = vpop.f32.mrb[0].mxu0
      %v806 = vadd.f32 0.0, %v805
      %v807 = vpop.f32.mrb[0].mxu0
      %808 = vmatprep.mubr.f32.mxu0 0.0
      %809 = vmatmul.mubr.f32.gmra.mrb[0].mxu0 %v533
      %v810 = vpop.f32.mrb[0].mxu0
      %v811 = vadd.f32 0.0, %v810
      %v812 = vpop.f32.mrb[0].mxu0
      %813 = vmatprep.mubr.f32.mxu0 0.0
      %814 = vmatmul.mubr.f32.gmra.mrb[0].mxu0 %v536
      %v815 = vpop.f32.mrb[0].mxu0
      %v816 = vadd.f32 0.0, %v815
      %v817 = vpop.f32.mrb[0].mxu0
      %818 = vmatprep.mubr.f32.mxu0 0.0
      %819 = vmatmul.mubr.f32.gmra.mrb[0].mxu0 %v539
      %v820 = vpop.f32.mrb[0].mxu0
      %v821 = vadd.f32 0.0, %v820
      %v822 = vpop.f32.mrb[0].mxu0
      %823 = vmatprep.mubr.f32.mxu0 0.0
      %824 = vmatmul.mubr.f32.gmra.mrb[0].mxu0 %v542
      %v825 = vpop.f32.mrb[0].mxu0
      %v826 = vadd.f32 0.0, %v825
      %v827 = vpop.f32.mrb[0].mxu0
      %828 = vmatprep.mubr.f32.mxu0 0.0
      %829 = vmatmul.mubr.f32.gmra.mrb[0].mxu0 %v545
      %v830 = vpop.f32.mrb[0].mxu0
      %v831 = vadd.f32 0.0, %v830
      %v832 = vpop.f32.mrb[0].mxu0
      %833 = vmatprep.mubr.f32.mxu0 0.0
      %834 = vmatmul.mubr.f32.gmra.mrb[0].mxu0 %v548
      %v835 = vpop.f32.mrb[0].mxu0
      %v836 = vadd.f32 0.0, %v835
      %v837 = vpop.f32.mrb[0].mxu0
      %838 = vmatprep.mubr.f32.mxu0 0.0
      %839 = vmatmul.mubr.f32.gmra.mrb[0].mxu0 %v551
      %v840 = vpop.f32.mrb[0].mxu0
      %v841 = vadd.f32 0.0, %v840
      %v842 = vpop.f32.mrb[0].mxu0
      %843 = vmatprep.mubr.f32.mxu0 0.0
      %844 = vmatmul.mubr.f32.gmra.mrb[0].mxu0 %v554
      %v845 = vpop.f32.mrb[0].mxu0
      %v846 = vadd.f32 0.0, %v845
      %v847 = vpop.f32.mrb[0].mxu0
      %848 = vmatprep.mubr.f32.mxu0 0.0
      %849 = vmatmul.mubr.f32.gmra.mrb[0].mxu0 %v557
      %v850 = vpop.f32.mrb[0].mxu0
      %v851 = vadd.f32 0.0, %v850
      %v852 = vpop.f32.mrb[0].mxu0
      %853 = vmatprep.mubr.f32.mxu0 0.0
      %854 = vmatmul.mubr.f32.gmra.mrb[0].mxu0 %v560
      %v855 = vpop.f32.mrb[0].mxu0
      %v856 = vadd.f32 0.0, %v855
      %v857 = vpop.f32.mrb[0].mxu0
      %858 = vmatprep.mubr.f32.mxu0 0.0
      %859 = vmatmul.mubr.f32.gmra.mrb[0].mxu0 %v563
      %v860 = vpop.f32.mrb[0].mxu0
      %v861 = vadd.f32 0.0, %v860
      %v862 = vpop.f32.mrb[0].mxu0
      %863 = vmatprep.mubr.f32.mxu0 0.0
      %864 = vmatmul.mubr.f32.gmra.mrb[0].mxu0 %v566
      %v865 = vpop.f32.mrb[0].mxu0
      %v866 = vadd.f32 0.0, %v865
      %v867 = vpop.f32.mrb[0].mxu0
      %868 = vmatprep.mubr.f32.mxu0 0.0
      %869 = vmatmul.mubr.f32.gmra.mrb[0].mxu0 %v569
      %v870 = vpop.f32.mrb[0].mxu0
      %v871 = vadd.f32 0.0, %v870
      %v872 = vpop.f32.mrb[0].mxu0
      %873 = vmatprep.mubr.f32.mxu0 0.0
      %874 = vmatmul.mubr.f32.gmra.mrb[0].mxu0 %v572
      %v875 = vpop.f32.mrb[0].mxu0
      %v876 = vadd.f32 0.0, %v875
      %v877 = vpop.f32.mrb[0].mxu0
      %878 = vmatprep.mubr.f32.mxu0 0.0
      %879 = vmatmul.mubr.f32.gmra.mrb[0].mxu0 %v575
      %v880 = vpop.f32.mrb[0].mxu0
      %v881 = vadd.f32 0.0, %v880
      %v882 = vpop.f32.mrb[0].mxu0
      %883 = vmatprep.mubr.f32.mxu0 0.0
      %884 = vmatmul.mubr.f32.gmra.mrb[0].mxu0 %v578
      %v885 = vpop.f32.mrb[0].mxu0
      %v886 = vadd.f32 0.0, %v885
      %v887 = vpop.f32.mrb[0].mxu0
      %888 = vmatprep.mubr.f32.mxu0 0.0
      %889 = vmatmul.mubr.f32.gmra.mrb[0].mxu0 %v581
      %v890 = vpop.f32.mrb[0].mxu0
      %v891 = vadd.f32 0.0, %v890
      %v892 = vpop.f32.mrb[0].mxu0
      %893 = vmatprep.mubr.f32.mxu0 0.0
      %894 = vmatmul.mubr.f32.gmra.mrb[0].mxu0 %v584
      %v895 = vpop.f32.mrb[0].mxu0
      %v896 = vadd.f32 0.0, %v895
      %v897 = vpop.f32.mrb[0].mxu0
      %898 = vmatprep.mubr.f32.mxu0 0.0
      %899 = vmatmul.mubr.f32.gmra.mrb[0].mxu0 %v587
      %v900 = vpop.f32.mrb[0].mxu0
      %v901 = vadd.f32 0.0, %v900
      %v902 = vpop.f32.mrb[0].mxu0
      %903 = vmatprep.mubr.f32.mxu0 0.0
      %904 = vmatmul.mubr.f32.gmra.mrb[0].mxu0 %v590
      %v905 = vpop.f32.mrb[0].mxu0
      %v906 = vadd.f32 0.0, %v905
      %v907 = vpop.f32.mrb[0].mxu0
      %908 = vmatprep.mubr.f32.mxu0 0.0
      %909 = vmatmul.mubr.f32.gmra.mrb[0].mxu0 %v593
      %v910 = vpop.f32.mrb[0].mxu0
      %v911 = vadd.f32 0.0, %v910
      %v912 = vpop.f32.mrb[0].mxu0
      %913 = vmatprep.mubr.f32.mxu0 0.0
      %914 = vmatmul.mubr.f32.gmra.mrb[0].mxu0 %v596
      %v915 = vpop.f32.mrb[0].mxu0
      %v916 = vadd.f32 0.0, %v915
      %v917 = vpop.f32.mrb[0].mxu0
      %918 = vmatprep.mubr.f32.mxu0 0.0
      %919 = vmatmul.mubr.f32.gmra.mrb[0].mxu0 %v599
      %v920 = vpop.f32.mrb[0].mxu0
      %v921 = vadd.f32 0.0, %v920
      %v922 = vpop.f32.mrb[0].mxu0
      %923 = vmatprep.mubr.f32.mxu0 0.0
      %924 = vmatmul.mubr.f32.gmra.mrb[0].mxu0 %v602
      %v925 = vpop.f32.mrb[0].mxu0
      %v926 = vadd.f32 0.0, %v925
      %v927 = vpop.f32.mrb[0].mxu0
      %928 = vmatprep.mubr.f32.mxu0 0.0
      %929 = vmatmul.mubr.f32.gmra.mrb[0].mxu0 %v605
      %v930 = vpop.f32.mrb[0].mxu0
      %v931 = vadd.f32 0.0, %v930
      %v932 = vpop.f32.mrb[0].mxu0
      %933 = vmatprep.mubr.f32.mxu0 0.0
      %934 = vmatmul.mubr.f32.gmra.mrb[0].mxu0 %v608
      %v935 = vpop.f32.mrb[0].mxu0
      %v936 = vadd.f32 0.0, %v935
      %v937 = vpop.f32.mrb[0].mxu0
      %938 = vmatprep.mubr.f32.mxu0 0.0
      %939 = vmatmul.mubr.f32.gmra.mrb[0].mxu0 %v611
      %v940 = vpop.f32.mrb[0].mxu0
      %v941 = vadd.f32 0.0, %v940
      %v942 = vpop.f32.mrb[0].mxu0
      %943 = vmatprep.mubr.f32.mxu0 0.0
      %944 = vmatmul.mubr.f32.gmra.mrb[0].mxu0 %v614
      %v945 = vpop.f32.mrb[0].mxu0
      %v946 = vadd.f32 0.0, %v945
      %v947 = vpop.f32.mrb[0].mxu0
      %948 = vmatprep.mubr.f32.mxu0 0.0
      %949 = vmatmul.mubr.f32.gmra.mrb[0].mxu0 %v617
      %v950 = vpop.f32.mrb[0].mxu0
      %v951 = vadd.f32 0.0, %v950
      %v952 = vpop.f32.mrb[0].mxu0
      %953 = vmatprep.mubr.f32.mxu0 0.0
      %954 = vmatmul.mubr.f32.gmra.mrb[0].mxu0 %v620
      %v955 = vpop.f32.mrb[0].mxu0
      %v956 = vadd.f32 0.0, %v955
      %v957 = vpop.f32.mrb[0].mxu0
      %958 = vmatprep.mubr.f32.mxu0 0.0
      %959 = vmatmul.mubr.f32.gmra.mrb[0].mxu0 %v623
      %v960 = vpop.f32.mrb[0].mxu0
      %v961 = vadd.f32 0.0, %v960
      %v962 = vpop.f32.mrb[0].mxu0
      %963 = vmatprep.mubr.f32.mxu0 0.0
      %964 = vmatmul.mubr.f32.gmra.mrb[0].mxu0 %v626
      %v965 = vpop.f32.mrb[0].mxu0
      %v966 = vadd.f32 0.0, %v965
      %v967 = vpop.f32.mrb[0].mxu0
      %968 = vmatprep.mubr.f32.mxu0 0.0
      %969 = vmatmul.mubr.f32.gmra.mrb[0].mxu0 %v629
      %v970 = vpop.f32.mrb[0].mxu0
      %v971 = vadd.f32 0.0, %v970
      %v972 = vpop.f32.mrb[0].mxu0
      %973 = vmatprep.mubr.f32.mxu0 0.0
      %974 = vmatmul.mubr.f32.gmra.mrb[0].mxu0 %v632
      %v975 = vpop.f32.mrb[0].mxu0
      %v976 = vadd.f32 0.0, %v975
      %v977 = vpop.f32.mrb[0].mxu0
      %978 = vmatprep.mubr.f32.mxu0 0.0
      %979 = vmatmul.mubr.f32.gmra.mrb[0].mxu0 %v635
      %v980 = vpop.f32.mrb[0].mxu0
      %v981 = vadd.f32 0.0, %v980
      %v982 = vpop.f32.mrb[0].mxu0
      %983 = vmatprep.mubr.f32.mxu0 0.0
      %984 = vmatmul.mubr.f32.gmra.mrb[0].mxu0 %v638
      %v985 = vpop.f32.mrb[0].mxu0
      %v986 = vadd.f32 0.0, %v985
      %v987 = vpop.f32.mrb[0].mxu0
      %988 = vmatprep.mubr.f32.mxu0 0.0
      %989 = vmatmul.mubr.f32.gmra.mrb[0].mxu0 %v641
      %v990 = vpop.f32.mrb[0].mxu0
      %v991 = vadd.f32 0.0, %v990
      %v992 = vpop.f32.mrb[0].mxu0
      %993 = vmatprep.mubr.f32.mxu0 0.0
      %994 = vmatmul.mubr.f32.gmra.mrb[0].mxu0 %v644
      %v995 = vpop.f32.mrb[0].mxu0
      %v996 = vadd.f32 0.0, %v995
      %v997 = vpop.f32.mrb[0].mxu0
      %998 = vmatprep.mubr.f32.mxu0 0.0
      %999 = vmatmul.mubr.f32.gmra.mrb[0].mxu0 %v647
      %v1000 = vpop.f32.mrb[0].mxu0
      %v1001 = vadd.f32 0.0, %v1000
      %v1002 = vpop.f32.mrb[0].mxu0
      %1003 = vmatprep.mubr.f32.mxu0 0.0
      %1004 = vmatmul.mubr.f32.gmra.mrb[0].mxu0 %v650
      %v1005 = vpop.f32.mrb[0].mxu0
      %v1006 = vadd.f32 0.0, %v1005
      %v1007 = vpop.f32.mrb[0].mxu0
      %1008 = vmatprep.mubr.f32.mxu0 0.0
      %1009 = vmatmul.mubr.f32.gmra.mrb[0].mxu0 %v653
      %v1010 = vpop.f32.mrb[0].mxu0
      %v1011 = vadd.f32 0.0, %v1010
      %v1012 = vpop.f32.mrb[0].mxu0
      %1013 = vmatprep.mubr.f32.mxu0 0.0
      %1014 = vmatmul.mubr.f32.gmra.mrb[0].mxu0 %v656
      %v1015 = vpop.f32.mrb[0].mxu0
      %v1016 = vadd.f32 0.0, %v1015
      %v1017 = vpop.f32.mrb[0].mxu0
      %1018 = vmatprep.mubr.f32.mxu0 0.0
      %1019 = vmatmul.mubr.f32.gmra.mrb[0].mxu0 %v659
      %v1020 = vpop.f32.mrb[0].mxu0
      %v1021 = vadd.f32 0.0, %v1020
      %v1022 = vpop.f32.mrb[0].mxu0
      %1023 = vmatprep.mubr.f32.mxu0 0.0
      %1024 = vmatmul.mubr.f32.gmra.mrb[0].mxu0 %v662
      %v1025 = vpop.f32.mrb[0].mxu0
      %v1026 = vadd.f32 0.0, %v1025
      %v1027 = vpop.f32.mrb[0].mxu0
      %1028 = vmatprep.mubr.f32.mxu0 0.0
      %1029 = vmatmul.mubr.f32.gmra.mrb[0].mxu0 %v665
      %v1030 = vpop.f32.mrb[0].mxu0
      %v1031 = vadd.f32 0.0, %v1030
      %v1032 = vpop.f32.mrb[0].mxu0
      %1033 = vmatprep.mubr.f32.mxu0 0.0
      %1034 = vmatmul.mubr.f32.gmra.mrb[0].mxu0 %v668
      %v1035 = vpop.f32.mrb[0].mxu0
      %v1036 = vadd.f32 0.0, %v1035
      %v1037 = vpop.f32.mrb[0].mxu0
      %1038 = vmatprep.mubr.f32.mxu0 0.0
      %1039 = vmatmul.mubr.f32.gmra.mrb[0].mxu0 %v671
      %v1040 = vpop.f32.mrb[0].mxu0
      %v1041 = vadd.f32 0.0, %v1040
      %v1042 = vpop.f32.mrb[0].mxu0
      %1043 = vmatprep.mubr.f32.mxu0 0.0
      %1044 = vmatmul.mubr.f32.gmra.mrb[0].mxu0 %v674
      %v1045 = vpop.f32.mrb[0].mxu0
      %v1046 = vadd.f32 0.0, %v1045
      %v1047 = vpop.f32.mrb[0].mxu0
      %1048 = vmatprep.mubr.f32.mxu0 0.0
      %1049 = vmatmul.mubr.f32.gmra.mrb[0].mxu0 %v677
      %v1050 = vpop.f32.mrb[0].mxu0
      %v1051 = vadd.f32 0.0, %v1050
      %v1052 = vpop.f32.mrb[0].mxu0
      %1053 = vmatprep.mubr.f32.mxu0 0.0
      %1054 = vmatmul.mubr.f32.gmra.mrb[0].mxu0 %v680
      %v1055 = vpop.f32.mrb[0].mxu0
      %v1056 = vadd.f32 0.0, %v1055
      %v1057 = vpop.f32.mrb[0].mxu0
      %1058 = vmatprep.mubr.f32.mxu0 0.0
      %1059 = vmatmul.mubr.f32.gmra.mrb[0].mxu0 %v683
      %v1060 = vpop.f32.mrb[0].mxu0
      %v1061 = vadd.f32 0.0, %v1060
      %v1062 = vpop.f32.mrb[0].mxu0
      %1063 = vmatprep.mubr.f32.mxu0 0.0
      %1064 = vmatmul.mubr.f32.gmra.mrb[0].mxu0 %v686
      %v1065 = vpop.f32.mrb[0].mxu0
      %v1066 = vadd.f32 0.0, %v1065
      %v1067 = vpop.f32.mrb[0].mxu0
      %1068 = vmatprep.mubr.f32.mxu0 0.0
      %1069 = vmatmul.mubr.f32.gmra.mrb[0].mxu0 %v689
      %v1070 = vpop.f32.mrb[0].mxu0
      %v1071 = vadd.f32 0.0, %v1070
      %v1072 = vpop.f32.mrb[0].mxu0
      %1073 = vmatprep.mubr.f32.mxu0 0.0
      %1074 = vmatmul.mubr.f32.gmra.mrb[0].mxu0 %v692
      %v1075 = vpop.f32.mrb[0].mxu0
      %v1076 = vadd.f32 0.0, %v1075
      %v1077 = vpop.f32.mrb[0].mxu0
      %1078 = vdwg.mxu0
      %v1079 = vld [vmem:[%s3] sm:$0xff]
      %v1080 = vld [vmem:[%s3 + $0x8] sm:$0xff]
      %v1081 = vld [vmem:[%s3 + $0x10] sm:$0xff]
      %v1082 = vld [vmem:[%s3 + $0x18] sm:$0xff]
      %v1083 = vld [vmem:[%s3 + $0x20] sm:$0xff]
      %v1084 = vld [vmem:[%s3 + $0x28] sm:$0xff]
      %v1085 = vld [vmem:[%s3 + $0x30] sm:$0xff]
      %v1086 = vld [vmem:[%s3 + $0x38] sm:$0xff]
      %1087 = vmatprep.subr.mxu0 0.0
      %1088 = vmatpush1.msra.mxu0 %v1079
      %1089 = vmatprep.subr.mxu0 0.0
      %1090 = vmatpush1.msra.mxu0 %v1080
      %1091 = vmatprep.subr.mxu0 0.0
      %1092 = vmatpush1.msra.mxu0 %v1081
      %1093 = vmatprep.subr.mxu0 0.0
      %1094 = vmatpush1.msra.mxu0 %v1082
      %1095 = vmatprep.subr.mxu0 0.0
      %1096 = vmatpush1.msra.mxu0 %v1083
      %1097 = vmatprep.subr.mxu0 0.0
      %1098 = vmatpush1.msra.mxu0 %v1084
      %1099 = vmatprep.subr.mxu0 0.0
      %1100 = vmatpush1.msra.mxu0 %v1085
      %1101 = vmatprep.subr.mxu0 0.0
      %1102 = vmatpush1.msra.mxu0 %v1086
      %1103 = vmatprep.subr.mxu0 0.0
      %1104 = vmatpush1.msra.mxu0 0.0
      %1105 = vmatprep.subr.mxu0 0.0
      %1106 = vmatpush1.msra.mxu0 0.0
      %1107 = vmatprep.subr.mxu0 0.0
      %1108 = vmatpush1.msra.mxu0 0.0
      %1109 = vmatprep.subr.mxu0 0.0
      %1110 = vmatpush1.msra.mxu0 0.0
      %1111 = vmatprep.subr.mxu0 0.0
      %1112 = vmatpush1.msra.mxu0 0.0
      %1113 = vmatprep.subr.mxu0 0.0
      %1114 = vmatpush1.msra.mxu0 0.0
      %1115 = vmatprep.subr.mxu0 0.0
      %1116 = vmatpush1.msra.mxu0 0.0
      %1117 = vmatprep.subr.mxu0 0.0
      %1118 = vmatpush1.msra.mxu0 0.0
      %1119 = vmatprep.subr.mxu0 0.0
      %1120 = vmatpush1.msra.mxu0 0.0
      %1121 = vmatprep.subr.mxu0 0.0
      %1122 = vmatpush1.msra.mxu0 0.0
      %1123 = vmatprep.subr.mxu0 0.0
      %1124 = vmatpush1.msra.mxu0 0.0
      %1125 = vmatprep.subr.mxu0 0.0
      %1126 = vmatpush1.msra.mxu0 0.0
      %1127 = vmatprep.subr.mxu0 0.0
      %1128 = vmatpush1.msra.mxu0 0.0
      %1129 = vmatprep.subr.mxu0 0.0
      %1130 = vmatpush1.msra.mxu0 0.0
      %1131 = vmatprep.subr.mxu0 0.0
      %1132 = vmatpush1.msra.mxu0 0.0
      %1133 = vmatprep.subr.mxu0 0.0
      %1134 = vmatpush1.msra.mxu0 0.0
      %1135 = vmatprep.subr.mxu0 0.0
      %1136 = vmatpush1.msra.mxu0 0.0
      %1137 = vmatprep.subr.mxu0 0.0
      %1138 = vmatpush1.msra.mxu0 0.0
      %1139 = vmatprep.subr.mxu0 0.0
      %1140 = vmatpush1.msra.mxu0 0.0
      %1141 = vmatprep.subr.mxu0 0.0
      %1142 = vmatpush1.msra.mxu0 0.0
      %1143 = vmatprep.subr.mxu0 0.0
      %1144 = vmatpush1.msra.mxu0 0.0
      %1145 = vmatprep.subr.mxu0 0.0
      %1146 = vmatpush1.msra.mxu0 0.0
      %1147 = vmatprep.subr.mxu0 0.0
      %1148 = vmatpush1.msra.mxu0 0.0
      %1149 = vmatprep.subr.mxu0 0.0
      %1150 = vmatpush1.msra.mxu0 0.0
      %1151 = vmatprep.mubr.f32.mxu0 0.0
      %1152 = vmatmul.mubr.f32.gmra.mrb[0].mxu0 %v503
      %v1153 = vpop.f32.mrb[0].mxu0
      %v1154 = vadd.f32 0.0, %v1153
      %v1155 = vpop.f32.mrb[0].mxu0
      %1156 = vmatprep.mubr.f32.mxu0 0.0
      %1157 = vmatmul.mubr.f32.gmra.mrb[0].mxu0 %v506
      %v1158 = vpop.f32.mrb[0].mxu0
      %v1159 = vadd.f32 0.0, %v1158
      %v1160 = vpop.f32.mrb[0].mxu0
      %1161 = vmatprep.mubr.f32.mxu0 0.0
      %1162 = vmatmul.mubr.f32.gmra.mrb[0].mxu0 %v509
      %v1163 = vpop.f32.mrb[0].mxu0
      %v1164 = vadd.f32 0.0, %v1163
      %v1165 = vpop.f32.mrb[0].mxu0
      %1166 = vmatprep.mubr.f32.mxu0 0.0
      %1167 = vmatmul.mubr.f32.gmra.mrb[0].mxu0 %v512
      %v1168 = vpop.f32.mrb[0].mxu0
      %v1169 = vadd.f32 0.0, %v1168
      %v1170 = vpop.f32.mrb[0].mxu0
      %1171 = vmatprep.mubr.f32.mxu0 0.0
      %1172 = vmatmul.mubr.f32.gmra.mrb[0].mxu0 %v515
      %v1173 = vpop.f32.mrb[0].mxu0
      %v1174 = vadd.f32 0.0, %v1173
      %v1175 = vpop.f32.mrb[0].mxu0
      %1176 = vmatprep.mubr.f32.mxu0 0.0
      %1177 = vmatmul.mubr.f32.gmra.mrb[0].mxu0 %v518
      %v1178 = vpop.f32.mrb[0].mxu0
      %v1179 = vadd.f32 0.0, %v1178
      %v1180 = vpop.f32.mrb[0].mxu0
      %1181 = vmatprep.mubr.f32.mxu0 0.0
      %1182 = vmatmul.mubr.f32.gmra.mrb[0].mxu0 %v521
      %v1183 = vpop.f32.mrb[0].mxu0
      %v1184 = vadd.f32 0.0, %v1183
      %v1185 = vpop.f32.mrb[0].mxu0
      %1186 = vmatprep.mubr.f32.mxu0 0.0
      %1187 = vmatmul.mubr.f32.gmra.mrb[0].mxu0 %v524
      %v1188 = vpop.f32.mrb[0].mxu0
      %v1189 = vadd.f32 0.0, %v1188
      %v1190 = vpop.f32.mrb[0].mxu0
      %1191 = vmatprep.mubr.f32.mxu0 0.0
      %1192 = vmatmul.mubr.f32.gmra.mrb[0].mxu0 %v527
      %v1193 = vpop.f32.mrb[0].mxu0
      %v1194 = vadd.f32 0.0, %v1193
      %v1195 = vpop.f32.mrb[0].mxu0
      %1196 = vmatprep.mubr.f32.mxu0 0.0
      %1197 = vmatmul.mubr.f32.gmra.mrb[0].mxu0 %v530
      %v1198 = vpop.f32.mrb[0].mxu0
      %v1199 = vadd.f32 0.0, %v1198
      %v1200 = vpop.f32.mrb[0].mxu0
      %1201 = vmatprep.mubr.f32.mxu0 0.0
      %1202 = vmatmul.mubr.f32.gmra.mrb[0].mxu0 %v533
      %v1203 = vpop.f32.mrb[0].mxu0
      %v1204 = vadd.f32 0.0, %v1203
      %v1205 = vpop.f32.mrb[0].mxu0
      %1206 = vmatprep.mubr.f32.mxu0 0.0
      %1207 = vmatmul.mubr.f32.gmra.mrb[0].mxu0 %v536
      %v1208 = vpop.f32.mrb[0].mxu0
      %v1209 = vadd.f32 0.0, %v1208
      %v1210 = vpop.f32.mrb[0].mxu0
      %1211 = vmatprep.mubr.f32.mxu0 0.0
      %1212 = vmatmul.mubr.f32.gmra.mrb[0].mxu0 %v539
      %v1213 = vpop.f32.mrb[0].mxu0
      %v1214 = vadd.f32 0.0, %v1213
      %v1215 = vpop.f32.mrb[0].mxu0
      %1216 = vmatprep.mubr.f32.mxu0 0.0
      %1217 = vmatmul.mubr.f32.gmra.mrb[0].mxu0 %v542
      %v1218 = vpop.f32.mrb[0].mxu0
      %v1219 = vadd.f32 0.0, %v1218
      %v1220 = vpop.f32.mrb[0].mxu0
      %1221 = vmatprep.mubr.f32.mxu0 0.0
      %1222 = vmatmul.mubr.f32.gmra.mrb[0].mxu0 %v545
      %v1223 = vpop.f32.mrb[0].mxu0
      %v1224 = vadd.f32 0.0, %v1223
      %v1225 = vpop.f32.mrb[0].mxu0
      %1226 = vmatprep.mubr.f32.mxu0 0.0
      %1227 = vmatmul.mubr.f32.gmra.mrb[0].mxu0 %v548
      %v1228 = vpop.f32.mrb[0].mxu0
      %v1229 = vadd.f32 0.0, %v1228
      %v1230 = vpop.f32.mrb[0].mxu0
      %1231 = vmatprep.mubr.f32.mxu0 0.0
      %1232 = vmatmul.mubr.f32.gmra.mrb[0].mxu0 %v551
      %v1233 = vpop.f32.mrb[0].mxu0
      %v1234 = vadd.f32 0.0, %v1233
      %v1235 = vpop.f32.mrb[0].mxu0
      %1236 = vmatprep.mubr.f32.mxu0 0.0
      %1237 = vmatmul.mubr.f32.gmra.mrb[0].mxu0 %v554
      %v1238 = vpop.f32.mrb[0].mxu0
      %v1239 = vadd.f32 0.0, %v1238
      %v1240 = vpop.f32.mrb[0].mxu0
      %1241 = vmatprep.mubr.f32.mxu0 0.0
      %1242 = vmatmul.mubr.f32.gmra.mrb[0].mxu0 %v557
      %v1243 = vpop.f32.mrb[0].mxu0
      %v1244 = vadd.f32 0.0, %v1243
      %v1245 = vpop.f32.mrb[0].mxu0
      %1246 = vmatprep.mubr.f32.mxu0 0.0
      %1247 = vmatmul.mubr.f32.gmra.mrb[0].mxu0 %v560
      %v1248 = vpop.f32.mrb[0].mxu0
      %v1249 = vadd.f32 0.0, %v1248
      %v1250 = vpop.f32.mrb[0].mxu0
      %1251 = vmatprep.mubr.f32.mxu0 0.0
      %1252 = vmatmul.mubr.f32.gmra.mrb[0].mxu0 %v563
      %v1253 = vpop.f32.mrb[0].mxu0
      %v1254 = vadd.f32 0.0, %v1253
      %v1255 = vpop.f32.mrb[0].mxu0
      %1256 = vmatprep.mubr.f32.mxu0 0.0
      %1257 = vmatmul.mubr.f32.gmra.mrb[0].mxu0 %v566
      %v1258 = vpop.f32.mrb[0].mxu0
      %v1259 = vadd.f32 0.0, %v1258
      %v1260 = vpop.f32.mrb[0].mxu0
      %1261 = vmatprep.mubr.f32.mxu0 0.0
      %1262 = vmatmul.mubr.f32.gmra.mrb[0].mxu0 %v569
      %v1263 = vpop.f32.mrb[0].mxu0
      %v1264 = vadd.f32 0.0, %v1263
      %v1265 = vpop.f32.mrb[0].mxu0
      %1266 = vmatprep.mubr.f32.mxu0 0.0
      %1267 = vmatmul.mubr.f32.gmra.mrb[0].mxu0 %v572
      %v1268 = vpop.f32.mrb[0].mxu0
      %v1269 = vadd.f32 0.0, %v1268
      %v1270 = vpop.f32.mrb[0].mxu0
      %1271 = vmatprep.mubr.f32.mxu0 0.0
      %1272 = vmatmul.mubr.f32.gmra.mrb[0].mxu0 %v575
      %v1273 = vpop.f32.mrb[0].mxu0
      %v1274 = vadd.f32 0.0, %v1273
      %v1275 = vpop.f32.mrb[0].mxu0
      %1276 = vmatprep.mubr.f32.mxu0 0.0
      %1277 = vmatmul.mubr.f32.gmra.mrb[0].mxu0 %v578
      %v1278 = vpop.f32.mrb[0].mxu0
      %v1279 = vadd.f32 0.0, %v1278
      %v1280 = vpop.f32.mrb[0].mxu0
      %1281 = vmatprep.mubr.f32.mxu0 0.0
      %1282 = vmatmul.mubr.f32.gmra.mrb[0].mxu0 %v581
      %v1283 = vpop.f32.mrb[0].mxu0
      %v1284 = vadd.f32 0.0, %v1283
      %v1285 = vpop.f32.mrb[0].mxu0
      %1286 = vmatprep.mubr.f32.mxu0 0.0
      %1287 = vmatmul.mubr.f32.gmra.mrb[0].mxu0 %v584
      %v1288 = vpop.f32.mrb[0].mxu0
      %v1289 = vadd.f32 0.0, %v1288
      %v1290 = vpop.f32.mrb[0].mxu0
      %1291 = vmatprep.mubr.f32.mxu0 0.0
      %1292 = vmatmul.mubr.f32.gmra.mrb[0].mxu0 %v587
      %v1293 = vpop.f32.mrb[0].mxu0
      %v1294 = vadd.f32 0.0, %v1293
      %v1295 = vpop.f32.mrb[0].mxu0
      %1296 = vmatprep.mubr.f32.mxu0 0.0
      %1297 = vmatmul.mubr.f32.gmra.mrb[0].mxu0 %v590
      %v1298 = vpop.f32.mrb[0].mxu0
      %v1299 = vadd.f32 0.0, %v1298
      %v1300 = vpop.f32.mrb[0].mxu0
      %1301 = vmatprep.mubr.f32.mxu0 0.0
      %1302 = vmatmul.mubr.f32.gmra.mrb[0].mxu0 %v593
      %v1303 = vpop.f32.mrb[0].mxu0
      %v1304 = vadd.f32 0.0, %v1303
      %v1305 = vpop.f32.mrb[0].mxu0
      %1306 = vmatprep.mubr.f32.mxu0 0.0
      %1307 = vmatmul.mubr.f32.gmra.mrb[0].mxu0 %v596
      %v1308 = vpop.f32.mrb[0].mxu0
      %v1309 = vadd.f32 0.0, %v1308
      %v1310 = vpop.f32.mrb[0].mxu0
      %1311 = vmatprep.mubr.f32.mxu0 0.0
      %1312 = vmatmul.mubr.f32.gmra.mrb[0].mxu0 %v599
      %v1313 = vpop.f32.mrb[0].mxu0
      %v1314 = vadd.f32 0.0, %v1313
      %v1315 = vpop.f32.mrb[0].mxu0
      %1316 = vmatprep.mubr.f32.mxu0 0.0
      %1317 = vmatmul.mubr.f32.gmra.mrb[0].mxu0 %v602
      %v1318 = vpop.f32.mrb[0].mxu0
      %v1319 = vadd.f32 0.0, %v1318
      %v1320 = vpop.f32.mrb[0].mxu0
      %1321 = vmatprep.mubr.f32.mxu0 0.0
      %1322 = vmatmul.mubr.f32.gmra.mrb[0].mxu0 %v605
      %v1323 = vpop.f32.mrb[0].mxu0
      %v1324 = vadd.f32 0.0, %v1323
      %v1325 = vpop.f32.mrb[0].mxu0
      %1326 = vmatprep.mubr.f32.mxu0 0.0
      %1327 = vmatmul.mubr.f32.gmra.mrb[0].mxu0 %v608
      %v1328 = vpop.f32.mrb[0].mxu0
      %v1329 = vadd.f32 0.0, %v1328
      %v1330 = vpop.f32.mrb[0].mxu0
      %1331 = vmatprep.mubr.f32.mxu0 0.0
      %1332 = vmatmul.mubr.f32.gmra.mrb[0].mxu0 %v611
      %v1333 = vpop.f32.mrb[0].mxu0
      %v1334 = vadd.f32 0.0, %v1333
      %v1335 = vpop.f32.mrb[0].mxu0
      %1336 = vmatprep.mubr.f32.mxu0 0.0
      %1337 = vmatmul.mubr.f32.gmra.mrb[0].mxu0 %v614
      %v1338 = vpop.f32.mrb[0].mxu0
      %v1339 = vadd.f32 0.0, %v1338
      %v1340 = vpop.f32.mrb[0].mxu0
      %1341 = vmatprep.mubr.f32.mxu0 0.0
      %1342 = vmatmul.mubr.f32.gmra.mrb[0].mxu0 %v617
      %v1343 = vpop.f32.mrb[0].mxu0
      %v1344 = vadd.f32 0.0, %v1343
      %v1345 = vpop.f32.mrb[0].mxu0
      %1346 = vmatprep.mubr.f32.mxu0 0.0
      %1347 = vmatmul.mubr.f32.gmra.mrb[0].mxu0 %v620
      %v1348 = vpop.f32.mrb[0].mxu0
      %v1349 = vadd.f32 0.0, %v1348
      %v1350 = vpop.f32.mrb[0].mxu0
      %1351 = vmatprep.mubr.f32.mxu0 0.0
      %1352 = vmatmul.mubr.f32.gmra.mrb[0].mxu0 %v623
      %v1353 = vpop.f32.mrb[0].mxu0
      %v1354 = vadd.f32 0.0, %v1353
      %v1355 = vpop.f32.mrb[0].mxu0
      %1356 = vmatprep.mubr.f32.mxu0 0.0
      %1357 = vmatmul.mubr.f32.gmra.mrb[0].mxu0 %v626
      %v1358 = vpop.f32.mrb[0].mxu0
      %v1359 = vadd.f32 0.0, %v1358
      %v1360 = vpop.f32.mrb[0].mxu0
      %1361 = vmatprep.mubr.f32.mxu0 0.0
      %1362 = vmatmul.mubr.f32.gmra.mrb[0].mxu0 %v629
      %v1363 = vpop.f32.mrb[0].mxu0
      %v1364 = vadd.f32 0.0, %v1363
      %v1365 = vpop.f32.mrb[0].mxu0
      %1366 = vmatprep.mubr.f32.mxu0 0.0
      %1367 = vmatmul.mubr.f32.gmra.mrb[0].mxu0 %v632
      %v1368 = vpop.f32.mrb[0].mxu0
      %v1369 = vadd.f32 0.0, %v1368
      %v1370 = vpop.f32.mrb[0].mxu0
      %1371 = vmatprep.mubr.f32.mxu0 0.0
      %1372 = vmatmul.mubr.f32.gmra.mrb[0].mxu0 %v635
      %v1373 = vpop.f32.mrb[0].mxu0
      %v1374 = vadd.f32 0.0, %v1373
      %v1375 = vpop.f32.mrb[0].mxu0
      %1376 = vmatprep.mubr.f32.mxu0 0.0
      %1377 = vmatmul.mubr.f32.gmra.mrb[0].mxu0 %v638
      %v1378 = vpop.f32.mrb[0].mxu0
      %v1379 = vadd.f32 0.0, %v1378
      %v1380 = vpop.f32.mrb[0].mxu0
      %1381 = vmatprep.mubr.f32.mxu0 0.0
      %1382 = vmatmul.mubr.f32.gmra.mrb[0].mxu0 %v641
      %v1383 = vpop.f32.mrb[0].mxu0
      %v1384 = vadd.f32 0.0, %v1383
      %v1385 = vpop.f32.mrb[0].mxu0
      %1386 = vmatprep.mubr.f32.mxu0 0.0
      %1387 = vmatmul.mubr.f32.gmra.mrb[0].mxu0 %v644
      %v1388 = vpop.f32.mrb[0].mxu0
      %v1389 = vadd.f32 0.0, %v1388
      %v1390 = vpop.f32.mrb[0].mxu0
      %1391 = vmatprep.mubr.f32.mxu0 0.0
      %1392 = vmatmul.mubr.f32.gmra.mrb[0].mxu0 %v647
      %v1393 = vpop.f32.mrb[0].mxu0
      %v1394 = vadd.f32 0.0, %v1393
      %v1395 = vpop.f32.mrb[0].mxu0
      %1396 = vmatprep.mubr.f32.mxu0 0.0
      %1397 = vmatmul.mubr.f32.gmra.mrb[0].mxu0 %v650
      %v1398 = vpop.f32.mrb[0].mxu0
      %v1399 = vadd.f32 0.0, %v1398
      %v1400 = vpop.f32.mrb[0].mxu0
      %1401 = vmatprep.mubr.f32.mxu0 0.0
      %1402 = vmatmul.mubr.f32.gmra.mrb[0].mxu0 %v653
      %v1403 = vpop.f32.mrb[0].mxu0
      %v1404 = vadd.f32 0.0, %v1403
      %v1405 = vpop.f32.mrb[0].mxu0
      %1406 = vmatprep.mubr.f32.mxu0 0.0
      %1407 = vmatmul.mubr.f32.gmra.mrb[0].mxu0 %v656
      %v1408 = vpop.f32.mrb[0].mxu0
      %v1409 = vadd.f32 0.0, %v1408
      %v1410 = vpop.f32.mrb[0].mxu0
      %1411 = vmatprep.mubr.f32.mxu0 0.0
      %1412 = vmatmul.mubr.f32.gmra.mrb[0].mxu0 %v659
      %v1413 = vpop.f32.mrb[0].mxu0
      %v1414 = vadd.f32 0.0, %v1413
      %v1415 = vpop.f32.mrb[0].mxu0
      %1416 = vmatprep.mubr.f32.mxu0 0.0
      %1417 = vmatmul.mubr.f32.gmra.mrb[0].mxu0 %v662
      %v1418 = vpop.f32.mrb[0].mxu0
      %v1419 = vadd.f32 0.0, %v1418
      %v1420 = vpop.f32.mrb[0].mxu0
      %1421 = vmatprep.mubr.f32.mxu0 0.0
      %1422 = vmatmul.mubr.f32.gmra.mrb[0].mxu0 %v665
      %v1423 = vpop.f32.mrb[0].mxu0
      %v1424 = vadd.f32 0.0, %v1423
      %v1425 = vpop.f32.mrb[0].mxu0
      %1426 = vmatprep.mubr.f32.mxu0 0.0
      %1427 = vmatmul.mubr.f32.gmra.mrb[0].mxu0 %v668
      %v1428 = vpop.f32.mrb[0].mxu0
      %v1429 = vadd.f32 0.0, %v1428
      %v1430 = vpop.f32.mrb[0].mxu0
      %1431 = vmatprep.mubr.f32.mxu0 0.0
      %1432 = vmatmul.mubr.f32.gmra.mrb[0].mxu0 %v671
      %v1433 = vpop.f32.mrb[0].mxu0
      %v1434 = vadd.f32 0.0, %v1433
      %v1435 = vpop.f32.mrb[0].mxu0
      %1436 = vmatprep.mubr.f32.mxu0 0.0
      %1437 = vmatmul.mubr.f32.gmra.mrb[0].mxu0 %v674
      %v1438 = vpop.f32.mrb[0].mxu0
      %v1439 = vadd.f32 0.0, %v1438
      %v1440 = vpop.f32.mrb[0].mxu0
      %1441 = vmatprep.mubr.f32.mxu0 0.0
      %1442 = vmatmul.mubr.f32.gmra.mrb[0].mxu0 %v677
      %v1443 = vpop.f32.mrb[0].mxu0
      %v1444 = vadd.f32 0.0, %v1443
      %v1445 = vpop.f32.mrb[0].mxu0
      %1446 = vmatprep.mubr.f32.mxu0 0.0
      %1447 = vmatmul.mubr.f32.gmra.mrb[0].mxu0 %v680
      %v1448 = vpop.f32.mrb[0].mxu0
      %v1449 = vadd.f32 0.0, %v1448
      %v1450 = vpop.f32.mrb[0].mxu0
      %1451 = vmatprep.mubr.f32.mxu0 0.0
      %1452 = vmatmul.mubr.f32.gmra.mrb[0].mxu0 %v683
      %v1453 = vpop.f32.mrb[0].mxu0
      %v1454 = vadd.f32 0.0, %v1453
      %v1455 = vpop.f32.mrb[0].mxu0
      %1456 = vmatprep.mubr.f32.mxu0 0.0
      %1457 = vmatmul.mubr.f32.gmra.mrb[0].mxu0 %v686
      %v1458 = vpop.f32.mrb[0].mxu0
      %v1459 = vadd.f32 0.0, %v1458
      %v1460 = vpop.f32.mrb[0].mxu0
      %1461 = vmatprep.mubr.f32.mxu0 0.0
      %1462 = vmatmul.mubr.f32.gmra.mrb[0].mxu0 %v689
      %v1463 = vpop.f32.mrb[0].mxu0
      %v1464 = vadd.f32 0.0, %v1463
      %v1465 = vpop.f32.mrb[0].mxu0
      %1466 = vmatprep.mubr.f32.mxu0 0.0
      %1467 = vmatmul.mubr.f32.gmra.mrb[0].mxu0 %v692
      %v1468 = vpop.f32.mrb[0].mxu0
      %v1469 = vadd.f32 0.0, %v1468
      %v1470 = vpop.f32.mrb[0].mxu0
      %1471 = vdwg.mxu0
      %v1472 = vld [vmem:[%s4] sm:$0xff]
      %v1473 = vld [vmem:[%s4 + $0x8] sm:$0xff]
      %v1474 = vld [vmem:[%s4 + $0x10] sm:$0xff]
      %v1475 = vld [vmem:[%s4 + $0x18] sm:$0xff]
      %v1476 = vld [vmem:[%s4 + $0x20] sm:$0xff]
      %v1477 = vld [vmem:[%s4 + $0x28] sm:$0xff]
      %v1478 = vld [vmem:[%s4 + $0x30] sm:$0xff]
      %v1479 = vld [vmem:[%s4 + $0x38] sm:$0xff]
      %1480 = vmatprep.subr.mxu0 0.0
      %1481 = vmatpush1.msra.mxu0 %v1472
      %1482 = vmatprep.subr.mxu0 0.0
      %1483 = vmatpush1.msra.mxu0 %v1473
      %1484 = vmatprep.subr.mxu0 0.0
      %1485 = vmatpush1.msra.mxu0 %v1474
      %1486 = vmatprep.subr.mxu0 0.0
      %1487 = vmatpush1.msra.mxu0 %v1475
      %1488 = vmatprep.subr.mxu0 0.0
      %1489 = vmatpush1.msra.mxu0 %v1476
      %1490 = vmatprep.subr.mxu0 0.0
      %1491 = vmatpush1.msra.mxu0 %v1477
      %1492 = vmatprep.subr.mxu0 0.0
      %1493 = vmatpush1.msra.mxu0 %v1478
      %1494 = vmatprep.subr.mxu0 0.0
      %1495 = vmatpush1.msra.mxu0 %v1479
      %1496 = vmatprep.subr.mxu0 0.0
      %1497 = vmatpush1.msra.mxu0 0.0
      %1498 = vmatprep.subr.mxu0 0.0
      %1499 = vmatpush1.msra.mxu0 0.0
      %1500 = vmatprep.subr.mxu0 0.0
      %1501 = vmatpush1.msra.mxu0 0.0
      %1502 = vmatprep.subr.mxu0 0.0
      %1503 = vmatpush1.msra.mxu0 0.0
      %1504 = vmatprep.subr.mxu0 0.0
      %1505 = vmatpush1.msra.mxu0 0.0
      %1506 = vmatprep.subr.mxu0 0.0
      %1507 = vmatpush1.msra.mxu0 0.0
      %1508 = vmatprep.subr.mxu0 0.0
      %1509 = vmatpush1.msra.mxu0 0.0
      %1510 = vmatprep.subr.mxu0 0.0
      %1511 = vmatpush1.msra.mxu0 0.0
      %1512 = vmatprep.subr.mxu0 0.0
      %1513 = vmatpush1.msra.mxu0 0.0
      %1514 = vmatprep.subr.mxu0 0.0
      %1515 = vmatpush1.msra.mxu0 0.0
      %1516 = vmatprep.subr.mxu0 0.0
      %1517 = vmatpush1.msra.mxu0 0.0
      %1518 = vmatprep.subr.mxu0 0.0
      %1519 = vmatpush1.msra.mxu0 0.0
      %1520 = vmatprep.subr.mxu0 0.0
      %1521 = vmatpush1.msra.mxu0 0.0
      %1522 = vmatprep.subr.mxu0 0.0
      %1523 = vmatpush1.msra.mxu0 0.0
      %1524 = vmatprep.subr.mxu0 0.0
      %1525 = vmatpush1.msra.mxu0 0.0
      %1526 = vmatprep.subr.mxu0 0.0
      %1527 = vmatpush1.msra.mxu0 0.0
      %1528 = vmatprep.subr.mxu0 0.0
      %1529 = vmatpush1.msra.mxu0 0.0
      %1530 = vmatprep.subr.mxu0 0.0
      %1531 = vmatpush1.msra.mxu0 0.0
      %1532 = vmatprep.subr.mxu0 0.0
      %1533 = vmatpush1.msra.mxu0 0.0
      %1534 = vmatprep.subr.mxu0 0.0
      %1535 = vmatpush1.msra.mxu0 0.0
      %1536 = vmatprep.subr.mxu0 0.0
      %1537 = vmatpush1.msra.mxu0 0.0
      %1538 = vmatprep.subr.mxu0 0.0
      %1539 = vmatpush1.msra.mxu0 0.0
      %1540 = vmatprep.subr.mxu0 0.0
      %1541 = vmatpush1.msra.mxu0 0.0
      %1542 = vmatprep.subr.mxu0 0.0
      %1543 = vmatpush1.msra.mxu0 0.0
      %1544 = vmatprep.mubr.f32.mxu0 0.0
      %1545 = vmatmul.mubr.f32.gmra.mrb[0].mxu0 %v503
      %v1546 = vpop.f32.mrb[0].mxu0
      %v1547 = vadd.f32 0.0, %v1546
      %v1548 = vpop.f32.mrb[0].mxu0
      %1549 = vmatprep.mubr.f32.mxu0 0.0
      %1550 = vmatmul.mubr.f32.gmra.mrb[0].mxu0 %v506
      %v1551 = vpop.f32.mrb[0].mxu0
      %v1552 = vadd.f32 0.0, %v1551
      %v1553 = vpop.f32.mrb[0].mxu0
      %1554 = vmatprep.mubr.f32.mxu0 0.0
      %1555 = vmatmul.mubr.f32.gmra.mrb[0].mxu0 %v509
      %v1556 = vpop.f32.mrb[0].mxu0
      %v1557 = vadd.f32 0.0, %v1556
      %v1558 = vpop.f32.mrb[0].mxu0
      %1559 = vmatprep.mubr.f32.mxu0 0.0
      %1560 = vmatmul.mubr.f32.gmra.mrb[0].mxu0 %v512
      %v1561 = vpop.f32.mrb[0].mxu0
      %v1562 = vadd.f32 0.0, %v1561
      %v1563 = vpop.f32.mrb[0].mxu0
      %1564 = vmatprep.mubr.f32.mxu0 0.0
      %1565 = vmatmul.mubr.f32.gmra.mrb[0].mxu0 %v515
      %v1566 = vpop.f32.mrb[0].mxu0
      %v1567 = vadd.f32 0.0, %v1566
      %v1568 = vpop.f32.mrb[0].mxu0
      %1569 = vmatprep.mubr.f32.mxu0 0.0
      %1570 = vmatmul.mubr.f32.gmra.mrb[0].mxu0 %v518
      %v1571 = vpop.f32.mrb[0].mxu0
      %v1572 = vadd.f32 0.0, %v1571
      %v1573 = vpop.f32.mrb[0].mxu0
      %1574 = vmatprep.mubr.f32.mxu0 0.0
      %1575 = vmatmul.mubr.f32.gmra.mrb[0].mxu0 %v521
      %v1576 = vpop.f32.mrb[0].mxu0
      %v1577 = vadd.f32 0.0, %v1576
      %v1578 = vpop.f32.mrb[0].mxu0
      %1579 = vmatprep.mubr.f32.mxu0 0.0
      %1580 = vmatmul.mubr.f32.gmra.mrb[0].mxu0 %v524
      %v1581 = vpop.f32.mrb[0].mxu0
      %v1582 = vadd.f32 0.0, %v1581
      %v1583 = vpop.f32.mrb[0].mxu0
      %1584 = vmatprep.mubr.f32.mxu0 0.0
      %1585 = vmatmul.mubr.f32.gmra.mrb[0].mxu0 %v527
      %v1586 = vpop.f32.mrb[0].mxu0
      %v1587 = vadd.f32 0.0, %v1586
      %v1588 = vpop.f32.mrb[0].mxu0
      %1589 = vmatprep.mubr.f32.mxu0 0.0
      %1590 = vmatmul.mubr.f32.gmra.mrb[0].mxu0 %v530
      %v1591 = vpop.f32.mrb[0].mxu0
      %v1592 = vadd.f32 0.0, %v1591
      %v1593 = vpop.f32.mrb[0].mxu0
      %1594 = vmatprep.mubr.f32.mxu0 0.0
      %1595 = vmatmul.mubr.f32.gmra.mrb[0].mxu0 %v533
      %v1596 = vpop.f32.mrb[0].mxu0
      %v1597 = vadd.f32 0.0, %v1596
      %v1598 = vpop.f32.mrb[0].mxu0
      %1599 = vmatprep.mubr.f32.mxu0 0.0
      %1600 = vmatmul.mubr.f32.gmra.mrb[0].mxu0 %v536
      %v1601 = vpop.f32.mrb[0].mxu0
      %v1602 = vadd.f32 0.0, %v1601
      %v1603 = vpop.f32.mrb[0].mxu0
      %1604 = vmatprep.mubr.f32.mxu0 0.0
      %1605 = vmatmul.mubr.f32.gmra.mrb[0].mxu0 %v539
      %v1606 = vpop.f32.mrb[0].mxu0
      %v1607 = vadd.f32 0.0, %v1606
      %v1608 = vpop.f32.mrb[0].mxu0
      %1609 = vmatprep.mubr.f32.mxu0 0.0
      %1610 = vmatmul.mubr.f32.gmra.mrb[0].mxu0 %v542
      %v1611 = vpop.f32.mrb[0].mxu0
      %v1612 = vadd.f32 0.0, %v1611
      %v1613 = vpop.f32.mrb[0].mxu0
      %1614 = vmatprep.mubr.f32.mxu0 0.0
      %1615 = vmatmul.mubr.f32.gmra.mrb[0].mxu0 %v545
      %v1616 = vpop.f32.mrb[0].mxu0
      %v1617 = vadd.f32 0.0, %v1616
      %v1618 = vpop.f32.mrb[0].mxu0
      %1619 = vmatprep.mubr.f32.mxu0 0.0
      %1620 = vmatmul.mubr.f32.gmra.mrb[0].mxu0 %v548
      %v1621 = vpop.f32.mrb[0].mxu0
      %v1622 = vadd.f32 0.0, %v1621
      %v1623 = vpop.f32.mrb[0].mxu0
      %1624 = vmatprep.mubr.f32.mxu0 0.0
      %1625 = vmatmul.mubr.f32.gmra.mrb[0].mxu0 %v551
      %v1626 = vpop.f32.mrb[0].mxu0
      %v1627 = vadd.f32 0.0, %v1626
      %v1628 = vpop.f32.mrb[0].mxu0
      %1629 = vmatprep.mubr.f32.mxu0 0.0
      %1630 = vmatmul.mubr.f32.gmra.mrb[0].mxu0 %v554
      %v1631 = vpop.f32.mrb[0].mxu0
      %v1632 = vadd.f32 0.0, %v1631
      %v1633 = vpop.f32.mrb[0].mxu0
      %1634 = vmatprep.mubr.f32.mxu0 0.0
      %1635 = vmatmul.mubr.f32.gmra.mrb[0].mxu0 %v557
      %v1636 = vpop.f32.mrb[0].mxu0
      %v1637 = vadd.f32 0.0, %v1636
      %v1638 = vpop.f32.mrb[0].mxu0
      %1639 = vmatprep.mubr.f32.mxu0 0.0
      %1640 = vmatmul.mubr.f32.gmra.mrb[0].mxu0 %v560
      %v1641 = vpop.f32.mrb[0].mxu0
      %v1642 = vadd.f32 0.0, %v1641
      %v1643 = vpop.f32.mrb[0].mxu0
      %1644 = vmatprep.mubr.f32.mxu0 0.0
      %1645 = vmatmul.mubr.f32.gmra.mrb[0].mxu0 %v563
      %v1646 = vpop.f32.mrb[0].mxu0
      %v1647 = vadd.f32 0.0, %v1646
      %v1648 = vpop.f32.mrb[0].mxu0
      %1649 = vmatprep.mubr.f32.mxu0 0.0
      %1650 = vmatmul.mubr.f32.gmra.mrb[0].mxu0 %v566
      %v1651 = vpop.f32.mrb[0].mxu0
      %v1652 = vadd.f32 0.0, %v1651
      %v1653 = vpop.f32.mrb[0].mxu0
      %1654 = vmatprep.mubr.f32.mxu0 0.0
      %1655 = vmatmul.mubr.f32.gmra.mrb[0].mxu0 %v569
      %v1656 = vpop.f32.mrb[0].mxu0
      %v1657 = vadd.f32 0.0, %v1656
      %v1658 = vpop.f32.mrb[0].mxu0
      %1659 = vmatprep.mubr.f32.mxu0 0.0
      %1660 = vmatmul.mubr.f32.gmra.mrb[0].mxu0 %v572
      %v1661 = vpop.f32.mrb[0].mxu0
      %v1662 = vadd.f32 0.0, %v1661
      %v1663 = vpop.f32.mrb[0].mxu0
      %1664 = vmatprep.mubr.f32.mxu0 0.0
      %1665 = vmatmul.mubr.f32.gmra.mrb[0].mxu0 %v575
      %v1666 = vpop.f32.mrb[0].mxu0
      %v1667 = vadd.f32 0.0, %v1666
      %v1668 = vpop.f32.mrb[0].mxu0
      %1669 = vmatprep.mubr.f32.mxu0 0.0
      %1670 = vmatmul.mubr.f32.gmra.mrb[0].mxu0 %v578
      %v1671 = vpop.f32.mrb[0].mxu0
      %v1672 = vadd.f32 0.0, %v1671
      %v1673 = vpop.f32.mrb[0].mxu0
      %1674 = vmatprep.mubr.f32.mxu0 0.0
      %1675 = vmatmul.mubr.f32.gmra.mrb[0].mxu0 %v581
      %v1676 = vpop.f32.mrb[0].mxu0
      %v1677 = vadd.f32 0.0, %v1676
      %v1678 = vpop.f32.mrb[0].mxu0
      %1679 = vmatprep.mubr.f32.mxu0 0.0
      %1680 = vmatmul.mubr.f32.gmra.mrb[0].mxu0 %v584
      %v1681 = vpop.f32.mrb[0].mxu0
      %v1682 = vadd.f32 0.0, %v1681
      %v1683 = vpop.f32.mrb[0].mxu0
      %1684 = vmatprep.mubr.f32.mxu0 0.0
      %1685 = vmatmul.mubr.f32.gmra.mrb[0].mxu0 %v587
      %v1686 = vpop.f32.mrb[0].mxu0
      %v1687 = vadd.f32 0.0, %v1686
      %v1688 = vpop.f32.mrb[0].mxu0
      %1689 = vmatprep.mubr.f32.mxu0 0.0
      %1690 = vmatmul.mubr.f32.gmra.mrb[0].mxu0 %v590
      %v1691 = vpop.f32.mrb[0].mxu0
      %v1692 = vadd.f32 0.0, %v1691
      %v1693 = vpop.f32.mrb[0].mxu0
      %1694 = vmatprep.mubr.f32.mxu0 0.0
      %1695 = vmatmul.mubr.f32.gmra.mrb[0].mxu0 %v593
      %v1696 = vpop.f32.mrb[0].mxu0
      %v1697 = vadd.f32 0.0, %v1696
      %v1698 = vpop.f32.mrb[0].mxu0
      %1699 = vmatprep.mubr.f32.mxu0 0.0
      %1700 = vmatmul.mubr.f32.gmra.mrb[0].mxu0 %v596
      %v1701 = vpop.f32.mrb[0].mxu0
      %v1702 = vadd.f32 0.0, %v1701
      %v1703 = vpop.f32.mrb[0].mxu0
      %1704 = vmatprep.mubr.f32.mxu0 0.0
      %1705 = vmatmul.mubr.f32.gmra.mrb[0].mxu0 %v599
      %v1706 = vpop.f32.mrb[0].mxu0
      %v1707 = vadd.f32 0.0, %v1706
      %v1708 = vpop.f32.mrb[0].mxu0
      %1709 = vmatprep.mubr.f32.mxu0 0.0
      %1710 = vmatmul.mubr.f32.gmra.mrb[0].mxu0 %v602
      %v1711 = vpop.f32.mrb[0].mxu0
      %v1712 = vadd.f32 0.0, %v1711
      %v1713 = vpop.f32.mrb[0].mxu0
      %1714 = vmatprep.mubr.f32.mxu0 0.0
      %1715 = vmatmul.mubr.f32.gmra.mrb[0].mxu0 %v605
      %v1716 = vpop.f32.mrb[0].mxu0
      %v1717 = vadd.f32 0.0, %v1716
      %v1718 = vpop.f32.mrb[0].mxu0
      %1719 = vmatprep.mubr.f32.mxu0 0.0
      %1720 = vmatmul.mubr.f32.gmra.mrb[0].mxu0 %v608
      %v1721 = vpop.f32.mrb[0].mxu0
      %v1722 = vadd.f32 0.0, %v1721
      %v1723 = vpop.f32.mrb[0].mxu0
      %1724 = vmatprep.mubr.f32.mxu0 0.0
      %1725 = vmatmul.mubr.f32.gmra.mrb[0].mxu0 %v611
      %v1726 = vpop.f32.mrb[0].mxu0
      %v1727 = vadd.f32 0.0, %v1726
      %v1728 = vpop.f32.mrb[0].mxu0
      %1729 = vmatprep.mubr.f32.mxu0 0.0
      %1730 = vmatmul.mubr.f32.gmra.mrb[0].mxu0 %v614
      %v1731 = vpop.f32.mrb[0].mxu0
      %v1732 = vadd.f32 0.0, %v1731
      %v1733 = vpop.f32.mrb[0].mxu0
      %1734 = vmatprep.mubr.f32.mxu0 0.0
      %1735 = vmatmul.mubr.f32.gmra.mrb[0].mxu0 %v617
      %v1736 = vpop.f32.mrb[0].mxu0
      %v1737 = vadd.f32 0.0, %v1736
      %v1738 = vpop.f32.mrb[0].mxu0
      %1739 = vmatprep.mubr.f32.mxu0 0.0
      %1740 = vmatmul.mubr.f32.gmra.mrb[0].mxu0 %v620
      %v1741 = vpop.f32.mrb[0].mxu0
      %v1742 = vadd.f32 0.0, %v1741
      %v1743 = vpop.f32.mrb[0].mxu0
      %1744 = vmatprep.mubr.f32.mxu0 0.0
      %1745 = vmatmul.mubr.f32.gmra.mrb[0].mxu0 %v623
      %v1746 = vpop.f32.mrb[0].mxu0
      %v1747 = vadd.f32 0.0, %v1746
      %v1748 = vpop.f32.mrb[0].mxu0
      %1749 = vmatprep.mubr.f32.mxu0 0.0
      %1750 = vmatmul.mubr.f32.gmra.mrb[0].mxu0 %v626
      %v1751 = vpop.f32.mrb[0].mxu0
      %v1752 = vadd.f32 0.0, %v1751
      %v1753 = vpop.f32.mrb[0].mxu0
      %1754 = vmatprep.mubr.f32.mxu0 0.0
      %1755 = vmatmul.mubr.f32.gmra.mrb[0].mxu0 %v629
      %v1756 = vpop.f32.mrb[0].mxu0
      %v1757 = vadd.f32 0.0, %v1756
      %v1758 = vpop.f32.mrb[0].mxu0
      %1759 = vmatprep.mubr.f32.mxu0 0.0
      %1760 = vmatmul.mubr.f32.gmra.mrb[0].mxu0 %v632
      %v1761 = vpop.f32.mrb[0].mxu0
      %v1762 = vadd.f32 0.0, %v1761
      %v1763 = vpop.f32.mrb[0].mxu0
      %1764 = vmatprep.mubr.f32.mxu0 0.0
      %1765 = vmatmul.mubr.f32.gmra.mrb[0].mxu0 %v635
      %v1766 = vpop.f32.mrb[0].mxu0
      %v1767 = vadd.f32 0.0, %v1766
      %v1768 = vpop.f32.mrb[0].mxu0
      %1769 = vmatprep.mubr.f32.mxu0 0.0
      %1770 = vmatmul.mubr.f32.gmra.mrb[0].mxu0 %v638
      %v1771 = vpop.f32.mrb[0].mxu0
      %v1772 = vadd.f32 0.0, %v1771
      %v1773 = vpop.f32.mrb[0].mxu0
      %1774 = vmatprep.mubr.f32.mxu0 0.0
      %1775 = vmatmul.mubr.f32.gmra.mrb[0].mxu0 %v641
      %v1776 = vpop.f32.mrb[0].mxu0
      %v1777 = vadd.f32 0.0, %v1776
      %v1778 = vpop.f32.mrb[0].mxu0
      %1779 = vmatprep.mubr.f32.mxu0 0.0
      %1780 = vmatmul.mubr.f32.gmra.mrb[0].mxu0 %v644
      %v1781 = vpop.f32.mrb[0].mxu0
      %v1782 = vadd.f32 0.0, %v1781
      %v1783 = vpop.f32.mrb[0].mxu0
      %1784 = vmatprep.mubr.f32.mxu0 0.0
      %1785 = vmatmul.mubr.f32.gmra.mrb[0].mxu0 %v647
      %v1786 = vpop.f32.mrb[0].mxu0
      %v1787 = vadd.f32 0.0, %v1786
      %v1788 = vpop.f32.mrb[0].mxu0
      %1789 = vmatprep.mubr.f32.mxu0 0.0
      %1790 = vmatmul.mubr.f32.gmra.mrb[0].mxu0 %v650
      %v1791 = vpop.f32.mrb[0].mxu0
      %v1792 = vadd.f32 0.0, %v1791
      %v1793 = vpop.f32.mrb[0].mxu0
      %1794 = vmatprep.mubr.f32.mxu0 0.0
      %1795 = vmatmul.mubr.f32.gmra.mrb[0].mxu0 %v653
      %v1796 = vpop.f32.mrb[0].mxu0
      %v1797 = vadd.f32 0.0, %v1796
      %v1798 = vpop.f32.mrb[0].mxu0
      %1799 = vmatprep.mubr.f32.mxu0 0.0
      %1800 = vmatmul.mubr.f32.gmra.mrb[0].mxu0 %v656
      %v1801 = vpop.f32.mrb[0].mxu0
      %v1802 = vadd.f32 0.0, %v1801
      %v1803 = vpop.f32.mrb[0].mxu0
      %1804 = vmatprep.mubr.f32.mxu0 0.0
      %1805 = vmatmul.mubr.f32.gmra.mrb[0].mxu0 %v659
      %v1806 = vpop.f32.mrb[0].mxu0
      %v1807 = vadd.f32 0.0, %v1806
      %v1808 = vpop.f32.mrb[0].mxu0
      %1809 = vmatprep.mubr.f32.mxu0 0.0
      %1810 = vmatmul.mubr.f32.gmra.mrb[0].mxu0 %v662
      %v1811 = vpop.f32.mrb[0].mxu0
      %v1812 = vadd.f32 0.0, %v1811
      %v1813 = vpop.f32.mrb[0].mxu0
      %1814 = vmatprep.mubr.f32.mxu0 0.0
      %1815 = vmatmul.mubr.f32.gmra.mrb[0].mxu0 %v665
      %v1816 = vpop.f32.mrb[0].mxu0
      %v1817 = vadd.f32 0.0, %v1816
      %v1818 = vpop.f32.mrb[0].mxu0
      %1819 = vmatprep.mubr.f32.mxu0 0.0
      %1820 = vmatmul.mubr.f32.gmra.mrb[0].mxu0 %v668
      %v1821 = vpop.f32.mrb[0].mxu0
      %v1822 = vadd.f32 0.0, %v1821
      %v1823 = vpop.f32.mrb[0].mxu0
      %1824 = vmatprep.mubr.f32.mxu0 0.0
      %1825 = vmatmul.mubr.f32.gmra.mrb[0].mxu0 %v671
      %v1826 = vpop.f32.mrb[0].mxu0
      %v1827 = vadd.f32 0.0, %v1826
      %v1828 = vpop.f32.mrb[0].mxu0
      %1829 = vmatprep.mubr.f32.mxu0 0.0
      %1830 = vmatmul.mubr.f32.gmra.mrb[0].mxu0 %v674
      %v1831 = vpop.f32.mrb[0].mxu0
      %v1832 = vadd.f32 0.0, %v1831
      %v1833 = vpop.f32.mrb[0].mxu0
      %1834 = vmatprep.mubr.f32.mxu0 0.0
      %1835 = vmatmul.mubr.f32.gmra.mrb[0].mxu0 %v677
      %v1836 = vpop.f32.mrb[0].mxu0
      %v1837 = vadd.f32 0.0, %v1836
      %v1838 = vpop.f32.mrb[0].mxu0
      %1839 = vmatprep.mubr.f32.mxu0 0.0
      %1840 = vmatmul.mubr.f32.gmra.mrb[0].mxu0 %v680
      %v1841 = vpop.f32.mrb[0].mxu0
      %v1842 = vadd.f32 0.0, %v1841
      %v1843 = vpop.f32.mrb[0].mxu0
      %1844 = vmatprep.mubr.f32.mxu0 0.0
      %1845 = vmatmul.mubr.f32.gmra.mrb[0].mxu0 %v683
      %v1846 = vpop.f32.mrb[0].mxu0
      %v1847 = vadd.f32 0.0, %v1846
      %v1848 = vpop.f32.mrb[0].mxu0
      %1849 = vmatprep.mubr.f32.mxu0 0.0
      %1850 = vmatmul.mubr.f32.gmra.mrb[0].mxu0 %v686
      %v1851 = vpop.f32.mrb[0].mxu0
      %v1852 = vadd.f32 0.0, %v1851
      %v1853 = vpop.f32.mrb[0].mxu0
      %1854 = vmatprep.mubr.f32.mxu0 0.0
      %1855 = vmatmul.mubr.f32.gmra.mrb[0].mxu0 %v689
      %v1856 = vpop.f32.mrb[0].mxu0
      %v1857 = vadd.f32 0.0, %v1856
      %v1858 = vpop.f32.mrb[0].mxu0
      %1859 = vmatprep.mubr.f32.mxu0 0.0
      %1860 = vmatmul.mubr.f32.gmra.mrb[0].mxu0 %v692
      %v1861 = vpop.f32.mrb[0].mxu0
      %v1862 = vadd.f32 0.0, %v1861
      %v1863 = vpop.f32.mrb[0].mxu0
      %1864 = vdwg.mxu0
      %v1865 = vmul.f32 %v761, 0.125
      %v1866 = vmul.f32 %v766, 0.125
      %v1867 = vmul.f32 %v771, 0.125
      %v1868 = vmul.f32 %v776, 0.125
      %v1869 = vmul.f32 %v781, 0.125
      %v1870 = vmul.f32 %v786, 0.125
      %v1871 = vmul.f32 %v791, 0.125
      %v1872 = vmul.f32 %v796, 0.125
      %v1873 = vmul.f32 %v801, 0.125
      %v1874 = vmul.f32 %v806, 0.125
      %v1875 = vmul.f32 %v811, 0.125
      %v1876 = vmul.f32 %v816, 0.125
      %v1877 = vmul.f32 %v821, 0.125
      %v1878 = vmul.f32 %v826, 0.125
      %v1879 = vmul.f32 %v831, 0.125
      %v1880 = vmul.f32 %v836, 0.125
      %v1881 = vmul.f32 %v841, 0.125
      %v1882 = vmul.f32 %v846, 0.125
      %v1883 = vmul.f32 %v851, 0.125
      %v1884 = vmul.f32 %v856, 0.125
      %v1885 = vmul.f32 %v861, 0.125
      %v1886 = vmul.f32 %v866, 0.125
      %v1887 = vmul.f32 %v871, 0.125
      %v1888 = vmul.f32 %v876, 0.125
      %v1889 = vmul.f32 %v881, 0.125
      %v1890 = vmul.f32 %v886, 0.125
      %v1891 = vmul.f32 %v891, 0.125
      %v1892 = vmul.f32 %v896, 0.125
      %v1893 = vmul.f32 %v901, 0.125
      %v1894 = vmul.f32 %v906, 0.125
      %v1895 = vmul.f32 %v911, 0.125
      %v1896 = vmul.f32 %v916, 0.125
      %v1897 = vmul.f32 %v921, 0.125
      %v1898 = vmul.f32 %v926, 0.125
      %v1899 = vmul.f32 %v931, 0.125
      %v1900 = vmul.f32 %v936, 0.125
      %v1901 = vmul.f32 %v941, 0.125
      %v1902 = vmul.f32 %v946, 0.125
      %v1903 = vmul.f32 %v951, 0.125
      %v1904 = vmul.f32 %v956, 0.125
      %v1905 = vmul.f32 %v961, 0.125
      %v1906 = vmul.f32 %v966, 0.125
      %v1907 = vmul.f32 %v971, 0.125
      %v1908 = vmul.f32 %v976, 0.125
      %v1909 = vmul.f32 %v981, 0.125
      %v1910 = vmul.f32 %v986, 0.125
      %v1911 = vmul.f32 %v991, 0.125
      %v1912 = vmul.f32 %v996, 0.125
      %v1913 = vmul.f32 %v1001, 0.125
      %v1914 = vmul.f32 %v1006, 0.125
      %v1915 = vmul.f32 %v1011, 0.125
      %v1916 = vmul.f32 %v1016, 0.125
      %v1917 = vmul.f32 %v1021, 0.125
      %v1918 = vmul.f32 %v1026, 0.125
      %v1919 = vmul.f32 %v1031, 0.125
      %v1920 = vmul.f32 %v1036, 0.125
      %v1921 = vmul.f32 %v1041, 0.125
      %v1922 = vmul.f32 %v1046, 0.125
      %v1923 = vmul.f32 %v1051, 0.125
      %v1924 = vmul.f32 %v1056, 0.125
      %v1925 = vmul.f32 %v1061, 0.125
      %v1926 = vmul.f32 %v1066, 0.125
      %v1927 = vmul.f32 %v1071, 0.125
      %v1928 = vmul.f32 %v1076, 0.125
      %v1929 = vlaneseq
      %v1930 = vand.u32 %v1929, 127
      %vm1931 = vcmp.ge.s32.totalorder %v1930, 49
      %v1933 = vsel %vm501, %v1865, 0
      %v1936 = vsel %vm501, %v1866, 0
      %v1939 = vsel %vm501, %v1867, 0
      %v1942 = vsel %vm501, %v1868, 0
      %v1945 = vsel %vm501, %v1869, 0
      %v1948 = vsel %vm501, %v1870, 0
      %v1951 = vsel %vm501, %v1871, 0
      %v1954 = vsel %vm501, %v1872, 0
      %v1957 = vsel %vm501, %v1154, 0
      %v1960 = vsel %vm501, %v1159, 0
      %v1963 = vsel %vm501, %v1164, 0
      %v1966 = vsel %vm501, %v1169, 0
      %v1969 = vsel %vm501, %v1174, 0
      %v1972 = vsel %vm501, %v1179, 0
      %v1975 = vsel %vm501, %v1184, 0
      %v1978 = vsel %vm501, %v1189, 0
      %v1981 = vsel %vm501, 0.0, 0
      %1983 = vmatprep.subr.mxu0 0.0
      %1984 = vmatpush1.xpose.msra.mxu0 %v1957
      %1985 = vmatprep.subr.mxu0 0.0
      %1986 = vmatpush1.xpose.msra.mxu0 %v1960
      %1987 = vmatprep.subr.mxu0 0.0
      %1988 = vmatpush1.xpose.msra.mxu0 %v1963
      %1989 = vmatprep.subr.mxu0 0.0
      %1990 = vmatpush1.xpose.msra.mxu0 %v1966
      %1991 = vmatprep.subr.mxu0 0.0
      %1992 = vmatpush1.xpose.msra.mxu0 %v1969
      %1993 = vmatprep.subr.mxu0 0.0
      %1994 = vmatpush1.xpose.msra.mxu0 %v1972
      %1995 = vmatprep.subr.mxu0 0.0
      %1996 = vmatpush1.xpose.msra.mxu0 %v1975
      %1997 = vmatprep.subr.mxu0 0.0
      %1998 = vmatpush1.xpose.msra.mxu0 %v1978
      %1999 = vmatprep.subr.mxu0 0.0
      %2000 = vmatpush1.xpose.msra.mxu0 %v1981
      %2001 = vmatprep.subr.mxu0 0.0
      %2002 = vmatpush1.xpose.msra.mxu0 %v1981
      %2003 = vmatprep.subr.mxu0 0.0
      %2004 = vmatpush1.xpose.msra.mxu0 %v1981
      %2005 = vmatprep.subr.mxu0 0.0
      %2006 = vmatpush1.xpose.msra.mxu0 %v1981
      %2007 = vmatprep.subr.mxu0 0.0
      %2008 = vmatpush1.xpose.msra.mxu0 %v1981
      %2009 = vmatprep.subr.mxu0 0.0
      %2010 = vmatpush1.xpose.msra.mxu0 %v1981
      %2011 = vmatprep.subr.mxu0 0.0
      %2012 = vmatpush1.xpose.msra.mxu0 %v1981
      %2013 = vmatprep.subr.mxu0 0.0
      %2014 = vmatpush1.xpose.msra.mxu0 %v1981
      %2015 = vmatprep.subr.mxu0 0.0
      %2016 = vmatpush1.xpose.msra.mxu0 0.0
      %2017 = vmatprep.subr.mxu0 0.0
      %2018 = vmatpush1.xpose.msra.mxu0 0.0
      %2019 = vmatprep.subr.mxu0 0.0
      %2020 = vmatpush1.xpose.msra.mxu0 0.0
      %2021 = vmatprep.subr.mxu0 0.0
      %2022 = vmatpush1.xpose.msra.mxu0 0.0
      %2023 = vmatprep.subr.mxu0 0.0
      %2024 = vmatpush1.xpose.msra.mxu0 0.0
      %2025 = vmatprep.subr.mxu0 0.0
      %2026 = vmatpush1.xpose.msra.mxu0 0.0
      %2027 = vmatprep.subr.mxu0 0.0
      %2028 = vmatpush1.xpose.msra.mxu0 0.0
      %2029 = vmatprep.subr.mxu0 0.0
      %2030 = vmatpush1.xpose.msra.mxu0 0.0
      %2031 = vmatprep.subr.mxu0 0.0
      %2032 = vmatpush1.xpose.msra.mxu0 0.0
      %2033 = vmatprep.subr.mxu0 0.0
      %2034 = vmatpush1.xpose.msra.mxu0 0.0
      %2035 = vmatprep.subr.mxu0 0.0
      %2036 = vmatpush1.xpose.msra.mxu0 0.0
      %2037 = vmatprep.subr.mxu0 0.0
      %2038 = vmatpush1.xpose.msra.mxu0 0.0
      %2039 = vmatprep.subr.mxu0 0.0
      %2040 = vmatpush1.xpose.msra.mxu0 0.0
      %2041 = vmatprep.subr.mxu0 0.0
      %2042 = vmatpush1.xpose.msra.mxu0 0.0
      %2043 = vmatprep.subr.mxu0 0.0
      %2044 = vmatpush1.xpose.msra.mxu0 0.0
      %2045 = vmatprep.subr.mxu0 0.0
      %2046 = vmatpush1.xpose.msra.mxu0 0.0
      %2047 = vmatprep.mubr.f32.mxu0 0.0
      %2048 = vmatmul.mubr.f32.gmra.mrb[0].mxu0 %v1933
      %v2049 = vpop.f32.mrb[0].mxu0
      %v2050 = vadd.f32 0.0, %v2049
      %v2051 = vpop.f32.mrb[0].mxu0
      %2052 = vmatprep.mubr.f32.mxu0 0.0
      %2053 = vmatmul.mubr.f32.gmra.mrb[0].mxu0 %v1936
      %v2054 = vpop.f32.mrb[0].mxu0
      %v2055 = vadd.f32 0.0, %v2054
      %v2056 = vpop.f32.mrb[0].mxu0
      %2057 = vmatprep.mubr.f32.mxu0 0.0
      %2058 = vmatmul.mubr.f32.gmra.mrb[0].mxu0 %v1939
      %v2059 = vpop.f32.mrb[0].mxu0
      %v2060 = vadd.f32 0.0, %v2059
      %v2061 = vpop.f32.mrb[0].mxu0
      %2062 = vmatprep.mubr.f32.mxu0 0.0
      %2063 = vmatmul.mubr.f32.gmra.mrb[0].mxu0 %v1942
      %v2064 = vpop.f32.mrb[0].mxu0
      %v2065 = vadd.f32 0.0, %v2064
      %v2066 = vpop.f32.mrb[0].mxu0
      %2067 = vmatprep.mubr.f32.mxu0 0.0
      %2068 = vmatmul.mubr.f32.gmra.mrb[0].mxu0 %v1945
      %v2069 = vpop.f32.mrb[0].mxu0
      %v2070 = vadd.f32 0.0, %v2069
      %v2071 = vpop.f32.mrb[0].mxu0
      %2072 = vmatprep.mubr.f32.mxu0 0.0
      %2073 = vmatmul.mubr.f32.gmra.mrb[0].mxu0 %v1948
      %v2074 = vpop.f32.mrb[0].mxu0
      %v2075 = vadd.f32 0.0, %v2074
      %v2076 = vpop.f32.mrb[0].mxu0
      %2077 = vmatprep.mubr.f32.mxu0 0.0
      %2078 = vmatmul.mubr.f32.gmra.mrb[0].mxu0 %v1951
      %v2079 = vpop.f32.mrb[0].mxu0
      %v2080 = vadd.f32 0.0, %v2079
      %v2081 = vpop.f32.mrb[0].mxu0
      %2082 = vmatprep.mubr.f32.mxu0 0.0
      %2083 = vmatmul.mubr.f32.gmra.mrb[0].mxu0 %v1954
      %v2084 = vpop.f32.mrb[0].mxu0
      %v2085 = vadd.f32 0.0, %v2084
      %v2086 = vpop.f32.mrb[0].mxu0
      %2087 = vdwg.mxu0
      %v2089 = vsel %vm501, %v1873, 0
      %v2092 = vsel %vm501, %v1874, 0
      %v2095 = vsel %vm501, %v1875, 0
      %v2098 = vsel %vm501, %v1876, 0
      %v2101 = vsel %vm501, %v1877, 0
      %v2104 = vsel %vm501, %v1878, 0
      %v2107 = vsel %vm501, %v1879, 0
      %v2110 = vsel %vm501, %v1880, 0
      %v2113 = vsel %vm501, %v1194, 0
      %v2116 = vsel %vm501, %v1199, 0
      %v2119 = vsel %vm501, %v1204, 0
      %v2122 = vsel %vm501, %v1209, 0
      %v2125 = vsel %vm501, %v1214, 0
      %v2128 = vsel %vm501, %v1219, 0
      %v2131 = vsel %vm501, %v1224, 0
      %v2134 = vsel %vm501, %v1229, 0
      %2136 = vmatprep.subr.mxu0 0.0
      %2137 = vmatpush1.xpose.msra.mxu0 %v2113
      %2138 = vmatprep.subr.mxu0 0.0
      %2139 = vmatpush1.xpose.msra.mxu0 %v2116
      %2140 = vmatprep.subr.mxu0 0.0
      %2141 = vmatpush1.xpose.msra.mxu0 %v2119
      %2142 = vmatprep.subr.mxu0 0.0
      %2143 = vmatpush1.xpose.msra.mxu0 %v2122
      %2144 = vmatprep.subr.mxu0 0.0
      %2145 = vmatpush1.xpose.msra.mxu0 %v2125
      %2146 = vmatprep.subr.mxu0 0.0
      %2147 = vmatpush1.xpose.msra.mxu0 %v2128
      %2148 = vmatprep.subr.mxu0 0.0
      %2149 = vmatpush1.xpose.msra.mxu0 %v2131
      %2150 = vmatprep.subr.mxu0 0.0
      %2151 = vmatpush1.xpose.msra.mxu0 %v2134
      %2152 = vmatprep.subr.mxu0 0.0
      %2153 = vmatpush1.xpose.msra.mxu0 %v1981
      %2154 = vmatprep.subr.mxu0 0.0
      %2155 = vmatpush1.xpose.msra.mxu0 %v1981
      %2156 = vmatprep.subr.mxu0 0.0
      %2157 = vmatpush1.xpose.msra.mxu0 %v1981
      %2158 = vmatprep.subr.mxu0 0.0
      %2159 = vmatpush1.xpose.msra.mxu0 %v1981
      %2160 = vmatprep.subr.mxu0 0.0
      %2161 = vmatpush1.xpose.msra.mxu0 %v1981
      %2162 = vmatprep.subr.mxu0 0.0
      %2163 = vmatpush1.xpose.msra.mxu0 %v1981
      %2164 = vmatprep.subr.mxu0 0.0
      %2165 = vmatpush1.xpose.msra.mxu0 %v1981
      %2166 = vmatprep.subr.mxu0 0.0
      %2167 = vmatpush1.xpose.msra.mxu0 %v1981
      %2168 = vmatprep.subr.mxu0 0.0
      %2169 = vmatpush1.xpose.msra.mxu0 0.0
      %2170 = vmatprep.subr.mxu0 0.0
      %2171 = vmatpush1.xpose.msra.mxu0 0.0
      %2172 = vmatprep.subr.mxu0 0.0
      %2173 = vmatpush1.xpose.msra.mxu0 0.0
      %2174 = vmatprep.subr.mxu0 0.0
      %2175 = vmatpush1.xpose.msra.mxu0 0.0
      %2176 = vmatprep.subr.mxu0 0.0
      %2177 = vmatpush1.xpose.msra.mxu0 0.0
      %2178 = vmatprep.subr.mxu0 0.0
      %2179 = vmatpush1.xpose.msra.mxu0 0.0
      %2180 = vmatprep.subr.mxu0 0.0
      %2181 = vmatpush1.xpose.msra.mxu0 0.0
      %2182 = vmatprep.subr.mxu0 0.0
      %2183 = vmatpush1.xpose.msra.mxu0 0.0
      %2184 = vmatprep.subr.mxu0 0.0
      %2185 = vmatpush1.xpose.msra.mxu0 0.0
      %2186 = vmatprep.subr.mxu0 0.0
      %2187 = vmatpush1.xpose.msra.mxu0 0.0
      %2188 = vmatprep.subr.mxu0 0.0
      %2189 = vmatpush1.xpose.msra.mxu0 0.0
      %2190 = vmatprep.subr.mxu0 0.0
      %2191 = vmatpush1.xpose.msra.mxu0 0.0
      %2192 = vmatprep.subr.mxu0 0.0
      %2193 = vmatpush1.xpose.msra.mxu0 0.0
      %2194 = vmatprep.subr.mxu0 0.0
      %2195 = vmatpush1.xpose.msra.mxu0 0.0
      %2196 = vmatprep.subr.mxu0 0.0
      %2197 = vmatpush1.xpose.msra.mxu0 0.0
      %2198 = vmatprep.subr.mxu0 0.0
      %2199 = vmatpush1.xpose.msra.mxu0 0.0
      %2200 = vmatprep.mubr.f32.mxu0 0.0
      %2201 = vmatmul.mubr.f32.gmra.mrb[0].mxu0 %v2089
      %v2202 = vpop.f32.mrb[0].mxu0
      %v2203 = vadd.f32 0.0, %v2202
      %v2204 = vpop.f32.mrb[0].mxu0
      %2205 = vmatprep.mubr.f32.mxu0 0.0
      %2206 = vmatmul.mubr.f32.gmra.mrb[0].mxu0 %v2092
      %v2207 = vpop.f32.mrb[0].mxu0
      %v2208 = vadd.f32 0.0, %v2207
      %v2209 = vpop.f32.mrb[0].mxu0
      %2210 = vmatprep.mubr.f32.mxu0 0.0
      %2211 = vmatmul.mubr.f32.gmra.mrb[0].mxu0 %v2095
      %v2212 = vpop.f32.mrb[0].mxu0
      %v2213 = vadd.f32 0.0, %v2212
      %v2214 = vpop.f32.mrb[0].mxu0
      %2215 = vmatprep.mubr.f32.mxu0 0.0
      %2216 = vmatmul.mubr.f32.gmra.mrb[0].mxu0 %v2098
      %v2217 = vpop.f32.mrb[0].mxu0
      %v2218 = vadd.f32 0.0, %v2217
      %v2219 = vpop.f32.mrb[0].mxu0
      %2220 = vmatprep.mubr.f32.mxu0 0.0
      %2221 = vmatmul.mubr.f32.gmra.mrb[0].mxu0 %v2101
      %v2222 = vpop.f32.mrb[0].mxu0
      %v2223 = vadd.f32 0.0, %v2222
      %v2224 = vpop.f32.mrb[0].mxu0
      %2225 = vmatprep.mubr.f32.mxu0 0.0
      %2226 = vmatmul.mubr.f32.gmra.mrb[0].mxu0 %v2104
      %v2227 = vpop.f32.mrb[0].mxu0
      %v2228 = vadd.f32 0.0, %v2227
      %v2229 = vpop.f32.mrb[0].mxu0
      %2230 = vmatprep.mubr.f32.mxu0 0.0
      %2231 = vmatmul.mubr.f32.gmra.mrb[0].mxu0 %v2107
      %v2232 = vpop.f32.mrb[0].mxu0
      %v2233 = vadd.f32 0.0, %v2232
      %v2234 = vpop.f32.mrb[0].mxu0
      %2235 = vmatprep.mubr.f32.mxu0 0.0
      %2236 = vmatmul.mubr.f32.gmra.mrb[0].mxu0 %v2110
      %v2237 = vpop.f32.mrb[0].mxu0
      %v2238 = vadd.f32 0.0, %v2237
      %v2239 = vpop.f32.mrb[0].mxu0
      %2240 = vdwg.mxu0
      %v2242 = vsel %vm501, %v1881, 0
      %v2245 = vsel %vm501, %v1882, 0
      %v2248 = vsel %vm501, %v1883, 0
      %v2251 = vsel %vm501, %v1884, 0
      %v2254 = vsel %vm501, %v1885, 0
      %v2257 = vsel %vm501, %v1886, 0
      %v2260 = vsel %vm501, %v1887, 0
      %v2263 = vsel %vm501, %v1888, 0
      %v2266 = vsel %vm501, %v1234, 0
      %v2269 = vsel %vm501, %v1239, 0
      %v2272 = vsel %vm501, %v1244, 0
      %v2275 = vsel %vm501, %v1249, 0
      %v2278 = vsel %vm501, %v1254, 0
      %v2281 = vsel %vm501, %v1259, 0
      %v2284 = vsel %vm501, %v1264, 0
      %v2287 = vsel %vm501, %v1269, 0
      %2289 = vmatprep.subr.mxu0 0.0
      %2290 = vmatpush1.xpose.msra.mxu0 %v2266
      %2291 = vmatprep.subr.mxu0 0.0
      %2292 = vmatpush1.xpose.msra.mxu0 %v2269
      %2293 = vmatprep.subr.mxu0 0.0
      %2294 = vmatpush1.xpose.msra.mxu0 %v2272
      %2295 = vmatprep.subr.mxu0 0.0
      %2296 = vmatpush1.xpose.msra.mxu0 %v2275
      %2297 = vmatprep.subr.mxu0 0.0
      %2298 = vmatpush1.xpose.msra.mxu0 %v2278
      %2299 = vmatprep.subr.mxu0 0.0
      %2300 = vmatpush1.xpose.msra.mxu0 %v2281
      %2301 = vmatprep.subr.mxu0 0.0
      %2302 = vmatpush1.xpose.msra.mxu0 %v2284
      %2303 = vmatprep.subr.mxu0 0.0
      %2304 = vmatpush1.xpose.msra.mxu0 %v2287
      %2305 = vmatprep.subr.mxu0 0.0
      %2306 = vmatpush1.xpose.msra.mxu0 %v1981
      %2307 = vmatprep.subr.mxu0 0.0
      %2308 = vmatpush1.xpose.msra.mxu0 %v1981
      %2309 = vmatprep.subr.mxu0 0.0
      %2310 = vmatpush1.xpose.msra.mxu0 %v1981
      %2311 = vmatprep.subr.mxu0 0.0
      %2312 = vmatpush1.xpose.msra.mxu0 %v1981
      %2313 = vmatprep.subr.mxu0 0.0
      %2314 = vmatpush1.xpose.msra.mxu0 %v1981
      %2315 = vmatprep.subr.mxu0 0.0
      %2316 = vmatpush1.xpose.msra.mxu0 %v1981
      %2317 = vmatprep.subr.mxu0 0.0
      %2318 = vmatpush1.xpose.msra.mxu0 %v1981
      %2319 = vmatprep.subr.mxu0 0.0
      %2320 = vmatpush1.xpose.msra.mxu0 %v1981
      %2321 = vmatprep.subr.mxu0 0.0
      %2322 = vmatpush1.xpose.msra.mxu0 0.0
      %2323 = vmatprep.subr.mxu0 0.0
      %2324 = vmatpush1.xpose.msra.mxu0 0.0
      %2325 = vmatprep.subr.mxu0 0.0
      %2326 = vmatpush1.xpose.msra.mxu0 0.0
      %2327 = vmatprep.subr.mxu0 0.0
      %2328 = vmatpush1.xpose.msra.mxu0 0.0
      %2329 = vmatprep.subr.mxu0 0.0
      %2330 = vmatpush1.xpose.msra.mxu0 0.0
      %2331 = vmatprep.subr.mxu0 0.0
      %2332 = vmatpush1.xpose.msra.mxu0 0.0
      %2333 = vmatprep.subr.mxu0 0.0
      %2334 = vmatpush1.xpose.msra.mxu0 0.0
      %2335 = vmatprep.subr.mxu0 0.0
      %2336 = vmatpush1.xpose.msra.mxu0 0.0
      %2337 = vmatprep.subr.mxu0 0.0
      %2338 = vmatpush1.xpose.msra.mxu0 0.0
      %2339 = vmatprep.subr.mxu0 0.0
      %2340 = vmatpush1.xpose.msra.mxu0 0.0
      %2341 = vmatprep.subr.mxu0 0.0
      %2342 = vmatpush1.xpose.msra.mxu0 0.0
      %2343 = vmatprep.subr.mxu0 0.0
      %2344 = vmatpush1.xpose.msra.mxu0 0.0
      %2345 = vmatprep.subr.mxu0 0.0
      %2346 = vmatpush1.xpose.msra.mxu0 0.0
      %2347 = vmatprep.subr.mxu0 0.0
      %2348 = vmatpush1.xpose.msra.mxu0 0.0
      %2349 = vmatprep.subr.mxu0 0.0
      %2350 = vmatpush1.xpose.msra.mxu0 0.0
      %2351 = vmatprep.subr.mxu0 0.0
      %2352 = vmatpush1.xpose.msra.mxu0 0.0
      %2353 = vmatprep.mubr.f32.mxu0 0.0
      %2354 = vmatmul.mubr.f32.gmra.mrb[0].mxu0 %v2242
      %v2355 = vpop.f32.mrb[0].mxu0
      %v2356 = vadd.f32 0.0, %v2355
      %v2357 = vpop.f32.mrb[0].mxu0
      %2358 = vmatprep.mubr.f32.mxu0 0.0
      %2359 = vmatmul.mubr.f32.gmra.mrb[0].mxu0 %v2245
      %v2360 = vpop.f32.mrb[0].mxu0
      %v2361 = vadd.f32 0.0, %v2360
      %v2362 = vpop.f32.mrb[0].mxu0
      %2363 = vmatprep.mubr.f32.mxu0 0.0
      %2364 = vmatmul.mubr.f32.gmra.mrb[0].mxu0 %v2248
      %v2365 = vpop.f32.mrb[0].mxu0
      %v2366 = vadd.f32 0.0, %v2365
      %v2367 = vpop.f32.mrb[0].mxu0
      %2368 = vmatprep.mubr.f32.mxu0 0.0
      %2369 = vmatmul.mubr.f32.gmra.mrb[0].mxu0 %v2251
      %v2370 = vpop.f32.mrb[0].mxu0
      %v2371 = vadd.f32 0.0, %v2370
      %v2372 = vpop.f32.mrb[0].mxu0
      %2373 = vmatprep.mubr.f32.mxu0 0.0
      %2374 = vmatmul.mubr.f32.gmra.mrb[0].mxu0 %v2254
      %v2375 = vpop.f32.mrb[0].mxu0
      %v2376 = vadd.f32 0.0, %v2375
      %v2377 = vpop.f32.mrb[0].mxu0
      %2378 = vmatprep.mubr.f32.mxu0 0.0
      %2379 = vmatmul.mubr.f32.gmra.mrb[0].mxu0 %v2257
      %v2380 = vpop.f32.mrb[0].mxu0
      %v2381 = vadd.f32 0.0, %v2380
      %v2382 = vpop.f32.mrb[0].mxu0
      %2383 = vmatprep.mubr.f32.mxu0 0.0
      %2384 = vmatmul.mubr.f32.gmra.mrb[0].mxu0 %v2260
      %v2385 = vpop.f32.mrb[0].mxu0
      %v2386 = vadd.f32 0.0, %v2385
      %v2387 = vpop.f32.mrb[0].mxu0
      %2388 = vmatprep.mubr.f32.mxu0 0.0
      %2389 = vmatmul.mubr.f32.gmra.mrb[0].mxu0 %v2263
      %v2390 = vpop.f32.mrb[0].mxu0
      %v2391 = vadd.f32 0.0, %v2390
      %v2392 = vpop.f32.mrb[0].mxu0
      %2393 = vdwg.mxu0
      %v2395 = vsel %vm501, %v1889, 0
      %v2398 = vsel %vm501, %v1890, 0
      %v2401 = vsel %vm501, %v1891, 0
      %v2404 = vsel %vm501, %v1892, 0
      %v2407 = vsel %vm501, %v1893, 0
      %v2410 = vsel %vm501, %v1894, 0
      %v2413 = vsel %vm501, %v1895, 0
      %v2416 = vsel %vm501, %v1896, 0
      %v2419 = vsel %vm501, %v1274, 0
      %v2422 = vsel %vm501, %v1279, 0
      %v2425 = vsel %vm501, %v1284, 0
      %v2428 = vsel %vm501, %v1289, 0
      %v2431 = vsel %vm501, %v1294, 0
      %v2434 = vsel %vm501, %v1299, 0
      %v2437 = vsel %vm501, %v1304, 0
      %v2440 = vsel %vm501, %v1309, 0
      %2442 = vmatprep.subr.mxu0 0.0
      %2443 = vmatpush1.xpose.msra.mxu0 %v2419
      %2444 = vmatprep.subr.mxu0 0.0
      %2445 = vmatpush1.xpose.msra.mxu0 %v2422
      %2446 = vmatprep.subr.mxu0 0.0
      %2447 = vmatpush1.xpose.msra.mxu0 %v2425
      %2448 = vmatprep.subr.mxu0 0.0
      %2449 = vmatpush1.xpose.msra.mxu0 %v2428
      %2450 = vmatprep.subr.mxu0 0.0
      %2451 = vmatpush1.xpose.msra.mxu0 %v2431
      %2452 = vmatprep.subr.mxu0 0.0
      %2453 = vmatpush1.xpose.msra.mxu0 %v2434
      %2454 = vmatprep.subr.mxu0 0.0
      %2455 = vmatpush1.xpose.msra.mxu0 %v2437
      %2456 = vmatprep.subr.mxu0 0.0
      %2457 = vmatpush1.xpose.msra.mxu0 %v2440
      %2458 = vmatprep.subr.mxu0 0.0
      %2459 = vmatpush1.xpose.msra.mxu0 %v1981
      %2460 = vmatprep.subr.mxu0 0.0
      %2461 = vmatpush1.xpose.msra.mxu0 %v1981
      %2462 = vmatprep.subr.mxu0 0.0
      %2463 = vmatpush1.xpose.msra.mxu0 %v1981
      %2464 = vmatprep.subr.mxu0 0.0
      %2465 = vmatpush1.xpose.msra.mxu0 %v1981
      %2466 = vmatprep.subr.mxu0 0.0
      %2467 = vmatpush1.xpose.msra.mxu0 %v1981
      %2468 = vmatprep.subr.mxu0 0.0
      %2469 = vmatpush1.xpose.msra.mxu0 %v1981
      %2470 = vmatprep.subr.mxu0 0.0
      %2471 = vmatpush1.xpose.msra.mxu0 %v1981
      %2472 = vmatprep.subr.mxu0 0.0
      %2473 = vmatpush1.xpose.msra.mxu0 %v1981
      %2474 = vmatprep.subr.mxu0 0.0
      %2475 = vmatpush1.xpose.msra.mxu0 0.0
      %2476 = vmatprep.subr.mxu0 0.0
      %2477 = vmatpush1.xpose.msra.mxu0 0.0
      %2478 = vmatprep.subr.mxu0 0.0
      %2479 = vmatpush1.xpose.msra.mxu0 0.0
      %2480 = vmatprep.subr.mxu0 0.0
      %2481 = vmatpush1.xpose.msra.mxu0 0.0
      %2482 = vmatprep.subr.mxu0 0.0
      %2483 = vmatpush1.xpose.msra.mxu0 0.0
      %2484 = vmatprep.subr.mxu0 0.0
      %2485 = vmatpush1.xpose.msra.mxu0 0.0
      %2486 = vmatprep.subr.mxu0 0.0
      %2487 = vmatpush1.xpose.msra.mxu0 0.0
      %2488 = vmatprep.subr.mxu0 0.0
      %2489 = vmatpush1.xpose.msra.mxu0 0.0
      %2490 = vmatprep.subr.mxu0 0.0
      %2491 = vmatpush1.xpose.msra.mxu0 0.0
      %2492 = vmatprep.subr.mxu0 0.0
      %2493 = vmatpush1.xpose.msra.mxu0 0.0
      %2494 = vmatprep.subr.mxu0 0.0
      %2495 = vmatpush1.xpose.msra.mxu0 0.0
      %2496 = vmatprep.subr.mxu0 0.0
      %2497 = vmatpush1.xpose.msra.mxu0 0.0
      %2498 = vmatprep.subr.mxu0 0.0
      %2499 = vmatpush1.xpose.msra.mxu0 0.0
      %2500 = vmatprep.subr.mxu0 0.0
      %2501 = vmatpush1.xpose.msra.mxu0 0.0
      %2502 = vmatprep.subr.mxu0 0.0
      %2503 = vmatpush1.xpose.msra.mxu0 0.0
      %2504 = vmatprep.subr.mxu0 0.0
      %2505 = vmatpush1.xpose.msra.mxu0 0.0
      %2506 = vmatprep.mubr.f32.mxu0 0.0
      %2507 = vmatmul.mubr.f32.gmra.mrb[0].mxu0 %v2395
      %v2508 = vpop.f32.mrb[0].mxu0
      %v2509 = vadd.f32 0.0, %v2508
      %v2510 = vpop.f32.mrb[0].mxu0
      %2511 = vmatprep.mubr.f32.mxu0 0.0
      %2512 = vmatmul.mubr.f32.gmra.mrb[0].mxu0 %v2398
      %v2513 = vpop.f32.mrb[0].mxu0
      %v2514 = vadd.f32 0.0, %v2513
      %v2515 = vpop.f32.mrb[0].mxu0
      %2516 = vmatprep.mubr.f32.mxu0 0.0
      %2517 = vmatmul.mubr.f32.gmra.mrb[0].mxu0 %v2401
      %v2518 = vpop.f32.mrb[0].mxu0
      %v2519 = vadd.f32 0.0, %v2518
      %v2520 = vpop.f32.mrb[0].mxu0
      %2521 = vmatprep.mubr.f32.mxu0 0.0
      %2522 = vmatmul.mubr.f32.gmra.mrb[0].mxu0 %v2404
      %v2523 = vpop.f32.mrb[0].mxu0
      %v2524 = vadd.f32 0.0, %v2523
      %v2525 = vpop.f32.mrb[0].mxu0
      %2526 = vmatprep.mubr.f32.mxu0 0.0
      %2527 = vmatmul.mubr.f32.gmra.mrb[0].mxu0 %v2407
      %v2528 = vpop.f32.mrb[0].mxu0
      %v2529 = vadd.f32 0.0, %v2528
      %v2530 = vpop.f32.mrb[0].mxu0
      %2531 = vmatprep.mubr.f32.mxu0 0.0
      %2532 = vmatmul.mubr.f32.gmra.mrb[0].mxu0 %v2410
      %v2533 = vpop.f32.mrb[0].mxu0
      %v2534 = vadd.f32 0.0, %v2533
      %v2535 = vpop.f32.mrb[0].mxu0
      %2536 = vmatprep.mubr.f32.mxu0 0.0
      %2537 = vmatmul.mubr.f32.gmra.mrb[0].mxu0 %v2413
      %v2538 = vpop.f32.mrb[0].mxu0
      %v2539 = vadd.f32 0.0, %v2538
      %v2540 = vpop.f32.mrb[0].mxu0
      %2541 = vmatprep.mubr.f32.mxu0 0.0
      %2542 = vmatmul.mubr.f32.gmra.mrb[0].mxu0 %v2416
      %v2543 = vpop.f32.mrb[0].mxu0
      %v2544 = vadd.f32 0.0, %v2543
      %v2545 = vpop.f32.mrb[0].mxu0
      %2546 = vdwg.mxu0
      %v2548 = vsel %vm501, %v1897, 0
      %v2551 = vsel %vm501, %v1898, 0
      %v2554 = vsel %vm501, %v1899, 0
      %v2557 = vsel %vm501, %v1900, 0
      %v2560 = vsel %vm501, %v1901, 0
      %v2563 = vsel %vm501, %v1902, 0
      %v2566 = vsel %vm501, %v1903, 0
      %v2569 = vsel %vm501, %v1904, 0
      %v2572 = vsel %vm501, %v1314, 0
      %v2575 = vsel %vm501, %v1319, 0
      %v2578 = vsel %vm501, %v1324, 0
      %v2581 = vsel %vm501, %v1329, 0
      %v2584 = vsel %vm501, %v1334, 0
      %v2587 = vsel %vm501, %v1339, 0
      %v2590 = vsel %vm501, %v1344, 0
      %v2593 = vsel %vm501, %v1349, 0
      %2595 = vmatprep.subr.mxu0 0.0
      %2596 = vmatpush1.xpose.msra.mxu0 %v2572
      %2597 = vmatprep.subr.mxu0 0.0
      %2598 = vmatpush1.xpose.msra.mxu0 %v2575
      %2599 = vmatprep.subr.mxu0 0.0
      %2600 = vmatpush1.xpose.msra.mxu0 %v2578
      %2601 = vmatprep.subr.mxu0 0.0
      %2602 = vmatpush1.xpose.msra.mxu0 %v2581
      %2603 = vmatprep.subr.mxu0 0.0
      %2604 = vmatpush1.xpose.msra.mxu0 %v2584
      %2605 = vmatprep.subr.mxu0 0.0
      %2606 = vmatpush1.xpose.msra.mxu0 %v2587
      %2607 = vmatprep.subr.mxu0 0.0
      %2608 = vmatpush1.xpose.msra.mxu0 %v2590
      %2609 = vmatprep.subr.mxu0 0.0
      %2610 = vmatpush1.xpose.msra.mxu0 %v2593
      %2611 = vmatprep.subr.mxu0 0.0
      %2612 = vmatpush1.xpose.msra.mxu0 %v1981
      %2613 = vmatprep.subr.mxu0 0.0
      %2614 = vmatpush1.xpose.msra.mxu0 %v1981
      %2615 = vmatprep.subr.mxu0 0.0
      %2616 = vmatpush1.xpose.msra.mxu0 %v1981
      %2617 = vmatprep.subr.mxu0 0.0
      %2618 = vmatpush1.xpose.msra.mxu0 %v1981
      %2619 = vmatprep.subr.mxu0 0.0
      %2620 = vmatpush1.xpose.msra.mxu0 %v1981
      %2621 = vmatprep.subr.mxu0 0.0
      %2622 = vmatpush1.xpose.msra.mxu0 %v1981
      %2623 = vmatprep.subr.mxu0 0.0
      %2624 = vmatpush1.xpose.msra.mxu0 %v1981
      %2625 = vmatprep.subr.mxu0 0.0
      %2626 = vmatpush1.xpose.msra.mxu0 %v1981
      %2627 = vmatprep.subr.mxu0 0.0
      %2628 = vmatpush1.xpose.msra.mxu0 0.0
      %2629 = vmatprep.subr.mxu0 0.0
      %2630 = vmatpush1.xpose.msra.mxu0 0.0
      %2631 = vmatprep.subr.mxu0 0.0
      %2632 = vmatpush1.xpose.msra.mxu0 0.0
      %2633 = vmatprep.subr.mxu0 0.0
      %2634 = vmatpush1.xpose.msra.mxu0 0.0
      %2635 = vmatprep.subr.mxu0 0.0
      %2636 = vmatpush1.xpose.msra.mxu0 0.0
      %2637 = vmatprep.subr.mxu0 0.0
      %2638 = vmatpush1.xpose.msra.mxu0 0.0
      %2639 = vmatprep.subr.mxu0 0.0
      %2640 = vmatpush1.xpose.msra.mxu0 0.0
      %2641 = vmatprep.subr.mxu0 0.0
      %2642 = vmatpush1.xpose.msra.mxu0 0.0
      %2643 = vmatprep.subr.mxu0 0.0
      %2644 = vmatpush1.xpose.msra.mxu0 0.0
      %2645 = vmatprep.subr.mxu0 0.0
      %2646 = vmatpush1.xpose.msra.mxu0 0.0
      %2647 = vmatprep.subr.mxu0 0.0
      %2648 = vmatpush1.xpose.msra.mxu0 0.0
      %2649 = vmatprep.subr.mxu0 0.0
      %2650 = vmatpush1.xpose.msra.mxu0 0.0
      %2651 = vmatprep.subr.mxu0 0.0
      %2652 = vmatpush1.xpose.msra.mxu0 0.0
      %2653 = vmatprep.subr.mxu0 0.0
      %2654 = vmatpush1.xpose.msra.mxu0 0.0
      %2655 = vmatprep.subr.mxu0 0.0
      %2656 = vmatpush1.xpose.msra.mxu0 0.0
      %2657 = vmatprep.subr.mxu0 0.0
      %2658 = vmatpush1.xpose.msra.mxu0 0.0
      %2659 = vmatprep.mubr.f32.mxu0 0.0
      %2660 = vmatmul.mubr.f32.gmra.mrb[0].mxu0 %v2548
      %v2661 = vpop.f32.mrb[0].mxu0
      %v2662 = vadd.f32 0.0, %v2661
      %v2663 = vpop.f32.mrb[0].mxu0
      %2664 = vmatprep.mubr.f32.mxu0 0.0
      %2665 = vmatmul.mubr.f32.gmra.mrb[0].mxu0 %v2551
      %v2666 = vpop.f32.mrb[0].mxu0
      %v2667 = vadd.f32 0.0, %v2666
      %v2668 = vpop.f32.mrb[0].mxu0
      %2669 = vmatprep.mubr.f32.mxu0 0.0
      %2670 = vmatmul.mubr.f32.gmra.mrb[0].mxu0 %v2554
      %v2671 = vpop.f32.mrb[0].mxu0
      %v2672 = vadd.f32 0.0, %v2671
      %v2673 = vpop.f32.mrb[0].mxu0
      %2674 = vmatprep.mubr.f32.mxu0 0.0
      %2675 = vmatmul.mubr.f32.gmra.mrb[0].mxu0 %v2557
      %v2676 = vpop.f32.mrb[0].mxu0
      %v2677 = vadd.f32 0.0, %v2676
      %v2678 = vpop.f32.mrb[0].mxu0
      %2679 = vmatprep.mubr.f32.mxu0 0.0
      %2680 = vmatmul.mubr.f32.gmra.mrb[0].mxu0 %v2560
      %v2681 = vpop.f32.mrb[0].mxu0
      %v2682 = vadd.f32 0.0, %v2681
      %v2683 = vpop.f32.mrb[0].mxu0
      %2684 = vmatprep.mubr.f32.mxu0 0.0
      %2685 = vmatmul.mubr.f32.gmra.mrb[0].mxu0 %v2563
      %v2686 = vpop.f32.mrb[0].mxu0
      %v2687 = vadd.f32 0.0, %v2686
      %v2688 = vpop.f32.mrb[0].mxu0
      %2689 = vmatprep.mubr.f32.mxu0 0.0
      %2690 = vmatmul.mubr.f32.gmra.mrb[0].mxu0 %v2566
      %v2691 = vpop.f32.mrb[0].mxu0
      %v2692 = vadd.f32 0.0, %v2691
      %v2693 = vpop.f32.mrb[0].mxu0
      %2694 = vmatprep.mubr.f32.mxu0 0.0
      %2695 = vmatmul.mubr.f32.gmra.mrb[0].mxu0 %v2569
      %v2696 = vpop.f32.mrb[0].mxu0
      %v2697 = vadd.f32 0.0, %v2696
      %v2698 = vpop.f32.mrb[0].mxu0
      %2699 = vdwg.mxu0
      %v2701 = vsel %vm501, %v1905, 0
      %v2704 = vsel %vm501, %v1906, 0
      %v2707 = vsel %vm501, %v1907, 0
      %v2710 = vsel %vm501, %v1908, 0
      %v2713 = vsel %vm501, %v1909, 0
      %v2716 = vsel %vm501, %v1910, 0
      %v2719 = vsel %vm501, %v1911, 0
      %v2722 = vsel %vm501, %v1912, 0
      %v2725 = vsel %vm501, %v1354, 0
      %v2728 = vsel %vm501, %v1359, 0
      %v2731 = vsel %vm501, %v1364, 0
      %v2734 = vsel %vm501, %v1369, 0
      %v2737 = vsel %vm501, %v1374, 0
      %v2740 = vsel %vm501, %v1379, 0
      %v2743 = vsel %vm501, %v1384, 0
      %v2746 = vsel %vm501, %v1389, 0
      %2748 = vmatprep.subr.mxu0 0.0
      %2749 = vmatpush1.xpose.msra.mxu0 %v2725
      %2750 = vmatprep.subr.mxu0 0.0
      %2751 = vmatpush1.xpose.msra.mxu0 %v2728
      %2752 = vmatprep.subr.mxu0 0.0
      %2753 = vmatpush1.xpose.msra.mxu0 %v2731
      %2754 = vmatprep.subr.mxu0 0.0
      %2755 = vmatpush1.xpose.msra.mxu0 %v2734
      %2756 = vmatprep.subr.mxu0 0.0
      %2757 = vmatpush1.xpose.msra.mxu0 %v2737
      %2758 = vmatprep.subr.mxu0 0.0
      %2759 = vmatpush1.xpose.msra.mxu0 %v2740
      %2760 = vmatprep.subr.mxu0 0.0
      %2761 = vmatpush1.xpose.msra.mxu0 %v2743
      %2762 = vmatprep.subr.mxu0 0.0
      %2763 = vmatpush1.xpose.msra.mxu0 %v2746
      %2764 = vmatprep.subr.mxu0 0.0
      %2765 = vmatpush1.xpose.msra.mxu0 %v1981
      %2766 = vmatprep.subr.mxu0 0.0
      %2767 = vmatpush1.xpose.msra.mxu0 %v1981
      %2768 = vmatprep.subr.mxu0 0.0
      %2769 = vmatpush1.xpose.msra.mxu0 %v1981
      %2770 = vmatprep.subr.mxu0 0.0
      %2771 = vmatpush1.xpose.msra.mxu0 %v1981
      %2772 = vmatprep.subr.mxu0 0.0
      %2773 = vmatpush1.xpose.msra.mxu0 %v1981
      %2774 = vmatprep.subr.mxu0 0.0
      %2775 = vmatpush1.xpose.msra.mxu0 %v1981
      %2776 = vmatprep.subr.mxu0 0.0
      %2777 = vmatpush1.xpose.msra.mxu0 %v1981
      %2778 = vmatprep.subr.mxu0 0.0
      %2779 = vmatpush1.xpose.msra.mxu0 %v1981
      %2780 = vmatprep.subr.mxu0 0.0
      %2781 = vmatpush1.xpose.msra.mxu0 0.0
      %2782 = vmatprep.subr.mxu0 0.0
      %2783 = vmatpush1.xpose.msra.mxu0 0.0
      %2784 = vmatprep.subr.mxu0 0.0
      %2785 = vmatpush1.xpose.msra.mxu0 0.0
      %2786 = vmatprep.subr.mxu0 0.0
      %2787 = vmatpush1.xpose.msra.mxu0 0.0
      %2788 = vmatprep.subr.mxu0 0.0
      %2789 = vmatpush1.xpose.msra.mxu0 0.0
      %2790 = vmatprep.subr.mxu0 0.0
      %2791 = vmatpush1.xpose.msra.mxu0 0.0
      %2792 = vmatprep.subr.mxu0 0.0
      %2793 = vmatpush1.xpose.msra.mxu0 0.0
      %2794 = vmatprep.subr.mxu0 0.0
      %2795 = vmatpush1.xpose.msra.mxu0 0.0
      %2796 = vmatprep.subr.mxu0 0.0
      %2797 = vmatpush1.xpose.msra.mxu0 0.0
      %2798 = vmatprep.subr.mxu0 0.0
      %2799 = vmatpush1.xpose.msra.mxu0 0.0
      %2800 = vmatprep.subr.mxu0 0.0
      %2801 = vmatpush1.xpose.msra.mxu0 0.0
      %2802 = vmatprep.subr.mxu0 0.0
      %2803 = vmatpush1.xpose.msra.mxu0 0.0
      %2804 = vmatprep.subr.mxu0 0.0
      %2805 = vmatpush1.xpose.msra.mxu0 0.0
      %2806 = vmatprep.subr.mxu0 0.0
      %2807 = vmatpush1.xpose.msra.mxu0 0.0
      %2808 = vmatprep.subr.mxu0 0.0
      %2809 = vmatpush1.xpose.msra.mxu0 0.0
      %2810 = vmatprep.subr.mxu0 0.0
      %2811 = vmatpush1.xpose.msra.mxu0 0.0
      %2812 = vmatprep.mubr.f32.mxu0 0.0
      %2813 = vmatmul.mubr.f32.gmra.mrb[0].mxu0 %v2701
      %v2814 = vpop.f32.mrb[0].mxu0
      %v2815 = vadd.f32 0.0, %v2814
      %v2816 = vpop.f32.mrb[0].mxu0
      %2817 = vmatprep.mubr.f32.mxu0 0.0
      %2818 = vmatmul.mubr.f32.gmra.mrb[0].mxu0 %v2704
      %v2819 = vpop.f32.mrb[0].mxu0
      %v2820 = vadd.f32 0.0, %v2819
      %v2821 = vpop.f32.mrb[0].mxu0
      %2822 = vmatprep.mubr.f32.mxu0 0.0
      %2823 = vmatmul.mubr.f32.gmra.mrb[0].mxu0 %v2707
      %v2824 = vpop.f32.mrb[0].mxu0
      %v2825 = vadd.f32 0.0, %v2824
      %v2826 = vpop.f32.mrb[0].mxu0
      %2827 = vmatprep.mubr.f32.mxu0 0.0
      %2828 = vmatmul.mubr.f32.gmra.mrb[0].mxu0 %v2710
      %v2829 = vpop.f32.mrb[0].mxu0
      %v2830 = vadd.f32 0.0, %v2829
      %v2831 = vpop.f32.mrb[0].mxu0
      %2832 = vmatprep.mubr.f32.mxu0 0.0
      %2833 = vmatmul.mubr.f32.gmra.mrb[0].mxu0 %v2713
      %v2834 = vpop.f32.mrb[0].mxu0
      %v2835 = vadd.f32 0.0, %v2834
      %v2836 = vpop.f32.mrb[0].mxu0
      %2837 = vmatprep.mubr.f32.mxu0 0.0
      %2838 = vmatmul.mubr.f32.gmra.mrb[0].mxu0 %v2716
      %v2839 = vpop.f32.mrb[0].mxu0
      %v2840 = vadd.f32 0.0, %v2839
      %v2841 = vpop.f32.mrb[0].mxu0
      %2842 = vmatprep.mubr.f32.mxu0 0.0
      %2843 = vmatmul.mubr.f32.gmra.mrb[0].mxu0 %v2719
      %v2844 = vpop.f32.mrb[0].mxu0
      %v2845 = vadd.f32 0.0, %v2844
      %v2846 = vpop.f32.mrb[0].mxu0
      %2847 = vmatprep.mubr.f32.mxu0 0.0
      %2848 = vmatmul.mubr.f32.gmra.mrb[0].mxu0 %v2722
      %v2849 = vpop.f32.mrb[0].mxu0
      %v2850 = vadd.f32 0.0, %v2849
      %v2851 = vpop.f32.mrb[0].mxu0
      %2852 = vdwg.mxu0
      %v2854 = vsel %vm501, %v1913, 0
      %v2857 = vsel %vm501, %v1914, 0
      %v2860 = vsel %vm501, %v1915, 0
      %v2863 = vsel %vm501, %v1916, 0
      %v2866 = vsel %vm501, %v1917, 0
      %v2869 = vsel %vm501, %v1918, 0
      %v2872 = vsel %vm501, %v1919, 0
      %v2875 = vsel %vm501, %v1920, 0
      %v2878 = vsel %vm501, %v1394, 0
      %v2881 = vsel %vm501, %v1399, 0
      %v2884 = vsel %vm501, %v1404, 0
      %v2887 = vsel %vm501, %v1409, 0
      %v2890 = vsel %vm501, %v1414, 0
      %v2893 = vsel %vm501, %v1419, 0
      %v2896 = vsel %vm501, %v1424, 0
      %v2899 = vsel %vm501, %v1429, 0
      %2901 = vmatprep.subr.mxu0 0.0
      %2902 = vmatpush1.xpose.msra.mxu0 %v2878
      %2903 = vmatprep.subr.mxu0 0.0
      %2904 = vmatpush1.xpose.msra.mxu0 %v2881
      %2905 = vmatprep.subr.mxu0 0.0
      %2906 = vmatpush1.xpose.msra.mxu0 %v2884
      %2907 = vmatprep.subr.mxu0 0.0
      %2908 = vmatpush1.xpose.msra.mxu0 %v2887
      %2909 = vmatprep.subr.mxu0 0.0
      %2910 = vmatpush1.xpose.msra.mxu0 %v2890
      %2911 = vmatprep.subr.mxu0 0.0
      %2912 = vmatpush1.xpose.msra.mxu0 %v2893
      %2913 = vmatprep.subr.mxu0 0.0
      %2914 = vmatpush1.xpose.msra.mxu0 %v2896
      %2915 = vmatprep.subr.mxu0 0.0
      %2916 = vmatpush1.xpose.msra.mxu0 %v2899
      %2917 = vmatprep.subr.mxu0 0.0
      %2918 = vmatpush1.xpose.msra.mxu0 %v1981
      %2919 = vmatprep.subr.mxu0 0.0
      %2920 = vmatpush1.xpose.msra.mxu0 %v1981
      %2921 = vmatprep.subr.mxu0 0.0
      %2922 = vmatpush1.xpose.msra.mxu0 %v1981
      %2923 = vmatprep.subr.mxu0 0.0
      %2924 = vmatpush1.xpose.msra.mxu0 %v1981
      %2925 = vmatprep.subr.mxu0 0.0
      %2926 = vmatpush1.xpose.msra.mxu0 %v1981
      %2927 = vmatprep.subr.mxu0 0.0
      %2928 = vmatpush1.xpose.msra.mxu0 %v1981
      %2929 = vmatprep.subr.mxu0 0.0
      %2930 = vmatpush1.xpose.msra.mxu0 %v1981
      %2931 = vmatprep.subr.mxu0 0.0
      %2932 = vmatpush1.xpose.msra.mxu0 %v1981
      %2933 = vmatprep.subr.mxu0 0.0
      %2934 = vmatpush1.xpose.msra.mxu0 0.0
      %2935 = vmatprep.subr.mxu0 0.0
      %2936 = vmatpush1.xpose.msra.mxu0 0.0
      %2937 = vmatprep.subr.mxu0 0.0
      %2938 = vmatpush1.xpose.msra.mxu0 0.0
      %2939 = vmatprep.subr.mxu0 0.0
      %2940 = vmatpush1.xpose.msra.mxu0 0.0
      %2941 = vmatprep.subr.mxu0 0.0
      %2942 = vmatpush1.xpose.msra.mxu0 0.0
      %2943 = vmatprep.subr.mxu0 0.0
      %2944 = vmatpush1.xpose.msra.mxu0 0.0
      %2945 = vmatprep.subr.mxu0 0.0
      %2946 = vmatpush1.xpose.msra.mxu0 0.0
      %2947 = vmatprep.subr.mxu0 0.0
      %2948 = vmatpush1.xpose.msra.mxu0 0.0
      %2949 = vmatprep.subr.mxu0 0.0
      %2950 = vmatpush1.xpose.msra.mxu0 0.0
      %2951 = vmatprep.subr.mxu0 0.0
      %2952 = vmatpush1.xpose.msra.mxu0 0.0
      %2953 = vmatprep.subr.mxu0 0.0
      %2954 = vmatpush1.xpose.msra.mxu0 0.0
      %2955 = vmatprep.subr.mxu0 0.0
      %2956 = vmatpush1.xpose.msra.mxu0 0.0
      %2957 = vmatprep.subr.mxu0 0.0
      %2958 = vmatpush1.xpose.msra.mxu0 0.0
      %2959 = vmatprep.subr.mxu0 0.0
      %2960 = vmatpush1.xpose.msra.mxu0 0.0
      %2961 = vmatprep.subr.mxu0 0.0
      %2962 = vmatpush1.xpose.msra.mxu0 0.0
      %2963 = vmatprep.subr.mxu0 0.0
      %2964 = vmatpush1.xpose.msra.mxu0 0.0
      %2965 = vmatprep.mubr.f32.mxu0 0.0
      %2966 = vmatmul.mubr.f32.gmra.mrb[0].mxu0 %v2854
      %v2967 = vpop.f32.mrb[0].mxu0
      %v2968 = vadd.f32 0.0, %v2967
      %v2969 = vpop.f32.mrb[0].mxu0
      %2970 = vmatprep.mubr.f32.mxu0 0.0
      %2971 = vmatmul.mubr.f32.gmra.mrb[0].mxu0 %v2857
      %v2972 = vpop.f32.mrb[0].mxu0
      %v2973 = vadd.f32 0.0, %v2972
      %v2974 = vpop.f32.mrb[0].mxu0
      %2975 = vmatprep.mubr.f32.mxu0 0.0
      %2976 = vmatmul.mubr.f32.gmra.mrb[0].mxu0 %v2860
      %v2977 = vpop.f32.mrb[0].mxu0
      %v2978 = vadd.f32 0.0, %v2977
      %v2979 = vpop.f32.mrb[0].mxu0
      %2980 = vmatprep.mubr.f32.mxu0 0.0
      %2981 = vmatmul.mubr.f32.gmra.mrb[0].mxu0 %v2863
      %v2982 = vpop.f32.mrb[0].mxu0
      %v2983 = vadd.f32 0.0, %v2982
      %v2984 = vpop.f32.mrb[0].mxu0
      %2985 = vmatprep.mubr.f32.mxu0 0.0
      %2986 = vmatmul.mubr.f32.gmra.mrb[0].mxu0 %v2866
      %v2987 = vpop.f32.mrb[0].mxu0
      %v2988 = vadd.f32 0.0, %v2987
      %v2989 = vpop.f32.mrb[0].mxu0
      %2990 = vmatprep.mubr.f32.mxu0 0.0
      %2991 = vmatmul.mubr.f32.gmra.mrb[0].mxu0 %v2869
      %v2992 = vpop.f32.mrb[0].mxu0
      %v2993 = vadd.f32 0.0, %v2992
      %v2994 = vpop.f32.mrb[0].mxu0
      %2995 = vmatprep.mubr.f32.mxu0 0.0
      %2996 = vmatmul.mubr.f32.gmra.mrb[0].mxu0 %v2872
      %v2997 = vpop.f32.mrb[0].mxu0
      %v2998 = vadd.f32 0.0, %v2997
      %v2999 = vpop.f32.mrb[0].mxu0
      %3000 = vmatprep.mubr.f32.mxu0 0.0
      %3001 = vmatmul.mubr.f32.gmra.mrb[0].mxu0 %v2875
      %v3002 = vpop.f32.mrb[0].mxu0
      %v3003 = vadd.f32 0.0, %v3002
      %v3004 = vpop.f32.mrb[0].mxu0
      %3005 = vdwg.mxu0
      %v3007 = vsel %vm501, %v1921, 0
      %v3010 = vsel %vm501, %v1922, 0
      %v3013 = vsel %vm501, %v1923, 0
      %v3016 = vsel %vm501, %v1924, 0
      %v3019 = vsel %vm501, %v1925, 0
      %v3022 = vsel %vm501, %v1926, 0
      %v3025 = vsel %vm501, %v1927, 0
      %v3028 = vsel %vm501, %v1928, 0
      %v3031 = vsel %vm501, %v1434, 0
      %v3034 = vsel %vm501, %v1439, 0
      %v3037 = vsel %vm501, %v1444, 0
      %v3040 = vsel %vm501, %v1449, 0
      %v3043 = vsel %vm501, %v1454, 0
      %v3046 = vsel %vm501, %v1459, 0
      %v3049 = vsel %vm501, %v1464, 0
      %v3052 = vsel %vm501, %v1469, 0
      %3054 = vmatprep.subr.mxu0 0.0
      %3055 = vmatpush1.xpose.msra.mxu0 %v3031
      %3056 = vmatprep.subr.mxu0 0.0
      %3057 = vmatpush1.xpose.msra.mxu0 %v3034
      %3058 = vmatprep.subr.mxu0 0.0
      %3059 = vmatpush1.xpose.msra.mxu0 %v3037
      %3060 = vmatprep.subr.mxu0 0.0
      %3061 = vmatpush1.xpose.msra.mxu0 %v3040
      %3062 = vmatprep.subr.mxu0 0.0
      %3063 = vmatpush1.xpose.msra.mxu0 %v3043
      %3064 = vmatprep.subr.mxu0 0.0
      %3065 = vmatpush1.xpose.msra.mxu0 %v3046
      %3066 = vmatprep.subr.mxu0 0.0
      %3067 = vmatpush1.xpose.msra.mxu0 %v3049
      %3068 = vmatprep.subr.mxu0 0.0
      %3069 = vmatpush1.xpose.msra.mxu0 %v3052
      %3070 = vmatprep.subr.mxu0 0.0
      %3071 = vmatpush1.xpose.msra.mxu0 %v1981
      %3072 = vmatprep.subr.mxu0 0.0
      %3073 = vmatpush1.xpose.msra.mxu0 %v1981
      %3074 = vmatprep.subr.mxu0 0.0
      %3075 = vmatpush1.xpose.msra.mxu0 %v1981
      %3076 = vmatprep.subr.mxu0 0.0
      %3077 = vmatpush1.xpose.msra.mxu0 %v1981
      %3078 = vmatprep.subr.mxu0 0.0
      %3079 = vmatpush1.xpose.msra.mxu0 %v1981
      %3080 = vmatprep.subr.mxu0 0.0
      %3081 = vmatpush1.xpose.msra.mxu0 %v1981
      %3082 = vmatprep.subr.mxu0 0.0
      %3083 = vmatpush1.xpose.msra.mxu0 %v1981
      %3084 = vmatprep.subr.mxu0 0.0
      %3085 = vmatpush1.xpose.msra.mxu0 %v1981
      %3086 = vmatprep.subr.mxu0 0.0
      %3087 = vmatpush1.xpose.msra.mxu0 0.0
      %3088 = vmatprep.subr.mxu0 0.0
      %3089 = vmatpush1.xpose.msra.mxu0 0.0
      %3090 = vmatprep.subr.mxu0 0.0
      %3091 = vmatpush1.xpose.msra.mxu0 0.0
      %3092 = vmatprep.subr.mxu0 0.0
      %3093 = vmatpush1.xpose.msra.mxu0 0.0
      %3094 = vmatprep.subr.mxu0 0.0
      %3095 = vmatpush1.xpose.msra.mxu0 0.0
      %3096 = vmatprep.subr.mxu0 0.0
      %3097 = vmatpush1.xpose.msra.mxu0 0.0
      %3098 = vmatprep.subr.mxu0 0.0
      %3099 = vmatpush1.xpose.msra.mxu0 0.0
      %3100 = vmatprep.subr.mxu0 0.0
      %3101 = vmatpush1.xpose.msra.mxu0 0.0
      %3102 = vmatprep.subr.mxu0 0.0
      %3103 = vmatpush1.xpose.msra.mxu0 0.0
      %3104 = vmatprep.subr.mxu0 0.0
      %3105 = vmatpush1.xpose.msra.mxu0 0.0
      %3106 = vmatprep.subr.mxu0 0.0
      %3107 = vmatpush1.xpose.msra.mxu0 0.0
      %3108 = vmatprep.subr.mxu0 0.0
      %3109 = vmatpush1.xpose.msra.mxu0 0.0
      %3110 = vmatprep.subr.mxu0 0.0
      %3111 = vmatpush1.xpose.msra.mxu0 0.0
      %3112 = vmatprep.subr.mxu0 0.0
      %3113 = vmatpush1.xpose.msra.mxu0 0.0
      %3114 = vmatprep.subr.mxu0 0.0
      %3115 = vmatpush1.xpose.msra.mxu0 0.0
      %3116 = vmatprep.subr.mxu0 0.0
      %3117 = vmatpush1.xpose.msra.mxu0 0.0
      %3118 = vmatprep.mubr.f32.mxu0 0.0
      %3119 = vmatmul.mubr.f32.gmra.mrb[0].mxu0 %v3007
      %v3120 = vpop.f32.mrb[0].mxu0
      %v3121 = vadd.f32 0.0, %v3120
      %v3122 = vpop.f32.mrb[0].mxu0
      %3123 = vmatprep.mubr.f32.mxu0 0.0
      %3124 = vmatmul.mubr.f32.gmra.mrb[0].mxu0 %v3010
      %v3125 = vpop.f32.mrb[0].mxu0
      %v3126 = vadd.f32 0.0, %v3125
      %v3127 = vpop.f32.mrb[0].mxu0
      %3128 = vmatprep.mubr.f32.mxu0 0.0
      %3129 = vmatmul.mubr.f32.gmra.mrb[0].mxu0 %v3013
      %v3130 = vpop.f32.mrb[0].mxu0
      %v3131 = vadd.f32 0.0, %v3130
      %v3132 = vpop.f32.mrb[0].mxu0
      %3133 = vmatprep.mubr.f32.mxu0 0.0
      %3134 = vmatmul.mubr.f32.gmra.mrb[0].mxu0 %v3016
      %v3135 = vpop.f32.mrb[0].mxu0
      %v3136 = vadd.f32 0.0, %v3135
      %v3137 = vpop.f32.mrb[0].mxu0
      %3138 = vmatprep.mubr.f32.mxu0 0.0
      %3139 = vmatmul.mubr.f32.gmra.mrb[0].mxu0 %v3019
      %v3140 = vpop.f32.mrb[0].mxu0
      %v3141 = vadd.f32 0.0, %v3140
      %v3142 = vpop.f32.mrb[0].mxu0
      %3143 = vmatprep.mubr.f32.mxu0 0.0
      %3144 = vmatmul.mubr.f32.gmra.mrb[0].mxu0 %v3022
      %v3145 = vpop.f32.mrb[0].mxu0
      %v3146 = vadd.f32 0.0, %v3145
      %v3147 = vpop.f32.mrb[0].mxu0
      %3148 = vmatprep.mubr.f32.mxu0 0.0
      %3149 = vmatmul.mubr.f32.gmra.mrb[0].mxu0 %v3025
      %v3150 = vpop.f32.mrb[0].mxu0
      %v3151 = vadd.f32 0.0, %v3150
      %v3152 = vpop.f32.mrb[0].mxu0
      %3153 = vmatprep.mubr.f32.mxu0 0.0
      %3154 = vmatmul.mubr.f32.gmra.mrb[0].mxu0 %v3028
      %v3155 = vpop.f32.mrb[0].mxu0
      %v3156 = vadd.f32 0.0, %v3155
      %v3157 = vpop.f32.mrb[0].mxu0
      %3158 = vdwg.mxu0
      %v3159 = vsel %vm1931, 1, 0
      %vm3160 = vcmp.eq.s32.totalorder %v3159, 1
      %v3161 = vsel %vm3160, -1e+09, %v2050
      %v3162 = vsel %vm3160, -1e+09, %v2055
      %v3163 = vsel %vm3160, -1e+09, %v2060
      %v3164 = vsel %vm3160, -1e+09, %v2065
      %v3165 = vsel %vm3160, -1e+09, %v2070
      %v3166 = vsel %vm3160, -1e+09, %v2075
      %v3167 = vsel %vm3160, -1e+09, %v2080
      %v3168 = vsel %vm3160, -1e+09, %v2085
      %v3169 = vsel %vm3160, -1e+09, %v2203
      %v3170 = vsel %vm3160, -1e+09, %v2208
      %v3171 = vsel %vm3160, -1e+09, %v2213
      %v3172 = vsel %vm3160, -1e+09, %v2218
      %v3173 = vsel %vm3160, -1e+09, %v2223
      %v3174 = vsel %vm3160, -1e+09, %v2228
      %v3175 = vsel %vm3160, -1e+09, %v2233
      %v3176 = vsel %vm3160, -1e+09, %v2238
      %v3177 = vsel %vm3160, -1e+09, %v2356
      %v3178 = vsel %vm3160, -1e+09, %v2361
      %v3179 = vsel %vm3160, -1e+09, %v2366
      %v3180 = vsel %vm3160, -1e+09, %v2371
      %v3181 = vsel %vm3160, -1e+09, %v2376
      %v3182 = vsel %vm3160, -1e+09, %v2381
      %v3183 = vsel %vm3160, -1e+09, %v2386
      %v3184 = vsel %vm3160, -1e+09, %v2391
      %v3185 = vsel %vm3160, -1e+09, %v2509
      %v3186 = vsel %vm3160, -1e+09, %v2514
      %v3187 = vsel %vm3160, -1e+09, %v2519
      %v3188 = vsel %vm3160, -1e+09, %v2524
      %v3189 = vsel %vm3160, -1e+09, %v2529
      %v3190 = vsel %vm3160, -1e+09, %v2534
      %v3191 = vsel %vm3160, -1e+09, %v2539
      %v3192 = vsel %vm3160, -1e+09, %v2544
      %v3193 = vsel %vm3160, -1e+09, %v2662
      %v3194 = vsel %vm3160, -1e+09, %v2667
      %v3195 = vsel %vm3160, -1e+09, %v2672
      %v3196 = vsel %vm3160, -1e+09, %v2677
      %v3197 = vsel %vm3160, -1e+09, %v2682
      %v3198 = vsel %vm3160, -1e+09, %v2687
      %v3199 = vsel %vm3160, -1e+09, %v2692
      %v3200 = vsel %vm3160, -1e+09, %v2697
      %v3201 = vsel %vm3160, -1e+09, %v2815
      %v3202 = vsel %vm3160, -1e+09, %v2820
      %v3203 = vsel %vm3160, -1e+09, %v2825
      %v3204 = vsel %vm3160, -1e+09, %v2830
      %v3205 = vsel %vm3160, -1e+09, %v2835
      %v3206 = vsel %vm3160, -1e+09, %v2840
      %v3207 = vsel %vm3160, -1e+09, %v2845
      %v3208 = vsel %vm3160, -1e+09, %v2850
      %v3209 = vsel %vm3160, -1e+09, %v2968
      %v3210 = vsel %vm3160, -1e+09, %v2973
      %v3211 = vsel %vm3160, -1e+09, %v2978
      %v3212 = vsel %vm3160, -1e+09, %v2983
      %v3213 = vsel %vm3160, -1e+09, %v2988
      %v3214 = vsel %vm3160, -1e+09, %v2993
      %v3215 = vsel %vm3160, -1e+09, %v2998
      %v3216 = vsel %vm3160, -1e+09, %v3003
      %v3217 = vsel %vm3160, -1e+09, %v3121
      %v3218 = vsel %vm3160, -1e+09, %v3126
      %v3219 = vsel %vm3160, -1e+09, %v3131
      %v3220 = vsel %vm3160, -1e+09, %v3136
      %v3221 = vsel %vm3160, -1e+09, %v3141
      %v3222 = vsel %vm3160, -1e+09, %v3146
      %v3223 = vsel %vm3160, -1e+09, %v3151
      %v3224 = vsel %vm3160, -1e+09, %v3156
      %3225 = vmax.xlane.f32.xlu0 %v3161
      %v3226 = vpop.xlane.xlu0 %3225
      %3227 = vmax.xlane.f32.xlu0 %v3162
      %v3228 = vpop.xlane.xlu0 %3227
      %3229 = vmax.xlane.f32.xlu0 %v3163
      %v3230 = vpop.xlane.xlu0 %3229
      %3231 = vmax.xlane.f32.xlu0 %v3164
      %v3232 = vpop.xlane.xlu0 %3231
      %3233 = vmax.xlane.f32.xlu0 %v3165
      %v3234 = vpop.xlane.xlu0 %3233
      %3235 = vmax.xlane.f32.xlu0 %v3166
      %v3236 = vpop.xlane.xlu0 %3235
      %3237 = vmax.xlane.f32.xlu0 %v3167
      %v3238 = vpop.xlane.xlu0 %3237
      %3239 = vmax.xlane.f32.xlu0 %v3168
      %v3240 = vpop.xlane.xlu0 %3239
      %3241 = vmax.xlane.f32.xlu0 %v3169
      %v3242 = vpop.xlane.xlu0 %3241
      %3243 = vmax.xlane.f32.xlu0 %v3170
      %v3244 = vpop.xlane.xlu0 %3243
      %3245 = vmax.xlane.f32.xlu0 %v3171
      %v3246 = vpop.xlane.xlu0 %3245
      %3247 = vmax.xlane.f32.xlu0 %v3172
      %v3248 = vpop.xlane.xlu0 %3247
      %3249 = vmax.xlane.f32.xlu0 %v3173
      %v3250 = vpop.xlane.xlu0 %3249
      %3251 = vmax.xlane.f32.xlu0 %v3174
      %v3252 = vpop.xlane.xlu0 %3251
      %3253 = vmax.xlane.f32.xlu0 %v3175
      %v3254 = vpop.xlane.xlu0 %3253
      %3255 = vmax.xlane.f32.xlu0 %v3176
      %v3256 = vpop.xlane.xlu0 %3255
      %3257 = vmax.xlane.f32.xlu0 %v3177
      %v3258 = vpop.xlane.xlu0 %3257
      %3259 = vmax.xlane.f32.xlu0 %v3178
      %v3260 = vpop.xlane.xlu0 %3259
      %3261 = vmax.xlane.f32.xlu0 %v3179
      %v3262 = vpop.xlane.xlu0 %3261
      %3263 = vmax.xlane.f32.xlu0 %v3180
      %v3264 = vpop.xlane.xlu0 %3263
      %3265 = vmax.xlane.f32.xlu0 %v3181
      %v3266 = vpop.xlane.xlu0 %3265
      %3267 = vmax.xlane.f32.xlu0 %v3182
      %v3268 = vpop.xlane.xlu0 %3267
      %3269 = vmax.xlane.f32.xlu0 %v3183
      %v3270 = vpop.xlane.xlu0 %3269
      %3271 = vmax.xlane.f32.xlu0 %v3184
      %v3272 = vpop.xlane.xlu0 %3271
      %3273 = vmax.xlane.f32.xlu0 %v3185
      %v3274 = vpop.xlane.xlu0 %3273
      %3275 = vmax.xlane.f32.xlu0 %v3186
      %v3276 = vpop.xlane.xlu0 %3275
      %3277 = vmax.xlane.f32.xlu0 %v3187
      %v3278 = vpop.xlane.xlu0 %3277
      %3279 = vmax.xlane.f32.xlu0 %v3188
      %v3280 = vpop.xlane.xlu0 %3279
      %3281 = vmax.xlane.f32.xlu0 %v3189
      %v3282 = vpop.xlane.xlu0 %3281
      %3283 = vmax.xlane.f32.xlu0 %v3190
      %v3284 = vpop.xlane.xlu0 %3283
      %3285 = vmax.xlane.f32.xlu0 %v3191
      %v3286 = vpop.xlane.xlu0 %3285
      %3287 = vmax.xlane.f32.xlu0 %v3192
      %v3288 = vpop.xlane.xlu0 %3287
      %3289 = vmax.xlane.f32.xlu0 %v3193
      %v3290 = vpop.xlane.xlu0 %3289
      %3291 = vmax.xlane.f32.xlu0 %v3194
      %v3292 = vpop.xlane.xlu0 %3291
      %3293 = vmax.xlane.f32.xlu0 %v3195
      %v3294 = vpop.xlane.xlu0 %3293
      %3295 = vmax.xlane.f32.xlu0 %v3196
      %v3296 = vpop.xlane.xlu0 %3295
      %3297 = vmax.xlane.f32.xlu0 %v3197
      %v3298 = vpop.xlane.xlu0 %3297
      %3299 = vmax.xlane.f32.xlu0 %v3198
      %v3300 = vpop.xlane.xlu0 %3299
      %3301 = vmax.xlane.f32.xlu0 %v3199
      %v3302 = vpop.xlane.xlu0 %3301
      %3303 = vmax.xlane.f32.xlu0 %v3200
      %v3304 = vpop.xlane.xlu0 %3303
      %3305 = vmax.xlane.f32.xlu0 %v3201
      %v3306 = vpop.xlane.xlu0 %3305
      %3307 = vmax.xlane.f32.xlu0 %v3202
      %v3308 = vpop.xlane.xlu0 %3307
      %3309 = vmax.xlane.f32.xlu0 %v3203
      %v3310 = vpop.xlane.xlu0 %3309
      %3311 = vmax.xlane.f32.xlu0 %v3204
      %v3312 = vpop.xlane.xlu0 %3311
      %3313 = vmax.xlane.f32.xlu0 %v3205
      %v3314 = vpop.xlane.xlu0 %3313
      %3315 = vmax.xlane.f32.xlu0 %v3206
      %v3316 = vpop.xlane.xlu0 %3315
      %3317 = vmax.xlane.f32.xlu0 %v3207
      %v3318 = vpop.xlane.xlu0 %3317
      %3319 = vmax.xlane.f32.xlu0 %v3208
      %v3320 = vpop.xlane.xlu0 %3319
      %3321 = vmax.xlane.f32.xlu0 %v3209
      %v3322 = vpop.xlane.xlu0 %3321
      %3323 = vmax.xlane.f32.xlu0 %v3210
      %v3324 = vpop.xlane.xlu0 %3323
      %3325 = vmax.xlane.f32.xlu0 %v3211
      %v3326 = vpop.xlane.xlu0 %3325
      %3327 = vmax.xlane.f32.xlu0 %v3212
      %v3328 = vpop.xlane.xlu0 %3327
      %3329 = vmax.xlane.f32.xlu0 %v3213
      %v3330 = vpop.xlane.xlu0 %3329
      %3331 = vmax.xlane.f32.xlu0 %v3214
      %v3332 = vpop.xlane.xlu0 %3331
      %3333 = vmax.xlane.f32.xlu0 %v3215
      %v3334 = vpop.xlane.xlu0 %3333
      %3335 = vmax.xlane.f32.xlu0 %v3216
      %v3336 = vpop.xlane.xlu0 %3335
      %3337 = vmax.xlane.f32.xlu0 %v3217
      %v3338 = vpop.xlane.xlu0 %3337
      %3339 = vmax.xlane.f32.xlu0 %v3218
      %v3340 = vpop.xlane.xlu0 %3339
      %3341 = vmax.xlane.f32.xlu0 %v3219
      %v3342 = vpop.xlane.xlu0 %3341
      %3343 = vmax.xlane.f32.xlu0 %v3220
      %v3344 = vpop.xlane.xlu0 %3343
      %3345 = vmax.xlane.f32.xlu0 %v3221
      %v3346 = vpop.xlane.xlu0 %3345
      %3347 = vmax.xlane.f32.xlu0 %v3222
      %v3348 = vpop.xlane.xlu0 %3347
      %3349 = vmax.xlane.f32.xlu0 %v3223
      %v3350 = vpop.xlane.xlu0 %3349
      %3351 = vmax.xlane.f32.xlu0 %v3224
      %v3352 = vpop.xlane.xlu0 %3351
      %v3353 = vsub.f32 %v3161, %v3226
      %v3354 = vsub.f32 %v3162, %v3228
      %v3355 = vsub.f32 %v3163, %v3230
      %v3356 = vsub.f32 %v3164, %v3232
      %v3357 = vsub.f32 %v3165, %v3234
      %v3358 = vsub.f32 %v3166, %v3236
      %v3359 = vsub.f32 %v3167, %v3238
      %v3360 = vsub.f32 %v3168, %v3240
      %v3361 = vsub.f32 %v3169, %v3242
      %v3362 = vsub.f32 %v3170, %v3244
      %v3363 = vsub.f32 %v3171, %v3246
      %v3364 = vsub.f32 %v3172, %v3248
      %v3365 = vsub.f32 %v3173, %v3250
      %v3366 = vsub.f32 %v3174, %v3252
      %v3367 = vsub.f32 %v3175, %v3254
      %v3368 = vsub.f32 %v3176, %v3256
      %v3369 = vsub.f32 %v3177, %v3258
      %v3370 = vsub.f32 %v3178, %v3260
      %v3371 = vsub.f32 %v3179, %v3262
      %v3372 = vsub.f32 %v3180, %v3264
      %v3373 = vsub.f32 %v3181, %v3266
      %v3374 = vsub.f32 %v3182, %v3268
      %v3375 = vsub.f32 %v3183, %v3270
      %v3376 = vsub.f32 %v3184, %v3272
      %v3377 = vsub.f32 %v3185, %v3274
      %v3378 = vsub.f32 %v3186, %v3276
      %v3379 = vsub.f32 %v3187, %v3278
      %v3380 = vsub.f32 %v3188, %v3280
      %v3381 = vsub.f32 %v3189, %v3282
      %v3382 = vsub.f32 %v3190, %v3284
      %v3383 = vsub.f32 %v3191, %v3286
      %v3384 = vsub.f32 %v3192, %v3288
      %v3385 = vsub.f32 %v3193, %v3290
      %v3386 = vsub.f32 %v3194, %v3292
      %v3387 = vsub.f32 %v3195, %v3294
      %v3388 = vsub.f32 %v3196, %v3296
      %v3389 = vsub.f32 %v3197, %v3298
      %v3390 = vsub.f32 %v3198, %v3300
      %v3391 = vsub.f32 %v3199, %v3302
      %v3392 = vsub.f32 %v3200, %v3304
      %v3393 = vsub.f32 %v3201, %v3306
      %v3394 = vsub.f32 %v3202, %v3308
      %v3395 = vsub.f32 %v3203, %v3310
      %v3396 = vsub.f32 %v3204, %v3312
      %v3397 = vsub.f32 %v3205, %v3314
      %v3398 = vsub.f32 %v3206, %v3316
      %v3399 = vsub.f32 %v3207, %v3318
      %v3400 = vsub.f32 %v3208, %v3320
      %v3401 = vsub.f32 %v3209, %v3322
      %v3402 = vsub.f32 %v3210, %v3324
      %v3403 = vsub.f32 %v3211, %v3326
      %v3404 = vsub.f32 %v3212, %v3328
      %v3405 = vsub.f32 %v3213, %v3330
      %v3406 = vsub.f32 %v3214, %v3332
      %v3407 = vsub.f32 %v3215, %v3334
      %v3408 = vsub.f32 %v3216, %v3336
      %v3409 = vsub.f32 %v3217, %v3338
      %v3410 = vsub.f32 %v3218, %v3340
      %v3411 = vsub.f32 %v3219, %v3342
      %v3412 = vsub.f32 %v3220, %v3344
      %v3413 = vsub.f32 %v3221, %v3346
      %v3414 = vsub.f32 %v3222, %v3348
      %v3415 = vsub.f32 %v3223, %v3350
      %v3416 = vsub.f32 %v3224, %v3352
      %v3417 = vmul.f32 %v3353, 1.442695
      %v3418 = vpow.pop %v3417
      %v3419 = vmul.f32 %v3354, 1.442695
      %v3420 = vpow.pop %v3419
      %v3421 = vmul.f32 %v3355, 1.442695
      %v3422 = vpow.pop %v3421
      %v3423 = vmul.f32 %v3356, 1.442695
      %v3424 = vpow.pop %v3423
      %v3425 = vmul.f32 %v3357, 1.442695
      %v3426 = vpow.pop %v3425
      %v3427 = vmul.f32 %v3358, 1.442695
      %v3428 = vpow.pop %v3427
      %v3429 = vmul.f32 %v3359, 1.442695
      %v3430 = vpow.pop %v3429
      %v3431 = vmul.f32 %v3360, 1.442695
      %v3432 = vpow.pop %v3431
      %v3433 = vmul.f32 %v3361, 1.442695
      %v3434 = vpow.pop %v3433
      %v3435 = vmul.f32 %v3362, 1.442695
      %v3436 = vpow.pop %v3435
      %v3437 = vmul.f32 %v3363, 1.442695
      %v3438 = vpow.pop %v3437
      %v3439 = vmul.f32 %v3364, 1.442695
      %v3440 = vpow.pop %v3439
      %v3441 = vmul.f32 %v3365, 1.442695
      %v3442 = vpow.pop %v3441
      %v3443 = vmul.f32 %v3366, 1.442695
      %v3444 = vpow.pop %v3443
      %v3445 = vmul.f32 %v3367, 1.442695
      %v3446 = vpow.pop %v3445
      %v3447 = vmul.f32 %v3368, 1.442695
      %v3448 = vpow.pop %v3447
      %v3449 = vmul.f32 %v3369, 1.442695
      %v3450 = vpow.pop %v3449
      %v3451 = vmul.f32 %v3370, 1.442695
      %v3452 = vpow.pop %v3451
      %v3453 = vmul.f32 %v3371, 1.442695
      %v3454 = vpow.pop %v3453
      %v3455 = vmul.f32 %v3372, 1.442695
      %v3456 = vpow.pop %v3455
      %v3457 = vmul.f32 %v3373, 1.442695
      %v3458 = vpow.pop %v3457
      %v3459 = vmul.f32 %v3374, 1.442695
      %v3460 = vpow.pop %v3459
      %v3461 = vmul.f32 %v3375, 1.442695
      %v3462 = vpow.pop %v3461
      %v3463 = vmul.f32 %v3376, 1.442695
      %v3464 = vpow.pop %v3463
      %v3465 = vmul.f32 %v3377, 1.442695
      %v3466 = vpow.pop %v3465
      %v3467 = vmul.f32 %v3378, 1.442695
      %v3468 = vpow.pop %v3467
      %v3469 = vmul.f32 %v3379, 1.442695
      %v3470 = vpow.pop %v3469
      %v3471 = vmul.f32 %v3380, 1.442695
      %v3472 = vpow.pop %v3471
      %v3473 = vmul.f32 %v3381, 1.442695
      %v3474 = vpow.pop %v3473
      %v3475 = vmul.f32 %v3382, 1.442695
      %v3476 = vpow.pop %v3475
      %v3477 = vmul.f32 %v3383, 1.442695
      %v3478 = vpow.pop %v3477
      %v3479 = vmul.f32 %v3384, 1.442695
      %v3480 = vpow.pop %v3479
      %v3481 = vmul.f32 %v3385, 1.442695
      %v3482 = vpow.pop %v3481
      %v3483 = vmul.f32 %v3386, 1.442695
      %v3484 = vpow.pop %v3483
      %v3485 = vmul.f32 %v3387, 1.442695
      %v3486 = vpow.pop %v3485
      %v3487 = vmul.f32 %v3388, 1.442695
      %v3488 = vpow.pop %v3487
      %v3489 = vmul.f32 %v3389, 1.442695
      %v3490 = vpow.pop %v3489
      %v3491 = vmul.f32 %v3390, 1.442695
      %v3492 = vpow.pop %v3491
      %v3493 = vmul.f32 %v3391, 1.442695
      %v3494 = vpow.pop %v3493
      %v3495 = vmul.f32 %v3392, 1.442695
      %v3496 = vpow.pop %v3495
      %v3497 = vmul.f32 %v3393, 1.442695
      %v3498 = vpow.pop %v3497
      %v3499 = vmul.f32 %v3394, 1.442695
      %v3500 = vpow.pop %v3499
      %v3501 = vmul.f32 %v3395, 1.442695
      %v3502 = vpow.pop %v3501
      %v3503 = vmul.f32 %v3396, 1.442695
      %v3504 = vpow.pop %v3503
      %v3505 = vmul.f32 %v3397, 1.442695
      %v3506 = vpow.pop %v3505
      %v3507 = vmul.f32 %v3398, 1.442695
      %v3508 = vpow.pop %v3507
      %v3509 = vmul.f32 %v3399, 1.442695
      %v3510 = vpow.pop %v3509
      %v3511 = vmul.f32 %v3400, 1.442695
      %v3512 = vpow.pop %v3511
      %v3513 = vmul.f32 %v3401, 1.442695
      %v3514 = vpow.pop %v3513
      %v3515 = vmul.f32 %v3402, 1.442695
      %v3516 = vpow.pop %v3515
      %v3517 = vmul.f32 %v3403, 1.442695
      %v3518 = vpow.pop %v3517
      %v3519 = vmul.f32 %v3404, 1.442695
      %v3520 = vpow.pop %v3519
      %v3521 = vmul.f32 %v3405, 1.442695
      %v3522 = vpow.pop %v3521
      %v3523 = vmul.f32 %v3406, 1.442695
      %v3524 = vpow.pop %v3523
      %v3525 = vmul.f32 %v3407, 1.442695
      %v3526 = vpow.pop %v3525
      %v3527 = vmul.f32 %v3408, 1.442695
      %v3528 = vpow.pop %v3527
      %v3529 = vmul.f32 %v3409, 1.442695
      %v3530 = vpow.pop %v3529
      %v3531 = vmul.f32 %v3410, 1.442695
      %v3532 = vpow.pop %v3531
      %v3533 = vmul.f32 %v3411, 1.442695
      %v3534 = vpow.pop %v3533
      %v3535 = vmul.f32 %v3412, 1.442695
      %v3536 = vpow.pop %v3535
      %v3537 = vmul.f32 %v3413, 1.442695
      %v3538 = vpow.pop %v3537
      %v3539 = vmul.f32 %v3414, 1.442695
      %v3540 = vpow.pop %v3539
      %v3541 = vmul.f32 %v3415, 1.442695
      %v3542 = vpow.pop %v3541
      %v3543 = vmul.f32 %v3416, 1.442695
      %v3544 = vpow.pop %v3543
      %3545 = vadd.xlane.f32.xlu0 %v3418
      %v3546 = vpop.xlane.xlu0 %3545
      %3547 = vadd.xlane.f32.xlu0 %v3420
      %v3548 = vpop.xlane.xlu0 %3547
      %3549 = vadd.xlane.f32.xlu0 %v3422
      %v3550 = vpop.xlane.xlu0 %3549
      %3551 = vadd.xlane.f32.xlu0 %v3424
      %v3552 = vpop.xlane.xlu0 %3551
      %3553 = vadd.xlane.f32.xlu0 %v3426
      %v3554 = vpop.xlane.xlu0 %3553
      %3555 = vadd.xlane.f32.xlu0 %v3428
      %v3556 = vpop.xlane.xlu0 %3555
      %3557 = vadd.xlane.f32.xlu0 %v3430
      %v3558 = vpop.xlane.xlu0 %3557
      %3559 = vadd.xlane.f32.xlu0 %v3432
      %v3560 = vpop.xlane.xlu0 %3559
      %3561 = vadd.xlane.f32.xlu0 %v3434
      %v3562 = vpop.xlane.xlu0 %3561
      %3563 = vadd.xlane.f32.xlu0 %v3436
      %v3564 = vpop.xlane.xlu0 %3563
      %3565 = vadd.xlane.f32.xlu0 %v3438
      %v3566 = vpop.xlane.xlu0 %3565
      %3567 = vadd.xlane.f32.xlu0 %v3440
      %v3568 = vpop.xlane.xlu0 %3567
      %3569 = vadd.xlane.f32.xlu0 %v3442
      %v3570 = vpop.xlane.xlu0 %3569
      %3571 = vadd.xlane.f32.xlu0 %v3444
      %v3572 = vpop.xlane.xlu0 %3571
      %3573 = vadd.xlane.f32.xlu0 %v3446
      %v3574 = vpop.xlane.xlu0 %3573
      %3575 = vadd.xlane.f32.xlu0 %v3448
      %v3576 = vpop.xlane.xlu0 %3575
      %3577 = vadd.xlane.f32.xlu0 %v3450
      %v3578 = vpop.xlane.xlu0 %3577
      %3579 = vadd.xlane.f32.xlu0 %v3452
      %v3580 = vpop.xlane.xlu0 %3579
      %3581 = vadd.xlane.f32.xlu0 %v3454
      %v3582 = vpop.xlane.xlu0 %3581
      %3583 = vadd.xlane.f32.xlu0 %v3456
      %v3584 = vpop.xlane.xlu0 %3583
      %3585 = vadd.xlane.f32.xlu0 %v3458
      %v3586 = vpop.xlane.xlu0 %3585
      %3587 = vadd.xlane.f32.xlu0 %v3460
      %v3588 = vpop.xlane.xlu0 %3587
      %3589 = vadd.xlane.f32.xlu0 %v3462
      %v3590 = vpop.xlane.xlu0 %3589
      %3591 = vadd.xlane.f32.xlu0 %v3464
      %v3592 = vpop.xlane.xlu0 %3591
      %3593 = vadd.xlane.f32.xlu0 %v3466
      %v3594 = vpop.xlane.xlu0 %3593
      %3595 = vadd.xlane.f32.xlu0 %v3468
      %v3596 = vpop.xlane.xlu0 %3595
      %3597 = vadd.xlane.f32.xlu0 %v3470
      %v3598 = vpop.xlane.xlu0 %3597
      %3599 = vadd.xlane.f32.xlu0 %v3472
      %v3600 = vpop.xlane.xlu0 %3599
      %3601 = vadd.xlane.f32.xlu0 %v3474
      %v3602 = vpop.xlane.xlu0 %3601
      %3603 = vadd.xlane.f32.xlu0 %v3476
      %v3604 = vpop.xlane.xlu0 %3603
      %3605 = vadd.xlane.f32.xlu0 %v3478
      %v3606 = vpop.xlane.xlu0 %3605
      %3607 = vadd.xlane.f32.xlu0 %v3480
      %v3608 = vpop.xlane.xlu0 %3607
      %3609 = vadd.xlane.f32.xlu0 %v3482
      %v3610 = vpop.xlane.xlu0 %3609
      %3611 = vadd.xlane.f32.xlu0 %v3484
      %v3612 = vpop.xlane.xlu0 %3611
      %3613 = vadd.xlane.f32.xlu0 %v3486
      %v3614 = vpop.xlane.xlu0 %3613
      %3615 = vadd.xlane.f32.xlu0 %v3488
      %v3616 = vpop.xlane.xlu0 %3615
      %3617 = vadd.xlane.f32.xlu0 %v3490
      %v3618 = vpop.xlane.xlu0 %3617
      %3619 = vadd.xlane.f32.xlu0 %v3492
      %v3620 = vpop.xlane.xlu0 %3619
      %3621 = vadd.xlane.f32.xlu0 %v3494
      %v3622 = vpop.xlane.xlu0 %3621
      %3623 = vadd.xlane.f32.xlu0 %v3496
      %v3624 = vpop.xlane.xlu0 %3623
      %3625 = vadd.xlane.f32.xlu0 %v3498
      %v3626 = vpop.xlane.xlu0 %3625
      %3627 = vadd.xlane.f32.xlu0 %v3500
      %v3628 = vpop.xlane.xlu0 %3627
      %3629 = vadd.xlane.f32.xlu0 %v3502
      %v3630 = vpop.xlane.xlu0 %3629
      %3631 = vadd.xlane.f32.xlu0 %v3504
      %v3632 = vpop.xlane.xlu0 %3631
      %3633 = vadd.xlane.f32.xlu0 %v3506
      %v3634 = vpop.xlane.xlu0 %3633
      %3635 = vadd.xlane.f32.xlu0 %v3508
      %v3636 = vpop.xlane.xlu0 %3635
      %3637 = vadd.xlane.f32.xlu0 %v3510
      %v3638 = vpop.xlane.xlu0 %3637
      %3639 = vadd.xlane.f32.xlu0 %v3512
      %v3640 = vpop.xlane.xlu0 %3639
      %3641 = vadd.xlane.f32.xlu0 %v3514
      %v3642 = vpop.xlane.xlu0 %3641
      %3643 = vadd.xlane.f32.xlu0 %v3516
      %v3644 = vpop.xlane.xlu0 %3643
      %3645 = vadd.xlane.f32.xlu0 %v3518
      %v3646 = vpop.xlane.xlu0 %3645
      %3647 = vadd.xlane.f32.xlu0 %v3520
      %v3648 = vpop.xlane.xlu0 %3647
      %3649 = vadd.xlane.f32.xlu0 %v3522
      %v3650 = vpop.xlane.xlu0 %3649
      %3651 = vadd.xlane.f32.xlu0 %v3524
      %v3652 = vpop.xlane.xlu0 %3651
      %3653 = vadd.xlane.f32.xlu0 %v3526
      %v3654 = vpop.xlane.xlu0 %3653
      %3655 = vadd.xlane.f32.xlu0 %v3528
      %v3656 = vpop.xlane.xlu0 %3655
      %3657 = vadd.xlane.f32.xlu0 %v3530
      %v3658 = vpop.xlane.xlu0 %3657
      %3659 = vadd.xlane.f32.xlu0 %v3532
      %v3660 = vpop.xlane.xlu0 %3659
      %3661 = vadd.xlane.f32.xlu0 %v3534
      %v3662 = vpop.xlane.xlu0 %3661
      %3663 = vadd.xlane.f32.xlu0 %v3536
      %v3664 = vpop.xlane.xlu0 %3663
      %3665 = vadd.xlane.f32.xlu0 %v3538
      %v3666 = vpop.xlane.xlu0 %3665
      %3667 = vadd.xlane.f32.xlu0 %v3540
      %v3668 = vpop.xlane.xlu0 %3667
      %3669 = vadd.xlane.f32.xlu0 %v3542
      %v3670 = vpop.xlane.xlu0 %3669
      %3671 = vadd.xlane.f32.xlu0 %v3544
      %v3672 = vpop.xlane.xlu0 %3671
      %v3673 = vrcp.pop %v3546
      %v3674 = vrcp.pop %v3548
      %v3675 = vrcp.pop %v3550
      %v3676 = vrcp.pop %v3552
      %v3677 = vrcp.pop %v3554
      %v3678 = vrcp.pop %v3556
      %v3679 = vrcp.pop %v3558
      %v3680 = vrcp.pop %v3560
      %v3681 = vrcp.pop %v3562
      %v3682 = vrcp.pop %v3564
      %v3683 = vrcp.pop %v3566
      %v3684 = vrcp.pop %v3568
      %v3685 = vrcp.pop %v3570
      %v3686 = vrcp.pop %v3572
      %v3687 = vrcp.pop %v3574
      %v3688 = vrcp.pop %v3576
      %v3689 = vrcp.pop %v3578
      %v3690 = vrcp.pop %v3580
      %v3691 = vrcp.pop %v3582
      %v3692 = vrcp.pop %v3584
      %v3693 = vrcp.pop %v3586
      %v3694 = vrcp.pop %v3588
      %v3695 = vrcp.pop %v3590
      %v3696 = vrcp.pop %v3592
      %v3697 = vrcp.pop %v3594
      %v3698 = vrcp.pop %v3596
      %v3699 = vrcp.pop %v3598
      %v3700 = vrcp.pop %v3600
      %v3701 = vrcp.pop %v3602
      %v3702 = vrcp.pop %v3604
      %v3703 = vrcp.pop %v3606
      %v3704 = vrcp.pop %v3608
      %v3705 = vrcp.pop %v3610
      %v3706 = vrcp.pop %v3612
      %v3707 = vrcp.pop %v3614
      %v3708 = vrcp.pop %v3616
      %v3709 = vrcp.pop %v3618
      %v3710 = vrcp.pop %v3620
      %v3711 = vrcp.pop %v3622
      %v3712 = vrcp.pop %v3624
      %v3713 = vrcp.pop %v3626
      %v3714 = vrcp.pop %v3628
      %v3715 = vrcp.pop %v3630
      %v3716 = vrcp.pop %v3632
      %v3717 = vrcp.pop %v3634
      %v3718 = vrcp.pop %v3636
      %v3719 = vrcp.pop %v3638
      %v3720 = vrcp.pop %v3640
      %v3721 = vrcp.pop %v3642
      %v3722 = vrcp.pop %v3644
      %v3723 = vrcp.pop %v3646
      %v3724 = vrcp.pop %v3648
      %v3725 = vrcp.pop %v3650
      %v3726 = vrcp.pop %v3652
      %v3727 = vrcp.pop %v3654
      %v3728 = vrcp.pop %v3656
      %v3729 = vrcp.pop %v3658
      %v3730 = vrcp.pop %v3660
      %v3731 = vrcp.pop %v3662
      %v3732 = vrcp.pop %v3664
      %v3733 = vrcp.pop %v3666
      %v3734 = vrcp.pop %v3668
      %v3735 = vrcp.pop %v3670
      %v3736 = vrcp.pop %v3672
      %v3737 = vmul.f32 %v3418, %v3673
      %v3738 = vmul.f32 %v3420, %v3674
      %v3739 = vmul.f32 %v3422, %v3675
      %v3740 = vmul.f32 %v3424, %v3676
      %v3741 = vmul.f32 %v3426, %v3677
      %v3742 = vmul.f32 %v3428, %v3678
      %v3743 = vmul.f32 %v3430, %v3679
      %v3744 = vmul.f32 %v3432, %v3680
      %v3745 = vmul.f32 %v3434, %v3681
      %v3746 = vmul.f32 %v3436, %v3682
      %v3747 = vmul.f32 %v3438, %v3683
      %v3748 = vmul.f32 %v3440, %v3684
      %v3749 = vmul.f32 %v3442, %v3685
      %v3750 = vmul.f32 %v3444, %v3686
      %v3751 = vmul.f32 %v3446, %v3687
      %v3752 = vmul.f32 %v3448, %v3688
      %v3753 = vmul.f32 %v3450, %v3689
      %v3754 = vmul.f32 %v3452, %v3690
      %v3755 = vmul.f32 %v3454, %v3691
      %v3756 = vmul.f32 %v3456, %v3692
      %v3757 = vmul.f32 %v3458, %v3693
      %v3758 = vmul.f32 %v3460, %v3694
      %v3759 = vmul.f32 %v3462, %v3695
      %v3760 = vmul.f32 %v3464, %v3696
      %v3761 = vmul.f32 %v3466, %v3697
      %v3762 = vmul.f32 %v3468, %v3698
      %v3763 = vmul.f32 %v3470, %v3699
      %v3764 = vmul.f32 %v3472, %v3700
      %v3765 = vmul.f32 %v3474, %v3701
      %v3766 = vmul.f32 %v3476, %v3702
      %v3767 = vmul.f32 %v3478, %v3703
      %v3768 = vmul.f32 %v3480, %v3704
      %v3769 = vmul.f32 %v3482, %v3705
      %v3770 = vmul.f32 %v3484, %v3706
      %v3771 = vmul.f32 %v3486, %v3707
      %v3772 = vmul.f32 %v3488, %v3708
      %v3773 = vmul.f32 %v3490, %v3709
      %v3774 = vmul.f32 %v3492, %v3710
      %v3775 = vmul.f32 %v3494, %v3711
      %v3776 = vmul.f32 %v3496, %v3712
      %v3777 = vmul.f32 %v3498, %v3713
      %v3778 = vmul.f32 %v3500, %v3714
      %v3779 = vmul.f32 %v3502, %v3715
      %v3780 = vmul.f32 %v3504, %v3716
      %v3781 = vmul.f32 %v3506, %v3717
      %v3782 = vmul.f32 %v3508, %v3718
      %v3783 = vmul.f32 %v3510, %v3719
      %v3784 = vmul.f32 %v3512, %v3720
      %v3785 = vmul.f32 %v3514, %v3721
      %v3786 = vmul.f32 %v3516, %v3722
      %v3787 = vmul.f32 %v3518, %v3723
      %v3788 = vmul.f32 %v3520, %v3724
      %v3789 = vmul.f32 %v3522, %v3725
      %v3790 = vmul.f32 %v3524, %v3726
      %v3791 = vmul.f32 %v3526, %v3727
      %v3792 = vmul.f32 %v3528, %v3728
      %v3793 = vmul.f32 %v3530, %v3729
      %v3794 = vmul.f32 %v3532, %v3730
      %v3795 = vmul.f32 %v3534, %v3731
      %v3796 = vmul.f32 %v3536, %v3732
      %v3797 = vmul.f32 %v3538, %v3733
      %v3798 = vmul.f32 %v3540, %v3734
      %v3799 = vmul.f32 %v3542, %v3735
      %v3800 = vmul.f32 %v3544, %v3736
      %3801 = vmatprep.subr.mxu0 0.0
      %3802 = vmatpush1.msra.mxu0 %v1547
      %3803 = vmatprep.subr.mxu0 0.0
      %3804 = vmatpush1.msra.mxu0 %v1552
      %3805 = vmatprep.subr.mxu0 0.0
      %3806 = vmatpush1.msra.mxu0 %v1557
      %3807 = vmatprep.subr.mxu0 0.0
      %3808 = vmatpush1.msra.mxu0 %v1562
      %3809 = vmatprep.subr.mxu0 0.0
      %3810 = vmatpush1.msra.mxu0 %v1567
      %3811 = vmatprep.subr.mxu0 0.0
      %3812 = vmatpush1.msra.mxu0 %v1572
      %3813 = vmatprep.subr.mxu0 0.0
      %3814 = vmatpush1.msra.mxu0 %v1577
      %3815 = vmatprep.subr.mxu0 0.0
      %3816 = vmatpush1.msra.mxu0 %v1582
      %3817 = vmatprep.subr.mxu0 0.0
      %3818 = vmatpush1.msra.mxu0 0.0
      %3819 = vmatprep.subr.mxu0 0.0
      %3820 = vmatpush1.msra.mxu0 0.0
      %3821 = vmatprep.subr.mxu0 0.0
      %3822 = vmatpush1.msra.mxu0 0.0
      %3823 = vmatprep.subr.mxu0 0.0
      %3824 = vmatpush1.msra.mxu0 0.0
      %3825 = vmatprep.subr.mxu0 0.0
      %3826 = vmatpush1.msra.mxu0 0.0
      %3827 = vmatprep.subr.mxu0 0.0
      %3828 = vmatpush1.msra.mxu0 0.0
      %3829 = vmatprep.subr.mxu0 0.0
      %3830 = vmatpush1.msra.mxu0 0.0
      %3831 = vmatprep.subr.mxu0 0.0
      %3832 = vmatpush1.msra.mxu0 0.0
      %3833 = vmatprep.subr.mxu0 0.0
      %3834 = vmatpush1.msra.mxu0 0.0
      %3835 = vmatprep.subr.mxu0 0.0
      %3836 = vmatpush1.msra.mxu0 0.0
      %3837 = vmatprep.subr.mxu0 0.0
      %3838 = vmatpush1.msra.mxu0 0.0
      %3839 = vmatprep.subr.mxu0 0.0
      %3840 = vmatpush1.msra.mxu0 0.0
      %3841 = vmatprep.subr.mxu0 0.0
      %3842 = vmatpush1.msra.mxu0 0.0
      %3843 = vmatprep.subr.mxu0 0.0
      %3844 = vmatpush1.msra.mxu0 0.0
      %3845 = vmatprep.subr.mxu0 0.0
      %3846 = vmatpush1.msra.mxu0 0.0
      %3847 = vmatprep.subr.mxu0 0.0
      %3848 = vmatpush1.msra.mxu0 0.0
      %3849 = vmatprep.subr.mxu0 0.0
      %3850 = vmatpush1.msra.mxu0 0.0
      %3851 = vmatprep.subr.mxu0 0.0
      %3852 = vmatpush1.msra.mxu0 0.0
      %3853 = vmatprep.subr.mxu0 0.0
      %3854 = vmatpush1.msra.mxu0 0.0
      %3855 = vmatprep.subr.mxu0 0.0
      %3856 = vmatpush1.msra.mxu0 0.0
      %3857 = vmatprep.subr.mxu0 0.0
      %3858 = vmatpush1.msra.mxu0 0.0
      %3859 = vmatprep.subr.mxu0 0.0
      %3860 = vmatpush1.msra.mxu0 0.0
      %3861 = vmatprep.subr.mxu0 0.0
      %3862 = vmatpush1.msra.mxu0 0.0
      %3863 = vmatprep.subr.mxu0 0.0
      %3864 = vmatpush1.msra.mxu0 0.0
      %3865 = vmatprep.mubr.f32.mxu0 0.0
      %3866 = vmatmul.mubr.f32.gmra.mrb[0].mxu0 %v3737
      %v3867 = vpop.f32.mrb[0].mxu0
      %v3868 = vadd.f32 0.0, %v3867
      %v3869 = vpop.f32.mrb[0].mxu0
      %3870 = vmatprep.mubr.f32.mxu0 0.0
      %3871 = vmatmul.mubr.f32.gmra.mrb[0].mxu0 %v3738
      %v3872 = vpop.f32.mrb[0].mxu0
      %v3873 = vadd.f32 0.0, %v3872
      %v3874 = vpop.f32.mrb[0].mxu0
      %3875 = vmatprep.mubr.f32.mxu0 0.0
      %3876 = vmatmul.mubr.f32.gmra.mrb[0].mxu0 %v3739
      %v3877 = vpop.f32.mrb[0].mxu0
      %v3878 = vadd.f32 0.0, %v3877
      %v3879 = vpop.f32.mrb[0].mxu0
      %3880 = vmatprep.mubr.f32.mxu0 0.0
      %3881 = vmatmul.mubr.f32.gmra.mrb[0].mxu0 %v3740
      %v3882 = vpop.f32.mrb[0].mxu0
      %v3883 = vadd.f32 0.0, %v3882
      %v3884 = vpop.f32.mrb[0].mxu0
      %3885 = vmatprep.mubr.f32.mxu0 0.0
      %3886 = vmatmul.mubr.f32.gmra.mrb[0].mxu0 %v3741
      %v3887 = vpop.f32.mrb[0].mxu0
      %v3888 = vadd.f32 0.0, %v3887
      %v3889 = vpop.f32.mrb[0].mxu0
      %3890 = vmatprep.mubr.f32.mxu0 0.0
      %3891 = vmatmul.mubr.f32.gmra.mrb[0].mxu0 %v3742
      %v3892 = vpop.f32.mrb[0].mxu0
      %v3893 = vadd.f32 0.0, %v3892
      %v3894 = vpop.f32.mrb[0].mxu0
      %3895 = vmatprep.mubr.f32.mxu0 0.0
      %3896 = vmatmul.mubr.f32.gmra.mrb[0].mxu0 %v3743
      %v3897 = vpop.f32.mrb[0].mxu0
      %v3898 = vadd.f32 0.0, %v3897
      %v3899 = vpop.f32.mrb[0].mxu0
      %3900 = vmatprep.mubr.f32.mxu0 0.0
      %3901 = vmatmul.mubr.f32.gmra.mrb[0].mxu0 %v3744
      %v3902 = vpop.f32.mrb[0].mxu0
      %v3903 = vadd.f32 0.0, %v3902
      %v3904 = vpop.f32.mrb[0].mxu0
      %3905 = vdwg.mxu0
      %3906 = vmatprep.subr.mxu0 0.0
      %3907 = vmatpush1.msra.mxu0 %v1587
      %3908 = vmatprep.subr.mxu0 0.0
      %3909 = vmatpush1.msra.mxu0 %v1592
      %3910 = vmatprep.subr.mxu0 0.0
      %3911 = vmatpush1.msra.mxu0 %v1597
      %3912 = vmatprep.subr.mxu0 0.0
      %3913 = vmatpush1.msra.mxu0 %v1602
      %3914 = vmatprep.subr.mxu0 0.0
      %3915 = vmatpush1.msra.mxu0 %v1607
      %3916 = vmatprep.subr.mxu0 0.0
      %3917 = vmatpush1.msra.mxu0 %v1612
      %3918 = vmatprep.subr.mxu0 0.0
      %3919 = vmatpush1.msra.mxu0 %v1617
      %3920 = vmatprep.subr.mxu0 0.0
      %3921 = vmatpush1.msra.mxu0 %v1622
      %3922 = vmatprep.subr.mxu0 0.0
      %3923 = vmatpush1.msra.mxu0 0.0
      %3924 = vmatprep.subr.mxu0 0.0
      %3925 = vmatpush1.msra.mxu0 0.0
      %3926 = vmatprep.subr.mxu0 0.0
      %3927 = vmatpush1.msra.mxu0 0.0
      %3928 = vmatprep.subr.mxu0 0.0
      %3929 = vmatpush1.msra.mxu0 0.0
      %3930 = vmatprep.subr.mxu0 0.0
      %3931 = vmatpush1.msra.mxu0 0.0
      %3932 = vmatprep.subr.mxu0 0.0
      %3933 = vmatpush1.msra.mxu0 0.0
      %3934 = vmatprep.subr.mxu0 0.0
      %3935 = vmatpush1.msra.mxu0 0.0
      %3936 = vmatprep.subr.mxu0 0.0
      %3937 = vmatpush1.msra.mxu0 0.0
      %3938 = vmatprep.subr.mxu0 0.0
      %3939 = vmatpush1.msra.mxu0 0.0
      %3940 = vmatprep.subr.mxu0 0.0
      %3941 = vmatpush1.msra.mxu0 0.0
      %3942 = vmatprep.subr.mxu0 0.0
      %3943 = vmatpush1.msra.mxu0 0.0
      %3944 = vmatprep.subr.mxu0 0.0
      %3945 = vmatpush1.msra.mxu0 0.0
      %3946 = vmatprep.subr.mxu0 0.0
      %3947 = vmatpush1.msra.mxu0 0.0
      %3948 = vmatprep.subr.mxu0 0.0
      %3949 = vmatpush1.msra.mxu0 0.0
      %3950 = vmatprep.subr.mxu0 0.0
      %3951 = vmatpush1.msra.mxu0 0.0
      %3952 = vmatprep.subr.mxu0 0.0
      %3953 = vmatpush1.msra.mxu0 0.0
      %3954 = vmatprep.subr.mxu0 0.0
      %3955 = vmatpush1.msra.mxu0 0.0
      %3956 = vmatprep.subr.mxu0 0.0
      %3957 = vmatpush1.msra.mxu0 0.0
      %3958 = vmatprep.subr.mxu0 0.0
      %3959 = vmatpush1.msra.mxu0 0.0
      %3960 = vmatprep.subr.mxu0 0.0
      %3961 = vmatpush1.msra.mxu0 0.0
      %3962 = vmatprep.subr.mxu0 0.0
      %3963 = vmatpush1.msra.mxu0 0.0
      %3964 = vmatprep.subr.mxu0 0.0
      %3965 = vmatpush1.msra.mxu0 0.0
      %3966 = vmatprep.subr.mxu0 0.0
      %3967 = vmatpush1.msra.mxu0 0.0
      %3968 = vmatprep.subr.mxu0 0.0
      %3969 = vmatpush1.msra.mxu0 0.0
      %3970 = vmatprep.mubr.f32.mxu0 0.0
      %3971 = vmatmul.mubr.f32.gmra.mrb[0].mxu0 %v3745
      %v3972 = vpop.f32.mrb[0].mxu0
      %v3973 = vadd.f32 0.0, %v3972
      %v3974 = vpop.f32.mrb[0].mxu0
      %3975 = vmatprep.mubr.f32.mxu0 0.0
      %3976 = vmatmul.mubr.f32.gmra.mrb[0].mxu0 %v3746
      %v3977 = vpop.f32.mrb[0].mxu0
      %v3978 = vadd.f32 0.0, %v3977
      %v3979 = vpop.f32.mrb[0].mxu0
      %3980 = vmatprep.mubr.f32.mxu0 0.0
      %3981 = vmatmul.mubr.f32.gmra.mrb[0].mxu0 %v3747
      %v3982 = vpop.f32.mrb[0].mxu0
      %v3983 = vadd.f32 0.0, %v3982
      %v3984 = vpop.f32.mrb[0].mxu0
      %3985 = vmatprep.mubr.f32.mxu0 0.0
      %3986 = vmatmul.mubr.f32.gmra.mrb[0].mxu0 %v3748
      %v3987 = vpop.f32.mrb[0].mxu0
      %v3988 = vadd.f32 0.0, %v3987
      %v3989 = vpop.f32.mrb[0].mxu0
      %3990 = vmatprep.mubr.f32.mxu0 0.0
      %3991 = vmatmul.mubr.f32.gmra.mrb[0].mxu0 %v3749
      %v3992 = vpop.f32.mrb[0].mxu0
      %v3993 = vadd.f32 0.0, %v3992
      %v3994 = vpop.f32.mrb[0].mxu0
      %3995 = vmatprep.mubr.f32.mxu0 0.0
      %3996 = vmatmul.mubr.f32.gmra.mrb[0].mxu0 %v3750
      %v3997 = vpop.f32.mrb[0].mxu0
      %v3998 = vadd.f32 0.0, %v3997
      %v3999 = vpop.f32.mrb[0].mxu0
      %4000 = vmatprep.mubr.f32.mxu0 0.0
      %4001 = vmatmul.mubr.f32.gmra.mrb[0].mxu0 %v3751
      %v4002 = vpop.f32.mrb[0].mxu0
      %v4003 = vadd.f32 0.0, %v4002
      %v4004 = vpop.f32.mrb[0].mxu0
      %4005 = vmatprep.mubr.f32.mxu0 0.0
      %4006 = vmatmul.mubr.f32.gmra.mrb[0].mxu0 %v3752
      %v4007 = vpop.f32.mrb[0].mxu0
      %v4008 = vadd.f32 0.0, %v4007
      %v4009 = vpop.f32.mrb[0].mxu0
      %4010 = vdwg.mxu0
      %4011 = vmatprep.subr.mxu0 0.0
      %4012 = vmatpush1.msra.mxu0 %v1627
      %4013 = vmatprep.subr.mxu0 0.0
      %4014 = vmatpush1.msra.mxu0 %v1632
      %4015 = vmatprep.subr.mxu0 0.0
      %4016 = vmatpush1.msra.mxu0 %v1637
      %4017 = vmatprep.subr.mxu0 0.0
      %4018 = vmatpush1.msra.mxu0 %v1642
      %4019 = vmatprep.subr.mxu0 0.0
      %4020 = vmatpush1.msra.mxu0 %v1647
      %4021 = vmatprep.subr.mxu0 0.0
      %4022 = vmatpush1.msra.mxu0 %v1652
      %4023 = vmatprep.subr.mxu0 0.0
      %4024 = vmatpush1.msra.mxu0 %v1657
      %4025 = vmatprep.subr.mxu0 0.0
      %4026 = vmatpush1.msra.mxu0 %v1662
      %4027 = vmatprep.subr.mxu0 0.0
      %4028 = vmatpush1.msra.mxu0 0.0
      %4029 = vmatprep.subr.mxu0 0.0
      %4030 = vmatpush1.msra.mxu0 0.0
      %4031 = vmatprep.subr.mxu0 0.0
      %4032 = vmatpush1.msra.mxu0 0.0
      %4033 = vmatprep.subr.mxu0 0.0
      %4034 = vmatpush1.msra.mxu0 0.0
      %4035 = vmatprep.subr.mxu0 0.0
      %4036 = vmatpush1.msra.mxu0 0.0
      %4037 = vmatprep.subr.mxu0 0.0
      %4038 = vmatpush1.msra.mxu0 0.0
      %4039 = vmatprep.subr.mxu0 0.0
      %4040 = vmatpush1.msra.mxu0 0.0
      %4041 = vmatprep.subr.mxu0 0.0
      %4042 = vmatpush1.msra.mxu0 0.0
      %4043 = vmatprep.subr.mxu0 0.0
      %4044 = vmatpush1.msra.mxu0 0.0
      %4045 = vmatprep.subr.mxu0 0.0
      %4046 = vmatpush1.msra.mxu0 0.0
      %4047 = vmatprep.subr.mxu0 0.0
      %4048 = vmatpush1.msra.mxu0 0.0
      %4049 = vmatprep.subr.mxu0 0.0
      %4050 = vmatpush1.msra.mxu0 0.0
      %4051 = vmatprep.subr.mxu0 0.0
      %4052 = vmatpush1.msra.mxu0 0.0
      %4053 = vmatprep.subr.mxu0 0.0
      %4054 = vmatpush1.msra.mxu0 0.0
      %4055 = vmatprep.subr.mxu0 0.0
      %4056 = vmatpush1.msra.mxu0 0.0
      %4057 = vmatprep.subr.mxu0 0.0
      %4058 = vmatpush1.msra.mxu0 0.0
      %4059 = vmatprep.subr.mxu0 0.0
      %4060 = vmatpush1.msra.mxu0 0.0
      %4061 = vmatprep.subr.mxu0 0.0
      %4062 = vmatpush1.msra.mxu0 0.0
      %4063 = vmatprep.subr.mxu0 0.0
      %4064 = vmatpush1.msra.mxu0 0.0
      %4065 = vmatprep.subr.mxu0 0.0
      %4066 = vmatpush1.msra.mxu0 0.0
      %4067 = vmatprep.subr.mxu0 0.0
      %4068 = vmatpush1.msra.mxu0 0.0
      %4069 = vmatprep.subr.mxu0 0.0
      %4070 = vmatpush1.msra.mxu0 0.0
      %4071 = vmatprep.subr.mxu0 0.0
      %4072 = vmatpush1.msra.mxu0 0.0
      %4073 = vmatprep.subr.mxu0 0.0
      %4074 = vmatpush1.msra.mxu0 0.0
      %4075 = vmatprep.mubr.f32.mxu0 0.0
      %4076 = vmatmul.mubr.f32.gmra.mrb[0].mxu0 %v3753
      %v4077 = vpop.f32.mrb[0].mxu0
      %v4078 = vadd.f32 0.0, %v4077
      %v4079 = vpop.f32.mrb[0].mxu0
      %4080 = vmatprep.mubr.f32.mxu0 0.0
      %4081 = vmatmul.mubr.f32.gmra.mrb[0].mxu0 %v3754
      %v4082 = vpop.f32.mrb[0].mxu0
      %v4083 = vadd.f32 0.0, %v4082
      %v4084 = vpop.f32.mrb[0].mxu0
      %4085 = vmatprep.mubr.f32.mxu0 0.0
      %4086 = vmatmul.mubr.f32.gmra.mrb[0].mxu0 %v3755
      %v4087 = vpop.f32.mrb[0].mxu0
      %v4088 = vadd.f32 0.0, %v4087
      %v4089 = vpop.f32.mrb[0].mxu0
      %4090 = vmatprep.mubr.f32.mxu0 0.0
      %4091 = vmatmul.mubr.f32.gmra.mrb[0].mxu0 %v3756
      %v4092 = vpop.f32.mrb[0].mxu0
      %v4093 = vadd.f32 0.0, %v4092
      %v4094 = vpop.f32.mrb[0].mxu0
      %4095 = vmatprep.mubr.f32.mxu0 0.0
      %4096 = vmatmul.mubr.f32.gmra.mrb[0].mxu0 %v3757
      %v4097 = vpop.f32.mrb[0].mxu0
      %v4098 = vadd.f32 0.0, %v4097
      %v4099 = vpop.f32.mrb[0].mxu0
      %4100 = vmatprep.mubr.f32.mxu0 0.0
      %4101 = vmatmul.mubr.f32.gmra.mrb[0].mxu0 %v3758
      %v4102 = vpop.f32.mrb[0].mxu0
      %v4103 = vadd.f32 0.0, %v4102
      %v4104 = vpop.f32.mrb[0].mxu0
      %4105 = vmatprep.mubr.f32.mxu0 0.0
      %4106 = vmatmul.mubr.f32.gmra.mrb[0].mxu0 %v3759
      %v4107 = vpop.f32.mrb[0].mxu0
      %v4108 = vadd.f32 0.0, %v4107
      %v4109 = vpop.f32.mrb[0].mxu0
      %4110 = vmatprep.mubr.f32.mxu0 0.0
      %4111 = vmatmul.mubr.f32.gmra.mrb[0].mxu0 %v3760
      %v4112 = vpop.f32.mrb[0].mxu0
      %v4113 = vadd.f32 0.0, %v4112
      %v4114 = vpop.f32.mrb[0].mxu0
      %4115 = vdwg.mxu0
      %4116 = vmatprep.subr.mxu0 0.0
      %4117 = vmatpush1.msra.mxu0 %v1667
      %4118 = vmatprep.subr.mxu0 0.0
      %4119 = vmatpush1.msra.mxu0 %v1672
      %4120 = vmatprep.subr.mxu0 0.0
      %4121 = vmatpush1.msra.mxu0 %v1677
      %4122 = vmatprep.subr.mxu0 0.0
      %4123 = vmatpush1.msra.mxu0 %v1682
      %4124 = vmatprep.subr.mxu0 0.0
      %4125 = vmatpush1.msra.mxu0 %v1687
      %4126 = vmatprep.subr.mxu0 0.0
      %4127 = vmatpush1.msra.mxu0 %v1692
      %4128 = vmatprep.subr.mxu0 0.0
      %4129 = vmatpush1.msra.mxu0 %v1697
      %4130 = vmatprep.subr.mxu0 0.0
      %4131 = vmatpush1.msra.mxu0 %v1702
      %4132 = vmatprep.subr.mxu0 0.0
      %4133 = vmatpush1.msra.mxu0 0.0
      %4134 = vmatprep.subr.mxu0 0.0
      %4135 = vmatpush1.msra.mxu0 0.0
      %4136 = vmatprep.subr.mxu0 0.0
      %4137 = vmatpush1.msra.mxu0 0.0
      %4138 = vmatprep.subr.mxu0 0.0
      %4139 = vmatpush1.msra.mxu0 0.0
      %4140 = vmatprep.subr.mxu0 0.0
      %4141 = vmatpush1.msra.mxu0 0.0
      %4142 = vmatprep.subr.mxu0 0.0
      %4143 = vmatpush1.msra.mxu0 0.0
      %4144 = vmatprep.subr.mxu0 0.0
      %4145 = vmatpush1.msra.mxu0 0.0
      %4146 = vmatprep.subr.mxu0 0.0
      %4147 = vmatpush1.msra.mxu0 0.0
      %4148 = vmatprep.subr.mxu0 0.0
      %4149 = vmatpush1.msra.mxu0 0.0
      %4150 = vmatprep.subr.mxu0 0.0
      %4151 = vmatpush1.msra.mxu0 0.0
      %4152 = vmatprep.subr.mxu0 0.0
      %4153 = vmatpush1.msra.mxu0 0.0
      %4154 = vmatprep.subr.mxu0 0.0
      %4155 = vmatpush1.msra.mxu0 0.0
      %4156 = vmatprep.subr.mxu0 0.0
      %4157 = vmatpush1.msra.mxu0 0.0
      %4158 = vmatprep.subr.mxu0 0.0
      %4159 = vmatpush1.msra.mxu0 0.0
      %4160 = vmatprep.subr.mxu0 0.0
      %4161 = vmatpush1.msra.mxu0 0.0
      %4162 = vmatprep.subr.mxu0 0.0
      %4163 = vmatpush1.msra.mxu0 0.0
      %4164 = vmatprep.subr.mxu0 0.0
      %4165 = vmatpush1.msra.mxu0 0.0
      %4166 = vmatprep.subr.mxu0 0.0
      %4167 = vmatpush1.msra.mxu0 0.0
      %4168 = vmatprep.subr.mxu0 0.0
      %4169 = vmatpush1.msra.mxu0 0.0
      %4170 = vmatprep.subr.mxu0 0.0
      %4171 = vmatpush1.msra.mxu0 0.0
      %4172 = vmatprep.subr.mxu0 0.0
      %4173 = vmatpush1.msra.mxu0 0.0
      %4174 = vmatprep.subr.mxu0 0.0
      %4175 = vmatpush1.msra.mxu0 0.0
      %4176 = vmatprep.subr.mxu0 0.0
      %4177 = vmatpush1.msra.mxu0 0.0
      %4178 = vmatprep.subr.mxu0 0.0
      %4179 = vmatpush1.msra.mxu0 0.0
      %4180 = vmatprep.mubr.f32.mxu0 0.0
      %4181 = vmatmul.mubr.f32.gmra.mrb[0].mxu0 %v3761
      %v4182 = vpop.f32.mrb[0].mxu0
      %v4183 = vadd.f32 0.0, %v4182
      %v4184 = vpop.f32.mrb[0].mxu0
      %4185 = vmatprep.mubr.f32.mxu0 0.0
      %4186 = vmatmul.mubr.f32.gmra.mrb[0].mxu0 %v3762
      %v4187 = vpop.f32.mrb[0].mxu0
      %v4188 = vadd.f32 0.0, %v4187
      %v4189 = vpop.f32.mrb[0].mxu0
      %4190 = vmatprep.mubr.f32.mxu0 0.0
      %4191 = vmatmul.mubr.f32.gmra.mrb[0].mxu0 %v3763
      %v4192 = vpop.f32.mrb[0].mxu0
      %v4193 = vadd.f32 0.0, %v4192
      %v4194 = vpop.f32.mrb[0].mxu0
      %4195 = vmatprep.mubr.f32.mxu0 0.0
      %4196 = vmatmul.mubr.f32.gmra.mrb[0].mxu0 %v3764
      %v4197 = vpop.f32.mrb[0].mxu0
      %v4198 = vadd.f32 0.0, %v4197
      %v4199 = vpop.f32.mrb[0].mxu0
      %4200 = vmatprep.mubr.f32.mxu0 0.0
      %4201 = vmatmul.mubr.f32.gmra.mrb[0].mxu0 %v3765
      %v4202 = vpop.f32.mrb[0].mxu0
      %v4203 = vadd.f32 0.0, %v4202
      %v4204 = vpop.f32.mrb[0].mxu0
      %4205 = vmatprep.mubr.f32.mxu0 0.0
      %4206 = vmatmul.mubr.f32.gmra.mrb[0].mxu0 %v3766
      %v4207 = vpop.f32.mrb[0].mxu0
      %v4208 = vadd.f32 0.0, %v4207
      %v4209 = vpop.f32.mrb[0].mxu0
      %4210 = vmatprep.mubr.f32.mxu0 0.0
      %4211 = vmatmul.mubr.f32.gmra.mrb[0].mxu0 %v3767
      %v4212 = vpop.f32.mrb[0].mxu0
      %v4213 = vadd.f32 0.0, %v4212
      %v4214 = vpop.f32.mrb[0].mxu0
      %4215 = vmatprep.mubr.f32.mxu0 0.0
      %4216 = vmatmul.mubr.f32.gmra.mrb[0].mxu0 %v3768
      %v4217 = vpop.f32.mrb[0].mxu0
      %v4218 = vadd.f32 0.0, %v4217
      %v4219 = vpop.f32.mrb[0].mxu0
      %4220 = vdwg.mxu0
      %4221 = vmatprep.subr.mxu0 0.0
      %4222 = vmatpush1.msra.mxu0 %v1707
      %4223 = vmatprep.subr.mxu0 0.0
      %4224 = vmatpush1.msra.mxu0 %v1712
      %4225 = vmatprep.subr.mxu0 0.0
      %4226 = vmatpush1.msra.mxu0 %v1717
      %4227 = vmatprep.subr.mxu0 0.0
      %4228 = vmatpush1.msra.mxu0 %v1722
      %4229 = vmatprep.subr.mxu0 0.0
      %4230 = vmatpush1.msra.mxu0 %v1727
      %4231 = vmatprep.subr.mxu0 0.0
      %4232 = vmatpush1.msra.mxu0 %v1732
      %4233 = vmatprep.subr.mxu0 0.0
      %4234 = vmatpush1.msra.mxu0 %v1737
      %4235 = vmatprep.subr.mxu0 0.0
      %4236 = vmatpush1.msra.mxu0 %v1742
      %4237 = vmatprep.subr.mxu0 0.0
      %4238 = vmatpush1.msra.mxu0 0.0
      %4239 = vmatprep.subr.mxu0 0.0
      %4240 = vmatpush1.msra.mxu0 0.0
      %4241 = vmatprep.subr.mxu0 0.0
      %4242 = vmatpush1.msra.mxu0 0.0
      %4243 = vmatprep.subr.mxu0 0.0
      %4244 = vmatpush1.msra.mxu0 0.0
      %4245 = vmatprep.subr.mxu0 0.0
      %4246 = vmatpush1.msra.mxu0 0.0
      %4247 = vmatprep.subr.mxu0 0.0
      %4248 = vmatpush1.msra.mxu0 0.0
      %4249 = vmatprep.subr.mxu0 0.0
      %4250 = vmatpush1.msra.mxu0 0.0
      %4251 = vmatprep.subr.mxu0 0.0
      %4252 = vmatpush1.msra.mxu0 0.0
      %4253 = vmatprep.subr.mxu0 0.0
      %4254 = vmatpush1.msra.mxu0 0.0
      %4255 = vmatprep.subr.mxu0 0.0
      %4256 = vmatpush1.msra.mxu0 0.0
      %4257 = vmatprep.subr.mxu0 0.0
      %4258 = vmatpush1.msra.mxu0 0.0
      %4259 = vmatprep.subr.mxu0 0.0
      %4260 = vmatpush1.msra.mxu0 0.0
      %4261 = vmatprep.subr.mxu0 0.0
      %4262 = vmatpush1.msra.mxu0 0.0
      %4263 = vmatprep.subr.mxu0 0.0
      %4264 = vmatpush1.msra.mxu0 0.0
      %4265 = vmatprep.subr.mxu0 0.0
      %4266 = vmatpush1.msra.mxu0 0.0
      %4267 = vmatprep.subr.mxu0 0.0
      %4268 = vmatpush1.msra.mxu0 0.0
      %4269 = vmatprep.subr.mxu0 0.0
      %4270 = vmatpush1.msra.mxu0 0.0
      %4271 = vmatprep.subr.mxu0 0.0
      %4272 = vmatpush1.msra.mxu0 0.0
      %4273 = vmatprep.subr.mxu0 0.0
      %4274 = vmatpush1.msra.mxu0 0.0
      %4275 = vmatprep.subr.mxu0 0.0
      %4276 = vmatpush1.msra.mxu0 0.0
      %4277 = vmatprep.subr.mxu0 0.0
      %4278 = vmatpush1.msra.mxu0 0.0
      %4279 = vmatprep.subr.mxu0 0.0
      %4280 = vmatpush1.msra.mxu0 0.0
      %4281 = vmatprep.subr.mxu0 0.0
      %4282 = vmatpush1.msra.mxu0 0.0
      %4283 = vmatprep.subr.mxu0 0.0
      %4284 = vmatpush1.msra.mxu0 0.0
      %4285 = vmatprep.mubr.f32.mxu0 0.0
      %4286 = vmatmul.mubr.f32.gmra.mrb[0].mxu0 %v3769
      %v4287 = vpop.f32.mrb[0].mxu0
      %v4288 = vadd.f32 0.0, %v4287
      %v4289 = vpop.f32.mrb[0].mxu0
      %4290 = vmatprep.mubr.f32.mxu0 0.0
      %4291 = vmatmul.mubr.f32.gmra.mrb[0].mxu0 %v3770
      %v4292 = vpop.f32.mrb[0].mxu0
      %v4293 = vadd.f32 0.0, %v4292
      %v4294 = vpop.f32.mrb[0].mxu0
      %4295 = vmatprep.mubr.f32.mxu0 0.0
      %4296 = vmatmul.mubr.f32.gmra.mrb[0].mxu0 %v3771
      %v4297 = vpop.f32.mrb[0].mxu0
      %v4298 = vadd.f32 0.0, %v4297
      %v4299 = vpop.f32.mrb[0].mxu0
      %4300 = vmatprep.mubr.f32.mxu0 0.0
      %4301 = vmatmul.mubr.f32.gmra.mrb[0].mxu0 %v3772
      %v4302 = vpop.f32.mrb[0].mxu0
      %v4303 = vadd.f32 0.0, %v4302
      %v4304 = vpop.f32.mrb[0].mxu0
      %4305 = vmatprep.mubr.f32.mxu0 0.0
      %4306 = vmatmul.mubr.f32.gmra.mrb[0].mxu0 %v3773
      %v4307 = vpop.f32.mrb[0].mxu0
      %v4308 = vadd.f32 0.0, %v4307
      %v4309 = vpop.f32.mrb[0].mxu0
      %4310 = vmatprep.mubr.f32.mxu0 0.0
      %4311 = vmatmul.mubr.f32.gmra.mrb[0].mxu0 %v3774
      %v4312 = vpop.f32.mrb[0].mxu0
      %v4313 = vadd.f32 0.0, %v4312
      %v4314 = vpop.f32.mrb[0].mxu0
      %4315 = vmatprep.mubr.f32.mxu0 0.0
      %4316 = vmatmul.mubr.f32.gmra.mrb[0].mxu0 %v3775
      %v4317 = vpop.f32.mrb[0].mxu0
      %v4318 = vadd.f32 0.0, %v4317
      %v4319 = vpop.f32.mrb[0].mxu0
      %4320 = vmatprep.mubr.f32.mxu0 0.0
      %4321 = vmatmul.mubr.f32.gmra.mrb[0].mxu0 %v3776
      %v4322 = vpop.f32.mrb[0].mxu0
      %v4323 = vadd.f32 0.0, %v4322
      %v4324 = vpop.f32.mrb[0].mxu0
      %4325 = vdwg.mxu0
      %4326 = vmatprep.subr.mxu0 0.0
      %4327 = vmatpush1.msra.mxu0 %v1747
      %4328 = vmatprep.subr.mxu0 0.0
      %4329 = vmatpush1.msra.mxu0 %v1752
      %4330 = vmatprep.subr.mxu0 0.0
      %4331 = vmatpush1.msra.mxu0 %v1757
      %4332 = vmatprep.subr.mxu0 0.0
      %4333 = vmatpush1.msra.mxu0 %v1762
      %4334 = vmatprep.subr.mxu0 0.0
      %4335 = vmatpush1.msra.mxu0 %v1767
      %4336 = vmatprep.subr.mxu0 0.0
      %4337 = vmatpush1.msra.mxu0 %v1772
      %4338 = vmatprep.subr.mxu0 0.0
      %4339 = vmatpush1.msra.mxu0 %v1777
      %4340 = vmatprep.subr.mxu0 0.0
      %4341 = vmatpush1.msra.mxu0 %v1782
      %4342 = vmatprep.subr.mxu0 0.0
      %4343 = vmatpush1.msra.mxu0 0.0
      %4344 = vmatprep.subr.mxu0 0.0
      %4345 = vmatpush1.msra.mxu0 0.0
      %4346 = vmatprep.subr.mxu0 0.0
      %4347 = vmatpush1.msra.mxu0 0.0
      %4348 = vmatprep.subr.mxu0 0.0
      %4349 = vmatpush1.msra.mxu0 0.0
      %4350 = vmatprep.subr.mxu0 0.0
      %4351 = vmatpush1.msra.mxu0 0.0
      %4352 = vmatprep.subr.mxu0 0.0
      %4353 = vmatpush1.msra.mxu0 0.0
      %4354 = vmatprep.subr.mxu0 0.0
      %4355 = vmatpush1.msra.mxu0 0.0
      %4356 = vmatprep.subr.mxu0 0.0
      %4357 = vmatpush1.msra.mxu0 0.0
      %4358 = vmatprep.subr.mxu0 0.0
      %4359 = vmatpush1.msra.mxu0 0.0
      %4360 = vmatprep.subr.mxu0 0.0
      %4361 = vmatpush1.msra.mxu0 0.0
      %4362 = vmatprep.subr.mxu0 0.0
      %4363 = vmatpush1.msra.mxu0 0.0
      %4364 = vmatprep.subr.mxu0 0.0
      %4365 = vmatpush1.msra.mxu0 0.0
      %4366 = vmatprep.subr.mxu0 0.0
      %4367 = vmatpush1.msra.mxu0 0.0
      %4368 = vmatprep.subr.mxu0 0.0
      %4369 = vmatpush1.msra.mxu0 0.0
      %4370 = vmatprep.subr.mxu0 0.0
      %4371 = vmatpush1.msra.mxu0 0.0
      %4372 = vmatprep.subr.mxu0 0.0
      %4373 = vmatpush1.msra.mxu0 0.0
      %4374 = vmatprep.subr.mxu0 0.0
      %4375 = vmatpush1.msra.mxu0 0.0
      %4376 = vmatprep.subr.mxu0 0.0
      %4377 = vmatpush1.msra.mxu0 0.0
      %4378 = vmatprep.subr.mxu0 0.0
      %4379 = vmatpush1.msra.mxu0 0.0
      %4380 = vmatprep.subr.mxu0 0.0
      %4381 = vmatpush1.msra.mxu0 0.0
      %4382 = vmatprep.subr.mxu0 0.0
      %4383 = vmatpush1.msra.mxu0 0.0
      %4384 = vmatprep.subr.mxu0 0.0
      %4385 = vmatpush1.msra.mxu0 0.0
      %4386 = vmatprep.subr.mxu0 0.0
      %4387 = vmatpush1.msra.mxu0 0.0
      %4388 = vmatprep.subr.mxu0 0.0
      %4389 = vmatpush1.msra.mxu0 0.0
      %4390 = vmatprep.mubr.f32.mxu0 0.0
      %4391 = vmatmul.mubr.f32.gmra.mrb[0].mxu0 %v3777
      %v4392 = vpop.f32.mrb[0].mxu0
      %v4393 = vadd.f32 0.0, %v4392
      %v4394 = vpop.f32.mrb[0].mxu0
      %4395 = vmatprep.mubr.f32.mxu0 0.0
      %4396 = vmatmul.mubr.f32.gmra.mrb[0].mxu0 %v3778
      %v4397 = vpop.f32.mrb[0].mxu0
      %v4398 = vadd.f32 0.0, %v4397
      %v4399 = vpop.f32.mrb[0].mxu0
      %4400 = vmatprep.mubr.f32.mxu0 0.0
      %4401 = vmatmul.mubr.f32.gmra.mrb[0].mxu0 %v3779
      %v4402 = vpop.f32.mrb[0].mxu0
      %v4403 = vadd.f32 0.0, %v4402
      %v4404 = vpop.f32.mrb[0].mxu0
      %4405 = vmatprep.mubr.f32.mxu0 0.0
      %4406 = vmatmul.mubr.f32.gmra.mrb[0].mxu0 %v3780
      %v4407 = vpop.f32.mrb[0].mxu0
      %v4408 = vadd.f32 0.0, %v4407
      %v4409 = vpop.f32.mrb[0].mxu0
      %4410 = vmatprep.mubr.f32.mxu0 0.0
      %4411 = vmatmul.mubr.f32.gmra.mrb[0].mxu0 %v3781
      %v4412 = vpop.f32.mrb[0].mxu0
      %v4413 = vadd.f32 0.0, %v4412
      %v4414 = vpop.f32.mrb[0].mxu0
      %4415 = vmatprep.mubr.f32.mxu0 0.0
      %4416 = vmatmul.mubr.f32.gmra.mrb[0].mxu0 %v3782
      %v4417 = vpop.f32.mrb[0].mxu0
      %v4418 = vadd.f32 0.0, %v4417
      %v4419 = vpop.f32.mrb[0].mxu0
      %4420 = vmatprep.mubr.f32.mxu0 0.0
      %4421 = vmatmul.mubr.f32.gmra.mrb[0].mxu0 %v3783
      %v4422 = vpop.f32.mrb[0].mxu0
      %v4423 = vadd.f32 0.0, %v4422
      %v4424 = vpop.f32.mrb[0].mxu0
      %4425 = vmatprep.mubr.f32.mxu0 0.0
      %4426 = vmatmul.mubr.f32.gmra.mrb[0].mxu0 %v3784
      %v4427 = vpop.f32.mrb[0].mxu0
      %v4428 = vadd.f32 0.0, %v4427
      %v4429 = vpop.f32.mrb[0].mxu0
      %4430 = vdwg.mxu0
      %4431 = vmatprep.subr.mxu0 0.0
      %4432 = vmatpush1.msra.mxu0 %v1787
      %4433 = vmatprep.subr.mxu0 0.0
      %4434 = vmatpush1.msra.mxu0 %v1792
      %4435 = vmatprep.subr.mxu0 0.0
      %4436 = vmatpush1.msra.mxu0 %v1797
      %4437 = vmatprep.subr.mxu0 0.0
      %4438 = vmatpush1.msra.mxu0 %v1802
      %4439 = vmatprep.subr.mxu0 0.0
      %4440 = vmatpush1.msra.mxu0 %v1807
      %4441 = vmatprep.subr.mxu0 0.0
      %4442 = vmatpush1.msra.mxu0 %v1812
      %4443 = vmatprep.subr.mxu0 0.0
      %4444 = vmatpush1.msra.mxu0 %v1817
      %4445 = vmatprep.subr.mxu0 0.0
      %4446 = vmatpush1.msra.mxu0 %v1822
      %4447 = vmatprep.subr.mxu0 0.0
      %4448 = vmatpush1.msra.mxu0 0.0
      %4449 = vmatprep.subr.mxu0 0.0
      %4450 = vmatpush1.msra.mxu0 0.0
      %4451 = vmatprep.subr.mxu0 0.0
      %4452 = vmatpush1.msra.mxu0 0.0
      %4453 = vmatprep.subr.mxu0 0.0
      %4454 = vmatpush1.msra.mxu0 0.0
      %4455 = vmatprep.subr.mxu0 0.0
      %4456 = vmatpush1.msra.mxu0 0.0
      %4457 = vmatprep.subr.mxu0 0.0
      %4458 = vmatpush1.msra.mxu0 0.0
      %4459 = vmatprep.subr.mxu0 0.0
      %4460 = vmatpush1.msra.mxu0 0.0
      %4461 = vmatprep.subr.mxu0 0.0
      %4462 = vmatpush1.msra.mxu0 0.0
      %4463 = vmatprep.subr.mxu0 0.0
      %4464 = vmatpush1.msra.mxu0 0.0
      %4465 = vmatprep.subr.mxu0 0.0
      %4466 = vmatpush1.msra.mxu0 0.0
      %4467 = vmatprep.subr.mxu0 0.0
      %4468 = vmatpush1.msra.mxu0 0.0
      %4469 = vmatprep.subr.mxu0 0.0
      %4470 = vmatpush1.msra.mxu0 0.0
      %4471 = vmatprep.subr.mxu0 0.0
      %4472 = vmatpush1.msra.mxu0 0.0
      %4473 = vmatprep.subr.mxu0 0.0
      %4474 = vmatpush1.msra.mxu0 0.0
      %4475 = vmatprep.subr.mxu0 0.0
      %4476 = vmatpush1.msra.mxu0 0.0
      %4477 = vmatprep.subr.mxu0 0.0
      %4478 = vmatpush1.msra.mxu0 0.0
      %4479 = vmatprep.subr.mxu0 0.0
      %4480 = vmatpush1.msra.mxu0 0.0
      %4481 = vmatprep.subr.mxu0 0.0
      %4482 = vmatpush1.msra.mxu0 0.0
      %4483 = vmatprep.subr.mxu0 0.0
      %4484 = vmatpush1.msra.mxu0 0.0
      %4485 = vmatprep.subr.mxu0 0.0
      %4486 = vmatpush1.msra.mxu0 0.0
      %4487 = vmatprep.subr.mxu0 0.0
      %4488 = vmatpush1.msra.mxu0 0.0
      %4489 = vmatprep.subr.mxu0 0.0
      %4490 = vmatpush1.msra.mxu0 0.0
      %4491 = vmatprep.subr.mxu0 0.0
      %4492 = vmatpush1.msra.mxu0 0.0
      %4493 = vmatprep.subr.mxu0 0.0
      %4494 = vmatpush1.msra.mxu0 0.0
      %4495 = vmatprep.mubr.f32.mxu0 0.0
      %4496 = vmatmul.mubr.f32.gmra.mrb[0].mxu0 %v3785
      %v4497 = vpop.f32.mrb[0].mxu0
      %v4498 = vadd.f32 0.0, %v4497
      %v4499 = vpop.f32.mrb[0].mxu0
      %4500 = vmatprep.mubr.f32.mxu0 0.0
      %4501 = vmatmul.mubr.f32.gmra.mrb[0].mxu0 %v3786
      %v4502 = vpop.f32.mrb[0].mxu0
      %v4503 = vadd.f32 0.0, %v4502
      %v4504 = vpop.f32.mrb[0].mxu0
      %4505 = vmatprep.mubr.f32.mxu0 0.0
      %4506 = vmatmul.mubr.f32.gmra.mrb[0].mxu0 %v3787
      %v4507 = vpop.f32.mrb[0].mxu0
      %v4508 = vadd.f32 0.0, %v4507
      %v4509 = vpop.f32.mrb[0].mxu0
      %4510 = vmatprep.mubr.f32.mxu0 0.0
      %4511 = vmatmul.mubr.f32.gmra.mrb[0].mxu0 %v3788
      %v4512 = vpop.f32.mrb[0].mxu0
      %v4513 = vadd.f32 0.0, %v4512
      %v4514 = vpop.f32.mrb[0].mxu0
      %4515 = vmatprep.mubr.f32.mxu0 0.0
      %4516 = vmatmul.mubr.f32.gmra.mrb[0].mxu0 %v3789
      %v4517 = vpop.f32.mrb[0].mxu0
      %v4518 = vadd.f32 0.0, %v4517
      %v4519 = vpop.f32.mrb[0].mxu0
      %4520 = vmatprep.mubr.f32.mxu0 0.0
      %4521 = vmatmul.mubr.f32.gmra.mrb[0].mxu0 %v3790
      %v4522 = vpop.f32.mrb[0].mxu0
      %v4523 = vadd.f32 0.0, %v4522
      %v4524 = vpop.f32.mrb[0].mxu0
      %4525 = vmatprep.mubr.f32.mxu0 0.0
      %4526 = vmatmul.mubr.f32.gmra.mrb[0].mxu0 %v3791
      %v4527 = vpop.f32.mrb[0].mxu0
      %v4528 = vadd.f32 0.0, %v4527
      %v4529 = vpop.f32.mrb[0].mxu0
      %4530 = vmatprep.mubr.f32.mxu0 0.0
      %4531 = vmatmul.mubr.f32.gmra.mrb[0].mxu0 %v3792
      %v4532 = vpop.f32.mrb[0].mxu0
      %v4533 = vadd.f32 0.0, %v4532
      %v4534 = vpop.f32.mrb[0].mxu0
      %4535 = vdwg.mxu0
      %4536 = vmatprep.subr.mxu0 0.0
      %4537 = vmatpush1.msra.mxu0 %v1827
      %4538 = vmatprep.subr.mxu0 0.0
      %4539 = vmatpush1.msra.mxu0 %v1832
      %4540 = vmatprep.subr.mxu0 0.0
      %4541 = vmatpush1.msra.mxu0 %v1837
      %4542 = vmatprep.subr.mxu0 0.0
      %4543 = vmatpush1.msra.mxu0 %v1842
      %4544 = vmatprep.subr.mxu0 0.0
      %4545 = vmatpush1.msra.mxu0 %v1847
      %4546 = vmatprep.subr.mxu0 0.0
      %4547 = vmatpush1.msra.mxu0 %v1852
      %4548 = vmatprep.subr.mxu0 0.0
      %4549 = vmatpush1.msra.mxu0 %v1857
      %4550 = vmatprep.subr.mxu0 0.0
      %4551 = vmatpush1.msra.mxu0 %v1862
      %4552 = vmatprep.subr.mxu0 0.0
      %4553 = vmatpush1.msra.mxu0 0.0
      %4554 = vmatprep.subr.mxu0 0.0
      %4555 = vmatpush1.msra.mxu0 0.0
      %4556 = vmatprep.subr.mxu0 0.0
      %4557 = vmatpush1.msra.mxu0 0.0
      %4558 = vmatprep.subr.mxu0 0.0
      %4559 = vmatpush1.msra.mxu0 0.0
      %4560 = vmatprep.subr.mxu0 0.0
      %4561 = vmatpush1.msra.mxu0 0.0
      %4562 = vmatprep.subr.mxu0 0.0
      %4563 = vmatpush1.msra.mxu0 0.0
      %4564 = vmatprep.subr.mxu0 0.0
      %4565 = vmatpush1.msra.mxu0 0.0
      %4566 = vmatprep.subr.mxu0 0.0
      %4567 = vmatpush1.msra.mxu0 0.0
      %4568 = vmatprep.subr.mxu0 0.0
      %4569 = vmatpush1.msra.mxu0 0.0
      %4570 = vmatprep.subr.mxu0 0.0
      %4571 = vmatpush1.msra.mxu0 0.0
      %4572 = vmatprep.subr.mxu0 0.0
      %4573 = vmatpush1.msra.mxu0 0.0
      %4574 = vmatprep.subr.mxu0 0.0
      %4575 = vmatpush1.msra.mxu0 0.0
      %4576 = vmatprep.subr.mxu0 0.0
      %4577 = vmatpush1.msra.mxu0 0.0
      %4578 = vmatprep.subr.mxu0 0.0
      %4579 = vmatpush1.msra.mxu0 0.0
      %4580 = vmatprep.subr.mxu0 0.0
      %4581 = vmatpush1.msra.mxu0 0.0
      %4582 = vmatprep.subr.mxu0 0.0
      %4583 = vmatpush1.msra.mxu0 0.0
      %4584 = vmatprep.subr.mxu0 0.0
      %4585 = vmatpush1.msra.mxu0 0.0
      %4586 = vmatprep.subr.mxu0 0.0
      %4587 = vmatpush1.msra.mxu0 0.0
      %4588 = vmatprep.subr.mxu0 0.0
      %4589 = vmatpush1.msra.mxu0 0.0
      %4590 = vmatprep.subr.mxu0 0.0
      %4591 = vmatpush1.msra.mxu0 0.0
      %4592 = vmatprep.subr.mxu0 0.0
      %4593 = vmatpush1.msra.mxu0 0.0
      %4594 = vmatprep.subr.mxu0 0.0
      %4595 = vmatpush1.msra.mxu0 0.0
      %4596 = vmatprep.subr.mxu0 0.0
      %4597 = vmatpush1.msra.mxu0 0.0
      %4598 = vmatprep.subr.mxu0 0.0
      %4599 = vmatpush1.msra.mxu0 0.0
      %4600 = vmatprep.mubr.f32.mxu0 0.0
      %4601 = vmatmul.mubr.f32.gmra.mrb[0].mxu0 %v3793
      %v4602 = vpop.f32.mrb[0].mxu0
      %v4603 = vadd.f32 0.0, %v4602
      %v4604 = vpop.f32.mrb[0].mxu0
      %4605 = vmatprep.mubr.f32.mxu0 0.0
      %4606 = vmatmul.mubr.f32.gmra.mrb[0].mxu0 %v3794
      %v4607 = vpop.f32.mrb[0].mxu0
      %v4608 = vadd.f32 0.0, %v4607
      %v4609 = vpop.f32.mrb[0].mxu0
      %4610 = vmatprep.mubr.f32.mxu0 0.0
      %4611 = vmatmul.mubr.f32.gmra.mrb[0].mxu0 %v3795
      %v4612 = vpop.f32.mrb[0].mxu0
      %v4613 = vadd.f32 0.0, %v4612
      %v4614 = vpop.f32.mrb[0].mxu0
      %4615 = vmatprep.mubr.f32.mxu0 0.0
      %4616 = vmatmul.mubr.f32.gmra.mrb[0].mxu0 %v3796
      %v4617 = vpop.f32.mrb[0].mxu0
      %v4618 = vadd.f32 0.0, %v4617
      %v4619 = vpop.f32.mrb[0].mxu0
      %4620 = vmatprep.mubr.f32.mxu0 0.0
      %4621 = vmatmul.mubr.f32.gmra.mrb[0].mxu0 %v3797
      %v4622 = vpop.f32.mrb[0].mxu0
      %v4623 = vadd.f32 0.0, %v4622
      %v4624 = vpop.f32.mrb[0].mxu0
      %4625 = vmatprep.mubr.f32.mxu0 0.0
      %4626 = vmatmul.mubr.f32.gmra.mrb[0].mxu0 %v3798
      %v4627 = vpop.f32.mrb[0].mxu0
      %v4628 = vadd.f32 0.0, %v4627
      %v4629 = vpop.f32.mrb[0].mxu0
      %4630 = vmatprep.mubr.f32.mxu0 0.0
      %4631 = vmatmul.mubr.f32.gmra.mrb[0].mxu0 %v3799
      %v4632 = vpop.f32.mrb[0].mxu0
      %v4633 = vadd.f32 0.0, %v4632
      %v4634 = vpop.f32.mrb[0].mxu0
      %4635 = vmatprep.mubr.f32.mxu0 0.0
      %4636 = vmatmul.mubr.f32.gmra.mrb[0].mxu0 %v3800
      %v4637 = vpop.f32.mrb[0].mxu0
      %v4638 = vadd.f32 0.0, %v4637
      %v4639 = vpop.f32.mrb[0].mxu0
      %4640 = vdwg.mxu0
      %4641 = vst [vmem:[%s355] sm:$0xff] %v3737
      %4642 = vst [vmem:[%s355 + $0x8] sm:$0xff] %v3738
      %4643 = vst [vmem:[%s355 + $0x10] sm:$0xff] %v3739
      %4644 = vst [vmem:[%s355 + $0x18] sm:$0xff] %v3740
      %4645 = vst [vmem:[%s355 + $0x20] sm:$0xff] %v3741
      %4646 = vst [vmem:[%s355 + $0x28] sm:$0xff] %v3742
      %4647 = vst [vmem:[%s355 + $0x30] sm:$0xff] %v3743
      %4648 = vst [vmem:[%s355 + $0x38] sm:$0xff] %v3744
      %4649 = vst [vmem:[%s355 + $0x40] sm:$0xff] %v3745
      %4650 = vst [vmem:[%s355 + $0x48] sm:$0xff] %v3746
      %4651 = vst [vmem:[%s355 + $0x50] sm:$0xff] %v3747
      %4652 = vst [vmem:[%s355 + $0x58] sm:$0xff] %v3748
      %4653 = vst [vmem:[%s355 + $0x60] sm:$0xff] %v3749
      %4654 = vst [vmem:[%s355 + $0x68] sm:$0xff] %v3750
      %4655 = vst [vmem:[%s355 + $0x70] sm:$0xff] %v3751
      %4656 = vst [vmem:[%s355 + $0x78] sm:$0xff] %v3752
      %4657 = vst [vmem:[%s355 + $0x80] sm:$0xff] %v3753
      %4658 = vst [vmem:[%s355 + $0x88] sm:$0xff] %v3754
      %4659 = vst [vmem:[%s355 + $0x90] sm:$0xff] %v3755
      %4660 = vst [vmem:[%s355 + $0x98] sm:$0xff] %v3756
      %4661 = vst [vmem:[%s355 + $0xa0] sm:$0xff] %v3757
      %4662 = vst [vmem:[%s355 + $0xa8] sm:$0xff] %v3758
      %4663 = vst [vmem:[%s355 + $0xb0] sm:$0xff] %v3759
      %4664 = vst [vmem:[%s355 + $0xb8] sm:$0xff] %v3760
      %4665 = vst [vmem:[%s355 + $0xc0] sm:$0xff] %v3761
      %4666 = vst [vmem:[%s355 + $0xc8] sm:$0xff] %v3762
      %4667 = vst [vmem:[%s355 + $0xd0] sm:$0xff] %v3763
      %4668 = vst [vmem:[%s355 + $0xd8] sm:$0xff] %v3764
      %4669 = vst [vmem:[%s355 + $0xe0] sm:$0xff] %v3765
      %4670 = vst [vmem:[%s355 + $0xe8] sm:$0xff] %v3766
      %4671 = vst [vmem:[%s355 + $0xf0] sm:$0xff] %v3767
      %4672 = vst [vmem:[%s355 + $0xf8] sm:$0xff] %v3768
      %4673 = vst [vmem:[%s355 + $0x100] sm:$0xff] %v3769
      %4674 = vst [vmem:[%s355 + $0x108] sm:$0xff] %v3770
      %4675 = vst [vmem:[%s355 + $0x110] sm:$0xff] %v3771
      %4676 = vst [vmem:[%s355 + $0x118] sm:$0xff] %v3772
      %4677 = vst [vmem:[%s355 + $0x120] sm:$0xff] %v3773
      %4678 = vst [vmem:[%s355 + $0x128] sm:$0xff] %v3774
      %4679 = vst [vmem:[%s355 + $0x130] sm:$0xff] %v3775
      %4680 = vst [vmem:[%s355 + $0x138] sm:$0xff] %v3776
      %4681 = vst [vmem:[%s355 + $0x140] sm:$0xff] %v3777
      %4682 = vst [vmem:[%s355 + $0x148] sm:$0xff] %v3778
      %4683 = vst [vmem:[%s355 + $0x150] sm:$0xff] %v3779
      %4684 = vst [vmem:[%s355 + $0x158] sm:$0xff] %v3780
      %4685 = vst [vmem:[%s355 + $0x160] sm:$0xff] %v3781
      %4686 = vst [vmem:[%s355 + $0x168] sm:$0xff] %v3782
      %4687 = vst [vmem:[%s355 + $0x170] sm:$0xff] %v3783
      %4688 = vst [vmem:[%s355 + $0x178] sm:$0xff] %v3784
      %4689 = vst [vmem:[%s355 + $0x180] sm:$0xff] %v3785
      %4690 = vst [vmem:[%s355 + $0x188] sm:$0xff] %v3786
      %4691 = vst [vmem:[%s355 + $0x190] sm:$0xff] %v3787
      %4692 = vst [vmem:[%s355 + $0x198] sm:$0xff] %v3788
      %4693 = vst [vmem:[%s355 + $0x1a0] sm:$0xff] %v3789
      %4694 = vst [vmem:[%s355 + $0x1a8] sm:$0xff] %v3790
      %4695 = vst [vmem:[%s355 + $0x1b0] sm:$0xff] %v3791
      %4696 = vst [vmem:[%s355 + $0x1b8] sm:$0xff] %v3792
      %4697 = vst [vmem:[%s355 + $0x1c0] sm:$0xff] %v3793
      %4698 = vst [vmem:[%s355 + $0x1c8] sm:$0xff] %v3794
      %4699 = vst [vmem:[%s355 + $0x1d0] sm:$0xff] %v3795
      %4700 = vst [vmem:[%s355 + $0x1d8] sm:$0xff] %v3796
      %4701 = vst [vmem:[%s355 + $0x1e0] sm:$0xff] %v3797
      %4702 = vst [vmem:[%s355 + $0x1e8] sm:$0xff] %v3798
      %4703 = vst [vmem:[%s355 + $0x1f0] sm:$0xff] %v3799
      %4704 = vst [vmem:[%s355 + $0x1f8] sm:$0xff] %v3800
      %v4705 = vld [vmem:[%s5] sm:$0xff]
      %v4706 = vld [vmem:[%s5 + $0x8] sm:$0xff]
      %v4707 = vld [vmem:[%s5 + $0x10] sm:$0xff]
      %v4708 = vld [vmem:[%s5 + $0x18] sm:$0xff]
      %v4709 = vld [vmem:[%s5 + $0x20] sm:$0xff]
      %v4710 = vld [vmem:[%s5 + $0x28] sm:$0xff]
      %v4711 = vld [vmem:[%s5 + $0x30] sm:$0xff]
      %v4712 = vld [vmem:[%s5 + $0x38] sm:$0xff]
      %v4714 = vsel %vm501, %v3868, 0
      %v4717 = vsel %vm501, %v3873, 0
      %v4720 = vsel %vm501, %v3878, 0
      %v4723 = vsel %vm501, %v3883, 0
      %v4726 = vsel %vm501, %v3888, 0
      %v4729 = vsel %vm501, %v3893, 0
      %v4732 = vsel %vm501, %v3898, 0
      %v4735 = vsel %vm501, %v3903, 0
      %v4738 = vsel %vm501, %v3973, 0
      %v4741 = vsel %vm501, %v3978, 0
      %v4744 = vsel %vm501, %v3983, 0
      %v4747 = vsel %vm501, %v3988, 0
      %v4750 = vsel %vm501, %v3993, 0
      %v4753 = vsel %vm501, %v3998, 0
      %v4756 = vsel %vm501, %v4003, 0
      %v4759 = vsel %vm501, %v4008, 0
      %v4762 = vsel %vm501, %v4078, 0
      %v4765 = vsel %vm501, %v4083, 0
      %v4768 = vsel %vm501, %v4088, 0
      %v4771 = vsel %vm501, %v4093, 0
      %v4774 = vsel %vm501, %v4098, 0
      %v4777 = vsel %vm501, %v4103, 0
      %v4780 = vsel %vm501, %v4108, 0
      %v4783 = vsel %vm501, %v4113, 0
      %v4786 = vsel %vm501, %v4183, 0
      %v4789 = vsel %vm501, %v4188, 0
      %v4792 = vsel %vm501, %v4193, 0
      %v4795 = vsel %vm501, %v4198, 0
      %v4798 = vsel %vm501, %v4203, 0
      %v4801 = vsel %vm501, %v4208, 0
      %v4804 = vsel %vm501, %v4213, 0
      %v4807 = vsel %vm501, %v4218, 0
      %v4810 = vsel %vm501, %v4288, 0
      %v4813 = vsel %vm501, %v4293, 0
      %v4816 = vsel %vm501, %v4298, 0
      %v4819 = vsel %vm501, %v4303, 0
      %v4822 = vsel %vm501, %v4308, 0
      %v4825 = vsel %vm501, %v4313, 0
      %v4828 = vsel %vm501, %v4318, 0
      %v4831 = vsel %vm501, %v4323, 0
      %v4834 = vsel %vm501, %v4393, 0
      %v4837 = vsel %vm501, %v4398, 0
      %v4840 = vsel %vm501, %v4403, 0
      %v4843 = vsel %vm501, %v4408, 0
      %v4846 = vsel %vm501, %v4413, 0
      %v4849 = vsel %vm501, %v4418, 0
      %v4852 = vsel %vm501, %v4423, 0
      %v4855 = vsel %vm501, %v4428, 0
      %v4858 = vsel %vm501, %v4498, 0
      %v4861 = vsel %vm501, %v4503, 0
      %v4864 = vsel %vm501, %v4508, 0
      %v4867 = vsel %vm501, %v4513, 0
      %v4870 = vsel %vm501, %v4518, 0
      %v4873 = vsel %vm501, %v4523, 0
      %v4876 = vsel %vm501, %v4528, 0
      %v4879 = vsel %vm501, %v4533, 0
      %v4882 = vsel %vm501, %v4603, 0
      %v4885 = vsel %vm501, %v4608, 0
      %v4888 = vsel %vm501, %v4613, 0
      %v4891 = vsel %vm501, %v4618, 0
      %v4894 = vsel %vm501, %v4623, 0
      %v4897 = vsel %vm501, %v4628, 0
      %v4900 = vsel %vm501, %v4633, 0
      %v4903 = vsel %vm501, %v4638, 0
      %4905 = vmatprep.subr.mxu0 0.0
      %4906 = vmatpush1.msra.mxu0 %v4705
      %4907 = vmatprep.subr.mxu0 0.0
      %4908 = vmatpush1.msra.mxu0 %v4706
      %4909 = vmatprep.subr.mxu0 0.0
      %4910 = vmatpush1.msra.mxu0 %v4707
      %4911 = vmatprep.subr.mxu0 0.0
      %4912 = vmatpush1.msra.mxu0 %v4708
      %4913 = vmatprep.subr.mxu0 0.0
      %4914 = vmatpush1.msra.mxu0 %v4709
      %4915 = vmatprep.subr.mxu0 0.0
      %4916 = vmatpush1.msra.mxu0 %v4710
      %4917 = vmatprep.subr.mxu0 0.0
      %4918 = vmatpush1.msra.mxu0 %v4711
      %4919 = vmatprep.subr.mxu0 0.0
      %4920 = vmatpush1.msra.mxu0 %v4712
      %4921 = vmatprep.subr.mxu0 0.0
      %4922 = vmatpush1.msra.mxu0 0.0
      %4923 = vmatprep.subr.mxu0 0.0
      %4924 = vmatpush1.msra.mxu0 0.0
      %4925 = vmatprep.subr.mxu0 0.0
      %4926 = vmatpush1.msra.mxu0 0.0
      %4927 = vmatprep.subr.mxu0 0.0
      %4928 = vmatpush1.msra.mxu0 0.0
      %4929 = vmatprep.subr.mxu0 0.0
      %4930 = vmatpush1.msra.mxu0 0.0
      %4931 = vmatprep.subr.mxu0 0.0
      %4932 = vmatpush1.msra.mxu0 0.0
      %4933 = vmatprep.subr.mxu0 0.0
      %4934 = vmatpush1.msra.mxu0 0.0
      %4935 = vmatprep.subr.mxu0 0.0
      %4936 = vmatpush1.msra.mxu0 0.0
      %4937 = vmatprep.subr.mxu0 0.0
      %4938 = vmatpush1.msra.mxu0 0.0
      %4939 = vmatprep.subr.mxu0 0.0
      %4940 = vmatpush1.msra.mxu0 0.0
      %4941 = vmatprep.subr.mxu0 0.0
      %4942 = vmatpush1.msra.mxu0 0.0
      %4943 = vmatprep.subr.mxu0 0.0
      %4944 = vmatpush1.msra.mxu0 0.0
      %4945 = vmatprep.subr.mxu0 0.0
      %4946 = vmatpush1.msra.mxu0 0.0
      %4947 = vmatprep.subr.mxu0 0.0
      %4948 = vmatpush1.msra.mxu0 0.0
      %4949 = vmatprep.subr.mxu0 0.0
      %4950 = vmatpush1.msra.mxu0 0.0
      %4951 = vmatprep.subr.mxu0 0.0
      %4952 = vmatpush1.msra.mxu0 0.0
      %4953 = vmatprep.subr.mxu0 0.0
      %4954 = vmatpush1.msra.mxu0 0.0
      %4955 = vmatprep.subr.mxu0 0.0
      %4956 = vmatpush1.msra.mxu0 0.0
      %4957 = vmatprep.subr.mxu0 0.0
      %4958 = vmatpush1.msra.mxu0 0.0
      %4959 = vmatprep.subr.mxu0 0.0
      %4960 = vmatpush1.msra.mxu0 0.0
      %4961 = vmatprep.subr.mxu0 0.0
      %4962 = vmatpush1.msra.mxu0 0.0
      %4963 = vmatprep.subr.mxu0 0.0
      %4964 = vmatpush1.msra.mxu0 0.0
      %4965 = vmatprep.subr.mxu0 0.0
      %4966 = vmatpush1.msra.mxu0 0.0
      %4967 = vmatprep.subr.mxu0 0.0
      %4968 = vmatpush1.msra.mxu0 0.0
      %4969 = vmatprep.mubr.f32.mxu0 0.0
      %4970 = vmatmul.mubr.f32.gmra.mrb[0].mxu0 %v4714
      %v4971 = vpop.f32.mrb[0].mxu0
      %v4972 = vadd.f32 %v429, %v4971
      %v4973 = vpop.f32.mrb[0].mxu0
      %4974 = vmatprep.mubr.f32.mxu0 0.0
      %4975 = vmatmul.mubr.f32.gmra.mrb[0].mxu0 %v4717
      %v4976 = vpop.f32.mrb[0].mxu0
      %v4977 = vadd.f32 %v430, %v4976
      %v4978 = vpop.f32.mrb[0].mxu0
      %4979 = vmatprep.mubr.f32.mxu0 0.0
      %4980 = vmatmul.mubr.f32.gmra.mrb[0].mxu0 %v4720
      %v4981 = vpop.f32.mrb[0].mxu0
      %v4982 = vadd.f32 %v431, %v4981
      %v4983 = vpop.f32.mrb[0].mxu0
      %4984 = vmatprep.mubr.f32.mxu0 0.0
      %4985 = vmatmul.mubr.f32.gmra.mrb[0].mxu0 %v4723
      %v4986 = vpop.f32.mrb[0].mxu0
      %v4987 = vadd.f32 %v432, %v4986
      %v4988 = vpop.f32.mrb[0].mxu0
      %4989 = vmatprep.mubr.f32.mxu0 0.0
      %4990 = vmatmul.mubr.f32.gmra.mrb[0].mxu0 %v4726
      %v4991 = vpop.f32.mrb[0].mxu0
      %v4992 = vadd.f32 %v433, %v4991
      %v4993 = vpop.f32.mrb[0].mxu0
      %4994 = vmatprep.mubr.f32.mxu0 0.0
      %4995 = vmatmul.mubr.f32.gmra.mrb[0].mxu0 %v4729
      %v4996 = vpop.f32.mrb[0].mxu0
      %v4997 = vadd.f32 %v434, %v4996
      %v4998 = vpop.f32.mrb[0].mxu0
      %4999 = vmatprep.mubr.f32.mxu0 0.0
      %5000 = vmatmul.mubr.f32.gmra.mrb[0].mxu0 %v4732
      %v5001 = vpop.f32.mrb[0].mxu0
      %v5002 = vadd.f32 %v435, %v5001
      %v5003 = vpop.f32.mrb[0].mxu0
      %5004 = vmatprep.mubr.f32.mxu0 0.0
      %5005 = vmatmul.mubr.f32.gmra.mrb[0].mxu0 %v4735
      %v5006 = vpop.f32.mrb[0].mxu0
      %v5007 = vadd.f32 %v436, %v5006
      %v5008 = vpop.f32.mrb[0].mxu0
      %5009 = vmatprep.mubr.f32.mxu0 0.0
      %5010 = vmatmul.mubr.f32.gmra.mrb[0].mxu0 %v4738
      %v5011 = vpop.f32.mrb[0].mxu0
      %v5012 = vadd.f32 %v437, %v5011
      %v5013 = vpop.f32.mrb[0].mxu0
      %5014 = vmatprep.mubr.f32.mxu0 0.0
      %5015 = vmatmul.mubr.f32.gmra.mrb[0].mxu0 %v4741
      %v5016 = vpop.f32.mrb[0].mxu0
      %v5017 = vadd.f32 %v438, %v5016
      %v5018 = vpop.f32.mrb[0].mxu0
      %5019 = vmatprep.mubr.f32.mxu0 0.0
      %5020 = vmatmul.mubr.f32.gmra.mrb[0].mxu0 %v4744
      %v5021 = vpop.f32.mrb[0].mxu0
      %v5022 = vadd.f32 %v439, %v5021
      %v5023 = vpop.f32.mrb[0].mxu0
      %5024 = vmatprep.mubr.f32.mxu0 0.0
      %5025 = vmatmul.mubr.f32.gmra.mrb[0].mxu0 %v4747
      %v5026 = vpop.f32.mrb[0].mxu0
      %v5027 = vadd.f32 %v440, %v5026
      %v5028 = vpop.f32.mrb[0].mxu0
      %5029 = vmatprep.mubr.f32.mxu0 0.0
      %5030 = vmatmul.mubr.f32.gmra.mrb[0].mxu0 %v4750
      %v5031 = vpop.f32.mrb[0].mxu0
      %v5032 = vadd.f32 %v441, %v5031
      %v5033 = vpop.f32.mrb[0].mxu0
      %5034 = vmatprep.mubr.f32.mxu0 0.0
      %5035 = vmatmul.mubr.f32.gmra.mrb[0].mxu0 %v4753
      %v5036 = vpop.f32.mrb[0].mxu0
      %v5037 = vadd.f32 %v442, %v5036
      %v5038 = vpop.f32.mrb[0].mxu0
      %5039 = vmatprep.mubr.f32.mxu0 0.0
      %5040 = vmatmul.mubr.f32.gmra.mrb[0].mxu0 %v4756
      %v5041 = vpop.f32.mrb[0].mxu0
      %v5042 = vadd.f32 %v443, %v5041
      %v5043 = vpop.f32.mrb[0].mxu0
      %5044 = vmatprep.mubr.f32.mxu0 0.0
      %5045 = vmatmul.mubr.f32.gmra.mrb[0].mxu0 %v4759
      %v5046 = vpop.f32.mrb[0].mxu0
      %v5047 = vadd.f32 %v444, %v5046
      %v5048 = vpop.f32.mrb[0].mxu0
      %5049 = vmatprep.mubr.f32.mxu0 0.0
      %5050 = vmatmul.mubr.f32.gmra.mrb[0].mxu0 %v4762
      %v5051 = vpop.f32.mrb[0].mxu0
      %v5052 = vadd.f32 %v445, %v5051
      %v5053 = vpop.f32.mrb[0].mxu0
      %5054 = vmatprep.mubr.f32.mxu0 0.0
      %5055 = vmatmul.mubr.f32.gmra.mrb[0].mxu0 %v4765
      %v5056 = vpop.f32.mrb[0].mxu0
      %v5057 = vadd.f32 %v446, %v5056
      %v5058 = vpop.f32.mrb[0].mxu0
      %5059 = vmatprep.mubr.f32.mxu0 0.0
      %5060 = vmatmul.mubr.f32.gmra.mrb[0].mxu0 %v4768
      %v5061 = vpop.f32.mrb[0].mxu0
      %v5062 = vadd.f32 %v447, %v5061
      %v5063 = vpop.f32.mrb[0].mxu0
      %5064 = vmatprep.mubr.f32.mxu0 0.0
      %5065 = vmatmul.mubr.f32.gmra.mrb[0].mxu0 %v4771
      %v5066 = vpop.f32.mrb[0].mxu0
      %v5067 = vadd.f32 %v448, %v5066
      %v5068 = vpop.f32.mrb[0].mxu0
      %5069 = vmatprep.mubr.f32.mxu0 0.0
      %5070 = vmatmul.mubr.f32.gmra.mrb[0].mxu0 %v4774
      %v5071 = vpop.f32.mrb[0].mxu0
      %v5072 = vadd.f32 %v449, %v5071
      %v5073 = vpop.f32.mrb[0].mxu0
      %5074 = vmatprep.mubr.f32.mxu0 0.0
      %5075 = vmatmul.mubr.f32.gmra.mrb[0].mxu0 %v4777
      %v5076 = vpop.f32.mrb[0].mxu0
      %v5077 = vadd.f32 %v450, %v5076
      %v5078 = vpop.f32.mrb[0].mxu0
      %5079 = vmatprep.mubr.f32.mxu0 0.0
      %5080 = vmatmul.mubr.f32.gmra.mrb[0].mxu0 %v4780
      %v5081 = vpop.f32.mrb[0].mxu0
      %v5082 = vadd.f32 %v451, %v5081
      %v5083 = vpop.f32.mrb[0].mxu0
      %5084 = vmatprep.mubr.f32.mxu0 0.0
      %5085 = vmatmul.mubr.f32.gmra.mrb[0].mxu0 %v4783
      %v5086 = vpop.f32.mrb[0].mxu0
      %v5087 = vadd.f32 %v452, %v5086
      %v5088 = vpop.f32.mrb[0].mxu0
      %5089 = vmatprep.mubr.f32.mxu0 0.0
      %5090 = vmatmul.mubr.f32.gmra.mrb[0].mxu0 %v4786
      %v5091 = vpop.f32.mrb[0].mxu0
      %v5092 = vadd.f32 %v453, %v5091
      %v5093 = vpop.f32.mrb[0].mxu0
      %5094 = vmatprep.mubr.f32.mxu0 0.0
      %5095 = vmatmul.mubr.f32.gmra.mrb[0].mxu0 %v4789
      %v5096 = vpop.f32.mrb[0].mxu0
      %v5097 = vadd.f32 %v454, %v5096
      %v5098 = vpop.f32.mrb[0].mxu0
      %5099 = vmatprep.mubr.f32.mxu0 0.0
      %5100 = vmatmul.mubr.f32.gmra.mrb[0].mxu0 %v4792
      %v5101 = vpop.f32.mrb[0].mxu0
      %v5102 = vadd.f32 %v455, %v5101
      %v5103 = vpop.f32.mrb[0].mxu0
      %5104 = vmatprep.mubr.f32.mxu0 0.0
      %5105 = vmatmul.mubr.f32.gmra.mrb[0].mxu0 %v4795
      %v5106 = vpop.f32.mrb[0].mxu0
      %v5107 = vadd.f32 %v456, %v5106
      %v5108 = vpop.f32.mrb[0].mxu0
      %5109 = vmatprep.mubr.f32.mxu0 0.0
      %5110 = vmatmul.mubr.f32.gmra.mrb[0].mxu0 %v4798
      %v5111 = vpop.f32.mrb[0].mxu0
      %v5112 = vadd.f32 %v457, %v5111
      %v5113 = vpop.f32.mrb[0].mxu0
      %5114 = vmatprep.mubr.f32.mxu0 0.0
      %5115 = vmatmul.mubr.f32.gmra.mrb[0].mxu0 %v4801
      %v5116 = vpop.f32.mrb[0].mxu0
      %v5117 = vadd.f32 %v458, %v5116
      %v5118 = vpop.f32.mrb[0].mxu0
      %5119 = vmatprep.mubr.f32.mxu0 0.0
      %5120 = vmatmul.mubr.f32.gmra.mrb[0].mxu0 %v4804
      %v5121 = vpop.f32.mrb[0].mxu0
      %v5122 = vadd.f32 %v459, %v5121
      %v5123 = vpop.f32.mrb[0].mxu0
      %5124 = vmatprep.mubr.f32.mxu0 0.0
      %5125 = vmatmul.mubr.f32.gmra.mrb[0].mxu0 %v4807
      %v5126 = vpop.f32.mrb[0].mxu0
      %v5127 = vadd.f32 %v460, %v5126
      %v5128 = vpop.f32.mrb[0].mxu0
      %5129 = vmatprep.mubr.f32.mxu0 0.0
      %5130 = vmatmul.mubr.f32.gmra.mrb[0].mxu0 %v4810
      %v5131 = vpop.f32.mrb[0].mxu0
      %v5132 = vadd.f32 %v461, %v5131
      %v5133 = vpop.f32.mrb[0].mxu0
      %5134 = vmatprep.mubr.f32.mxu0 0.0
      %5135 = vmatmul.mubr.f32.gmra.mrb[0].mxu0 %v4813
      %v5136 = vpop.f32.mrb[0].mxu0
      %v5137 = vadd.f32 %v462, %v5136
      %v5138 = vpop.f32.mrb[0].mxu0
      %5139 = vmatprep.mubr.f32.mxu0 0.0
      %5140 = vmatmul.mubr.f32.gmra.mrb[0].mxu0 %v4816
      %v5141 = vpop.f32.mrb[0].mxu0
      %v5142 = vadd.f32 %v463, %v5141
      %v5143 = vpop.f32.mrb[0].mxu0
      %5144 = vmatprep.mubr.f32.mxu0 0.0
      %5145 = vmatmul.mubr.f32.gmra.mrb[0].mxu0 %v4819
      %v5146 = vpop.f32.mrb[0].mxu0
      %v5147 = vadd.f32 %v464, %v5146
      %v5148 = vpop.f32.mrb[0].mxu0
      %5149 = vmatprep.mubr.f32.mxu0 0.0
      %5150 = vmatmul.mubr.f32.gmra.mrb[0].mxu0 %v4822
      %v5151 = vpop.f32.mrb[0].mxu0
      %v5152 = vadd.f32 %v465, %v5151
      %v5153 = vpop.f32.mrb[0].mxu0
      %5154 = vmatprep.mubr.f32.mxu0 0.0
      %5155 = vmatmul.mubr.f32.gmra.mrb[0].mxu0 %v4825
      %v5156 = vpop.f32.mrb[0].mxu0
      %v5157 = vadd.f32 %v466, %v5156
      %v5158 = vpop.f32.mrb[0].mxu0
      %5159 = vmatprep.mubr.f32.mxu0 0.0
      %5160 = vmatmul.mubr.f32.gmra.mrb[0].mxu0 %v4828
      %v5161 = vpop.f32.mrb[0].mxu0
      %v5162 = vadd.f32 %v467, %v5161
      %v5163 = vpop.f32.mrb[0].mxu0
      %5164 = vmatprep.mubr.f32.mxu0 0.0
      %5165 = vmatmul.mubr.f32.gmra.mrb[0].mxu0 %v4831
      %v5166 = vpop.f32.mrb[0].mxu0
      %v5167 = vadd.f32 %v468, %v5166
      %v5168 = vpop.f32.mrb[0].mxu0
      %5169 = vmatprep.mubr.f32.mxu0 0.0
      %5170 = vmatmul.mubr.f32.gmra.mrb[0].mxu0 %v4834
      %v5171 = vpop.f32.mrb[0].mxu0
      %v5172 = vadd.f32 %v469, %v5171
      %v5173 = vpop.f32.mrb[0].mxu0
      %5174 = vmatprep.mubr.f32.mxu0 0.0
      %5175 = vmatmul.mubr.f32.gmra.mrb[0].mxu0 %v4837
      %v5176 = vpop.f32.mrb[0].mxu0
      %v5177 = vadd.f32 %v470, %v5176
      %v5178 = vpop.f32.mrb[0].mxu0
      %5179 = vmatprep.mubr.f32.mxu0 0.0
      %5180 = vmatmul.mubr.f32.gmra.mrb[0].mxu0 %v4840
      %v5181 = vpop.f32.mrb[0].mxu0
      %v5182 = vadd.f32 %v471, %v5181
      %v5183 = vpop.f32.mrb[0].mxu0
      %5184 = vmatprep.mubr.f32.mxu0 0.0
      %5185 = vmatmul.mubr.f32.gmra.mrb[0].mxu0 %v4843
      %v5186 = vpop.f32.mrb[0].mxu0
      %v5187 = vadd.f32 %v472, %v5186
      %v5188 = vpop.f32.mrb[0].mxu0
      %5189 = vmatprep.mubr.f32.mxu0 0.0
      %5190 = vmatmul.mubr.f32.gmra.mrb[0].mxu0 %v4846
      %v5191 = vpop.f32.mrb[0].mxu0
      %v5192 = vadd.f32 %v473, %v5191
      %v5193 = vpop.f32.mrb[0].mxu0
      %5194 = vmatprep.mubr.f32.mxu0 0.0
      %5195 = vmatmul.mubr.f32.gmra.mrb[0].mxu0 %v4849
      %v5196 = vpop.f32.mrb[0].mxu0
      %v5197 = vadd.f32 %v474, %v5196
      %v5198 = vpop.f32.mrb[0].mxu0
      %5199 = vmatprep.mubr.f32.mxu0 0.0
      %5200 = vmatmul.mubr.f32.gmra.mrb[0].mxu0 %v4852
      %v5201 = vpop.f32.mrb[0].mxu0
      %v5202 = vadd.f32 %v475, %v5201
      %v5203 = vpop.f32.mrb[0].mxu0
      %5204 = vmatprep.mubr.f32.mxu0 0.0
      %5205 = vmatmul.mubr.f32.gmra.mrb[0].mxu0 %v4855
      %v5206 = vpop.f32.mrb[0].mxu0
      %v5207 = vadd.f32 %v476, %v5206
      %v5208 = vpop.f32.mrb[0].mxu0
      %5209 = vmatprep.mubr.f32.mxu0 0.0
      %5210 = vmatmul.mubr.f32.gmra.mrb[0].mxu0 %v4858
      %v5211 = vpop.f32.mrb[0].mxu0
      %v5212 = vadd.f32 %v477, %v5211
      %v5213 = vpop.f32.mrb[0].mxu0
      %5214 = vmatprep.mubr.f32.mxu0 0.0
      %5215 = vmatmul.mubr.f32.gmra.mrb[0].mxu0 %v4861
      %v5216 = vpop.f32.mrb[0].mxu0
      %v5217 = vadd.f32 %v478, %v5216
      %v5218 = vpop.f32.mrb[0].mxu0
      %5219 = vmatprep.mubr.f32.mxu0 0.0
      %5220 = vmatmul.mubr.f32.gmra.mrb[0].mxu0 %v4864
      %v5221 = vpop.f32.mrb[0].mxu0
      %v5222 = vadd.f32 %v479, %v5221
      %v5223 = vpop.f32.mrb[0].mxu0
      %5224 = vmatprep.mubr.f32.mxu0 0.0
      %5225 = vmatmul.mubr.f32.gmra.mrb[0].mxu0 %v4867
      %v5226 = vpop.f32.mrb[0].mxu0
      %v5227 = vadd.f32 %v480, %v5226
      %v5228 = vpop.f32.mrb[0].mxu0
      %5229 = vmatprep.mubr.f32.mxu0 0.0
      %5230 = vmatmul.mubr.f32.gmra.mrb[0].mxu0 %v4870
      %v5231 = vpop.f32.mrb[0].mxu0
      %v5232 = vadd.f32 %v481, %v5231
      %v5233 = vpop.f32.mrb[0].mxu0
      %5234 = vmatprep.mubr.f32.mxu0 0.0
      %5235 = vmatmul.mubr.f32.gmra.mrb[0].mxu0 %v4873
      %v5236 = vpop.f32.mrb[0].mxu0
      %v5237 = vadd.f32 %v482, %v5236
      %v5238 = vpop.f32.mrb[0].mxu0
      %5239 = vmatprep.mubr.f32.mxu0 0.0
      %5240 = vmatmul.mubr.f32.gmra.mrb[0].mxu0 %v4876
      %v5241 = vpop.f32.mrb[0].mxu0
      %v5242 = vadd.f32 %v483, %v5241
      %v5243 = vpop.f32.mrb[0].mxu0
      %5244 = vmatprep.mubr.f32.mxu0 0.0
      %5245 = vmatmul.mubr.f32.gmra.mrb[0].mxu0 %v4879
      %v5246 = vpop.f32.mrb[0].mxu0
      %v5247 = vadd.f32 %v484, %v5246
      %v5248 = vpop.f32.mrb[0].mxu0
      %5249 = vmatprep.mubr.f32.mxu0 0.0
      %5250 = vmatmul.mubr.f32.gmra.mrb[0].mxu0 %v4882
      %v5251 = vpop.f32.mrb[0].mxu0
      %v5252 = vadd.f32 %v485, %v5251
      %v5253 = vpop.f32.mrb[0].mxu0
      %5254 = vmatprep.mubr.f32.mxu0 0.0
      %5255 = vmatmul.mubr.f32.gmra.mrb[0].mxu0 %v4885
      %v5256 = vpop.f32.mrb[0].mxu0
      %v5257 = vadd.f32 %v486, %v5256
      %v5258 = vpop.f32.mrb[0].mxu0
      %5259 = vmatprep.mubr.f32.mxu0 0.0
      %5260 = vmatmul.mubr.f32.gmra.mrb[0].mxu0 %v4888
      %v5261 = vpop.f32.mrb[0].mxu0
      %v5262 = vadd.f32 %v487, %v5261
      %v5263 = vpop.f32.mrb[0].mxu0
      %5264 = vmatprep.mubr.f32.mxu0 0.0
      %5265 = vmatmul.mubr.f32.gmra.mrb[0].mxu0 %v4891
      %v5266 = vpop.f32.mrb[0].mxu0
      %v5267 = vadd.f32 %v488, %v5266
      %v5268 = vpop.f32.mrb[0].mxu0
      %5269 = vmatprep.mubr.f32.mxu0 0.0
      %5270 = vmatmul.mubr.f32.gmra.mrb[0].mxu0 %v4894
      %v5271 = vpop.f32.mrb[0].mxu0
      %v5272 = vadd.f32 %v489, %v5271
      %v5273 = vpop.f32.mrb[0].mxu0
      %5274 = vmatprep.mubr.f32.mxu0 0.0
      %5275 = vmatmul.mubr.f32.gmra.mrb[0].mxu0 %v4897
      %v5276 = vpop.f32.mrb[0].mxu0
      %v5277 = vadd.f32 %v490, %v5276
      %v5278 = vpop.f32.mrb[0].mxu0
      %5279 = vmatprep.mubr.f32.mxu0 0.0
      %5280 = vmatmul.mubr.f32.gmra.mrb[0].mxu0 %v4900
      %v5281 = vpop.f32.mrb[0].mxu0
      %v5282 = vadd.f32 %v491, %v5281
      %v5283 = vpop.f32.mrb[0].mxu0
      %5284 = vmatprep.mubr.f32.mxu0 0.0
      %5285 = vmatmul.mubr.f32.gmra.mrb[0].mxu0 %v4903
      %v5286 = vpop.f32.mrb[0].mxu0
      %v5287 = vadd.f32 %v492, %v5286
      %v5288 = vpop.f32.mrb[0].mxu0
      %5289 = vdwg.mxu0
      %v5290 = vsel %vm501, %v4972, 0.0
      %5291 = vadd.xlane.f32.xlu0 %v5290
      %v5292 = vpop.xlane.xlu0 %5291
      %v5293 = vsel %vm501, %v4977, 0.0
      %5294 = vadd.xlane.f32.xlu0 %v5293
      %v5295 = vpop.xlane.xlu0 %5294
      %v5296 = vsel %vm501, %v4982, 0.0
      %5297 = vadd.xlane.f32.xlu0 %v5296
      %v5298 = vpop.xlane.xlu0 %5297
      %v5299 = vsel %vm501, %v4987, 0.0
      %5300 = vadd.xlane.f32.xlu0 %v5299
      %v5301 = vpop.xlane.xlu0 %5300
      %v5302 = vsel %vm501, %v4992, 0.0
      %5303 = vadd.xlane.f32.xlu0 %v5302
      %v5304 = vpop.xlane.xlu0 %5303
      %v5305 = vsel %vm501, %v4997, 0.0
      %5306 = vadd.xlane.f32.xlu0 %v5305
      %v5307 = vpop.xlane.xlu0 %5306
      %v5308 = vsel %vm501, %v5002, 0.0
      %5309 = vadd.xlane.f32.xlu0 %v5308
      %v5310 = vpop.xlane.xlu0 %5309
      %v5311 = vsel %vm501, %v5007, 0.0
      %5312 = vadd.xlane.f32.xlu0 %v5311
      %v5313 = vpop.xlane.xlu0 %5312
      %v5314 = vsel %vm501, %v5012, 0.0
      %5315 = vadd.xlane.f32.xlu0 %v5314
      %v5316 = vpop.xlane.xlu0 %5315
      %v5317 = vsel %vm501, %v5017, 0.0
      %5318 = vadd.xlane.f32.xlu0 %v5317
      %v5319 = vpop.xlane.xlu0 %5318
      %v5320 = vsel %vm501, %v5022, 0.0
      %5321 = vadd.xlane.f32.xlu0 %v5320
      %v5322 = vpop.xlane.xlu0 %5321
      %v5323 = vsel %vm501, %v5027, 0.0
      %5324 = vadd.xlane.f32.xlu0 %v5323
      %v5325 = vpop.xlane.xlu0 %5324
      %v5326 = vsel %vm501, %v5032, 0.0
      %5327 = vadd.xlane.f32.xlu0 %v5326
      %v5328 = vpop.xlane.xlu0 %5327
      %v5329 = vsel %vm501, %v5037, 0.0
      %5330 = vadd.xlane.f32.xlu0 %v5329
      %v5331 = vpop.xlane.xlu0 %5330
      %v5332 = vsel %vm501, %v5042, 0.0
      %5333 = vadd.xlane.f32.xlu0 %v5332
      %v5334 = vpop.xlane.xlu0 %5333
      %v5335 = vsel %vm501, %v5047, 0.0
      %5336 = vadd.xlane.f32.xlu0 %v5335
      %v5337 = vpop.xlane.xlu0 %5336
      %v5338 = vsel %vm501, %v5052, 0.0
      %5339 = vadd.xlane.f32.xlu0 %v5338
      %v5340 = vpop.xlane.xlu0 %5339
      %v5341 = vsel %vm501, %v5057, 0.0
      %5342 = vadd.xlane.f32.xlu0 %v5341
      %v5343 = vpop.xlane.xlu0 %5342
      %v5344 = vsel %vm501, %v5062, 0.0
      %5345 = vadd.xlane.f32.xlu0 %v5344
      %v5346 = vpop.xlane.xlu0 %5345
      %v5347 = vsel %vm501, %v5067, 0.0
      %5348 = vadd.xlane.f32.xlu0 %v5347
      %v5349 = vpop.xlane.xlu0 %5348
      %v5350 = vsel %vm501, %v5072, 0.0
      %5351 = vadd.xlane.f32.xlu0 %v5350
      %v5352 = vpop.xlane.xlu0 %5351
      %v5353 = vsel %vm501, %v5077, 0.0
      %5354 = vadd.xlane.f32.xlu0 %v5353
      %v5355 = vpop.xlane.xlu0 %5354
      %v5356 = vsel %vm501, %v5082, 0.0
      %5357 = vadd.xlane.f32.xlu0 %v5356
      %v5358 = vpop.xlane.xlu0 %5357
      %v5359 = vsel %vm501, %v5087, 0.0
      %5360 = vadd.xlane.f32.xlu0 %v5359
      %v5361 = vpop.xlane.xlu0 %5360
      %v5362 = vsel %vm501, %v5092, 0.0
      %5363 = vadd.xlane.f32.xlu0 %v5362
      %v5364 = vpop.xlane.xlu0 %5363
      %v5365 = vsel %vm501, %v5097, 0.0
      %5366 = vadd.xlane.f32.xlu0 %v5365
      %v5367 = vpop.xlane.xlu0 %5366
      %v5368 = vsel %vm501, %v5102, 0.0
      %5369 = vadd.xlane.f32.xlu0 %v5368
      %v5370 = vpop.xlane.xlu0 %5369
      %v5371 = vsel %vm501, %v5107, 0.0
      %5372 = vadd.xlane.f32.xlu0 %v5371
      %v5373 = vpop.xlane.xlu0 %5372
      %v5374 = vsel %vm501, %v5112, 0.0
      %5375 = vadd.xlane.f32.xlu0 %v5374
      %v5376 = vpop.xlane.xlu0 %5375
      %v5377 = vsel %vm501, %v5117, 0.0
      %5378 = vadd.xlane.f32.xlu0 %v5377
      %v5379 = vpop.xlane.xlu0 %5378
      %v5380 = vsel %vm501, %v5122, 0.0
      %5381 = vadd.xlane.f32.xlu0 %v5380
      %v5382 = vpop.xlane.xlu0 %5381
      %v5383 = vsel %vm501, %v5127, 0.0
      %5384 = vadd.xlane.f32.xlu0 %v5383
      %v5385 = vpop.xlane.xlu0 %5384
      %v5386 = vsel %vm501, %v5132, 0.0
      %5387 = vadd.xlane.f32.xlu0 %v5386
      %v5388 = vpop.xlane.xlu0 %5387
      %v5389 = vsel %vm501, %v5137, 0.0
      %5390 = vadd.xlane.f32.xlu0 %v5389
      %v5391 = vpop.xlane.xlu0 %5390
      %v5392 = vsel %vm501, %v5142, 0.0
      %5393 = vadd.xlane.f32.xlu0 %v5392
      %v5394 = vpop.xlane.xlu0 %5393
      %v5395 = vsel %vm501, %v5147, 0.0
      %5396 = vadd.xlane.f32.xlu0 %v5395
      %v5397 = vpop.xlane.xlu0 %5396
      %v5398 = vsel %vm501, %v5152, 0.0
      %5399 = vadd.xlane.f32.xlu0 %v5398
      %v5400 = vpop.xlane.xlu0 %5399
      %v5401 = vsel %vm501, %v5157, 0.0
      %5402 = vadd.xlane.f32.xlu0 %v5401
      %v5403 = vpop.xlane.xlu0 %5402
      %v5404 = vsel %vm501, %v5162, 0.0
      %5405 = vadd.xlane.f32.xlu0 %v5404
      %v5406 = vpop.xlane.xlu0 %5405
      %v5407 = vsel %vm501, %v5167, 0.0
      %5408 = vadd.xlane.f32.xlu0 %v5407
      %v5409 = vpop.xlane.xlu0 %5408
      %v5410 = vsel %vm501, %v5172, 0.0
      %5411 = vadd.xlane.f32.xlu0 %v5410
      %v5412 = vpop.xlane.xlu0 %5411
      %v5413 = vsel %vm501, %v5177, 0.0
      %5414 = vadd.xlane.f32.xlu0 %v5413
      %v5415 = vpop.xlane.xlu0 %5414
      %v5416 = vsel %vm501, %v5182, 0.0
      %5417 = vadd.xlane.f32.xlu0 %v5416
      %v5418 = vpop.xlane.xlu0 %5417
      %v5419 = vsel %vm501, %v5187, 0.0
      %5420 = vadd.xlane.f32.xlu0 %v5419
      %v5421 = vpop.xlane.xlu0 %5420
      %v5422 = vsel %vm501, %v5192, 0.0
      %5423 = vadd.xlane.f32.xlu0 %v5422
      %v5424 = vpop.xlane.xlu0 %5423
      %v5425 = vsel %vm501, %v5197, 0.0
      %5426 = vadd.xlane.f32.xlu0 %v5425
      %v5427 = vpop.xlane.xlu0 %5426
      %v5428 = vsel %vm501, %v5202, 0.0
      %5429 = vadd.xlane.f32.xlu0 %v5428
      %v5430 = vpop.xlane.xlu0 %5429
      %v5431 = vsel %vm501, %v5207, 0.0
      %5432 = vadd.xlane.f32.xlu0 %v5431
      %v5433 = vpop.xlane.xlu0 %5432
      %v5434 = vsel %vm501, %v5212, 0.0
      %5435 = vadd.xlane.f32.xlu0 %v5434
      %v5436 = vpop.xlane.xlu0 %5435
      %v5437 = vsel %vm501, %v5217, 0.0
      %5438 = vadd.xlane.f32.xlu0 %v5437
      %v5439 = vpop.xlane.xlu0 %5438
      %v5440 = vsel %vm501, %v5222, 0.0
      %5441 = vadd.xlane.f32.xlu0 %v5440
      %v5442 = vpop.xlane.xlu0 %5441
      %v5443 = vsel %vm501, %v5227, 0.0
      %5444 = vadd.xlane.f32.xlu0 %v5443
      %v5445 = vpop.xlane.xlu0 %5444
      %v5446 = vsel %vm501, %v5232, 0.0
      %5447 = vadd.xlane.f32.xlu0 %v5446
      %v5448 = vpop.xlane.xlu0 %5447
      %v5449 = vsel %vm501, %v5237, 0.0
      %5450 = vadd.xlane.f32.xlu0 %v5449
      %v5451 = vpop.xlane.xlu0 %5450
      %v5452 = vsel %vm501, %v5242, 0.0
      %5453 = vadd.xlane.f32.xlu0 %v5452
      %v5454 = vpop.xlane.xlu0 %5453
      %v5455 = vsel %vm501, %v5247, 0.0
      %5456 = vadd.xlane.f32.xlu0 %v5455
      %v5457 = vpop.xlane.xlu0 %5456
      %v5458 = vsel %vm501, %v5252, 0.0
      %5459 = vadd.xlane.f32.xlu0 %v5458
      %v5460 = vpop.xlane.xlu0 %5459
      %v5461 = vsel %vm501, %v5257, 0.0
      %5462 = vadd.xlane.f32.xlu0 %v5461
      %v5463 = vpop.xlane.xlu0 %5462
      %v5464 = vsel %vm501, %v5262, 0.0
      %5465 = vadd.xlane.f32.xlu0 %v5464
      %v5466 = vpop.xlane.xlu0 %5465
      %v5467 = vsel %vm501, %v5267, 0.0
      %5468 = vadd.xlane.f32.xlu0 %v5467
      %v5469 = vpop.xlane.xlu0 %5468
      %v5470 = vsel %vm501, %v5272, 0.0
      %5471 = vadd.xlane.f32.xlu0 %v5470
      %v5472 = vpop.xlane.xlu0 %5471
      %v5473 = vsel %vm501, %v5277, 0.0
      %5474 = vadd.xlane.f32.xlu0 %v5473
      %v5475 = vpop.xlane.xlu0 %5474
      %v5476 = vsel %vm501, %v5282, 0.0
      %5477 = vadd.xlane.f32.xlu0 %v5476
      %v5478 = vpop.xlane.xlu0 %5477
      %v5479 = vsel %vm501, %v5287, 0.0
      %5480 = vadd.xlane.f32.xlu0 %v5479
      %v5481 = vpop.xlane.xlu0 %5480
      %v5482 = vrcp.pop 64.0
      %v5483 = vmul.f32 %v5292, %v5482
      %v5484 = vmul.f32 %v5295, %v5482
      %v5485 = vmul.f32 %v5298, %v5482
      %v5486 = vmul.f32 %v5301, %v5482
      %v5487 = vmul.f32 %v5304, %v5482
      %v5488 = vmul.f32 %v5307, %v5482
      %v5489 = vmul.f32 %v5310, %v5482
      %v5490 = vmul.f32 %v5313, %v5482
      %v5491 = vmul.f32 %v5316, %v5482
      %v5492 = vmul.f32 %v5319, %v5482
      %v5493 = vmul.f32 %v5322, %v5482
      %v5494 = vmul.f32 %v5325, %v5482
      %v5495 = vmul.f32 %v5328, %v5482
      %v5496 = vmul.f32 %v5331, %v5482
      %v5497 = vmul.f32 %v5334, %v5482
      %v5498 = vmul.f32 %v5337, %v5482
      %v5499 = vmul.f32 %v5340, %v5482
      %v5500 = vmul.f32 %v5343, %v5482
      %v5501 = vmul.f32 %v5346, %v5482
      %v5502 = vmul.f32 %v5349, %v5482
      %v5503 = vmul.f32 %v5352, %v5482
      %v5504 = vmul.f32 %v5355, %v5482
      %v5505 = vmul.f32 %v5358, %v5482
      %v5506 = vmul.f32 %v5361, %v5482
      %v5507 = vmul.f32 %v5364, %v5482
      %v5508 = vmul.f32 %v5367, %v5482
      %v5509 = vmul.f32 %v5370, %v5482
      %v5510 = vmul.f32 %v5373, %v5482
      %v5511 = vmul.f32 %v5376, %v5482
      %v5512 = vmul.f32 %v5379, %v5482
      %v5513 = vmul.f32 %v5382, %v5482
      %v5514 = vmul.f32 %v5385, %v5482
      %v5515 = vmul.f32 %v5388, %v5482
      %v5516 = vmul.f32 %v5391, %v5482
      %v5517 = vmul.f32 %v5394, %v5482
      %v5518 = vmul.f32 %v5397, %v5482
      %v5519 = vmul.f32 %v5400, %v5482
      %v5520 = vmul.f32 %v5403, %v5482
      %v5521 = vmul.f32 %v5406, %v5482
      %v5522 = vmul.f32 %v5409, %v5482
      %v5523 = vmul.f32 %v5412, %v5482
      %v5524 = vmul.f32 %v5415, %v5482
      %v5525 = vmul.f32 %v5418, %v5482
      %v5526 = vmul.f32 %v5421, %v5482
      %v5527 = vmul.f32 %v5424, %v5482
      %v5528 = vmul.f32 %v5427, %v5482
      %v5529 = vmul.f32 %v5430, %v5482
      %v5530 = vmul.f32 %v5433, %v5482
      %v5531 = vmul.f32 %v5436, %v5482
      %v5532 = vmul.f32 %v5439, %v5482
      %v5533 = vmul.f32 %v5442, %v5482
      %v5534 = vmul.f32 %v5445, %v5482
      %v5535 = vmul.f32 %v5448, %v5482
      %v5536 = vmul.f32 %v5451, %v5482
      %v5537 = vmul.f32 %v5454, %v5482
      %v5538 = vmul.f32 %v5457, %v5482
      %v5539 = vmul.f32 %v5460, %v5482
      %v5540 = vmul.f32 %v5463, %v5482
      %v5541 = vmul.f32 %v5466, %v5482
      %v5542 = vmul.f32 %v5469, %v5482
      %v5543 = vmul.f32 %v5472, %v5482
      %v5544 = vmul.f32 %v5475, %v5482
      %v5545 = vmul.f32 %v5478, %v5482
      %v5546 = vmul.f32 %v5481, %v5482
      %v5547 = vsub.f32 %v4972, %v5483
      %v5548 = vsub.f32 %v4977, %v5484
      %v5549 = vsub.f32 %v4982, %v5485
      %v5550 = vsub.f32 %v4987, %v5486
      %v5551 = vsub.f32 %v4992, %v5487
      %v5552 = vsub.f32 %v4997, %v5488
      %v5553 = vsub.f32 %v5002, %v5489
      %v5554 = vsub.f32 %v5007, %v5490
      %v5555 = vsub.f32 %v5012, %v5491
      %v5556 = vsub.f32 %v5017, %v5492
      %v5557 = vsub.f32 %v5022, %v5493
      %v5558 = vsub.f32 %v5027, %v5494
      %v5559 = vsub.f32 %v5032, %v5495
      %v5560 = vsub.f32 %v5037, %v5496
      %v5561 = vsub.f32 %v5042, %v5497
      %v5562 = vsub.f32 %v5047, %v5498
      %v5563 = vsub.f32 %v5052, %v5499
      %v5564 = vsub.f32 %v5057, %v5500
      %v5565 = vsub.f32 %v5062, %v5501
      %v5566 = vsub.f32 %v5067, %v5502
      %v5567 = vsub.f32 %v5072, %v5503
      %v5568 = vsub.f32 %v5077, %v5504
      %v5569 = vsub.f32 %v5082, %v5505
      %v5570 = vsub.f32 %v5087, %v5506
      %v5571 = vsub.f32 %v5092, %v5507
      %v5572 = vsub.f32 %v5097, %v5508
      %v5573 = vsub.f32 %v5102, %v5509
      %v5574 = vsub.f32 %v5107, %v5510
      %v5575 = vsub.f32 %v5112, %v5511
      %v5576 = vsub.f32 %v5117, %v5512
      %v5577 = vsub.f32 %v5122, %v5513
      %v5578 = vsub.f32 %v5127, %v5514
      %v5579 = vsub.f32 %v5132, %v5515
      %v5580 = vsub.f32 %v5137, %v5516
      %v5581 = vsub.f32 %v5142, %v5517
      %v5582 = vsub.f32 %v5147, %v5518
      %v5583 = vsub.f32 %v5152, %v5519
      %v5584 = vsub.f32 %v5157, %v5520
      %v5585 = vsub.f32 %v5162, %v5521
      %v5586 = vsub.f32 %v5167, %v5522
      %v5587 = vsub.f32 %v5172, %v5523
      %v5588 = vsub.f32 %v5177, %v5524
      %v5589 = vsub.f32 %v5182, %v5525
      %v5590 = vsub.f32 %v5187, %v5526
      %v5591 = vsub.f32 %v5192, %v5527
      %v5592 = vsub.f32 %v5197, %v5528
      %v5593 = vsub.f32 %v5202, %v5529
      %v5594 = vsub.f32 %v5207, %v5530
      %v5595 = vsub.f32 %v5212, %v5531
      %v5596 = vsub.f32 %v5217, %v5532
      %v5597 = vsub.f32 %v5222, %v5533
      %v5598 = vsub.f32 %v5227, %v5534
      %v5599 = vsub.f32 %v5232, %v5535
      %v5600 = vsub.f32 %v5237, %v5536
      %v5601 = vsub.f32 %v5242, %v5537
      %v5602 = vsub.f32 %v5247, %v5538
      %v5603 = vsub.f32 %v5252, %v5539
      %v5604 = vsub.f32 %v5257, %v5540
      %v5605 = vsub.f32 %v5262, %v5541
      %v5606 = vsub.f32 %v5267, %v5542
      %v5607 = vsub.f32 %v5272, %v5543
      %v5608 = vsub.f32 %v5277, %v5544
      %v5609 = vsub.f32 %v5282, %v5545
      %v5610 = vsub.f32 %v5287, %v5546
      %v5611 = vmul.f32 %v5547, %v5547
      %v5612 = vmul.f32 %v5548, %v5548
      %v5613 = vmul.f32 %v5549, %v5549
      %v5614 = vmul.f32 %v5550, %v5550
      %v5615 = vmul.f32 %v5551, %v5551
      %v5616 = vmul.f32 %v5552, %v5552
      %v5617 = vmul.f32 %v5553, %v5553
      %v5618 = vmul.f32 %v5554, %v5554
      %v5619 = vmul.f32 %v5555, %v5555
      %v5620 = vmul.f32 %v5556, %v5556
      %v5621 = vmul.f32 %v5557, %v5557
      %v5622 = vmul.f32 %v5558, %v5558
      %v5623 = vmul.f32 %v5559, %v5559
      %v5624 = vmul.f32 %v5560, %v5560
      %v5625 = vmul.f32 %v5561, %v5561
      %v5626 = vmul.f32 %v5562, %v5562
      %v5627 = vmul.f32 %v5563, %v5563
      %v5628 = vmul.f32 %v5564, %v5564
      %v5629 = vmul.f32 %v5565, %v5565
      %v5630 = vmul.f32 %v5566, %v5566
      %v5631 = vmul.f32 %v5567, %v5567
      %v5632 = vmul.f32 %v5568, %v5568
      %v5633 = vmul.f32 %v5569, %v5569
      %v5634 = vmul.f32 %v5570, %v5570
      %v5635 = vmul.f32 %v5571, %v5571
      %v5636 = vmul.f32 %v5572, %v5572
      %v5637 = vmul.f32 %v5573, %v5573
      %v5638 = vmul.f32 %v5574, %v5574
      %v5639 = vmul.f32 %v5575, %v5575
      %v5640 = vmul.f32 %v5576, %v5576
      %v5641 = vmul.f32 %v5577, %v5577
      %v5642 = vmul.f32 %v5578, %v5578
      %v5643 = vmul.f32 %v5579, %v5579
      %v5644 = vmul.f32 %v5580, %v5580
      %v5645 = vmul.f32 %v5581, %v5581
      %v5646 = vmul.f32 %v5582, %v5582
      %v5647 = vmul.f32 %v5583, %v5583
      %v5648 = vmul.f32 %v5584, %v5584
      %v5649 = vmul.f32 %v5585, %v5585
      %v5650 = vmul.f32 %v5586, %v5586
      %v5651 = vmul.f32 %v5587, %v5587
      %v5652 = vmul.f32 %v5588, %v5588
      %v5653 = vmul.f32 %v5589, %v5589
      %v5654 = vmul.f32 %v5590, %v5590
      %v5655 = vmul.f32 %v5591, %v5591
      %v5656 = vmul.f32 %v5592, %v5592
      %v5657 = vmul.f32 %v5593, %v5593
      %v5658 = vmul.f32 %v5594, %v5594
      %v5659 = vmul.f32 %v5595, %v5595
      %v5660 = vmul.f32 %v5596, %v5596
      %v5661 = vmul.f32 %v5597, %v5597
      %v5662 = vmul.f32 %v5598, %v5598
      %v5663 = vmul.f32 %v5599, %v5599
      %v5664 = vmul.f32 %v5600, %v5600
      %v5665 = vmul.f32 %v5601, %v5601
      %v5666 = vmul.f32 %v5602, %v5602
      %v5667 = vmul.f32 %v5603, %v5603
      %v5668 = vmul.f32 %v5604, %v5604
      %v5669 = vmul.f32 %v5605, %v5605
      %v5670 = vmul.f32 %v5606, %v5606
      %v5671 = vmul.f32 %v5607, %v5607
      %v5672 = vmul.f32 %v5608, %v5608
      %v5673 = vmul.f32 %v5609, %v5609
      %v5674 = vmul.f32 %v5610, %v5610
      %v5675 = vsel %vm501, %v5611, 0.0
      %5676 = vadd.xlane.f32.xlu0 %v5675
      %v5677 = vpop.xlane.xlu0 %5676
      %v5678 = vsel %vm501, %v5612, 0.0
      %5679 = vadd.xlane.f32.xlu0 %v5678
      %v5680 = vpop.xlane.xlu0 %5679
      %v5681 = vsel %vm501, %v5613, 0.0
      %5682 = vadd.xlane.f32.xlu0 %v5681
      %v5683 = vpop.xlane.xlu0 %5682
      %v5684 = vsel %vm501, %v5614, 0.0
      %5685 = vadd.xlane.f32.xlu0 %v5684
      %v5686 = vpop.xlane.xlu0 %5685
      %v5687 = vsel %vm501, %v5615, 0.0
      %5688 = vadd.xlane.f32.xlu0 %v5687
      %v5689 = vpop.xlane.xlu0 %5688
      %v5690 = vsel %vm501, %v5616, 0.0
      %5691 = vadd.xlane.f32.xlu0 %v5690
      %v5692 = vpop.xlane.xlu0 %5691
      %v5693 = vsel %vm501, %v5617, 0.0
      %5694 = vadd.xlane.f32.xlu0 %v5693
      %v5695 = vpop.xlane.xlu0 %5694
      %v5696 = vsel %vm501, %v5618, 0.0
      %5697 = vadd.xlane.f32.xlu0 %v5696
      %v5698 = vpop.xlane.xlu0 %5697
      %v5699 = vsel %vm501, %v5619, 0.0
      %5700 = vadd.xlane.f32.xlu0 %v5699
      %v5701 = vpop.xlane.xlu0 %5700
      %v5702 = vsel %vm501, %v5620, 0.0
      %5703 = vadd.xlane.f32.xlu0 %v5702
      %v5704 = vpop.xlane.xlu0 %5703
      %v5705 = vsel %vm501, %v5621, 0.0
      %5706 = vadd.xlane.f32.xlu0 %v5705
      %v5707 = vpop.xlane.xlu0 %5706
      %v5708 = vsel %vm501, %v5622, 0.0
      %5709 = vadd.xlane.f32.xlu0 %v5708
      %v5710 = vpop.xlane.xlu0 %5709
      %v5711 = vsel %vm501, %v5623, 0.0
      %5712 = vadd.xlane.f32.xlu0 %v5711
      %v5713 = vpop.xlane.xlu0 %5712
      %v5714 = vsel %vm501, %v5624, 0.0
      %5715 = vadd.xlane.f32.xlu0 %v5714
      %v5716 = vpop.xlane.xlu0 %5715
      %v5717 = vsel %vm501, %v5625, 0.0
      %5718 = vadd.xlane.f32.xlu0 %v5717
      %v5719 = vpop.xlane.xlu0 %5718
      %v5720 = vsel %vm501, %v5626, 0.0
      %5721 = vadd.xlane.f32.xlu0 %v5720
      %v5722 = vpop.xlane.xlu0 %5721
      %v5723 = vsel %vm501, %v5627, 0.0
      %5724 = vadd.xlane.f32.xlu0 %v5723
      %v5725 = vpop.xlane.xlu0 %5724
      %v5726 = vsel %vm501, %v5628, 0.0
      %5727 = vadd.xlane.f32.xlu0 %v5726
      %v5728 = vpop.xlane.xlu0 %5727
      %v5729 = vsel %vm501, %v5629, 0.0
      %5730 = vadd.xlane.f32.xlu0 %v5729
      %v5731 = vpop.xlane.xlu0 %5730
      %v5732 = vsel %vm501, %v5630, 0.0
      %5733 = vadd.xlane.f32.xlu0 %v5732
      %v5734 = vpop.xlane.xlu0 %5733
      %v5735 = vsel %vm501, %v5631, 0.0
      %5736 = vadd.xlane.f32.xlu0 %v5735
      %v5737 = vpop.xlane.xlu0 %5736
      %v5738 = vsel %vm501, %v5632, 0.0
      %5739 = vadd.xlane.f32.xlu0 %v5738
      %v5740 = vpop.xlane.xlu0 %5739
      %v5741 = vsel %vm501, %v5633, 0.0
      %5742 = vadd.xlane.f32.xlu0 %v5741
      %v5743 = vpop.xlane.xlu0 %5742
      %v5744 = vsel %vm501, %v5634, 0.0
      %5745 = vadd.xlane.f32.xlu0 %v5744
      %v5746 = vpop.xlane.xlu0 %5745
      %v5747 = vsel %vm501, %v5635, 0.0
      %5748 = vadd.xlane.f32.xlu0 %v5747
      %v5749 = vpop.xlane.xlu0 %5748
      %v5750 = vsel %vm501, %v5636, 0.0
      %5751 = vadd.xlane.f32.xlu0 %v5750
      %v5752 = vpop.xlane.xlu0 %5751
      %v5753 = vsel %vm501, %v5637, 0.0
      %5754 = vadd.xlane.f32.xlu0 %v5753
      %v5755 = vpop.xlane.xlu0 %5754
      %v5756 = vsel %vm501, %v5638, 0.0
      %5757 = vadd.xlane.f32.xlu0 %v5756
      %v5758 = vpop.xlane.xlu0 %5757
      %v5759 = vsel %vm501, %v5639, 0.0
      %5760 = vadd.xlane.f32.xlu0 %v5759
      %v5761 = vpop.xlane.xlu0 %5760
      %v5762 = vsel %vm501, %v5640, 0.0
      %5763 = vadd.xlane.f32.xlu0 %v5762
      %v5764 = vpop.xlane.xlu0 %5763
      %v5765 = vsel %vm501, %v5641, 0.0
      %5766 = vadd.xlane.f32.xlu0 %v5765
      %v5767 = vpop.xlane.xlu0 %5766
      %v5768 = vsel %vm501, %v5642, 0.0
      %5769 = vadd.xlane.f32.xlu0 %v5768
      %v5770 = vpop.xlane.xlu0 %5769
      %v5771 = vsel %vm501, %v5643, 0.0
      %5772 = vadd.xlane.f32.xlu0 %v5771
      %v5773 = vpop.xlane.xlu0 %5772
      %v5774 = vsel %vm501, %v5644, 0.0
      %5775 = vadd.xlane.f32.xlu0 %v5774
      %v5776 = vpop.xlane.xlu0 %5775
      %v5777 = vsel %vm501, %v5645, 0.0
      %5778 = vadd.xlane.f32.xlu0 %v5777
      %v5779 = vpop.xlane.xlu0 %5778
      %v5780 = vsel %vm501, %v5646, 0.0
      %5781 = vadd.xlane.f32.xlu0 %v5780
      %v5782 = vpop.xlane.xlu0 %5781
      %v5783 = vsel %vm501, %v5647, 0.0
      %5784 = vadd.xlane.f32.xlu0 %v5783
      %v5785 = vpop.xlane.xlu0 %5784
      %v5786 = vsel %vm501, %v5648, 0.0
      %5787 = vadd.xlane.f32.xlu0 %v5786
      %v5788 = vpop.xlane.xlu0 %5787
      %v5789 = vsel %vm501, %v5649, 0.0
      %5790 = vadd.xlane.f32.xlu0 %v5789
      %v5791 = vpop.xlane.xlu0 %5790
      %v5792 = vsel %vm501, %v5650, 0.0
      %5793 = vadd.xlane.f32.xlu0 %v5792
      %v5794 = vpop.xlane.xlu0 %5793
      %v5795 = vsel %vm501, %v5651, 0.0
      %5796 = vadd.xlane.f32.xlu0 %v5795
      %v5797 = vpop.xlane.xlu0 %5796
      %v5798 = vsel %vm501, %v5652, 0.0
      %5799 = vadd.xlane.f32.xlu0 %v5798
      %v5800 = vpop.xlane.xlu0 %5799
      %v5801 = vsel %vm501, %v5653, 0.0
      %5802 = vadd.xlane.f32.xlu0 %v5801
      %v5803 = vpop.xlane.xlu0 %5802
      %v5804 = vsel %vm501, %v5654, 0.0
      %5805 = vadd.xlane.f32.xlu0 %v5804
      %v5806 = vpop.xlane.xlu0 %5805
      %v5807 = vsel %vm501, %v5655, 0.0
      %5808 = vadd.xlane.f32.xlu0 %v5807
      %v5809 = vpop.xlane.xlu0 %5808
      %v5810 = vsel %vm501, %v5656, 0.0
      %5811 = vadd.xlane.f32.xlu0 %v5810
      %v5812 = vpop.xlane.xlu0 %5811
      %v5813 = vsel %vm501, %v5657, 0.0
      %5814 = vadd.xlane.f32.xlu0 %v5813
      %v5815 = vpop.xlane.xlu0 %5814
      %v5816 = vsel %vm501, %v5658, 0.0
      %5817 = vadd.xlane.f32.xlu0 %v5816
      %v5818 = vpop.xlane.xlu0 %5817
      %v5819 = vsel %vm501, %v5659, 0.0
      %5820 = vadd.xlane.f32.xlu0 %v5819
      %v5821 = vpop.xlane.xlu0 %5820
      %v5822 = vsel %vm501, %v5660, 0.0
      %5823 = vadd.xlane.f32.xlu0 %v5822
      %v5824 = vpop.xlane.xlu0 %5823
      %v5825 = vsel %vm501, %v5661, 0.0
      %5826 = vadd.xlane.f32.xlu0 %v5825
      %v5827 = vpop.xlane.xlu0 %5826
      %v5828 = vsel %vm501, %v5662, 0.0
      %5829 = vadd.xlane.f32.xlu0 %v5828
      %v5830 = vpop.xlane.xlu0 %5829
      %v5831 = vsel %vm501, %v5663, 0.0
      %5832 = vadd.xlane.f32.xlu0 %v5831
      %v5833 = vpop.xlane.xlu0 %5832
      %v5834 = vsel %vm501, %v5664, 0.0
      %5835 = vadd.xlane.f32.xlu0 %v5834
      %v5836 = vpop.xlane.xlu0 %5835
      %v5837 = vsel %vm501, %v5665, 0.0
      %5838 = vadd.xlane.f32.xlu0 %v5837
      %v5839 = vpop.xlane.xlu0 %5838
      %v5840 = vsel %vm501, %v5666, 0.0
      %5841 = vadd.xlane.f32.xlu0 %v5840
      %v5842 = vpop.xlane.xlu0 %5841
      %v5843 = vsel %vm501, %v5667, 0.0
      %5844 = vadd.xlane.f32.xlu0 %v5843
      %v5845 = vpop.xlane.xlu0 %5844
      %v5846 = vsel %vm501, %v5668, 0.0
      %5847 = vadd.xlane.f32.xlu0 %v5846
      %v5848 = vpop.xlane.xlu0 %5847
      %v5849 = vsel %vm501, %v5669, 0.0
      %5850 = vadd.xlane.f32.xlu0 %v5849
      %v5851 = vpop.xlane.xlu0 %5850
      %v5852 = vsel %vm501, %v5670, 0.0
      %5853 = vadd.xlane.f32.xlu0 %v5852
      %v5854 = vpop.xlane.xlu0 %5853
      %v5855 = vsel %vm501, %v5671, 0.0
      %5856 = vadd.xlane.f32.xlu0 %v5855
      %v5857 = vpop.xlane.xlu0 %5856
      %v5858 = vsel %vm501, %v5672, 0.0
      %5859 = vadd.xlane.f32.xlu0 %v5858
      %v5860 = vpop.xlane.xlu0 %5859
      %v5861 = vsel %vm501, %v5673, 0.0
      %5862 = vadd.xlane.f32.xlu0 %v5861
      %v5863 = vpop.xlane.xlu0 %5862
      %v5864 = vsel %vm501, %v5674, 0.0
      %5865 = vadd.xlane.f32.xlu0 %v5864
      %v5866 = vpop.xlane.xlu0 %5865
      %v5867 = vmul.f32 %v5677, %v5482
      %v5868 = vmul.f32 %v5680, %v5482
      %v5869 = vmul.f32 %v5683, %v5482
      %v5870 = vmul.f32 %v5686, %v5482
      %v5871 = vmul.f32 %v5689, %v5482
      %v5872 = vmul.f32 %v5692, %v5482
      %v5873 = vmul.f32 %v5695, %v5482
      %v5874 = vmul.f32 %v5698, %v5482
      %v5875 = vmul.f32 %v5701, %v5482
      %v5876 = vmul.f32 %v5704, %v5482
      %v5877 = vmul.f32 %v5707, %v5482
      %v5878 = vmul.f32 %v5710, %v5482
      %v5879 = vmul.f32 %v5713, %v5482
      %v5880 = vmul.f32 %v5716, %v5482
      %v5881 = vmul.f32 %v5719, %v5482
      %v5882 = vmul.f32 %v5722, %v5482
      %v5883 = vmul.f32 %v5725, %v5482
      %v5884 = vmul.f32 %v5728, %v5482
      %v5885 = vmul.f32 %v5731, %v5482
      %v5886 = vmul.f32 %v5734, %v5482
      %v5887 = vmul.f32 %v5737, %v5482
      %v5888 = vmul.f32 %v5740, %v5482
      %v5889 = vmul.f32 %v5743, %v5482
      %v5890 = vmul.f32 %v5746, %v5482
      %v5891 = vmul.f32 %v5749, %v5482
      %v5892 = vmul.f32 %v5752, %v5482
      %v5893 = vmul.f32 %v5755, %v5482
      %v5894 = vmul.f32 %v5758, %v5482
      %v5895 = vmul.f32 %v5761, %v5482
      %v5896 = vmul.f32 %v5764, %v5482
      %v5897 = vmul.f32 %v5767, %v5482
      %v5898 = vmul.f32 %v5770, %v5482
      %v5899 = vmul.f32 %v5773, %v5482
      %v5900 = vmul.f32 %v5776, %v5482
      %v5901 = vmul.f32 %v5779, %v5482
      %v5902 = vmul.f32 %v5782, %v5482
      %v5903 = vmul.f32 %v5785, %v5482
      %v5904 = vmul.f32 %v5788, %v5482
      %v5905 = vmul.f32 %v5791, %v5482
      %v5906 = vmul.f32 %v5794, %v5482
      %v5907 = vmul.f32 %v5797, %v5482
      %v5908 = vmul.f32 %v5800, %v5482
      %v5909 = vmul.f32 %v5803, %v5482
      %v5910 = vmul.f32 %v5806, %v5482
      %v5911 = vmul.f32 %v5809, %v5482
      %v5912 = vmul.f32 %v5812, %v5482
      %v5913 = vmul.f32 %v5815, %v5482
      %v5914 = vmul.f32 %v5818, %v5482
      %v5915 = vmul.f32 %v5821, %v5482
      %v5916 = vmul.f32 %v5824, %v5482
      %v5917 = vmul.f32 %v5827, %v5482
      %v5918 = vmul.f32 %v5830, %v5482
      %v5919 = vmul.f32 %v5833, %v5482
      %v5920 = vmul.f32 %v5836, %v5482
      %v5921 = vmul.f32 %v5839, %v5482
      %v5922 = vmul.f32 %v5842, %v5482
      %v5923 = vmul.f32 %v5845, %v5482
      %v5924 = vmul.f32 %v5848, %v5482
      %v5925 = vmul.f32 %v5851, %v5482
      %v5926 = vmul.f32 %v5854, %v5482
      %v5927 = vmul.f32 %v5857, %v5482
      %v5928 = vmul.f32 %v5860, %v5482
      %v5929 = vmul.f32 %v5863, %v5482
      %v5930 = vmul.f32 %v5866, %v5482
      %v5931 = vadd.f32 %v5867, 1e-05
      %v5932 = vadd.f32 %v5868, 1e-05
      %v5933 = vadd.f32 %v5869, 1e-05
      %v5934 = vadd.f32 %v5870, 1e-05
      %v5935 = vadd.f32 %v5871, 1e-05
      %v5936 = vadd.f32 %v5872, 1e-05
      %v5937 = vadd.f32 %v5873, 1e-05
      %v5938 = vadd.f32 %v5874, 1e-05
      %v5939 = vadd.f32 %v5875, 1e-05
      %v5940 = vadd.f32 %v5876, 1e-05
      %v5941 = vadd.f32 %v5877, 1e-05
      %v5942 = vadd.f32 %v5878, 1e-05
      %v5943 = vadd.f32 %v5879, 1e-05
      %v5944 = vadd.f32 %v5880, 1e-05
      %v5945 = vadd.f32 %v5881, 1e-05
      %v5946 = vadd.f32 %v5882, 1e-05
      %v5947 = vadd.f32 %v5883, 1e-05
      %v5948 = vadd.f32 %v5884, 1e-05
      %v5949 = vadd.f32 %v5885, 1e-05
      %v5950 = vadd.f32 %v5886, 1e-05
      %v5951 = vadd.f32 %v5887, 1e-05
      %v5952 = vadd.f32 %v5888, 1e-05
      %v5953 = vadd.f32 %v5889, 1e-05
      %v5954 = vadd.f32 %v5890, 1e-05
      %v5955 = vadd.f32 %v5891, 1e-05
      %v5956 = vadd.f32 %v5892, 1e-05
      %v5957 = vadd.f32 %v5893, 1e-05
      %v5958 = vadd.f32 %v5894, 1e-05
      %v5959 = vadd.f32 %v5895, 1e-05
      %v5960 = vadd.f32 %v5896, 1e-05
      %v5961 = vadd.f32 %v5897, 1e-05
      %v5962 = vadd.f32 %v5898, 1e-05
      %v5963 = vadd.f32 %v5899, 1e-05
      %v5964 = vadd.f32 %v5900, 1e-05
      %v5965 = vadd.f32 %v5901, 1e-05
      %v5966 = vadd.f32 %v5902, 1e-05
      %v5967 = vadd.f32 %v5903, 1e-05
      %v5968 = vadd.f32 %v5904, 1e-05
      %v5969 = vadd.f32 %v5905, 1e-05
      %v5970 = vadd.f32 %v5906, 1e-05
      %v5971 = vadd.f32 %v5907, 1e-05
      %v5972 = vadd.f32 %v5908, 1e-05
      %v5973 = vadd.f32 %v5909, 1e-05
      %v5974 = vadd.f32 %v5910, 1e-05
      %v5975 = vadd.f32 %v5911, 1e-05
      %v5976 = vadd.f32 %v5912, 1e-05
      %v5977 = vadd.f32 %v5913, 1e-05
      %v5978 = vadd.f32 %v5914, 1e-05
      %v5979 = vadd.f32 %v5915, 1e-05
      %v5980 = vadd.f32 %v5916, 1e-05
      %v5981 = vadd.f32 %v5917, 1e-05
      %v5982 = vadd.f32 %v5918, 1e-05
      %v5983 = vadd.f32 %v5919, 1e-05
      %v5984 = vadd.f32 %v5920, 1e-05
      %v5985 = vadd.f32 %v5921, 1e-05
      %v5986 = vadd.f32 %v5922, 1e-05
      %v5987 = vadd.f32 %v5923, 1e-05
      %v5988 = vadd.f32 %v5924, 1e-05
      %v5989 = vadd.f32 %v5925, 1e-05
      %v5990 = vadd.f32 %v5926, 1e-05
      %v5991 = vadd.f32 %v5927, 1e-05
      %v5992 = vadd.f32 %v5928, 1e-05
      %v5993 = vadd.f32 %v5929, 1e-05
      %v5994 = vadd.f32 %v5930, 1e-05
      %v5995 = vrsqrt.pop %v5931
      %v5996 = vrsqrt.pop %v5932
      %v5997 = vrsqrt.pop %v5933
      %v5998 = vrsqrt.pop %v5934
      %v5999 = vrsqrt.pop %v5935
      %v6000 = vrsqrt.pop %v5936
      %v6001 = vrsqrt.pop %v5937
      %v6002 = vrsqrt.pop %v5938
      %v6003 = vrsqrt.pop %v5939
      %v6004 = vrsqrt.pop %v5940
      %v6005 = vrsqrt.pop %v5941
      %v6006 = vrsqrt.pop %v5942
      %v6007 = vrsqrt.pop %v5943
      %v6008 = vrsqrt.pop %v5944
      %v6009 = vrsqrt.pop %v5945
      %v6010 = vrsqrt.pop %v5946
      %v6011 = vrsqrt.pop %v5947
      %v6012 = vrsqrt.pop %v5948
      %v6013 = vrsqrt.pop %v5949
      %v6014 = vrsqrt.pop %v5950
      %v6015 = vrsqrt.pop %v5951
      %v6016 = vrsqrt.pop %v5952
      %v6017 = vrsqrt.pop %v5953
      %v6018 = vrsqrt.pop %v5954
      %v6019 = vrsqrt.pop %v5955
      %v6020 = vrsqrt.pop %v5956
      %v6021 = vrsqrt.pop %v5957
      %v6022 = vrsqrt.pop %v5958
      %v6023 = vrsqrt.pop %v5959
      %v6024 = vrsqrt.pop %v5960
      %v6025 = vrsqrt.pop %v5961
      %v6026 = vrsqrt.pop %v5962
      %v6027 = vrsqrt.pop %v5963
      %v6028 = vrsqrt.pop %v5964
      %v6029 = vrsqrt.pop %v5965
      %v6030 = vrsqrt.pop %v5966
      %v6031 = vrsqrt.pop %v5967
      %v6032 = vrsqrt.pop %v5968
      %v6033 = vrsqrt.pop %v5969
      %v6034 = vrsqrt.pop %v5970
      %v6035 = vrsqrt.pop %v5971
      %v6036 = vrsqrt.pop %v5972
      %v6037 = vrsqrt.pop %v5973
      %v6038 = vrsqrt.pop %v5974
      %v6039 = vrsqrt.pop %v5975
      %v6040 = vrsqrt.pop %v5976
      %v6041 = vrsqrt.pop %v5977
      %v6042 = vrsqrt.pop %v5978
      %v6043 = vrsqrt.pop %v5979
      %v6044 = vrsqrt.pop %v5980
      %v6045 = vrsqrt.pop %v5981
      %v6046 = vrsqrt.pop %v5982
      %v6047 = vrsqrt.pop %v5983
      %v6048 = vrsqrt.pop %v5984
      %v6049 = vrsqrt.pop %v5985
      %v6050 = vrsqrt.pop %v5986
      %v6051 = vrsqrt.pop %v5987
      %v6052 = vrsqrt.pop %v5988
      %v6053 = vrsqrt.pop %v5989
      %v6054 = vrsqrt.pop %v5990
      %v6055 = vrsqrt.pop %v5991
      %v6056 = vrsqrt.pop %v5992
      %v6057 = vrsqrt.pop %v5993
      %v6058 = vrsqrt.pop %v5994
      %v6059 = vmul.f32 %v5547, %v5995
      %v6060 = vmul.f32 %v5548, %v5996
      %v6061 = vmul.f32 %v5549, %v5997
      %v6062 = vmul.f32 %v5550, %v5998
      %v6063 = vmul.f32 %v5551, %v5999
      %v6064 = vmul.f32 %v5552, %v6000
      %v6065 = vmul.f32 %v5553, %v6001
      %v6066 = vmul.f32 %v5554, %v6002
      %v6067 = vmul.f32 %v5555, %v6003
      %v6068 = vmul.f32 %v5556, %v6004
      %v6069 = vmul.f32 %v5557, %v6005
      %v6070 = vmul.f32 %v5558, %v6006
      %v6071 = vmul.f32 %v5559, %v6007
      %v6072 = vmul.f32 %v5560, %v6008
      %v6073 = vmul.f32 %v5561, %v6009
      %v6074 = vmul.f32 %v5562, %v6010
      %v6075 = vmul.f32 %v5563, %v6011
      %v6076 = vmul.f32 %v5564, %v6012
      %v6077 = vmul.f32 %v5565, %v6013
      %v6078 = vmul.f32 %v5566, %v6014
      %v6079 = vmul.f32 %v5567, %v6015
      %v6080 = vmul.f32 %v5568, %v6016
      %v6081 = vmul.f32 %v5569, %v6017
      %v6082 = vmul.f32 %v5570, %v6018
      %v6083 = vmul.f32 %v5571, %v6019
      %v6084 = vmul.f32 %v5572, %v6020
      %v6085 = vmul.f32 %v5573, %v6021
      %v6086 = vmul.f32 %v5574, %v6022
      %v6087 = vmul.f32 %v5575, %v6023
      %v6088 = vmul.f32 %v5576, %v6024
      %v6089 = vmul.f32 %v5577, %v6025
      %v6090 = vmul.f32 %v5578, %v6026
      %v6091 = vmul.f32 %v5579, %v6027
      %v6092 = vmul.f32 %v5580, %v6028
      %v6093 = vmul.f32 %v5581, %v6029
      %v6094 = vmul.f32 %v5582, %v6030
      %v6095 = vmul.f32 %v5583, %v6031
      %v6096 = vmul.f32 %v5584, %v6032
      %v6097 = vmul.f32 %v5585, %v6033
      %v6098 = vmul.f32 %v5586, %v6034
      %v6099 = vmul.f32 %v5587, %v6035
      %v6100 = vmul.f32 %v5588, %v6036
      %v6101 = vmul.f32 %v5589, %v6037
      %v6102 = vmul.f32 %v5590, %v6038
      %v6103 = vmul.f32 %v5591, %v6039
      %v6104 = vmul.f32 %v5592, %v6040
      %v6105 = vmul.f32 %v5593, %v6041
      %v6106 = vmul.f32 %v5594, %v6042
      %v6107 = vmul.f32 %v5595, %v6043
      %v6108 = vmul.f32 %v5596, %v6044
      %v6109 = vmul.f32 %v5597, %v6045
      %v6110 = vmul.f32 %v5598, %v6046
      %v6111 = vmul.f32 %v5599, %v6047
      %v6112 = vmul.f32 %v5600, %v6048
      %v6113 = vmul.f32 %v5601, %v6049
      %v6114 = vmul.f32 %v5602, %v6050
      %v6115 = vmul.f32 %v5603, %v6051
      %v6116 = vmul.f32 %v5604, %v6052
      %v6117 = vmul.f32 %v5605, %v6053
      %v6118 = vmul.f32 %v5606, %v6054
      %v6119 = vmul.f32 %v5607, %v6055
      %v6120 = vmul.f32 %v5608, %v6056
      %v6121 = vmul.f32 %v5609, %v6057
      %v6122 = vmul.f32 %v5610, %v6058
      %v6123 = vld [vmem:[%s6] sm:$0xff]
      %v6124 = vld [vmem:[%s6 + $0x8] sm:$0xff]
      %v6125 = vld [vmem:[%s6 + $0x10] sm:$0xff]
      %v6126 = vld [vmem:[%s6 + $0x18] sm:$0xff]
      %v6127 = vld [vmem:[%s6 + $0x20] sm:$0xff]
      %v6128 = vld [vmem:[%s6 + $0x28] sm:$0xff]
      %v6129 = vld [vmem:[%s6 + $0x30] sm:$0xff]
      %v6130 = vld [vmem:[%s6 + $0x38] sm:$0xff]
      %v6131 = vld [vmem:[%s6 + $0x40] sm:$0xff]
      %v6132 = vld [vmem:[%s6 + $0x48] sm:$0xff]
      %v6133 = vld [vmem:[%s6 + $0x50] sm:$0xff]
      %v6134 = vld [vmem:[%s6 + $0x58] sm:$0xff]
      %v6135 = vld [vmem:[%s6 + $0x60] sm:$0xff]
      %v6136 = vld [vmem:[%s6 + $0x68] sm:$0xff]
      %v6137 = vld [vmem:[%s6 + $0x70] sm:$0xff]
      %v6138 = vld [vmem:[%s6 + $0x78] sm:$0xff]
      %v6139 = vld [vmem:[%s6 + $0x80] sm:$0xff]
      %v6140 = vld [vmem:[%s6 + $0x88] sm:$0xff]
      %v6141 = vld [vmem:[%s6 + $0x90] sm:$0xff]
      %v6142 = vld [vmem:[%s6 + $0x98] sm:$0xff]
      %v6143 = vld [vmem:[%s6 + $0xa0] sm:$0xff]
      %v6144 = vld [vmem:[%s6 + $0xa8] sm:$0xff]
      %v6145 = vld [vmem:[%s6 + $0xb0] sm:$0xff]
      %v6146 = vld [vmem:[%s6 + $0xb8] sm:$0xff]
      %v6147 = vld [vmem:[%s6 + $0xc0] sm:$0xff]
      %v6148 = vld [vmem:[%s6 + $0xc8] sm:$0xff]
      %v6149 = vld [vmem:[%s6 + $0xd0] sm:$0xff]
      %v6150 = vld [vmem:[%s6 + $0xd8] sm:$0xff]
      %v6151 = vld [vmem:[%s6 + $0xe0] sm:$0xff]
      %v6152 = vld [vmem:[%s6 + $0xe8] sm:$0xff]
      %v6153 = vld [vmem:[%s6 + $0xf0] sm:$0xff]
      %v6154 = vld [vmem:[%s6 + $0xf8] sm:$0xff]
      %v6156 = vsel %vm501, %v6059, 0
      %v6159 = vsel %vm501, %v6060, 0
      %v6162 = vsel %vm501, %v6061, 0
      %v6165 = vsel %vm501, %v6062, 0
      %v6168 = vsel %vm501, %v6063, 0
      %v6171 = vsel %vm501, %v6064, 0
      %v6174 = vsel %vm501, %v6065, 0
      %v6177 = vsel %vm501, %v6066, 0
      %v6180 = vsel %vm501, %v6067, 0
      %v6183 = vsel %vm501, %v6068, 0
      %v6186 = vsel %vm501, %v6069, 0
      %v6189 = vsel %vm501, %v6070, 0
      %v6192 = vsel %vm501, %v6071, 0
      %v6195 = vsel %vm501, %v6072, 0
      %v6198 = vsel %vm501, %v6073, 0
      %v6201 = vsel %vm501, %v6074, 0
      %v6204 = vsel %vm501, %v6075, 0
      %v6207 = vsel %vm501, %v6076, 0
      %v6210 = vsel %vm501, %v6077, 0
      %v6213 = vsel %vm501, %v6078, 0
      %v6216 = vsel %vm501, %v6079, 0
      %v6219 = vsel %vm501, %v6080, 0
      %v6222 = vsel %vm501, %v6081, 0
      %v6225 = vsel %vm501, %v6082, 0
      %v6228 = vsel %vm501, %v6083, 0
      %v6231 = vsel %vm501, %v6084, 0
      %v6234 = vsel %vm501, %v6085, 0
      %v6237 = vsel %vm501, %v6086, 0
      %v6240 = vsel %vm501, %v6087, 0
      %v6243 = vsel %vm501, %v6088, 0
      %v6246 = vsel %vm501, %v6089, 0
      %v6249 = vsel %vm501, %v6090, 0
      %v6252 = vsel %vm501, %v6091, 0
      %v6255 = vsel %vm501, %v6092, 0
      %v6258 = vsel %vm501, %v6093, 0
      %v6261 = vsel %vm501, %v6094, 0
      %v6264 = vsel %vm501, %v6095, 0
      %v6267 = vsel %vm501, %v6096, 0
      %v6270 = vsel %vm501, %v6097, 0
      %v6273 = vsel %vm501, %v6098, 0
      %v6276 = vsel %vm501, %v6099, 0
      %v6279 = vsel %vm501, %v6100, 0
      %v6282 = vsel %vm501, %v6101, 0
      %v6285 = vsel %vm501, %v6102, 0
      %v6288 = vsel %vm501, %v6103, 0
      %v6291 = vsel %vm501, %v6104, 0
      %v6294 = vsel %vm501, %v6105, 0
      %v6297 = vsel %vm501, %v6106, 0
      %v6300 = vsel %vm501, %v6107, 0
      %v6303 = vsel %vm501, %v6108, 0
      %v6306 = vsel %vm501, %v6109, 0
      %v6309 = vsel %vm501, %v6110, 0
      %v6312 = vsel %vm501, %v6111, 0
      %v6315 = vsel %vm501, %v6112, 0
      %v6318 = vsel %vm501, %v6113, 0
      %v6321 = vsel %vm501, %v6114, 0
      %v6324 = vsel %vm501, %v6115, 0
      %v6327 = vsel %vm501, %v6116, 0
      %v6330 = vsel %vm501, %v6117, 0
      %v6333 = vsel %vm501, %v6118, 0
      %v6336 = vsel %vm501, %v6119, 0
      %v6339 = vsel %vm501, %v6120, 0
      %v6342 = vsel %vm501, %v6121, 0
      %v6345 = vsel %vm501, %v6122, 0
      %6347 = vmatprep.subr.mxu0 %v6124
      %6348 = vmatpush1.msra.mxu0 %v6123
      %6349 = vmatprep.subr.mxu0 %v6128
      %6350 = vmatpush1.msra.mxu0 %v6127
      %6351 = vmatprep.subr.mxu0 %v6132
      %6352 = vmatpush1.msra.mxu0 %v6131
      %6353 = vmatprep.subr.mxu0 %v6136
      %6354 = vmatpush1.msra.mxu0 %v6135
      %6355 = vmatprep.subr.mxu0 %v6140
      %6356 = vmatpush1.msra.mxu0 %v6139
      %6357 = vmatprep.subr.mxu0 %v6144
      %6358 = vmatpush1.msra.mxu0 %v6143
      %6359 = vmatprep.subr.mxu0 %v6148
      %6360 = vmatpush1.msra.mxu0 %v6147
      %6361 = vmatprep.subr.mxu0 %v6152
      %6362 = vmatpush1.msra.mxu0 %v6151
      %6363 = vmatprep.subr.mxu0 0.0
      %6364 = vmatpush1.msra.mxu0 0.0
      %6365 = vmatprep.subr.mxu0 0.0
      %6366 = vmatpush1.msra.mxu0 0.0
      %6367 = vmatprep.subr.mxu0 0.0
      %6368 = vmatpush1.msra.mxu0 0.0
      %6369 = vmatprep.subr.mxu0 0.0
      %6370 = vmatpush1.msra.mxu0 0.0
      %6371 = vmatprep.subr.mxu0 0.0
      %6372 = vmatpush1.msra.mxu0 0.0
      %6373 = vmatprep.subr.mxu0 0.0
      %6374 = vmatpush1.msra.mxu0 0.0
      %6375 = vmatprep.subr.mxu0 0.0
      %6376 = vmatpush1.msra.mxu0 0.0
      %6377 = vmatprep.subr.mxu0 0.0
      %6378 = vmatpush1.msra.mxu0 0.0
      %6379 = vmatprep.subr.mxu0 0.0
      %6380 = vmatpush1.msra.mxu0 0.0
      %6381 = vmatprep.subr.mxu0 0.0
      %6382 = vmatpush1.msra.mxu0 0.0
      %6383 = vmatprep.subr.mxu0 0.0
      %6384 = vmatpush1.msra.mxu0 0.0
      %6385 = vmatprep.subr.mxu0 0.0
      %6386 = vmatpush1.msra.mxu0 0.0
      %6387 = vmatprep.subr.mxu0 0.0
      %6388 = vmatpush1.msra.mxu0 0.0
      %6389 = vmatprep.subr.mxu0 0.0
      %6390 = vmatpush1.msra.mxu0 0.0
      %6391 = vmatprep.subr.mxu0 0.0
      %6392 = vmatpush1.msra.mxu0 0.0
      %6393 = vmatprep.subr.mxu0 0.0
      %6394 = vmatpush1.msra.mxu0 0.0
      %6395 = vmatprep.subr.mxu0 0.0
      %6396 = vmatpush1.msra.mxu0 0.0
      %6397 = vmatprep.subr.mxu0 0.0
      %6398 = vmatpush1.msra.mxu0 0.0
      %6399 = vmatprep.subr.mxu0 0.0
      %6400 = vmatpush1.msra.mxu0 0.0
      %6401 = vmatprep.subr.mxu0 0.0
      %6402 = vmatpush1.msra.mxu0 0.0
      %6403 = vmatprep.subr.mxu0 0.0
      %6404 = vmatpush1.msra.mxu0 0.0
      %6405 = vmatprep.subr.mxu0 0.0
      %6406 = vmatpush1.msra.mxu0 0.0
      %6407 = vmatprep.subr.mxu0 0.0
      %6408 = vmatpush1.msra.mxu0 0.0
      %6409 = vmatprep.subr.mxu0 0.0
      %6410 = vmatpush1.msra.mxu0 0.0
      %6411 = vmatprep.mubr.f32.mxu0 0.0
      %6412 = vmatmul.mubr.f32.gmra.mrb[0].mxu0 %v6156
      %v6413 = vpop.f32.mrb[0].mxu0
      %v6414 = vadd.f32 0.0, %v6413
      %v6415 = vpop.f32.mrb[0].mxu0
      %v6416 = vadd.f32 0.0, %v6415
      %6417 = vmatprep.mubr.f32.mxu0 0.0
      %6418 = vmatmul.mubr.f32.gmra.mrb[0].mxu0 %v6159
      %v6419 = vpop.f32.mrb[0].mxu0
      %v6420 = vadd.f32 0.0, %v6419
      %v6421 = vpop.f32.mrb[0].mxu0
      %v6422 = vadd.f32 0.0, %v6421
      %6423 = vmatprep.mubr.f32.mxu0 0.0
      %6424 = vmatmul.mubr.f32.gmra.mrb[0].mxu0 %v6162
      %v6425 = vpop.f32.mrb[0].mxu0
      %v6426 = vadd.f32 0.0, %v6425
      %v6427 = vpop.f32.mrb[0].mxu0
      %v6428 = vadd.f32 0.0, %v6427
      %6429 = vmatprep.mubr.f32.mxu0 0.0
      %6430 = vmatmul.mubr.f32.gmra.mrb[0].mxu0 %v6165
      %v6431 = vpop.f32.mrb[0].mxu0
      %v6432 = vadd.f32 0.0, %v6431
      %v6433 = vpop.f32.mrb[0].mxu0
      %v6434 = vadd.f32 0.0, %v6433
      %6435 = vmatprep.mubr.f32.mxu0 0.0
      %6436 = vmatmul.mubr.f32.gmra.mrb[0].mxu0 %v6168
      %v6437 = vpop.f32.mrb[0].mxu0
      %v6438 = vadd.f32 0.0, %v6437
      %v6439 = vpop.f32.mrb[0].mxu0
      %v6440 = vadd.f32 0.0, %v6439
      %6441 = vmatprep.mubr.f32.mxu0 0.0
      %6442 = vmatmul.mubr.f32.gmra.mrb[0].mxu0 %v6171
      %v6443 = vpop.f32.mrb[0].mxu0
      %v6444 = vadd.f32 0.0, %v6443
      %v6445 = vpop.f32.mrb[0].mxu0
      %v6446 = vadd.f32 0.0, %v6445
      %6447 = vmatprep.mubr.f32.mxu0 0.0
      %6448 = vmatmul.mubr.f32.gmra.mrb[0].mxu0 %v6174
      %v6449 = vpop.f32.mrb[0].mxu0
      %v6450 = vadd.f32 0.0, %v6449
      %v6451 = vpop.f32.mrb[0].mxu0
      %v6452 = vadd.f32 0.0, %v6451
      %6453 = vmatprep.mubr.f32.mxu0 0.0
      %6454 = vmatmul.mubr.f32.gmra.mrb[0].mxu0 %v6177
      %v6455 = vpop.f32.mrb[0].mxu0
      %v6456 = vadd.f32 0.0, %v6455
      %v6457 = vpop.f32.mrb[0].mxu0
      %v6458 = vadd.f32 0.0, %v6457
      %6459 = vmatprep.mubr.f32.mxu0 0.0
      %6460 = vmatmul.mubr.f32.gmra.mrb[0].mxu0 %v6180
      %v6461 = vpop.f32.mrb[0].mxu0
      %v6462 = vadd.f32 0.0, %v6461
      %v6463 = vpop.f32.mrb[0].mxu0
      %v6464 = vadd.f32 0.0, %v6463
      %6465 = vmatprep.mubr.f32.mxu0 0.0
      %6466 = vmatmul.mubr.f32.gmra.mrb[0].mxu0 %v6183
      %v6467 = vpop.f32.mrb[0].mxu0
      %v6468 = vadd.f32 0.0, %v6467
      %v6469 = vpop.f32.mrb[0].mxu0
      %v6470 = vadd.f32 0.0, %v6469
      %6471 = vmatprep.mubr.f32.mxu0 0.0
      %6472 = vmatmul.mubr.f32.gmra.mrb[0].mxu0 %v6186
      %v6473 = vpop.f32.mrb[0].mxu0
      %v6474 = vadd.f32 0.0, %v6473
      %v6475 = vpop.f32.mrb[0].mxu0
      %v6476 = vadd.f32 0.0, %v6475
      %6477 = vmatprep.mubr.f32.mxu0 0.0
      %6478 = vmatmul.mubr.f32.gmra.mrb[0].mxu0 %v6189
      %v6479 = vpop.f32.mrb[0].mxu0
      %v6480 = vadd.f32 0.0, %v6479
      %v6481 = vpop.f32.mrb[0].mxu0
      %v6482 = vadd.f32 0.0, %v6481
      %6483 = vmatprep.mubr.f32.mxu0 0.0
      %6484 = vmatmul.mubr.f32.gmra.mrb[0].mxu0 %v6192
      %v6485 = vpop.f32.mrb[0].mxu0
      %v6486 = vadd.f32 0.0, %v6485
      %v6487 = vpop.f32.mrb[0].mxu0
      %v6488 = vadd.f32 0.0, %v6487
      %6489 = vmatprep.mubr.f32.mxu0 0.0
      %6490 = vmatmul.mubr.f32.gmra.mrb[0].mxu0 %v6195
      %v6491 = vpop.f32.mrb[0].mxu0
      %v6492 = vadd.f32 0.0, %v6491
      %v6493 = vpop.f32.mrb[0].mxu0
      %v6494 = vadd.f32 0.0, %v6493
      %6495 = vmatprep.mubr.f32.mxu0 0.0
      %6496 = vmatmul.mubr.f32.gmra.mrb[0].mxu0 %v6198
      %v6497 = vpop.f32.mrb[0].mxu0
      %v6498 = vadd.f32 0.0, %v6497
      %v6499 = vpop.f32.mrb[0].mxu0
      %v6500 = vadd.f32 0.0, %v6499
      %6501 = vmatprep.mubr.f32.mxu0 0.0
      %6502 = vmatmul.mubr.f32.gmra.mrb[0].mxu0 %v6201
      %v6503 = vpop.f32.mrb[0].mxu0
      %v6504 = vadd.f32 0.0, %v6503
      %v6505 = vpop.f32.mrb[0].mxu0
      %v6506 = vadd.f32 0.0, %v6505
      %6507 = vmatprep.mubr.f32.mxu0 0.0
      %6508 = vmatmul.mubr.f32.gmra.mrb[0].mxu0 %v6204
      %v6509 = vpop.f32.mrb[0].mxu0
      %v6510 = vadd.f32 0.0, %v6509
      %v6511 = vpop.f32.mrb[0].mxu0
      %v6512 = vadd.f32 0.0, %v6511
      %6513 = vmatprep.mubr.f32.mxu0 0.0
      %6514 = vmatmul.mubr.f32.gmra.mrb[0].mxu0 %v6207
      %v6515 = vpop.f32.mrb[0].mxu0
      %v6516 = vadd.f32 0.0, %v6515
      %v6517 = vpop.f32.mrb[0].mxu0
      %v6518 = vadd.f32 0.0, %v6517
      %6519 = vmatprep.mubr.f32.mxu0 0.0
      %6520 = vmatmul.mubr.f32.gmra.mrb[0].mxu0 %v6210
      %v6521 = vpop.f32.mrb[0].mxu0
      %v6522 = vadd.f32 0.0, %v6521
      %v6523 = vpop.f32.mrb[0].mxu0
      %v6524 = vadd.f32 0.0, %v6523
      %6525 = vmatprep.mubr.f32.mxu0 0.0
      %6526 = vmatmul.mubr.f32.gmra.mrb[0].mxu0 %v6213
      %v6527 = vpop.f32.mrb[0].mxu0
      %v6528 = vadd.f32 0.0, %v6527
      %v6529 = vpop.f32.mrb[0].mxu0
      %v6530 = vadd.f32 0.0, %v6529
      %6531 = vmatprep.mubr.f32.mxu0 0.0
      %6532 = vmatmul.mubr.f32.gmra.mrb[0].mxu0 %v6216
      %v6533 = vpop.f32.mrb[0].mxu0
      %v6534 = vadd.f32 0.0, %v6533
      %v6535 = vpop.f32.mrb[0].mxu0
      %v6536 = vadd.f32 0.0, %v6535
      %6537 = vmatprep.mubr.f32.mxu0 0.0
      %6538 = vmatmul.mubr.f32.gmra.mrb[0].mxu0 %v6219
      %v6539 = vpop.f32.mrb[0].mxu0
      %v6540 = vadd.f32 0.0, %v6539
      %v6541 = vpop.f32.mrb[0].mxu0
      %v6542 = vadd.f32 0.0, %v6541
      %6543 = vmatprep.mubr.f32.mxu0 0.0
      %6544 = vmatmul.mubr.f32.gmra.mrb[0].mxu0 %v6222
      %v6545 = vpop.f32.mrb[0].mxu0
      %v6546 = vadd.f32 0.0, %v6545
      %v6547 = vpop.f32.mrb[0].mxu0
      %v6548 = vadd.f32 0.0, %v6547
      %6549 = vmatprep.mubr.f32.mxu0 0.0
      %6550 = vmatmul.mubr.f32.gmra.mrb[0].mxu0 %v6225
      %v6551 = vpop.f32.mrb[0].mxu0
      %v6552 = vadd.f32 0.0, %v6551
      %v6553 = vpop.f32.mrb[0].mxu0
      %v6554 = vadd.f32 0.0, %v6553
      %6555 = vmatprep.mubr.f32.mxu0 0.0
      %6556 = vmatmul.mubr.f32.gmra.mrb[0].mxu0 %v6228
      %v6557 = vpop.f32.mrb[0].mxu0
      %v6558 = vadd.f32 0.0, %v6557
      %v6559 = vpop.f32.mrb[0].mxu0
      %v6560 = vadd.f32 0.0, %v6559
      %6561 = vmatprep.mubr.f32.mxu0 0.0
      %6562 = vmatmul.mubr.f32.gmra.mrb[0].mxu0 %v6231
      %v6563 = vpop.f32.mrb[0].mxu0
      %v6564 = vadd.f32 0.0, %v6563
      %v6565 = vpop.f32.mrb[0].mxu0
      %v6566 = vadd.f32 0.0, %v6565
      %6567 = vmatprep.mubr.f32.mxu0 0.0
      %6568 = vmatmul.mubr.f32.gmra.mrb[0].mxu0 %v6234
      %v6569 = vpop.f32.mrb[0].mxu0
      %v6570 = vadd.f32 0.0, %v6569
      %v6571 = vpop.f32.mrb[0].mxu0
      %v6572 = vadd.f32 0.0, %v6571
      %6573 = vmatprep.mubr.f32.mxu0 0.0
      %6574 = vmatmul.mubr.f32.gmra.mrb[0].mxu0 %v6237
      %v6575 = vpop.f32.mrb[0].mxu0
      %v6576 = vadd.f32 0.0, %v6575
      %v6577 = vpop.f32.mrb[0].mxu0
      %v6578 = vadd.f32 0.0, %v6577
      %6579 = vmatprep.mubr.f32.mxu0 0.0
      %6580 = vmatmul.mubr.f32.gmra.mrb[0].mxu0 %v6240
      %v6581 = vpop.f32.mrb[0].mxu0
      %v6582 = vadd.f32 0.0, %v6581
      %v6583 = vpop.f32.mrb[0].mxu0
      %v6584 = vadd.f32 0.0, %v6583
      %6585 = vmatprep.mubr.f32.mxu0 0.0
      %6586 = vmatmul.mubr.f32.gmra.mrb[0].mxu0 %v6243
      %v6587 = vpop.f32.mrb[0].mxu0
      %v6588 = vadd.f32 0.0, %v6587
      %v6589 = vpop.f32.mrb[0].mxu0
      %v6590 = vadd.f32 0.0, %v6589
      %6591 = vmatprep.mubr.f32.mxu0 0.0
      %6592 = vmatmul.mubr.f32.gmra.mrb[0].mxu0 %v6246
      %v6593 = vpop.f32.mrb[0].mxu0
      %v6594 = vadd.f32 0.0, %v6593
      %v6595 = vpop.f32.mrb[0].mxu0
      %v6596 = vadd.f32 0.0, %v6595
      %6597 = vmatprep.mubr.f32.mxu0 0.0
      %6598 = vmatmul.mubr.f32.gmra.mrb[0].mxu0 %v6249
      %v6599 = vpop.f32.mrb[0].mxu0
      %v6600 = vadd.f32 0.0, %v6599
      %v6601 = vpop.f32.mrb[0].mxu0
      %v6602 = vadd.f32 0.0, %v6601
      %6603 = vmatprep.mubr.f32.mxu0 0.0
      %6604 = vmatmul.mubr.f32.gmra.mrb[0].mxu0 %v6252
      %v6605 = vpop.f32.mrb[0].mxu0
      %v6606 = vadd.f32 0.0, %v6605
      %v6607 = vpop.f32.mrb[0].mxu0
      %v6608 = vadd.f32 0.0, %v6607
      %6609 = vmatprep.mubr.f32.mxu0 0.0
      %6610 = vmatmul.mubr.f32.gmra.mrb[0].mxu0 %v6255
      %v6611 = vpop.f32.mrb[0].mxu0
      %v6612 = vadd.f32 0.0, %v6611
      %v6613 = vpop.f32.mrb[0].mxu0
      %v6614 = vadd.f32 0.0, %v6613
      %6615 = vmatprep.mubr.f32.mxu0 0.0
      %6616 = vmatmul.mubr.f32.gmra.mrb[0].mxu0 %v6258
      %v6617 = vpop.f32.mrb[0].mxu0
      %v6618 = vadd.f32 0.0, %v6617
      %v6619 = vpop.f32.mrb[0].mxu0
      %v6620 = vadd.f32 0.0, %v6619
      %6621 = vmatprep.mubr.f32.mxu0 0.0
      %6622 = vmatmul.mubr.f32.gmra.mrb[0].mxu0 %v6261
      %v6623 = vpop.f32.mrb[0].mxu0
      %v6624 = vadd.f32 0.0, %v6623
      %v6625 = vpop.f32.mrb[0].mxu0
      %v6626 = vadd.f32 0.0, %v6625
      %6627 = vmatprep.mubr.f32.mxu0 0.0
      %6628 = vmatmul.mubr.f32.gmra.mrb[0].mxu0 %v6264
      %v6629 = vpop.f32.mrb[0].mxu0
      %v6630 = vadd.f32 0.0, %v6629
      %v6631 = vpop.f32.mrb[0].mxu0
      %v6632 = vadd.f32 0.0, %v6631
      %6633 = vmatprep.mubr.f32.mxu0 0.0
      %6634 = vmatmul.mubr.f32.gmra.mrb[0].mxu0 %v6267
      %v6635 = vpop.f32.mrb[0].mxu0
      %v6636 = vadd.f32 0.0, %v6635
      %v6637 = vpop.f32.mrb[0].mxu0
      %v6638 = vadd.f32 0.0, %v6637
      %6639 = vmatprep.mubr.f32.mxu0 0.0
      %6640 = vmatmul.mubr.f32.gmra.mrb[0].mxu0 %v6270
      %v6641 = vpop.f32.mrb[0].mxu0
      %v6642 = vadd.f32 0.0, %v6641
      %v6643 = vpop.f32.mrb[0].mxu0
      %v6644 = vadd.f32 0.0, %v6643
      %6645 = vmatprep.mubr.f32.mxu0 0.0
      %6646 = vmatmul.mubr.f32.gmra.mrb[0].mxu0 %v6273
      %v6647 = vpop.f32.mrb[0].mxu0
      %v6648 = vadd.f32 0.0, %v6647
      %v6649 = vpop.f32.mrb[0].mxu0
      %v6650 = vadd.f32 0.0, %v6649
      %6651 = vmatprep.mubr.f32.mxu0 0.0
      %6652 = vmatmul.mubr.f32.gmra.mrb[0].mxu0 %v6276
      %v6653 = vpop.f32.mrb[0].mxu0
      %v6654 = vadd.f32 0.0, %v6653
      %v6655 = vpop.f32.mrb[0].mxu0
      %v6656 = vadd.f32 0.0, %v6655
      %6657 = vmatprep.mubr.f32.mxu0 0.0
      %6658 = vmatmul.mubr.f32.gmra.mrb[0].mxu0 %v6279
      %v6659 = vpop.f32.mrb[0].mxu0
      %v6660 = vadd.f32 0.0, %v6659
      %v6661 = vpop.f32.mrb[0].mxu0
      %v6662 = vadd.f32 0.0, %v6661
      %6663 = vmatprep.mubr.f32.mxu0 0.0
      %6664 = vmatmul.mubr.f32.gmra.mrb[0].mxu0 %v6282
      %v6665 = vpop.f32.mrb[0].mxu0
      %v6666 = vadd.f32 0.0, %v6665
      %v6667 = vpop.f32.mrb[0].mxu0
      %v6668 = vadd.f32 0.0, %v6667
      %6669 = vmatprep.mubr.f32.mxu0 0.0
      %6670 = vmatmul.mubr.f32.gmra.mrb[0].mxu0 %v6285
      %v6671 = vpop.f32.mrb[0].mxu0
      %v6672 = vadd.f32 0.0, %v6671
      %v6673 = vpop.f32.mrb[0].mxu0
      %v6674 = vadd.f32 0.0, %v6673
      %6675 = vmatprep.mubr.f32.mxu0 0.0
      %6676 = vmatmul.mubr.f32.gmra.mrb[0].mxu0 %v6288
      %v6677 = vpop.f32.mrb[0].mxu0
      %v6678 = vadd.f32 0.0, %v6677
      %v6679 = vpop.f32.mrb[0].mxu0
      %v6680 = vadd.f32 0.0, %v6679
      %6681 = vmatprep.mubr.f32.mxu0 0.0
      %6682 = vmatmul.mubr.f32.gmra.mrb[0].mxu0 %v6291
      %v6683 = vpop.f32.mrb[0].mxu0
      %v6684 = vadd.f32 0.0, %v6683
      %v6685 = vpop.f32.mrb[0].mxu0
      %v6686 = vadd.f32 0.0, %v6685
      %6687 = vmatprep.mubr.f32.mxu0 0.0
      %6688 = vmatmul.mubr.f32.gmra.mrb[0].mxu0 %v6294
      %v6689 = vpop.f32.mrb[0].mxu0
      %v6690 = vadd.f32 0.0, %v6689
      %v6691 = vpop.f32.mrb[0].mxu0
      %v6692 = vadd.f32 0.0, %v6691
      %6693 = vmatprep.mubr.f32.mxu0 0.0
      %6694 = vmatmul.mubr.f32.gmra.mrb[0].mxu0 %v6297
      %v6695 = vpop.f32.mrb[0].mxu0
      %v6696 = vadd.f32 0.0, %v6695
      %v6697 = vpop.f32.mrb[0].mxu0
      %v6698 = vadd.f32 0.0, %v6697
      %6699 = vmatprep.mubr.f32.mxu0 0.0
      %6700 = vmatmul.mubr.f32.gmra.mrb[0].mxu0 %v6300
      %v6701 = vpop.f32.mrb[0].mxu0
      %v6702 = vadd.f32 0.0, %v6701
      %v6703 = vpop.f32.mrb[0].mxu0
      %v6704 = vadd.f32 0.0, %v6703
      %6705 = vmatprep.mubr.f32.mxu0 0.0
      %6706 = vmatmul.mubr.f32.gmra.mrb[0].mxu0 %v6303
      %v6707 = vpop.f32.mrb[0].mxu0
      %v6708 = vadd.f32 0.0, %v6707
      %v6709 = vpop.f32.mrb[0].mxu0
      %v6710 = vadd.f32 0.0, %v6709
      %6711 = vmatprep.mubr.f32.mxu0 0.0
      %6712 = vmatmul.mubr.f32.gmra.mrb[0].mxu0 %v6306
      %v6713 = vpop.f32.mrb[0].mxu0
      %v6714 = vadd.f32 0.0, %v6713
      %v6715 = vpop.f32.mrb[0].mxu0
      %v6716 = vadd.f32 0.0, %v6715
      %6717 = vmatprep.mubr.f32.mxu0 0.0
      %6718 = vmatmul.mubr.f32.gmra.mrb[0].mxu0 %v6309
      %v6719 = vpop.f32.mrb[0].mxu0
      %v6720 = vadd.f32 0.0, %v6719
      %v6721 = vpop.f32.mrb[0].mxu0
      %v6722 = vadd.f32 0.0, %v6721
      %6723 = vmatprep.mubr.f32.mxu0 0.0
      %6724 = vmatmul.mubr.f32.gmra.mrb[0].mxu0 %v6312
      %v6725 = vpop.f32.mrb[0].mxu0
      %v6726 = vadd.f32 0.0, %v6725
      %v6727 = vpop.f32.mrb[0].mxu0
      %v6728 = vadd.f32 0.0, %v6727
      %6729 = vmatprep.mubr.f32.mxu0 0.0
      %6730 = vmatmul.mubr.f32.gmra.mrb[0].mxu0 %v6315
      %v6731 = vpop.f32.mrb[0].mxu0
      %v6732 = vadd.f32 0.0, %v6731
      %v6733 = vpop.f32.mrb[0].mxu0
      %v6734 = vadd.f32 0.0, %v6733
      %6735 = vmatprep.mubr.f32.mxu0 0.0
      %6736 = vmatmul.mubr.f32.gmra.mrb[0].mxu0 %v6318
      %v6737 = vpop.f32.mrb[0].mxu0
      %v6738 = vadd.f32 0.0, %v6737
      %v6739 = vpop.f32.mrb[0].mxu0
      %v6740 = vadd.f32 0.0, %v6739
      %6741 = vmatprep.mubr.f32.mxu0 0.0
      %6742 = vmatmul.mubr.f32.gmra.mrb[0].mxu0 %v6321
      %v6743 = vpop.f32.mrb[0].mxu0
      %v6744 = vadd.f32 0.0, %v6743
      %v6745 = vpop.f32.mrb[0].mxu0
      %v6746 = vadd.f32 0.0, %v6745
      %6747 = vmatprep.mubr.f32.mxu0 0.0
      %6748 = vmatmul.mubr.f32.gmra.mrb[0].mxu0 %v6324
      %v6749 = vpop.f32.mrb[0].mxu0
      %v6750 = vadd.f32 0.0, %v6749
      %v6751 = vpop.f32.mrb[0].mxu0
      %v6752 = vadd.f32 0.0, %v6751
      %6753 = vmatprep.mubr.f32.mxu0 0.0
      %6754 = vmatmul.mubr.f32.gmra.mrb[0].mxu0 %v6327
      %v6755 = vpop.f32.mrb[0].mxu0
      %v6756 = vadd.f32 0.0, %v6755
      %v6757 = vpop.f32.mrb[0].mxu0
      %v6758 = vadd.f32 0.0, %v6757
      %6759 = vmatprep.mubr.f32.mxu0 0.0
      %6760 = vmatmul.mubr.f32.gmra.mrb[0].mxu0 %v6330
      %v6761 = vpop.f32.mrb[0].mxu0
      %v6762 = vadd.f32 0.0, %v6761
      %v6763 = vpop.f32.mrb[0].mxu0
      %v6764 = vadd.f32 0.0, %v6763
      %6765 = vmatprep.mubr.f32.mxu0 0.0
      %6766 = vmatmul.mubr.f32.gmra.mrb[0].mxu0 %v6333
      %v6767 = vpop.f32.mrb[0].mxu0
      %v6768 = vadd.f32 0.0, %v6767
      %v6769 = vpop.f32.mrb[0].mxu0
      %v6770 = vadd.f32 0.0, %v6769
      %6771 = vmatprep.mubr.f32.mxu0 0.0
      %6772 = vmatmul.mubr.f32.gmra.mrb[0].mxu0 %v6336
      %v6773 = vpop.f32.mrb[0].mxu0
      %v6774 = vadd.f32 0.0, %v6773
      %v6775 = vpop.f32.mrb[0].mxu0
      %v6776 = vadd.f32 0.0, %v6775
      %6777 = vmatprep.mubr.f32.mxu0 0.0
      %6778 = vmatmul.mubr.f32.gmra.mrb[0].mxu0 %v6339
      %v6779 = vpop.f32.mrb[0].mxu0
      %v6780 = vadd.f32 0.0, %v6779
      %v6781 = vpop.f32.mrb[0].mxu0
      %v6782 = vadd.f32 0.0, %v6781
      %6783 = vmatprep.mubr.f32.mxu0 0.0
      %6784 = vmatmul.mubr.f32.gmra.mrb[0].mxu0 %v6342
      %v6785 = vpop.f32.mrb[0].mxu0
      %v6786 = vadd.f32 0.0, %v6785
      %v6787 = vpop.f32.mrb[0].mxu0
      %v6788 = vadd.f32 0.0, %v6787
      %6789 = vmatprep.mubr.f32.mxu0 0.0
      %6790 = vmatmul.mubr.f32.gmra.mrb[0].mxu0 %v6345
      %v6791 = vpop.f32.mrb[0].mxu0
      %v6792 = vadd.f32 0.0, %v6791
      %v6793 = vpop.f32.mrb[0].mxu0
      %v6794 = vadd.f32 0.0, %v6793
      %6795 = vdwg.mxu0
      %6796 = vmatprep.subr.mxu0 %v6126
      %6797 = vmatpush1.msra.mxu0 %v6125
      %6798 = vmatprep.subr.mxu0 %v6130
      %6799 = vmatpush1.msra.mxu0 %v6129
      %6800 = vmatprep.subr.mxu0 %v6134
      %6801 = vmatpush1.msra.mxu0 %v6133
      %6802 = vmatprep.subr.mxu0 %v6138
      %6803 = vmatpush1.msra.mxu0 %v6137
      %6804 = vmatprep.subr.mxu0 %v6142
      %6805 = vmatpush1.msra.mxu0 %v6141
      %6806 = vmatprep.subr.mxu0 %v6146
      %6807 = vmatpush1.msra.mxu0 %v6145
      %6808 = vmatprep.subr.mxu0 %v6150
      %6809 = vmatpush1.msra.mxu0 %v6149
      %6810 = vmatprep.subr.mxu0 %v6154
      %6811 = vmatpush1.msra.mxu0 %v6153
      %6812 = vmatprep.subr.mxu0 0.0
      %6813 = vmatpush1.msra.mxu0 0.0
      %6814 = vmatprep.subr.mxu0 0.0
      %6815 = vmatpush1.msra.mxu0 0.0
      %6816 = vmatprep.subr.mxu0 0.0
      %6817 = vmatpush1.msra.mxu0 0.0
      %6818 = vmatprep.subr.mxu0 0.0
      %6819 = vmatpush1.msra.mxu0 0.0
      %6820 = vmatprep.subr.mxu0 0.0
      %6821 = vmatpush1.msra.mxu0 0.0
      %6822 = vmatprep.subr.mxu0 0.0
      %6823 = vmatpush1.msra.mxu0 0.0
      %6824 = vmatprep.subr.mxu0 0.0
      %6825 = vmatpush1.msra.mxu0 0.0
      %6826 = vmatprep.subr.mxu0 0.0
      %6827 = vmatpush1.msra.mxu0 0.0
      %6828 = vmatprep.subr.mxu0 0.0
      %6829 = vmatpush1.msra.mxu0 0.0
      %6830 = vmatprep.subr.mxu0 0.0
      %6831 = vmatpush1.msra.mxu0 0.0
      %6832 = vmatprep.subr.mxu0 0.0
      %6833 = vmatpush1.msra.mxu0 0.0
      %6834 = vmatprep.subr.mxu0 0.0
      %6835 = vmatpush1.msra.mxu0 0.0
      %6836 = vmatprep.subr.mxu0 0.0
      %6837 = vmatpush1.msra.mxu0 0.0
      %6838 = vmatprep.subr.mxu0 0.0
      %6839 = vmatpush1.msra.mxu0 0.0
      %6840 = vmatprep.subr.mxu0 0.0
      %6841 = vmatpush1.msra.mxu0 0.0
      %6842 = vmatprep.subr.mxu0 0.0
      %6843 = vmatpush1.msra.mxu0 0.0
      %6844 = vmatprep.subr.mxu0 0.0
      %6845 = vmatpush1.msra.mxu0 0.0
      %6846 = vmatprep.subr.mxu0 0.0
      %6847 = vmatpush1.msra.mxu0 0.0
      %6848 = vmatprep.subr.mxu0 0.0
      %6849 = vmatpush1.msra.mxu0 0.0
      %6850 = vmatprep.subr.mxu0 0.0
      %6851 = vmatpush1.msra.mxu0 0.0
      %6852 = vmatprep.subr.mxu0 0.0
      %6853 = vmatpush1.msra.mxu0 0.0
      %6854 = vmatprep.subr.mxu0 0.0
      %6855 = vmatpush1.msra.mxu0 0.0
      %6856 = vmatprep.subr.mxu0 0.0
      %6857 = vmatpush1.msra.mxu0 0.0
      %6858 = vmatprep.subr.mxu0 0.0
      %6859 = vmatpush1.msra.mxu0 0.0
      %6860 = vmatprep.mubr.f32.mxu0 0.0
      %6861 = vmatmul.mubr.f32.gmra.mrb[0].mxu0 %v6156
      %v6862 = vpop.f32.mrb[0].mxu0
      %v6863 = vadd.f32 0.0, %v6862
      %v6864 = vpop.f32.mrb[0].mxu0
      %v6865 = vadd.f32 0.0, %v6864
      %6866 = vmatprep.mubr.f32.mxu0 0.0
      %6867 = vmatmul.mubr.f32.gmra.mrb[0].mxu0 %v6159
      %v6868 = vpop.f32.mrb[0].mxu0
      %v6869 = vadd.f32 0.0, %v6868
      %v6870 = vpop.f32.mrb[0].mxu0
      %v6871 = vadd.f32 0.0, %v6870
      %6872 = vmatprep.mubr.f32.mxu0 0.0
      %6873 = vmatmul.mubr.f32.gmra.mrb[0].mxu0 %v6162
      %v6874 = vpop.f32.mrb[0].mxu0
      %v6875 = vadd.f32 0.0, %v6874
      %v6876 = vpop.f32.mrb[0].mxu0
      %v6877 = vadd.f32 0.0, %v6876
      %6878 = vmatprep.mubr.f32.mxu0 0.0
      %6879 = vmatmul.mubr.f32.gmra.mrb[0].mxu0 %v6165
      %v6880 = vpop.f32.mrb[0].mxu0
      %v6881 = vadd.f32 0.0, %v6880
      %v6882 = vpop.f32.mrb[0].mxu0
      %v6883 = vadd.f32 0.0, %v6882
      %6884 = vmatprep.mubr.f32.mxu0 0.0
      %6885 = vmatmul.mubr.f32.gmra.mrb[0].mxu0 %v6168
      %v6886 = vpop.f32.mrb[0].mxu0
      %v6887 = vadd.f32 0.0, %v6886
      %v6888 = vpop.f32.mrb[0].mxu0
      %v6889 = vadd.f32 0.0, %v6888
      %6890 = vmatprep.mubr.f32.mxu0 0.0
      %6891 = vmatmul.mubr.f32.gmra.mrb[0].mxu0 %v6171
      %v6892 = vpop.f32.mrb[0].mxu0
      %v6893 = vadd.f32 0.0, %v6892
      %v6894 = vpop.f32.mrb[0].mxu0
      %v6895 = vadd.f32 0.0, %v6894
      %6896 = vmatprep.mubr.f32.mxu0 0.0
      %6897 = vmatmul.mubr.f32.gmra.mrb[0].mxu0 %v6174
      %v6898 = vpop.f32.mrb[0].mxu0
      %v6899 = vadd.f32 0.0, %v6898
      %v6900 = vpop.f32.mrb[0].mxu0
      %v6901 = vadd.f32 0.0, %v6900
      %6902 = vmatprep.mubr.f32.mxu0 0.0
      %6903 = vmatmul.mubr.f32.gmra.mrb[0].mxu0 %v6177
      %v6904 = vpop.f32.mrb[0].mxu0
      %v6905 = vadd.f32 0.0, %v6904
      %v6906 = vpop.f32.mrb[0].mxu0
      %v6907 = vadd.f32 0.0, %v6906
      %6908 = vmatprep.mubr.f32.mxu0 0.0
      %6909 = vmatmul.mubr.f32.gmra.mrb[0].mxu0 %v6180
      %v6910 = vpop.f32.mrb[0].mxu0
      %v6911 = vadd.f32 0.0, %v6910
      %v6912 = vpop.f32.mrb[0].mxu0
      %v6913 = vadd.f32 0.0, %v6912
      %6914 = vmatprep.mubr.f32.mxu0 0.0
      %6915 = vmatmul.mubr.f32.gmra.mrb[0].mxu0 %v6183
      %v6916 = vpop.f32.mrb[0].mxu0
      %v6917 = vadd.f32 0.0, %v6916
      %v6918 = vpop.f32.mrb[0].mxu0
      %v6919 = vadd.f32 0.0, %v6918
      %6920 = vmatprep.mubr.f32.mxu0 0.0
      %6921 = vmatmul.mubr.f32.gmra.mrb[0].mxu0 %v6186
      %v6922 = vpop.f32.mrb[0].mxu0
      %v6923 = vadd.f32 0.0, %v6922
      %v6924 = vpop.f32.mrb[0].mxu0
      %v6925 = vadd.f32 0.0, %v6924
      %6926 = vmatprep.mubr.f32.mxu0 0.0
      %6927 = vmatmul.mubr.f32.gmra.mrb[0].mxu0 %v6189
      %v6928 = vpop.f32.mrb[0].mxu0
      %v6929 = vadd.f32 0.0, %v6928
      %v6930 = vpop.f32.mrb[0].mxu0
      %v6931 = vadd.f32 0.0, %v6930
      %6932 = vmatprep.mubr.f32.mxu0 0.0
      %6933 = vmatmul.mubr.f32.gmra.mrb[0].mxu0 %v6192
      %v6934 = vpop.f32.mrb[0].mxu0
      %v6935 = vadd.f32 0.0, %v6934
      %v6936 = vpop.f32.mrb[0].mxu0
      %v6937 = vadd.f32 0.0, %v6936
      %6938 = vmatprep.mubr.f32.mxu0 0.0
      %6939 = vmatmul.mubr.f32.gmra.mrb[0].mxu0 %v6195
      %v6940 = vpop.f32.mrb[0].mxu0
      %v6941 = vadd.f32 0.0, %v6940
      %v6942 = vpop.f32.mrb[0].mxu0
      %v6943 = vadd.f32 0.0, %v6942
      %6944 = vmatprep.mubr.f32.mxu0 0.0
      %6945 = vmatmul.mubr.f32.gmra.mrb[0].mxu0 %v6198
      %v6946 = vpop.f32.mrb[0].mxu0
      %v6947 = vadd.f32 0.0, %v6946
      %v6948 = vpop.f32.mrb[0].mxu0
      %v6949 = vadd.f32 0.0, %v6948
      %6950 = vmatprep.mubr.f32.mxu0 0.0
      %6951 = vmatmul.mubr.f32.gmra.mrb[0].mxu0 %v6201
      %v6952 = vpop.f32.mrb[0].mxu0
      %v6953 = vadd.f32 0.0, %v6952
      %v6954 = vpop.f32.mrb[0].mxu0
      %v6955 = vadd.f32 0.0, %v6954
      %6956 = vmatprep.mubr.f32.mxu0 0.0
      %6957 = vmatmul.mubr.f32.gmra.mrb[0].mxu0 %v6204
      %v6958 = vpop.f32.mrb[0].mxu0
      %v6959 = vadd.f32 0.0, %v6958
      %v6960 = vpop.f32.mrb[0].mxu0
      %v6961 = vadd.f32 0.0, %v6960
      %6962 = vmatprep.mubr.f32.mxu0 0.0
      %6963 = vmatmul.mubr.f32.gmra.mrb[0].mxu0 %v6207
      %v6964 = vpop.f32.mrb[0].mxu0
      %v6965 = vadd.f32 0.0, %v6964
      %v6966 = vpop.f32.mrb[0].mxu0
      %v6967 = vadd.f32 0.0, %v6966
      %6968 = vmatprep.mubr.f32.mxu0 0.0
      %6969 = vmatmul.mubr.f32.gmra.mrb[0].mxu0 %v6210
      %v6970 = vpop.f32.mrb[0].mxu0
      %v6971 = vadd.f32 0.0, %v6970
      %v6972 = vpop.f32.mrb[0].mxu0
      %v6973 = vadd.f32 0.0, %v6972
      %6974 = vmatprep.mubr.f32.mxu0 0.0
      %6975 = vmatmul.mubr.f32.gmra.mrb[0].mxu0 %v6213
      %v6976 = vpop.f32.mrb[0].mxu0
      %v6977 = vadd.f32 0.0, %v6976
      %v6978 = vpop.f32.mrb[0].mxu0
      %v6979 = vadd.f32 0.0, %v6978
      %6980 = vmatprep.mubr.f32.mxu0 0.0
      %6981 = vmatmul.mubr.f32.gmra.mrb[0].mxu0 %v6216
      %v6982 = vpop.f32.mrb[0].mxu0
      %v6983 = vadd.f32 0.0, %v6982
      %v6984 = vpop.f32.mrb[0].mxu0
      %v6985 = vadd.f32 0.0, %v6984
      %6986 = vmatprep.mubr.f32.mxu0 0.0
      %6987 = vmatmul.mubr.f32.gmra.mrb[0].mxu0 %v6219
      %v6988 = vpop.f32.mrb[0].mxu0
      %v6989 = vadd.f32 0.0, %v6988
      %v6990 = vpop.f32.mrb[0].mxu0
      %v6991 = vadd.f32 0.0, %v6990
      %6992 = vmatprep.mubr.f32.mxu0 0.0
      %6993 = vmatmul.mubr.f32.gmra.mrb[0].mxu0 %v6222
      %v6994 = vpop.f32.mrb[0].mxu0
      %v6995 = vadd.f32 0.0, %v6994
      %v6996 = vpop.f32.mrb[0].mxu0
      %v6997 = vadd.f32 0.0, %v6996
      %6998 = vmatprep.mubr.f32.mxu0 0.0
      %6999 = vmatmul.mubr.f32.gmra.mrb[0].mxu0 %v6225
      %v7000 = vpop.f32.mrb[0].mxu0
      %v7001 = vadd.f32 0.0, %v7000
      %v7002 = vpop.f32.mrb[0].mxu0
      %v7003 = vadd.f32 0.0, %v7002
      %7004 = vmatprep.mubr.f32.mxu0 0.0
      %7005 = vmatmul.mubr.f32.gmra.mrb[0].mxu0 %v6228
      %v7006 = vpop.f32.mrb[0].mxu0
      %v7007 = vadd.f32 0.0, %v7006
      %v7008 = vpop.f32.mrb[0].mxu0
      %v7009 = vadd.f32 0.0, %v7008
      %7010 = vmatprep.mubr.f32.mxu0 0.0
      %7011 = vmatmul.mubr.f32.gmra.mrb[0].mxu0 %v6231
      %v7012 = vpop.f32.mrb[0].mxu0
      %v7013 = vadd.f32 0.0, %v7012
      %v7014 = vpop.f32.mrb[0].mxu0
      %v7015 = vadd.f32 0.0, %v7014
      %7016 = vmatprep.mubr.f32.mxu0 0.0
      %7017 = vmatmul.mubr.f32.gmra.mrb[0].mxu0 %v6234
      %v7018 = vpop.f32.mrb[0].mxu0
      %v7019 = vadd.f32 0.0, %v7018
      %v7020 = vpop.f32.mrb[0].mxu0
      %v7021 = vadd.f32 0.0, %v7020
      %7022 = vmatprep.mubr.f32.mxu0 0.0
      %7023 = vmatmul.mubr.f32.gmra.mrb[0].mxu0 %v6237
      %v7024 = vpop.f32.mrb[0].mxu0
      %v7025 = vadd.f32 0.0, %v7024
      %v7026 = vpop.f32.mrb[0].mxu0
      %v7027 = vadd.f32 0.0, %v7026
      %7028 = vmatprep.mubr.f32.mxu0 0.0
      %7029 = vmatmul.mubr.f32.gmra.mrb[0].mxu0 %v6240
      %v7030 = vpop.f32.mrb[0].mxu0
      %v7031 = vadd.f32 0.0, %v7030
      %v7032 = vpop.f32.mrb[0].mxu0
      %v7033 = vadd.f32 0.0, %v7032
      %7034 = vmatprep.mubr.f32.mxu0 0.0
      %7035 = vmatmul.mubr.f32.gmra.mrb[0].mxu0 %v6243
      %v7036 = vpop.f32.mrb[0].mxu0
      %v7037 = vadd.f32 0.0, %v7036
      %v7038 = vpop.f32.mrb[0].mxu0
      %v7039 = vadd.f32 0.0, %v7038
      %7040 = vmatprep.mubr.f32.mxu0 0.0
      %7041 = vmatmul.mubr.f32.gmra.mrb[0].mxu0 %v6246
      %v7042 = vpop.f32.mrb[0].mxu0
      %v7043 = vadd.f32 0.0, %v7042
      %v7044 = vpop.f32.mrb[0].mxu0
      %v7045 = vadd.f32 0.0, %v7044
      %7046 = vmatprep.mubr.f32.mxu0 0.0
      %7047 = vmatmul.mubr.f32.gmra.mrb[0].mxu0 %v6249
      %v7048 = vpop.f32.mrb[0].mxu0
      %v7049 = vadd.f32 0.0, %v7048
      %v7050 = vpop.f32.mrb[0].mxu0
      %v7051 = vadd.f32 0.0, %v7050
      %7052 = vmatprep.mubr.f32.mxu0 0.0
      %7053 = vmatmul.mubr.f32.gmra.mrb[0].mxu0 %v6252
      %v7054 = vpop.f32.mrb[0].mxu0
      %v7055 = vadd.f32 0.0, %v7054
      %v7056 = vpop.f32.mrb[0].mxu0
      %v7057 = vadd.f32 0.0, %v7056
      %7058 = vmatprep.mubr.f32.mxu0 0.0
      %7059 = vmatmul.mubr.f32.gmra.mrb[0].mxu0 %v6255
      %v7060 = vpop.f32.mrb[0].mxu0
      %v7061 = vadd.f32 0.0, %v7060
      %v7062 = vpop.f32.mrb[0].mxu0
      %v7063 = vadd.f32 0.0, %v7062
      %7064 = vmatprep.mubr.f32.mxu0 0.0
      %7065 = vmatmul.mubr.f32.gmra.mrb[0].mxu0 %v6258
      %v7066 = vpop.f32.mrb[0].mxu0
      %v7067 = vadd.f32 0.0, %v7066
      %v7068 = vpop.f32.mrb[0].mxu0
      %v7069 = vadd.f32 0.0, %v7068
      %7070 = vmatprep.mubr.f32.mxu0 0.0
      %7071 = vmatmul.mubr.f32.gmra.mrb[0].mxu0 %v6261
      %v7072 = vpop.f32.mrb[0].mxu0
      %v7073 = vadd.f32 0.0, %v7072
      %v7074 = vpop.f32.mrb[0].mxu0
      %v7075 = vadd.f32 0.0, %v7074
      %7076 = vmatprep.mubr.f32.mxu0 0.0
      %7077 = vmatmul.mubr.f32.gmra.mrb[0].mxu0 %v6264
      %v7078 = vpop.f32.mrb[0].mxu0
      %v7079 = vadd.f32 0.0, %v7078
      %v7080 = vpop.f32.mrb[0].mxu0
      %v7081 = vadd.f32 0.0, %v7080
      %7082 = vmatprep.mubr.f32.mxu0 0.0
      %7083 = vmatmul.mubr.f32.gmra.mrb[0].mxu0 %v6267
      %v7084 = vpop.f32.mrb[0].mxu0
      %v7085 = vadd.f32 0.0, %v7084
      %v7086 = vpop.f32.mrb[0].mxu0
      %v7087 = vadd.f32 0.0, %v7086
      %7088 = vmatprep.mubr.f32.mxu0 0.0
      %7089 = vmatmul.mubr.f32.gmra.mrb[0].mxu0 %v6270
      %v7090 = vpop.f32.mrb[0].mxu0
      %v7091 = vadd.f32 0.0, %v7090
      %v7092 = vpop.f32.mrb[0].mxu0
      %v7093 = vadd.f32 0.0, %v7092
      %7094 = vmatprep.mubr.f32.mxu0 0.0
      %7095 = vmatmul.mubr.f32.gmra.mrb[0].mxu0 %v6273
      %v7096 = vpop.f32.mrb[0].mxu0
      %v7097 = vadd.f32 0.0, %v7096
      %v7098 = vpop.f32.mrb[0].mxu0
      %v7099 = vadd.f32 0.0, %v7098
      %7100 = vmatprep.mubr.f32.mxu0 0.0
      %7101 = vmatmul.mubr.f32.gmra.mrb[0].mxu0 %v6276
      %v7102 = vpop.f32.mrb[0].mxu0
      %v7103 = vadd.f32 0.0, %v7102
      %v7104 = vpop.f32.mrb[0].mxu0
      %v7105 = vadd.f32 0.0, %v7104
      %7106 = vmatprep.mubr.f32.mxu0 0.0
      %7107 = vmatmul.mubr.f32.gmra.mrb[0].mxu0 %v6279
      %v7108 = vpop.f32.mrb[0].mxu0
      %v7109 = vadd.f32 0.0, %v7108
      %v7110 = vpop.f32.mrb[0].mxu0
      %v7111 = vadd.f32 0.0, %v7110
      %7112 = vmatprep.mubr.f32.mxu0 0.0
      %7113 = vmatmul.mubr.f32.gmra.mrb[0].mxu0 %v6282
      %v7114 = vpop.f32.mrb[0].mxu0
      %v7115 = vadd.f32 0.0, %v7114
      %v7116 = vpop.f32.mrb[0].mxu0
      %v7117 = vadd.f32 0.0, %v7116
      %7118 = vmatprep.mubr.f32.mxu0 0.0
      %7119 = vmatmul.mubr.f32.gmra.mrb[0].mxu0 %v6285
      %v7120 = vpop.f32.mrb[0].mxu0
      %v7121 = vadd.f32 0.0, %v7120
      %v7122 = vpop.f32.mrb[0].mxu0
      %v7123 = vadd.f32 0.0, %v7122
      %7124 = vmatprep.mubr.f32.mxu0 0.0
      %7125 = vmatmul.mubr.f32.gmra.mrb[0].mxu0 %v6288
      %v7126 = vpop.f32.mrb[0].mxu0
      %v7127 = vadd.f32 0.0, %v7126
      %v7128 = vpop.f32.mrb[0].mxu0
      %v7129 = vadd.f32 0.0, %v7128
      %7130 = vmatprep.mubr.f32.mxu0 0.0
      %7131 = vmatmul.mubr.f32.gmra.mrb[0].mxu0 %v6291
      %v7132 = vpop.f32.mrb[0].mxu0
      %v7133 = vadd.f32 0.0, %v7132
      %v7134 = vpop.f32.mrb[0].mxu0
      %v7135 = vadd.f32 0.0, %v7134
      %7136 = vmatprep.mubr.f32.mxu0 0.0
      %7137 = vmatmul.mubr.f32.gmra.mrb[0].mxu0 %v6294
      %v7138 = vpop.f32.mrb[0].mxu0
      %v7139 = vadd.f32 0.0, %v7138
      %v7140 = vpop.f32.mrb[0].mxu0
      %v7141 = vadd.f32 0.0, %v7140
      %7142 = vmatprep.mubr.f32.mxu0 0.0
      %7143 = vmatmul.mubr.f32.gmra.mrb[0].mxu0 %v6297
      %v7144 = vpop.f32.mrb[0].mxu0
      %v7145 = vadd.f32 0.0, %v7144
      %v7146 = vpop.f32.mrb[0].mxu0
      %v7147 = vadd.f32 0.0, %v7146
      %7148 = vmatprep.mubr.f32.mxu0 0.0
      %7149 = vmatmul.mubr.f32.gmra.mrb[0].mxu0 %v6300
      %v7150 = vpop.f32.mrb[0].mxu0
      %v7151 = vadd.f32 0.0, %v7150
      %v7152 = vpop.f32.mrb[0].mxu0
      %v7153 = vadd.f32 0.0, %v7152
      %7154 = vmatprep.mubr.f32.mxu0 0.0
      %7155 = vmatmul.mubr.f32.gmra.mrb[0].mxu0 %v6303
      %v7156 = vpop.f32.mrb[0].mxu0
      %v7157 = vadd.f32 0.0, %v7156
      %v7158 = vpop.f32.mrb[0].mxu0
      %v7159 = vadd.f32 0.0, %v7158
      %7160 = vmatprep.mubr.f32.mxu0 0.0
      %7161 = vmatmul.mubr.f32.gmra.mrb[0].mxu0 %v6306
      %v7162 = vpop.f32.mrb[0].mxu0
      %v7163 = vadd.f32 0.0, %v7162
      %v7164 = vpop.f32.mrb[0].mxu0
      %v7165 = vadd.f32 0.0, %v7164
      %7166 = vmatprep.mubr.f32.mxu0 0.0
      %7167 = vmatmul.mubr.f32.gmra.mrb[0].mxu0 %v6309
      %v7168 = vpop.f32.mrb[0].mxu0
      %v7169 = vadd.f32 0.0, %v7168
      %v7170 = vpop.f32.mrb[0].mxu0
      %v7171 = vadd.f32 0.0, %v7170
      %7172 = vmatprep.mubr.f32.mxu0 0.0
      %7173 = vmatmul.mubr.f32.gmra.mrb[0].mxu0 %v6312
      %v7174 = vpop.f32.mrb[0].mxu0
      %v7175 = vadd.f32 0.0, %v7174
      %v7176 = vpop.f32.mrb[0].mxu0
      %v7177 = vadd.f32 0.0, %v7176
      %7178 = vmatprep.mubr.f32.mxu0 0.0
      %7179 = vmatmul.mubr.f32.gmra.mrb[0].mxu0 %v6315
      %v7180 = vpop.f32.mrb[0].mxu0
      %v7181 = vadd.f32 0.0, %v7180
      %v7182 = vpop.f32.mrb[0].mxu0
      %v7183 = vadd.f32 0.0, %v7182
      %7184 = vmatprep.mubr.f32.mxu0 0.0
      %7185 = vmatmul.mubr.f32.gmra.mrb[0].mxu0 %v6318
      %v7186 = vpop.f32.mrb[0].mxu0
      %v7187 = vadd.f32 0.0, %v7186
      %v7188 = vpop.f32.mrb[0].mxu0
      %v7189 = vadd.f32 0.0, %v7188
      %7190 = vmatprep.mubr.f32.mxu0 0.0
      %7191 = vmatmul.mubr.f32.gmra.mrb[0].mxu0 %v6321
      %v7192 = vpop.f32.mrb[0].mxu0
      %v7193 = vadd.f32 0.0, %v7192
      %v7194 = vpop.f32.mrb[0].mxu0
      %v7195 = vadd.f32 0.0, %v7194
      %7196 = vmatprep.mubr.f32.mxu0 0.0
      %7197 = vmatmul.mubr.f32.gmra.mrb[0].mxu0 %v6324
      %v7198 = vpop.f32.mrb[0].mxu0
      %v7199 = vadd.f32 0.0, %v7198
      %v7200 = vpop.f32.mrb[0].mxu0
      %v7201 = vadd.f32 0.0, %v7200
      %7202 = vmatprep.mubr.f32.mxu0 0.0
      %7203 = vmatmul.mubr.f32.gmra.mrb[0].mxu0 %v6327
      %v7204 = vpop.f32.mrb[0].mxu0
      %v7205 = vadd.f32 0.0, %v7204
      %v7206 = vpop.f32.mrb[0].mxu0
      %v7207 = vadd.f32 0.0, %v7206
      %7208 = vmatprep.mubr.f32.mxu0 0.0
      %7209 = vmatmul.mubr.f32.gmra.mrb[0].mxu0 %v6330
      %v7210 = vpop.f32.mrb[0].mxu0
      %v7211 = vadd.f32 0.0, %v7210
      %v7212 = vpop.f32.mrb[0].mxu0
      %v7213 = vadd.f32 0.0, %v7212
      %7214 = vmatprep.mubr.f32.mxu0 0.0
      %7215 = vmatmul.mubr.f32.gmra.mrb[0].mxu0 %v6333
      %v7216 = vpop.f32.mrb[0].mxu0
      %v7217 = vadd.f32 0.0, %v7216
      %v7218 = vpop.f32.mrb[0].mxu0
      %v7219 = vadd.f32 0.0, %v7218
      %7220 = vmatprep.mubr.f32.mxu0 0.0
      %7221 = vmatmul.mubr.f32.gmra.mrb[0].mxu0 %v6336
      %v7222 = vpop.f32.mrb[0].mxu0
      %v7223 = vadd.f32 0.0, %v7222
      %v7224 = vpop.f32.mrb[0].mxu0
      %v7225 = vadd.f32 0.0, %v7224
      %7226 = vmatprep.mubr.f32.mxu0 0.0
      %7227 = vmatmul.mubr.f32.gmra.mrb[0].mxu0 %v6339
      %v7228 = vpop.f32.mrb[0].mxu0
      %v7229 = vadd.f32 0.0, %v7228
      %v7230 = vpop.f32.mrb[0].mxu0
      %v7231 = vadd.f32 0.0, %v7230
      %7232 = vmatprep.mubr.f32.mxu0 0.0
      %7233 = vmatmul.mubr.f32.gmra.mrb[0].mxu0 %v6342
      %v7234 = vpop.f32.mrb[0].mxu0
      %v7235 = vadd.f32 0.0, %v7234
      %v7236 = vpop.f32.mrb[0].mxu0
      %v7237 = vadd.f32 0.0, %v7236
      %7238 = vmatprep.mubr.f32.mxu0 0.0
      %7239 = vmatmul.mubr.f32.gmra.mrb[0].mxu0 %v6345
      %v7240 = vpop.f32.mrb[0].mxu0
      %v7241 = vadd.f32 0.0, %v7240
      %v7242 = vpop.f32.mrb[0].mxu0
      %v7243 = vadd.f32 0.0, %v7242
      %7244 = vdwg.mxu0
      %v7245 = vmax.f32 %v6414, 0.0
      %v7246 = vmax.f32 %v6416, 0.0
      %v7247 = vmax.f32 %v6863, 0.0
      %v7248 = vmax.f32 %v6865, 0.0
      %v7249 = vmax.f32 %v6420, 0.0
      %v7250 = vmax.f32 %v6422, 0.0
      %v7251 = vmax.f32 %v6869, 0.0
      %v7252 = vmax.f32 %v6871, 0.0
      %v7253 = vmax.f32 %v6426, 0.0
      %v7254 = vmax.f32 %v6428, 0.0
      %v7255 = vmax.f32 %v6875, 0.0
      %v7256 = vmax.f32 %v6877, 0.0
      %v7257 = vmax.f32 %v6432, 0.0
      %v7258 = vmax.f32 %v6434, 0.0
      %v7259 = vmax.f32 %v6881, 0.0
      %v7260 = vmax.f32 %v6883, 0.0
      %v7261 = vmax.f32 %v6438, 0.0
      %v7262 = vmax.f32 %v6440, 0.0
      %v7263 = vmax.f32 %v6887, 0.0
      %v7264 = vmax.f32 %v6889, 0.0
      %v7265 = vmax.f32 %v6444, 0.0
      %v7266 = vmax.f32 %v6446, 0.0
      %v7267 = vmax.f32 %v6893, 0.0
      %v7268 = vmax.f32 %v6895, 0.0
      %v7269 = vmax.f32 %v6450, 0.0
      %v7270 = vmax.f32 %v6452, 0.0
      %v7271 = vmax.f32 %v6899, 0.0
      %v7272 = vmax.f32 %v6901, 0.0
      %v7273 = vmax.f32 %v6456, 0.0
      %v7274 = vmax.f32 %v6458, 0.0
      %v7275 = vmax.f32 %v6905, 0.0
      %v7276 = vmax.f32 %v6907, 0.0
      %v7277 = vmax.f32 %v6462, 0.0
      %v7278 = vmax.f32 %v6464, 0.0
      %v7279 = vmax.f32 %v6911, 0.0
      %v7280 = vmax.f32 %v6913, 0.0
      %v7281 = vmax.f32 %v6468, 0.0
      %v7282 = vmax.f32 %v6470, 0.0
      %v7283 = vmax.f32 %v6917, 0.0
      %v7284 = vmax.f32 %v6919, 0.0
      %v7285 = vmax.f32 %v6474, 0.0
      %v7286 = vmax.f32 %v6476, 0.0
      %v7287 = vmax.f32 %v6923, 0.0
      %v7288 = vmax.f32 %v6925, 0.0
      %v7289 = vmax.f32 %v6480, 0.0
      %v7290 = vmax.f32 %v6482, 0.0
      %v7291 = vmax.f32 %v6929, 0.0
      %v7292 = vmax.f32 %v6931, 0.0
      %v7293 = vmax.f32 %v6486, 0.0
      %v7294 = vmax.f32 %v6488, 0.0
      %v7295 = vmax.f32 %v6935, 0.0
      %v7296 = vmax.f32 %v6937, 0.0
      %v7297 = vmax.f32 %v6492, 0.0
      %v7298 = vmax.f32 %v6494, 0.0
      %v7299 = vmax.f32 %v6941, 0.0
      %v7300 = vmax.f32 %v6943, 0.0
      %v7301 = vmax.f32 %v6498, 0.0
      %v7302 = vmax.f32 %v6500, 0.0
      %v7303 = vmax.f32 %v6947, 0.0
      %v7304 = vmax.f32 %v6949, 0.0
      %v7305 = vmax.f32 %v6504, 0.0
      %v7306 = vmax.f32 %v6506, 0.0
      %v7307 = vmax.f32 %v6953, 0.0
      %v7308 = vmax.f32 %v6955, 0.0
      %v7309 = vmax.f32 %v6510, 0.0
      %v7310 = vmax.f32 %v6512, 0.0
      %v7311 = vmax.f32 %v6959, 0.0
      %v7312 = vmax.f32 %v6961, 0.0
      %v7313 = vmax.f32 %v6516, 0.0
      %v7314 = vmax.f32 %v6518, 0.0
      %v7315 = vmax.f32 %v6965, 0.0
      %v7316 = vmax.f32 %v6967, 0.0
      %v7317 = vmax.f32 %v6522, 0.0
      %v7318 = vmax.f32 %v6524, 0.0
      %v7319 = vmax.f32 %v6971, 0.0
      %v7320 = vmax.f32 %v6973, 0.0
      %v7321 = vmax.f32 %v6528, 0.0
      %v7322 = vmax.f32 %v6530, 0.0
      %v7323 = vmax.f32 %v6977, 0.0
      %v7324 = vmax.f32 %v6979, 0.0
      %v7325 = vmax.f32 %v6534, 0.0
      %v7326 = vmax.f32 %v6536, 0.0
      %v7327 = vmax.f32 %v6983, 0.0
      %v7328 = vmax.f32 %v6985, 0.0
      %v7329 = vmax.f32 %v6540, 0.0
      %v7330 = vmax.f32 %v6542, 0.0
      %v7331 = vmax.f32 %v6989, 0.0
      %v7332 = vmax.f32 %v6991, 0.0
      %v7333 = vmax.f32 %v6546, 0.0
      %v7334 = vmax.f32 %v6548, 0.0
      %v7335 = vmax.f32 %v6995, 0.0
      %v7336 = vmax.f32 %v6997, 0.0
      %v7337 = vmax.f32 %v6552, 0.0
      %v7338 = vmax.f32 %v6554, 0.0
      %v7339 = vmax.f32 %v7001, 0.0
      %v7340 = vmax.f32 %v7003, 0.0
      %v7341 = vmax.f32 %v6558, 0.0
      %v7342 = vmax.f32 %v6560, 0.0
      %v7343 = vmax.f32 %v7007, 0.0
      %v7344 = vmax.f32 %v7009, 0.0
      %v7345 = vmax.f32 %v6564, 0.0
      %v7346 = vmax.f32 %v6566, 0.0
      %v7347 = vmax.f32 %v7013, 0.0
      %v7348 = vmax.f32 %v7015, 0.0
      %v7349 = vmax.f32 %v6570, 0.0
      %v7350 = vmax.f32 %v6572, 0.0
      %v7351 = vmax.f32 %v7019, 0.0
      %v7352 = vmax.f32 %v7021, 0.0
      %v7353 = vmax.f32 %v6576, 0.0
      %v7354 = vmax.f32 %v6578, 0.0
      %v7355 = vmax.f32 %v7025, 0.0
      %v7356 = vmax.f32 %v7027, 0.0
      %v7357 = vmax.f32 %v6582, 0.0
      %v7358 = vmax.f32 %v6584, 0.0
      %v7359 = vmax.f32 %v7031, 0.0
      %v7360 = vmax.f32 %v7033, 0.0
      %v7361 = vmax.f32 %v6588, 0.0
      %v7362 = vmax.f32 %v6590, 0.0
      %v7363 = vmax.f32 %v7037, 0.0
      %v7364 = vmax.f32 %v7039, 0.0
      %v7365 = vmax.f32 %v6594, 0.0
      %v7366 = vmax.f32 %v6596, 0.0
      %v7367 = vmax.f32 %v7043, 0.0
      %v7368 = vmax.f32 %v7045, 0.0
      %v7369 = vmax.f32 %v6600, 0.0
      %v7370 = vmax.f32 %v6602, 0.0
      %v7371 = vmax.f32 %v7049, 0.0
      %v7372 = vmax.f32 %v7051, 0.0
      %v7373 = vmax.f32 %v6606, 0.0
      %v7374 = vmax.f32 %v6608, 0.0
      %v7375 = vmax.f32 %v7055, 0.0
      %v7376 = vmax.f32 %v7057, 0.0
      %v7377 = vmax.f32 %v6612, 0.0
      %v7378 = vmax.f32 %v6614, 0.0
      %v7379 = vmax.f32 %v7061, 0.0
      %v7380 = vmax.f32 %v7063, 0.0
      %v7381 = vmax.f32 %v6618, 0.0
      %v7382 = vmax.f32 %v6620, 0.0
      %v7383 = vmax.f32 %v7067, 0.0
      %v7384 = vmax.f32 %v7069, 0.0
      %v7385 = vmax.f32 %v6624, 0.0
      %v7386 = vmax.f32 %v6626, 0.0
      %v7387 = vmax.f32 %v7073, 0.0
      %v7388 = vmax.f32 %v7075, 0.0
      %v7389 = vmax.f32 %v6630, 0.0
      %v7390 = vmax.f32 %v6632, 0.0
      %v7391 = vmax.f32 %v7079, 0.0
      %v7392 = vmax.f32 %v7081, 0.0
      %v7393 = vmax.f32 %v6636, 0.0
      %v7394 = vmax.f32 %v6638, 0.0
      %v7395 = vmax.f32 %v7085, 0.0
      %v7396 = vmax.f32 %v7087, 0.0
      %v7397 = vmax.f32 %v6642, 0.0
      %v7398 = vmax.f32 %v6644, 0.0
      %v7399 = vmax.f32 %v7091, 0.0
      %v7400 = vmax.f32 %v7093, 0.0
      %v7401 = vmax.f32 %v6648, 0.0
      %v7402 = vmax.f32 %v6650, 0.0
      %v7403 = vmax.f32 %v7097, 0.0
      %v7404 = vmax.f32 %v7099, 0.0
      %v7405 = vmax.f32 %v6654, 0.0
      %v7406 = vmax.f32 %v6656, 0.0
      %v7407 = vmax.f32 %v7103, 0.0
      %v7408 = vmax.f32 %v7105, 0.0
      %v7409 = vmax.f32 %v6660, 0.0
      %v7410 = vmax.f32 %v6662, 0.0
      %v7411 = vmax.f32 %v7109, 0.0
      %v7412 = vmax.f32 %v7111, 0.0
      %v7413 = vmax.f32 %v6666, 0.0
      %v7414 = vmax.f32 %v6668, 0.0
      %v7415 = vmax.f32 %v7115, 0.0
      %v7416 = vmax.f32 %v7117, 0.0
      %v7417 = vmax.f32 %v6672, 0.0
      %v7418 = vmax.f32 %v6674, 0.0
      %v7419 = vmax.f32 %v7121, 0.0
      %v7420 = vmax.f32 %v7123, 0.0
      %v7421 = vmax.f32 %v6678, 0.0
      %v7422 = vmax.f32 %v6680, 0.0
      %v7423 = vmax.f32 %v7127, 0.0
      %v7424 = vmax.f32 %v7129, 0.0
      %v7425 = vmax.f32 %v6684, 0.0
      %v7426 = vmax.f32 %v6686, 0.0
      %v7427 = vmax.f32 %v7133, 0.0
      %v7428 = vmax.f32 %v7135, 0.0
      %v7429 = vmax.f32 %v6690, 0.0
      %v7430 = vmax.f32 %v6692, 0.0
      %v7431 = vmax.f32 %v7139, 0.0
      %v7432 = vmax.f32 %v7141, 0.0
      %v7433 = vmax.f32 %v6696, 0.0
      %v7434 = vmax.f32 %v6698, 0.0
      %v7435 = vmax.f32 %v7145, 0.0
      %v7436 = vmax.f32 %v7147, 0.0
      %v7437 = vmax.f32 %v6702, 0.0
      %v7438 = vmax.f32 %v6704, 0.0
      %v7439 = vmax.f32 %v7151, 0.0
      %v7440 = vmax.f32 %v7153, 0.0
      %v7441 = vmax.f32 %v6708, 0.0
      %v7442 = vmax.f32 %v6710, 0.0
      %v7443 = vmax.f32 %v7157, 0.0
      %v7444 = vmax.f32 %v7159, 0.0
      %v7445 = vmax.f32 %v6714, 0.0
      %v7446 = vmax.f32 %v6716, 0.0
      %v7447 = vmax.f32 %v7163, 0.0
      %v7448 = vmax.f32 %v7165, 0.0
      %v7449 = vmax.f32 %v6720, 0.0
      %v7450 = vmax.f32 %v6722, 0.0
      %v7451 = vmax.f32 %v7169, 0.0
      %v7452 = vmax.f32 %v7171, 0.0
      %v7453 = vmax.f32 %v6726, 0.0
      %v7454 = vmax.f32 %v6728, 0.0
      %v7455 = vmax.f32 %v7175, 0.0
      %v7456 = vmax.f32 %v7177, 0.0
      %v7457 = vmax.f32 %v6732, 0.0
      %v7458 = vmax.f32 %v6734, 0.0
      %v7459 = vmax.f32 %v7181, 0.0
      %v7460 = vmax.f32 %v7183, 0.0
      %v7461 = vmax.f32 %v6738, 0.0
      %v7462 = vmax.f32 %v6740, 0.0
      %v7463 = vmax.f32 %v7187, 0.0
      %v7464 = vmax.f32 %v7189, 0.0
      %v7465 = vmax.f32 %v6744, 0.0
      %v7466 = vmax.f32 %v6746, 0.0
      %v7467 = vmax.f32 %v7193, 0.0
      %v7468 = vmax.f32 %v7195, 0.0
      %v7469 = vmax.f32 %v6750, 0.0
      %v7470 = vmax.f32 %v6752, 0.0
      %v7471 = vmax.f32 %v7199, 0.0
      %v7472 = vmax.f32 %v7201, 0.0
      %v7473 = vmax.f32 %v6756, 0.0
      %v7474 = vmax.f32 %v6758, 0.0
      %v7475 = vmax.f32 %v7205, 0.0
      %v7476 = vmax.f32 %v7207, 0.0
      %v7477 = vmax.f32 %v6762, 0.0
      %v7478 = vmax.f32 %v6764, 0.0
      %v7479 = vmax.f32 %v7211, 0.0
      %v7480 = vmax.f32 %v7213, 0.0
      %v7481 = vmax.f32 %v6768, 0.0
      %v7482 = vmax.f32 %v6770, 0.0
      %v7483 = vmax.f32 %v7217, 0.0
      %v7484 = vmax.f32 %v7219, 0.0
      %v7485 = vmax.f32 %v6774, 0.0
      %v7486 = vmax.f32 %v6776, 0.0
      %v7487 = vmax.f32 %v7223, 0.0
      %v7488 = vmax.f32 %v7225, 0.0
      %v7489 = vmax.f32 %v6780, 0.0
      %v7490 = vmax.f32 %v6782, 0.0
      %v7491 = vmax.f32 %v7229, 0.0
      %v7492 = vmax.f32 %v7231, 0.0
      %v7493 = vmax.f32 %v6786, 0.0
      %v7494 = vmax.f32 %v6788, 0.0
      %v7495 = vmax.f32 %v7235, 0.0
      %v7496 = vmax.f32 %v7237, 0.0
      %v7497 = vmax.f32 %v6792, 0.0
      %v7498 = vmax.f32 %v6794, 0.0
      %v7499 = vmax.f32 %v7241, 0.0
      %v7500 = vmax.f32 %v7243, 0.0
      %v7501 = vld [vmem:[%s7] sm:$0xff]
      %v7502 = vld [vmem:[%s7 + $0x8] sm:$0xff]
      %v7503 = vld [vmem:[%s7 + $0x10] sm:$0xff]
      %v7504 = vld [vmem:[%s7 + $0x18] sm:$0xff]
      %v7505 = vld [vmem:[%s7 + $0x20] sm:$0xff]
      %v7506 = vld [vmem:[%s7 + $0x28] sm:$0xff]
      %v7507 = vld [vmem:[%s7 + $0x30] sm:$0xff]
      %v7508 = vld [vmem:[%s7 + $0x38] sm:$0xff]
      %v7509 = vld [vmem:[%s7 + $0x40] sm:$0xff]
      %v7510 = vld [vmem:[%s7 + $0x48] sm:$0xff]
      %v7511 = vld [vmem:[%s7 + $0x50] sm:$0xff]
      %v7512 = vld [vmem:[%s7 + $0x58] sm:$0xff]
      %v7513 = vld [vmem:[%s7 + $0x60] sm:$0xff]
      %v7514 = vld [vmem:[%s7 + $0x68] sm:$0xff]
      %v7515 = vld [vmem:[%s7 + $0x70] sm:$0xff]
      %v7516 = vld [vmem:[%s7 + $0x78] sm:$0xff]
      %v7517 = vld [vmem:[%s7 + $0x80] sm:$0xff]
      %v7518 = vld [vmem:[%s7 + $0x88] sm:$0xff]
      %v7519 = vld [vmem:[%s7 + $0x90] sm:$0xff]
      %v7520 = vld [vmem:[%s7 + $0x98] sm:$0xff]
      %v7521 = vld [vmem:[%s7 + $0xa0] sm:$0xff]
      %v7522 = vld [vmem:[%s7 + $0xa8] sm:$0xff]
      %v7523 = vld [vmem:[%s7 + $0xb0] sm:$0xff]
      %v7524 = vld [vmem:[%s7 + $0xb8] sm:$0xff]
      %v7525 = vld [vmem:[%s7 + $0xc0] sm:$0xff]
      %v7526 = vld [vmem:[%s7 + $0xc8] sm:$0xff]
      %v7527 = vld [vmem:[%s7 + $0xd0] sm:$0xff]
      %v7528 = vld [vmem:[%s7 + $0xd8] sm:$0xff]
      %v7529 = vld [vmem:[%s7 + $0xe0] sm:$0xff]
      %v7530 = vld [vmem:[%s7 + $0xe8] sm:$0xff]
      %v7531 = vld [vmem:[%s7 + $0xf0] sm:$0xff]
      %v7532 = vld [vmem:[%s7 + $0xf8] sm:$0xff]
      %v7533 = vld [vmem:[%s7 + $0x100] sm:$0xff]
      %v7534 = vld [vmem:[%s7 + $0x108] sm:$0xff]
      %v7535 = vld [vmem:[%s7 + $0x110] sm:$0xff]
      %v7536 = vld [vmem:[%s7 + $0x118] sm:$0xff]
      %v7537 = vld [vmem:[%s7 + $0x120] sm:$0xff]
      %v7538 = vld [vmem:[%s7 + $0x128] sm:$0xff]
      %v7539 = vld [vmem:[%s7 + $0x130] sm:$0xff]
      %v7540 = vld [vmem:[%s7 + $0x138] sm:$0xff]
      %v7541 = vld [vmem:[%s7 + $0x140] sm:$0xff]
      %v7542 = vld [vmem:[%s7 + $0x148] sm:$0xff]
      %v7543 = vld [vmem:[%s7 + $0x150] sm:$0xff]
      %v7544 = vld [vmem:[%s7 + $0x158] sm:$0xff]
      %v7545 = vld [vmem:[%s7 + $0x160] sm:$0xff]
      %v7546 = vld [vmem:[%s7 + $0x168] sm:$0xff]
      %v7547 = vld [vmem:[%s7 + $0x170] sm:$0xff]
      %v7548 = vld [vmem:[%s7 + $0x178] sm:$0xff]
      %v7549 = vld [vmem:[%s7 + $0x180] sm:$0xff]
      %v7550 = vld [vmem:[%s7 + $0x188] sm:$0xff]
      %v7551 = vld [vmem:[%s7 + $0x190] sm:$0xff]
      %v7552 = vld [vmem:[%s7 + $0x198] sm:$0xff]
      %v7553 = vld [vmem:[%s7 + $0x1a0] sm:$0xff]
      %v7554 = vld [vmem:[%s7 + $0x1a8] sm:$0xff]
      %v7555 = vld [vmem:[%s7 + $0x1b0] sm:$0xff]
      %v7556 = vld [vmem:[%s7 + $0x1b8] sm:$0xff]
      %v7557 = vld [vmem:[%s7 + $0x1c0] sm:$0xff]
      %v7558 = vld [vmem:[%s7 + $0x1c8] sm:$0xff]
      %v7559 = vld [vmem:[%s7 + $0x1d0] sm:$0xff]
      %v7560 = vld [vmem:[%s7 + $0x1d8] sm:$0xff]
      %v7561 = vld [vmem:[%s7 + $0x1e0] sm:$0xff]
      %v7562 = vld [vmem:[%s7 + $0x1e8] sm:$0xff]
      %v7563 = vld [vmem:[%s7 + $0x1f0] sm:$0xff]
      %v7564 = vld [vmem:[%s7 + $0x1f8] sm:$0xff]
      %7565 = vmatprep.subr.mxu0 0.0
      %7566 = vmatpush1.msra.mxu0 %v7501
      %7567 = vmatprep.subr.mxu0 0.0
      %7568 = vmatpush1.msra.mxu0 %v7502
      %7569 = vmatprep.subr.mxu0 0.0
      %7570 = vmatpush1.msra.mxu0 %v7503
      %7571 = vmatprep.subr.mxu0 0.0
      %7572 = vmatpush1.msra.mxu0 %v7504
      %7573 = vmatprep.subr.mxu0 0.0
      %7574 = vmatpush1.msra.mxu0 %v7505
      %7575 = vmatprep.subr.mxu0 0.0
      %7576 = vmatpush1.msra.mxu0 %v7506
      %7577 = vmatprep.subr.mxu0 0.0
      %7578 = vmatpush1.msra.mxu0 %v7507
      %7579 = vmatprep.subr.mxu0 0.0
      %7580 = vmatpush1.msra.mxu0 %v7508
      %7581 = vmatprep.subr.mxu0 0.0
      %7582 = vmatpush1.msra.mxu0 %v7509
      %7583 = vmatprep.subr.mxu0 0.0
      %7584 = vmatpush1.msra.mxu0 %v7510
      %7585 = vmatprep.subr.mxu0 0.0
      %7586 = vmatpush1.msra.mxu0 %v7511
      %7587 = vmatprep.subr.mxu0 0.0
      %7588 = vmatpush1.msra.mxu0 %v7512
      %7589 = vmatprep.subr.mxu0 0.0
      %7590 = vmatpush1.msra.mxu0 %v7513
      %7591 = vmatprep.subr.mxu0 0.0
      %7592 = vmatpush1.msra.mxu0 %v7514
      %7593 = vmatprep.subr.mxu0 0.0
      %7594 = vmatpush1.msra.mxu0 %v7515
      %7595 = vmatprep.subr.mxu0 0.0
      %7596 = vmatpush1.msra.mxu0 %v7516
      %7597 = vmatprep.subr.mxu0 0.0
      %7598 = vmatpush1.msra.mxu0 %v7517
      %7599 = vmatprep.subr.mxu0 0.0
      %7600 = vmatpush1.msra.mxu0 %v7518
      %7601 = vmatprep.subr.mxu0 0.0
      %7602 = vmatpush1.msra.mxu0 %v7519
      %7603 = vmatprep.subr.mxu0 0.0
      %7604 = vmatpush1.msra.mxu0 %v7520
      %7605 = vmatprep.subr.mxu0 0.0
      %7606 = vmatpush1.msra.mxu0 %v7521
      %7607 = vmatprep.subr.mxu0 0.0
      %7608 = vmatpush1.msra.mxu0 %v7522
      %7609 = vmatprep.subr.mxu0 0.0
      %7610 = vmatpush1.msra.mxu0 %v7523
      %7611 = vmatprep.subr.mxu0 0.0
      %7612 = vmatpush1.msra.mxu0 %v7524
      %7613 = vmatprep.subr.mxu0 0.0
      %7614 = vmatpush1.msra.mxu0 %v7525
      %7615 = vmatprep.subr.mxu0 0.0
      %7616 = vmatpush1.msra.mxu0 %v7526
      %7617 = vmatprep.subr.mxu0 0.0
      %7618 = vmatpush1.msra.mxu0 %v7527
      %7619 = vmatprep.subr.mxu0 0.0
      %7620 = vmatpush1.msra.mxu0 %v7528
      %7621 = vmatprep.subr.mxu0 0.0
      %7622 = vmatpush1.msra.mxu0 %v7529
      %7623 = vmatprep.subr.mxu0 0.0
      %7624 = vmatpush1.msra.mxu0 %v7530
      %7625 = vmatprep.subr.mxu0 0.0
      %7626 = vmatpush1.msra.mxu0 %v7531
      %7627 = vmatprep.subr.mxu0 0.0
      %7628 = vmatpush1.msra.mxu0 %v7532
      %7629 = vmatprep.mubr.f32.mxu0 %v7246
      %7630 = vmatmul.mubr.f32.gmra.mrb[0].mxu0 %v7245
      %v7631 = vpop.f32.mrb[0].mxu0
      %v7632 = vadd.f32 %v6059, %v7631
      %v7633 = vpop.f32.mrb[0].mxu0
      %7634 = vmatprep.mubr.f32.mxu0 %v7250
      %7635 = vmatmul.mubr.f32.gmra.mrb[0].mxu0 %v7249
      %v7636 = vpop.f32.mrb[0].mxu0
      %v7637 = vadd.f32 %v6060, %v7636
      %v7638 = vpop.f32.mrb[0].mxu0
      %7639 = vmatprep.mubr.f32.mxu0 %v7254
      %7640 = vmatmul.mubr.f32.gmra.mrb[0].mxu0 %v7253
      %v7641 = vpop.f32.mrb[0].mxu0
      %v7642 = vadd.f32 %v6061, %v7641
      %v7643 = vpop.f32.mrb[0].mxu0
      %7644 = vmatprep.mubr.f32.mxu0 %v7258
      %7645 = vmatmul.mubr.f32.gmra.mrb[0].mxu0 %v7257
      %v7646 = vpop.f32.mrb[0].mxu0
      %v7647 = vadd.f32 %v6062, %v7646
      %v7648 = vpop.f32.mrb[0].mxu0
      %7649 = vmatprep.mubr.f32.mxu0 %v7262
      %7650 = vmatmul.mubr.f32.gmra.mrb[0].mxu0 %v7261
      %v7651 = vpop.f32.mrb[0].mxu0
      %v7652 = vadd.f32 %v6063, %v7651
      %v7653 = vpop.f32.mrb[0].mxu0
      %7654 = vmatprep.mubr.f32.mxu0 %v7266
      %7655 = vmatmul.mubr.f32.gmra.mrb[0].mxu0 %v7265
      %v7656 = vpop.f32.mrb[0].mxu0
      %v7657 = vadd.f32 %v6064, %v7656
      %v7658 = vpop.f32.mrb[0].mxu0
      %7659 = vmatprep.mubr.f32.mxu0 %v7270
      %7660 = vmatmul.mubr.f32.gmra.mrb[0].mxu0 %v7269
      %v7661 = vpop.f32.mrb[0].mxu0
      %v7662 = vadd.f32 %v6065, %v7661
      %v7663 = vpop.f32.mrb[0].mxu0
      %7664 = vmatprep.mubr.f32.mxu0 %v7274
      %7665 = vmatmul.mubr.f32.gmra.mrb[0].mxu0 %v7273
      %v7666 = vpop.f32.mrb[0].mxu0
      %v7667 = vadd.f32 %v6066, %v7666
      %v7668 = vpop.f32.mrb[0].mxu0
      %7669 = vmatprep.mubr.f32.mxu0 %v7278
      %7670 = vmatmul.mubr.f32.gmra.mrb[0].mxu0 %v7277
      %v7671 = vpop.f32.mrb[0].mxu0
      %v7672 = vadd.f32 %v6067, %v7671
      %v7673 = vpop.f32.mrb[0].mxu0
      %7674 = vmatprep.mubr.f32.mxu0 %v7282
      %7675 = vmatmul.mubr.f32.gmra.mrb[0].mxu0 %v7281
      %v7676 = vpop.f32.mrb[0].mxu0
      %v7677 = vadd.f32 %v6068, %v7676
      %v7678 = vpop.f32.mrb[0].mxu0
      %7679 = vmatprep.mubr.f32.mxu0 %v7286
      %7680 = vmatmul.mubr.f32.gmra.mrb[0].mxu0 %v7285
      %v7681 = vpop.f32.mrb[0].mxu0
      %v7682 = vadd.f32 %v6069, %v7681
      %v7683 = vpop.f32.mrb[0].mxu0
      %7684 = vmatprep.mubr.f32.mxu0 %v7290
      %7685 = vmatmul.mubr.f32.gmra.mrb[0].mxu0 %v7289
      %v7686 = vpop.f32.mrb[0].mxu0
      %v7687 = vadd.f32 %v6070, %v7686
      %v7688 = vpop.f32.mrb[0].mxu0
      %7689 = vmatprep.mubr.f32.mxu0 %v7294
      %7690 = vmatmul.mubr.f32.gmra.mrb[0].mxu0 %v7293
      %v7691 = vpop.f32.mrb[0].mxu0
      %v7692 = vadd.f32 %v6071, %v7691
      %v7693 = vpop.f32.mrb[0].mxu0
      %7694 = vmatprep.mubr.f32.mxu0 %v7298
      %7695 = vmatmul.mubr.f32.gmra.mrb[0].mxu0 %v7297
      %v7696 = vpop.f32.mrb[0].mxu0
      %v7697 = vadd.f32 %v6072, %v7696
      %v7698 = vpop.f32.mrb[0].mxu0
      %7699 = vmatprep.mubr.f32.mxu0 %v7302
      %7700 = vmatmul.mubr.f32.gmra.mrb[0].mxu0 %v7301
      %v7701 = vpop.f32.mrb[0].mxu0
      %v7702 = vadd.f32 %v6073, %v7701
      %v7703 = vpop.f32.mrb[0].mxu0
      %7704 = vmatprep.mubr.f32.mxu0 %v7306
      %7705 = vmatmul.mubr.f32.gmra.mrb[0].mxu0 %v7305
      %v7706 = vpop.f32.mrb[0].mxu0
      %v7707 = vadd.f32 %v6074, %v7706
      %v7708 = vpop.f32.mrb[0].mxu0
      %7709 = vmatprep.mubr.f32.mxu0 %v7310
      %7710 = vmatmul.mubr.f32.gmra.mrb[0].mxu0 %v7309
      %v7711 = vpop.f32.mrb[0].mxu0
      %v7712 = vadd.f32 %v6075, %v7711
      %v7713 = vpop.f32.mrb[0].mxu0
      %7714 = vmatprep.mubr.f32.mxu0 %v7314
      %7715 = vmatmul.mubr.f32.gmra.mrb[0].mxu0 %v7313
      %v7716 = vpop.f32.mrb[0].mxu0
      %v7717 = vadd.f32 %v6076, %v7716
      %v7718 = vpop.f32.mrb[0].mxu0
      %7719 = vmatprep.mubr.f32.mxu0 %v7318
      %7720 = vmatmul.mubr.f32.gmra.mrb[0].mxu0 %v7317
      %v7721 = vpop.f32.mrb[0].mxu0
      %v7722 = vadd.f32 %v6077, %v7721
      %v7723 = vpop.f32.mrb[0].mxu0
      %7724 = vmatprep.mubr.f32.mxu0 %v7322
      %7725 = vmatmul.mubr.f32.gmra.mrb[0].mxu0 %v7321
      %v7726 = vpop.f32.mrb[0].mxu0
      %v7727 = vadd.f32 %v6078, %v7726
      %v7728 = vpop.f32.mrb[0].mxu0
      %7729 = vmatprep.mubr.f32.mxu0 %v7326
      %7730 = vmatmul.mubr.f32.gmra.mrb[0].mxu0 %v7325
      %v7731 = vpop.f32.mrb[0].mxu0
      %v7732 = vadd.f32 %v6079, %v7731
      %v7733 = vpop.f32.mrb[0].mxu0
      %7734 = vmatprep.mubr.f32.mxu0 %v7330
      %7735 = vmatmul.mubr.f32.gmra.mrb[0].mxu0 %v7329
      %v7736 = vpop.f32.mrb[0].mxu0
      %v7737 = vadd.f32 %v6080, %v7736
      %v7738 = vpop.f32.mrb[0].mxu0
      %7739 = vmatprep.mubr.f32.mxu0 %v7334
      %7740 = vmatmul.mubr.f32.gmra.mrb[0].mxu0 %v7333
      %v7741 = vpop.f32.mrb[0].mxu0
      %v7742 = vadd.f32 %v6081, %v7741
      %v7743 = vpop.f32.mrb[0].mxu0
      %7744 = vmatprep.mubr.f32.mxu0 %v7338
      %7745 = vmatmul.mubr.f32.gmra.mrb[0].mxu0 %v7337
      %v7746 = vpop.f32.mrb[0].mxu0
      %v7747 = vadd.f32 %v6082, %v7746
      %v7748 = vpop.f32.mrb[0].mxu0
      %7749 = vmatprep.mubr.f32.mxu0 %v7342
      %7750 = vmatmul.mubr.f32.gmra.mrb[0].mxu0 %v7341
      %v7751 = vpop.f32.mrb[0].mxu0
      %v7752 = vadd.f32 %v6083, %v7751
      %v7753 = vpop.f32.mrb[0].mxu0
      %7754 = vmatprep.mubr.f32.mxu0 %v7346
      %7755 = vmatmul.mubr.f32.gmra.mrb[0].mxu0 %v7345
      %v7756 = vpop.f32.mrb[0].mxu0
      %v7757 = vadd.f32 %v6084, %v7756
      %v7758 = vpop.f32.mrb[0].mxu0
      %7759 = vmatprep.mubr.f32.mxu0 %v7350
      %7760 = vmatmul.mubr.f32.gmra.mrb[0].mxu0 %v7349
      %v7761 = vpop.f32.mrb[0].mxu0
      %v7762 = vadd.f32 %v6085, %v7761
      %v7763 = vpop.f32.mrb[0].mxu0
      %7764 = vmatprep.mubr.f32.mxu0 %v7354
      %7765 = vmatmul.mubr.f32.gmra.mrb[0].mxu0 %v7353
      %v7766 = vpop.f32.mrb[0].mxu0
      %v7767 = vadd.f32 %v6086, %v7766
      %v7768 = vpop.f32.mrb[0].mxu0
      %7769 = vmatprep.mubr.f32.mxu0 %v7358
      %7770 = vmatmul.mubr.f32.gmra.mrb[0].mxu0 %v7357
      %v7771 = vpop.f32.mrb[0].mxu0
      %v7772 = vadd.f32 %v6087, %v7771
      %v7773 = vpop.f32.mrb[0].mxu0
      %7774 = vmatprep.mubr.f32.mxu0 %v7362
      %7775 = vmatmul.mubr.f32.gmra.mrb[0].mxu0 %v7361
      %v7776 = vpop.f32.mrb[0].mxu0
      %v7777 = vadd.f32 %v6088, %v7776
      %v7778 = vpop.f32.mrb[0].mxu0
      %7779 = vmatprep.mubr.f32.mxu0 %v7366
      %7780 = vmatmul.mubr.f32.gmra.mrb[0].mxu0 %v7365
      %v7781 = vpop.f32.mrb[0].mxu0
      %v7782 = vadd.f32 %v6089, %v7781
      %v7783 = vpop.f32.mrb[0].mxu0
      %7784 = vmatprep.mubr.f32.mxu0 %v7370
      %7785 = vmatmul.mubr.f32.gmra.mrb[0].mxu0 %v7369
      %v7786 = vpop.f32.mrb[0].mxu0
      %v7787 = vadd.f32 %v6090, %v7786
      %v7788 = vpop.f32.mrb[0].mxu0
      %7789 = vmatprep.mubr.f32.mxu0 %v7374
      %7790 = vmatmul.mubr.f32.gmra.mrb[0].mxu0 %v7373
      %v7791 = vpop.f32.mrb[0].mxu0
      %v7792 = vadd.f32 %v6091, %v7791
      %v7793 = vpop.f32.mrb[0].mxu0
      %7794 = vmatprep.mubr.f32.mxu0 %v7378
      %7795 = vmatmul.mubr.f32.gmra.mrb[0].mxu0 %v7377
      %v7796 = vpop.f32.mrb[0].mxu0
      %v7797 = vadd.f32 %v6092, %v7796
      %v7798 = vpop.f32.mrb[0].mxu0
      %7799 = vmatprep.mubr.f32.mxu0 %v7382
      %7800 = vmatmul.mubr.f32.gmra.mrb[0].mxu0 %v7381
      %v7801 = vpop.f32.mrb[0].mxu0
      %v7802 = vadd.f32 %v6093, %v7801
      %v7803 = vpop.f32.mrb[0].mxu0
      %7804 = vmatprep.mubr.f32.mxu0 %v7386
      %7805 = vmatmul.mubr.f32.gmra.mrb[0].mxu0 %v7385
      %v7806 = vpop.f32.mrb[0].mxu0
      %v7807 = vadd.f32 %v6094, %v7806
      %v7808 = vpop.f32.mrb[0].mxu0
      %7809 = vmatprep.mubr.f32.mxu0 %v7390
      %7810 = vmatmul.mubr.f32.gmra.mrb[0].mxu0 %v7389
      %v7811 = vpop.f32.mrb[0].mxu0
      %v7812 = vadd.f32 %v6095, %v7811
      %v7813 = vpop.f32.mrb[0].mxu0
      %7814 = vmatprep.mubr.f32.mxu0 %v7394
      %7815 = vmatmul.mubr.f32.gmra.mrb[0].mxu0 %v7393
      %v7816 = vpop.f32.mrb[0].mxu0
      %v7817 = vadd.f32 %v6096, %v7816
      %v7818 = vpop.f32.mrb[0].mxu0
      %7819 = vmatprep.mubr.f32.mxu0 %v7398
      %7820 = vmatmul.mubr.f32.gmra.mrb[0].mxu0 %v7397
      %v7821 = vpop.f32.mrb[0].mxu0
      %v7822 = vadd.f32 %v6097, %v7821
      %v7823 = vpop.f32.mrb[0].mxu0
      %7824 = vmatprep.mubr.f32.mxu0 %v7402
      %7825 = vmatmul.mubr.f32.gmra.mrb[0].mxu0 %v7401
      %v7826 = vpop.f32.mrb[0].mxu0
      %v7827 = vadd.f32 %v6098, %v7826
      %v7828 = vpop.f32.mrb[0].mxu0
      %7829 = vmatprep.mubr.f32.mxu0 %v7406
      %7830 = vmatmul.mubr.f32.gmra.mrb[0].mxu0 %v7405
      %v7831 = vpop.f32.mrb[0].mxu0
      %v7832 = vadd.f32 %v6099, %v7831
      %v7833 = vpop.f32.mrb[0].mxu0
      %7834 = vmatprep.mubr.f32.mxu0 %v7410
      %7835 = vmatmul.mubr.f32.gmra.mrb[0].mxu0 %v7409
      %v7836 = vpop.f32.mrb[0].mxu0
      %v7837 = vadd.f32 %v6100, %v7836
      %v7838 = vpop.f32.mrb[0].mxu0
      %7839 = vmatprep.mubr.f32.mxu0 %v7414
      %7840 = vmatmul.mubr.f32.gmra.mrb[0].mxu0 %v7413
      %v7841 = vpop.f32.mrb[0].mxu0
      %v7842 = vadd.f32 %v6101, %v7841
      %v7843 = vpop.f32.mrb[0].mxu0
      %7844 = vmatprep.mubr.f32.mxu0 %v7418
      %7845 = vmatmul.mubr.f32.gmra.mrb[0].mxu0 %v7417
      %v7846 = vpop.f32.mrb[0].mxu0
      %v7847 = vadd.f32 %v6102, %v7846
      %v7848 = vpop.f32.mrb[0].mxu0
      %7849 = vmatprep.mubr.f32.mxu0 %v7422
      %7850 = vmatmul.mubr.f32.gmra.mrb[0].mxu0 %v7421
      %v7851 = vpop.f32.mrb[0].mxu0
      %v7852 = vadd.f32 %v6103, %v7851
      %v7853 = vpop.f32.mrb[0].mxu0
      %7854 = vmatprep.mubr.f32.mxu0 %v7426
      %7855 = vmatmul.mubr.f32.gmra.mrb[0].mxu0 %v7425
      %v7856 = vpop.f32.mrb[0].mxu0
      %v7857 = vadd.f32 %v6104, %v7856
      %v7858 = vpop.f32.mrb[0].mxu0
      %7859 = vmatprep.mubr.f32.mxu0 %v7430
      %7860 = vmatmul.mubr.f32.gmra.mrb[0].mxu0 %v7429
      %v7861 = vpop.f32.mrb[0].mxu0
      %v7862 = vadd.f32 %v6105, %v7861
      %v7863 = vpop.f32.mrb[0].mxu0
      %7864 = vmatprep.mubr.f32.mxu0 %v7434
      %7865 = vmatmul.mubr.f32.gmra.mrb[0].mxu0 %v7433
      %v7866 = vpop.f32.mrb[0].mxu0
      %v7867 = vadd.f32 %v6106, %v7866
      %v7868 = vpop.f32.mrb[0].mxu0
      %7869 = vmatprep.mubr.f32.mxu0 %v7438
      %7870 = vmatmul.mubr.f32.gmra.mrb[0].mxu0 %v7437
      %v7871 = vpop.f32.mrb[0].mxu0
      %v7872 = vadd.f32 %v6107, %v7871
      %v7873 = vpop.f32.mrb[0].mxu0
      %7874 = vmatprep.mubr.f32.mxu0 %v7442
      %7875 = vmatmul.mubr.f32.gmra.mrb[0].mxu0 %v7441
      %v7876 = vpop.f32.mrb[0].mxu0
      %v7877 = vadd.f32 %v6108, %v7876
      %v7878 = vpop.f32.mrb[0].mxu0
      %7879 = vmatprep.mubr.f32.mxu0 %v7446
      %7880 = vmatmul.mubr.f32.gmra.mrb[0].mxu0 %v7445
      %v7881 = vpop.f32.mrb[0].mxu0
      %v7882 = vadd.f32 %v6109, %v7881
      %v7883 = vpop.f32.mrb[0].mxu0
      %7884 = vmatprep.mubr.f32.mxu0 %v7450
      %7885 = vmatmul.mubr.f32.gmra.mrb[0].mxu0 %v7449
      %v7886 = vpop.f32.mrb[0].mxu0
      %v7887 = vadd.f32 %v6110, %v7886
      %v7888 = vpop.f32.mrb[0].mxu0
      %7889 = vmatprep.mubr.f32.mxu0 %v7454
      %7890 = vmatmul.mubr.f32.gmra.mrb[0].mxu0 %v7453
      %v7891 = vpop.f32.mrb[0].mxu0
      %v7892 = vadd.f32 %v6111, %v7891
      %v7893 = vpop.f32.mrb[0].mxu0
      %7894 = vmatprep.mubr.f32.mxu0 %v7458
      %7895 = vmatmul.mubr.f32.gmra.mrb[0].mxu0 %v7457
      %v7896 = vpop.f32.mrb[0].mxu0
      %v7897 = vadd.f32 %v6112, %v7896
      %v7898 = vpop.f32.mrb[0].mxu0
      %7899 = vmatprep.mubr.f32.mxu0 %v7462
      %7900 = vmatmul.mubr.f32.gmra.mrb[0].mxu0 %v7461
      %v7901 = vpop.f32.mrb[0].mxu0
      %v7902 = vadd.f32 %v6113, %v7901
      %v7903 = vpop.f32.mrb[0].mxu0
      %7904 = vmatprep.mubr.f32.mxu0 %v7466
      %7905 = vmatmul.mubr.f32.gmra.mrb[0].mxu0 %v7465
      %v7906 = vpop.f32.mrb[0].mxu0
      %v7907 = vadd.f32 %v6114, %v7906
      %v7908 = vpop.f32.mrb[0].mxu0
      %7909 = vmatprep.mubr.f32.mxu0 %v7470
      %7910 = vmatmul.mubr.f32.gmra.mrb[0].mxu0 %v7469
      %v7911 = vpop.f32.mrb[0].mxu0
      %v7912 = vadd.f32 %v6115, %v7911
      %v7913 = vpop.f32.mrb[0].mxu0
      %7914 = vmatprep.mubr.f32.mxu0 %v7474
      %7915 = vmatmul.mubr.f32.gmra.mrb[0].mxu0 %v7473
      %v7916 = vpop.f32.mrb[0].mxu0
      %v7917 = vadd.f32 %v6116, %v7916
      %v7918 = vpop.f32.mrb[0].mxu0
      %7919 = vmatprep.mubr.f32.mxu0 %v7478
      %7920 = vmatmul.mubr.f32.gmra.mrb[0].mxu0 %v7477
      %v7921 = vpop.f32.mrb[0].mxu0
      %v7922 = vadd.f32 %v6117, %v7921
      %v7923 = vpop.f32.mrb[0].mxu0
      %7924 = vmatprep.mubr.f32.mxu0 %v7482
      %7925 = vmatmul.mubr.f32.gmra.mrb[0].mxu0 %v7481
      %v7926 = vpop.f32.mrb[0].mxu0
      %v7927 = vadd.f32 %v6118, %v7926
      %v7928 = vpop.f32.mrb[0].mxu0
      %7929 = vmatprep.mubr.f32.mxu0 %v7486
      %7930 = vmatmul.mubr.f32.gmra.mrb[0].mxu0 %v7485
      %v7931 = vpop.f32.mrb[0].mxu0
      %v7932 = vadd.f32 %v6119, %v7931
      %v7933 = vpop.f32.mrb[0].mxu0
      %7934 = vmatprep.mubr.f32.mxu0 %v7490
      %7935 = vmatmul.mubr.f32.gmra.mrb[0].mxu0 %v7489
      %v7936 = vpop.f32.mrb[0].mxu0
      %v7937 = vadd.f32 %v6120, %v7936
      %v7938 = vpop.f32.mrb[0].mxu0
      %7939 = vmatprep.mubr.f32.mxu0 %v7494
      %7940 = vmatmul.mubr.f32.gmra.mrb[0].mxu0 %v7493
      %v7941 = vpop.f32.mrb[0].mxu0
      %v7942 = vadd.f32 %v6121, %v7941
      %v7943 = vpop.f32.mrb[0].mxu0
      %7944 = vmatprep.mubr.f32.mxu0 %v7498
      %7945 = vmatmul.mubr.f32.gmra.mrb[0].mxu0 %v7497
      %v7946 = vpop.f32.mrb[0].mxu0
      %v7947 = vadd.f32 %v6122, %v7946
      %v7948 = vpop.f32.mrb[0].mxu0
      %7949 = vdwg.mxu0
      %7950 = vmatprep.subr.mxu0 0.0
      %7951 = vmatpush1.msra.mxu0 %v7533
      %7952 = vmatprep.subr.mxu0 0.0
      %7953 = vmatpush1.msra.mxu0 %v7534
      %7954 = vmatprep.subr.mxu0 0.0
      %7955 = vmatpush1.msra.mxu0 %v7535
      %7956 = vmatprep.subr.mxu0 0.0
      %7957 = vmatpush1.msra.mxu0 %v7536
      %7958 = vmatprep.subr.mxu0 0.0
      %7959 = vmatpush1.msra.mxu0 %v7537
      %7960 = vmatprep.subr.mxu0 0.0
      %7961 = vmatpush1.msra.mxu0 %v7538
      %7962 = vmatprep.subr.mxu0 0.0
      %7963 = vmatpush1.msra.mxu0 %v7539
      %7964 = vmatprep.subr.mxu0 0.0
      %7965 = vmatpush1.msra.mxu0 %v7540
      %7966 = vmatprep.subr.mxu0 0.0
      %7967 = vmatpush1.msra.mxu0 %v7541
      %7968 = vmatprep.subr.mxu0 0.0
      %7969 = vmatpush1.msra.mxu0 %v7542
      %7970 = vmatprep.subr.mxu0 0.0
      %7971 = vmatpush1.msra.mxu0 %v7543
      %7972 = vmatprep.subr.mxu0 0.0
      %7973 = vmatpush1.msra.mxu0 %v7544
      %7974 = vmatprep.subr.mxu0 0.0
      %7975 = vmatpush1.msra.mxu0 %v7545
      %7976 = vmatprep.subr.mxu0 0.0
      %7977 = vmatpush1.msra.mxu0 %v7546
      %7978 = vmatprep.subr.mxu0 0.0
      %7979 = vmatpush1.msra.mxu0 %v7547
      %7980 = vmatprep.subr.mxu0 0.0
      %7981 = vmatpush1.msra.mxu0 %v7548
      %7982 = vmatprep.subr.mxu0 0.0
      %7983 = vmatpush1.msra.mxu0 %v7549
      %7984 = vmatprep.subr.mxu0 0.0
      %7985 = vmatpush1.msra.mxu0 %v7550
      %7986 = vmatprep.subr.mxu0 0.0
      %7987 = vmatpush1.msra.mxu0 %v7551
      %7988 = vmatprep.subr.mxu0 0.0
      %7989 = vmatpush1.msra.mxu0 %v7552
      %7990 = vmatprep.subr.mxu0 0.0
      %7991 = vmatpush1.msra.mxu0 %v7553
      %7992 = vmatprep.subr.mxu0 0.0
      %7993 = vmatpush1.msra.mxu0 %v7554
      %7994 = vmatprep.subr.mxu0 0.0
      %7995 = vmatpush1.msra.mxu0 %v7555
      %7996 = vmatprep.subr.mxu0 0.0
      %7997 = vmatpush1.msra.mxu0 %v7556
      %7998 = vmatprep.subr.mxu0 0.0
      %7999 = vmatpush1.msra.mxu0 %v7557
      %8000 = vmatprep.subr.mxu0 0.0
      %8001 = vmatpush1.msra.mxu0 %v7558
      %8002 = vmatprep.subr.mxu0 0.0
      %8003 = vmatpush1.msra.mxu0 %v7559
      %8004 = vmatprep.subr.mxu0 0.0
      %8005 = vmatpush1.msra.mxu0 %v7560
      %8006 = vmatprep.subr.mxu0 0.0
      %8007 = vmatpush1.msra.mxu0 %v7561
      %8008 = vmatprep.subr.mxu0 0.0
      %8009 = vmatpush1.msra.mxu0 %v7562
      %8010 = vmatprep.subr.mxu0 0.0
      %8011 = vmatpush1.msra.mxu0 %v7563
      %8012 = vmatprep.subr.mxu0 0.0
      %8013 = vmatpush1.msra.mxu0 %v7564
      %8014 = vmatprep.mubr.f32.mxu0 %v7248
      %8015 = vmatmul.mubr.f32.gmra.mrb[0].mxu0 %v7247
      %v8016 = vpop.f32.mrb[0].mxu0
      %v8017 = vadd.f32 %v7632, %v8016
      %v8018 = vpop.f32.mrb[0].mxu0
      %8019 = vmatprep.mubr.f32.mxu0 %v7252
      %8020 = vmatmul.mubr.f32.gmra.mrb[0].mxu0 %v7251
      %v8021 = vpop.f32.mrb[0].mxu0
      %v8022 = vadd.f32 %v7637, %v8021
      %v8023 = vpop.f32.mrb[0].mxu0
      %8024 = vmatprep.mubr.f32.mxu0 %v7256
      %8025 = vmatmul.mubr.f32.gmra.mrb[0].mxu0 %v7255
      %v8026 = vpop.f32.mrb[0].mxu0
      %v8027 = vadd.f32 %v7642, %v8026
      %v8028 = vpop.f32.mrb[0].mxu0
      %8029 = vmatprep.mubr.f32.mxu0 %v7260
      %8030 = vmatmul.mubr.f32.gmra.mrb[0].mxu0 %v7259
      %v8031 = vpop.f32.mrb[0].mxu0
      %v8032 = vadd.f32 %v7647, %v8031
      %v8033 = vpop.f32.mrb[0].mxu0
      %8034 = vmatprep.mubr.f32.mxu0 %v7264
      %8035 = vmatmul.mubr.f32.gmra.mrb[0].mxu0 %v7263
      %v8036 = vpop.f32.mrb[0].mxu0
      %v8037 = vadd.f32 %v7652, %v8036
      %v8038 = vpop.f32.mrb[0].mxu0
      %8039 = vmatprep.mubr.f32.mxu0 %v7268
      %8040 = vmatmul.mubr.f32.gmra.mrb[0].mxu0 %v7267
      %v8041 = vpop.f32.mrb[0].mxu0
      %v8042 = vadd.f32 %v7657, %v8041
      %v8043 = vpop.f32.mrb[0].mxu0
      %8044 = vmatprep.mubr.f32.mxu0 %v7272
      %8045 = vmatmul.mubr.f32.gmra.mrb[0].mxu0 %v7271
      %v8046 = vpop.f32.mrb[0].mxu0
      %v8047 = vadd.f32 %v7662, %v8046
      %v8048 = vpop.f32.mrb[0].mxu0
      %8049 = vmatprep.mubr.f32.mxu0 %v7276
      %8050 = vmatmul.mubr.f32.gmra.mrb[0].mxu0 %v7275
      %v8051 = vpop.f32.mrb[0].mxu0
      %v8052 = vadd.f32 %v7667, %v8051
      %v8053 = vpop.f32.mrb[0].mxu0
      %8054 = vmatprep.mubr.f32.mxu0 %v7280
      %8055 = vmatmul.mubr.f32.gmra.mrb[0].mxu0 %v7279
      %v8056 = vpop.f32.mrb[0].mxu0
      %v8057 = vadd.f32 %v7672, %v8056
      %v8058 = vpop.f32.mrb[0].mxu0
      %8059 = vmatprep.mubr.f32.mxu0 %v7284
      %8060 = vmatmul.mubr.f32.gmra.mrb[0].mxu0 %v7283
      %v8061 = vpop.f32.mrb[0].mxu0
      %v8062 = vadd.f32 %v7677, %v8061
      %v8063 = vpop.f32.mrb[0].mxu0
      %8064 = vmatprep.mubr.f32.mxu0 %v7288
      %8065 = vmatmul.mubr.f32.gmra.mrb[0].mxu0 %v7287
      %v8066 = vpop.f32.mrb[0].mxu0
      %v8067 = vadd.f32 %v7682, %v8066
      %v8068 = vpop.f32.mrb[0].mxu0
      %8069 = vmatprep.mubr.f32.mxu0 %v7292
      %8070 = vmatmul.mubr.f32.gmra.mrb[0].mxu0 %v7291
      %v8071 = vpop.f32.mrb[0].mxu0
      %v8072 = vadd.f32 %v7687, %v8071
      %v8073 = vpop.f32.mrb[0].mxu0
      %8074 = vmatprep.mubr.f32.mxu0 %v7296
      %8075 = vmatmul.mubr.f32.gmra.mrb[0].mxu0 %v7295
      %v8076 = vpop.f32.mrb[0].mxu0
      %v8077 = vadd.f32 %v7692, %v8076
      %v8078 = vpop.f32.mrb[0].mxu0
      %8079 = vmatprep.mubr.f32.mxu0 %v7300
      %8080 = vmatmul.mubr.f32.gmra.mrb[0].mxu0 %v7299
      %v8081 = vpop.f32.mrb[0].mxu0
      %v8082 = vadd.f32 %v7697, %v8081
      %v8083 = vpop.f32.mrb[0].mxu0
      %8084 = vmatprep.mubr.f32.mxu0 %v7304
      %8085 = vmatmul.mubr.f32.gmra.mrb[0].mxu0 %v7303
      %v8086 = vpop.f32.mrb[0].mxu0
      %v8087 = vadd.f32 %v7702, %v8086
      %v8088 = vpop.f32.mrb[0].mxu0
      %8089 = vmatprep.mubr.f32.mxu0 %v7308
      %8090 = vmatmul.mubr.f32.gmra.mrb[0].mxu0 %v7307
      %v8091 = vpop.f32.mrb[0].mxu0
      %v8092 = vadd.f32 %v7707, %v8091
      %v8093 = vpop.f32.mrb[0].mxu0
      %8094 = vmatprep.mubr.f32.mxu0 %v7312
      %8095 = vmatmul.mubr.f32.gmra.mrb[0].mxu0 %v7311
      %v8096 = vpop.f32.mrb[0].mxu0
      %v8097 = vadd.f32 %v7712, %v8096
      %v8098 = vpop.f32.mrb[0].mxu0
      %8099 = vmatprep.mubr.f32.mxu0 %v7316
      %8100 = vmatmul.mubr.f32.gmra.mrb[0].mxu0 %v7315
      %v8101 = vpop.f32.mrb[0].mxu0
      %v8102 = vadd.f32 %v7717, %v8101
      %v8103 = vpop.f32.mrb[0].mxu0
      %8104 = vmatprep.mubr.f32.mxu0 %v7320
      %8105 = vmatmul.mubr.f32.gmra.mrb[0].mxu0 %v7319
      %v8106 = vpop.f32.mrb[0].mxu0
      %v8107 = vadd.f32 %v7722, %v8106
      %v8108 = vpop.f32.mrb[0].mxu0
      %8109 = vmatprep.mubr.f32.mxu0 %v7324
      %8110 = vmatmul.mubr.f32.gmra.mrb[0].mxu0 %v7323
      %v8111 = vpop.f32.mrb[0].mxu0
      %v8112 = vadd.f32 %v7727, %v8111
      %v8113 = vpop.f32.mrb[0].mxu0
      %8114 = vmatprep.mubr.f32.mxu0 %v7328
      %8115 = vmatmul.mubr.f32.gmra.mrb[0].mxu0 %v7327
      %v8116 = vpop.f32.mrb[0].mxu0
      %v8117 = vadd.f32 %v7732, %v8116
      %v8118 = vpop.f32.mrb[0].mxu0
      %8119 = vmatprep.mubr.f32.mxu0 %v7332
      %8120 = vmatmul.mubr.f32.gmra.mrb[0].mxu0 %v7331
      %v8121 = vpop.f32.mrb[0].mxu0
      %v8122 = vadd.f32 %v7737, %v8121
      %v8123 = vpop.f32.mrb[0].mxu0
      %8124 = vmatprep.mubr.f32.mxu0 %v7336
      %8125 = vmatmul.mubr.f32.gmra.mrb[0].mxu0 %v7335
      %v8126 = vpop.f32.mrb[0].mxu0
      %v8127 = vadd.f32 %v7742, %v8126
      %v8128 = vpop.f32.mrb[0].mxu0
      %8129 = vmatprep.mubr.f32.mxu0 %v7340
      %8130 = vmatmul.mubr.f32.gmra.mrb[0].mxu0 %v7339
      %v8131 = vpop.f32.mrb[0].mxu0
      %v8132 = vadd.f32 %v7747, %v8131
      %v8133 = vpop.f32.mrb[0].mxu0
      %8134 = vmatprep.mubr.f32.mxu0 %v7344
      %8135 = vmatmul.mubr.f32.gmra.mrb[0].mxu0 %v7343
      %v8136 = vpop.f32.mrb[0].mxu0
      %v8137 = vadd.f32 %v7752, %v8136
      %v8138 = vpop.f32.mrb[0].mxu0
      %8139 = vmatprep.mubr.f32.mxu0 %v7348
      %8140 = vmatmul.mubr.f32.gmra.mrb[0].mxu0 %v7347
      %v8141 = vpop.f32.mrb[0].mxu0
      %v8142 = vadd.f32 %v7757, %v8141
      %v8143 = vpop.f32.mrb[0].mxu0
      %8144 = vmatprep.mubr.f32.mxu0 %v7352
      %8145 = vmatmul.mubr.f32.gmra.mrb[0].mxu0 %v7351
      %v8146 = vpop.f32.mrb[0].mxu0
      %v8147 = vadd.f32 %v7762, %v8146
      %v8148 = vpop.f32.mrb[0].mxu0
      %8149 = vmatprep.mubr.f32.mxu0 %v7356
      %8150 = vmatmul.mubr.f32.gmra.mrb[0].mxu0 %v7355
      %v8151 = vpop.f32.mrb[0].mxu0
      %v8152 = vadd.f32 %v7767, %v8151
      %v8153 = vpop.f32.mrb[0].mxu0
      %8154 = vmatprep.mubr.f32.mxu0 %v7360
      %8155 = vmatmul.mubr.f32.gmra.mrb[0].mxu0 %v7359
      %v8156 = vpop.f32.mrb[0].mxu0
      %v8157 = vadd.f32 %v7772, %v8156
      %v8158 = vpop.f32.mrb[0].mxu0
      %8159 = vmatprep.mubr.f32.mxu0 %v7364
      %8160 = vmatmul.mubr.f32.gmra.mrb[0].mxu0 %v7363
      %v8161 = vpop.f32.mrb[0].mxu0
      %v8162 = vadd.f32 %v7777, %v8161
      %v8163 = vpop.f32.mrb[0].mxu0
      %8164 = vmatprep.mubr.f32.mxu0 %v7368
      %8165 = vmatmul.mubr.f32.gmra.mrb[0].mxu0 %v7367
      %v8166 = vpop.f32.mrb[0].mxu0
      %v8167 = vadd.f32 %v7782, %v8166
      %v8168 = vpop.f32.mrb[0].mxu0
      %8169 = vmatprep.mubr.f32.mxu0 %v7372
      %8170 = vmatmul.mubr.f32.gmra.mrb[0].mxu0 %v7371
      %v8171 = vpop.f32.mrb[0].mxu0
      %v8172 = vadd.f32 %v7787, %v8171
      %v8173 = vpop.f32.mrb[0].mxu0
      %8174 = vmatprep.mubr.f32.mxu0 %v7376
      %8175 = vmatmul.mubr.f32.gmra.mrb[0].mxu0 %v7375
      %v8176 = vpop.f32.mrb[0].mxu0
      %v8177 = vadd.f32 %v7792, %v8176
      %v8178 = vpop.f32.mrb[0].mxu0
      %8179 = vmatprep.mubr.f32.mxu0 %v7380
      %8180 = vmatmul.mubr.f32.gmra.mrb[0].mxu0 %v7379
      %v8181 = vpop.f32.mrb[0].mxu0
      %v8182 = vadd.f32 %v7797, %v8181
      %v8183 = vpop.f32.mrb[0].mxu0
      %8184 = vmatprep.mubr.f32.mxu0 %v7384
      %8185 = vmatmul.mubr.f32.gmra.mrb[0].mxu0 %v7383
      %v8186 = vpop.f32.mrb[0].mxu0
      %v8187 = vadd.f32 %v7802, %v8186
      %v8188 = vpop.f32.mrb[0].mxu0
      %8189 = vmatprep.mubr.f32.mxu0 %v7388
      %8190 = vmatmul.mubr.f32.gmra.mrb[0].mxu0 %v7387
      %v8191 = vpop.f32.mrb[0].mxu0
      %v8192 = vadd.f32 %v7807, %v8191
      %v8193 = vpop.f32.mrb[0].mxu0
      %8194 = vmatprep.mubr.f32.mxu0 %v7392
      %8195 = vmatmul.mubr.f32.gmra.mrb[0].mxu0 %v7391
      %v8196 = vpop.f32.mrb[0].mxu0
      %v8197 = vadd.f32 %v7812, %v8196
      %v8198 = vpop.f32.mrb[0].mxu0
      %8199 = vmatprep.mubr.f32.mxu0 %v7396
      %8200 = vmatmul.mubr.f32.gmra.mrb[0].mxu0 %v7395
      %v8201 = vpop.f32.mrb[0].mxu0
      %v8202 = vadd.f32 %v7817, %v8201
      %v8203 = vpop.f32.mrb[0].mxu0
      %8204 = vmatprep.mubr.f32.mxu0 %v7400
      %8205 = vmatmul.mubr.f32.gmra.mrb[0].mxu0 %v7399
      %v8206 = vpop.f32.mrb[0].mxu0
      %v8207 = vadd.f32 %v7822, %v8206
      %v8208 = vpop.f32.mrb[0].mxu0
      %8209 = vmatprep.mubr.f32.mxu0 %v7404
      %8210 = vmatmul.mubr.f32.gmra.mrb[0].mxu0 %v7403
      %v8211 = vpop.f32.mrb[0].mxu0
      %v8212 = vadd.f32 %v7827, %v8211
      %v8213 = vpop.f32.mrb[0].mxu0
      %8214 = vmatprep.mubr.f32.mxu0 %v7408
      %8215 = vmatmul.mubr.f32.gmra.mrb[0].mxu0 %v7407
      %v8216 = vpop.f32.mrb[0].mxu0
      %v8217 = vadd.f32 %v7832, %v8216
      %v8218 = vpop.f32.mrb[0].mxu0
      %8219 = vmatprep.mubr.f32.mxu0 %v7412
      %8220 = vmatmul.mubr.f32.gmra.mrb[0].mxu0 %v7411
      %v8221 = vpop.f32.mrb[0].mxu0
      %v8222 = vadd.f32 %v7837, %v8221
      %v8223 = vpop.f32.mrb[0].mxu0
      %8224 = vmatprep.mubr.f32.mxu0 %v7416
      %8225 = vmatmul.mubr.f32.gmra.mrb[0].mxu0 %v7415
      %v8226 = vpop.f32.mrb[0].mxu0
      %v8227 = vadd.f32 %v7842, %v8226
      %v8228 = vpop.f32.mrb[0].mxu0
      %8229 = vmatprep.mubr.f32.mxu0 %v7420
      %8230 = vmatmul.mubr.f32.gmra.mrb[0].mxu0 %v7419
      %v8231 = vpop.f32.mrb[0].mxu0
      %v8232 = vadd.f32 %v7847, %v8231
      %v8233 = vpop.f32.mrb[0].mxu0
      %8234 = vmatprep.mubr.f32.mxu0 %v7424
      %8235 = vmatmul.mubr.f32.gmra.mrb[0].mxu0 %v7423
      %v8236 = vpop.f32.mrb[0].mxu0
      %v8237 = vadd.f32 %v7852, %v8236
      %v8238 = vpop.f32.mrb[0].mxu0
      %8239 = vmatprep.mubr.f32.mxu0 %v7428
      %8240 = vmatmul.mubr.f32.gmra.mrb[0].mxu0 %v7427
      %v8241 = vpop.f32.mrb[0].mxu0
      %v8242 = vadd.f32 %v7857, %v8241
      %v8243 = vpop.f32.mrb[0].mxu0
      %8244 = vmatprep.mubr.f32.mxu0 %v7432
      %8245 = vmatmul.mubr.f32.gmra.mrb[0].mxu0 %v7431
      %v8246 = vpop.f32.mrb[0].mxu0
      %v8247 = vadd.f32 %v7862, %v8246
      %v8248 = vpop.f32.mrb[0].mxu0
      %8249 = vmatprep.mubr.f32.mxu0 %v7436
      %8250 = vmatmul.mubr.f32.gmra.mrb[0].mxu0 %v7435
      %v8251 = vpop.f32.mrb[0].mxu0
      %v8252 = vadd.f32 %v7867, %v8251
      %v8253 = vpop.f32.mrb[0].mxu0
      %8254 = vmatprep.mubr.f32.mxu0 %v7440
      %8255 = vmatmul.mubr.f32.gmra.mrb[0].mxu0 %v7439
      %v8256 = vpop.f32.mrb[0].mxu0
      %v8257 = vadd.f32 %v7872, %v8256
      %v8258 = vpop.f32.mrb[0].mxu0
      %8259 = vmatprep.mubr.f32.mxu0 %v7444
      %8260 = vmatmul.mubr.f32.gmra.mrb[0].mxu0 %v7443
      %v8261 = vpop.f32.mrb[0].mxu0
      %v8262 = vadd.f32 %v7877, %v8261
      %v8263 = vpop.f32.mrb[0].mxu0
      %8264 = vmatprep.mubr.f32.mxu0 %v7448
      %8265 = vmatmul.mubr.f32.gmra.mrb[0].mxu0 %v7447
      %v8266 = vpop.f32.mrb[0].mxu0
      %v8267 = vadd.f32 %v7882, %v8266
      %v8268 = vpop.f32.mrb[0].mxu0
      %8269 = vmatprep.mubr.f32.mxu0 %v7452
      %8270 = vmatmul.mubr.f32.gmra.mrb[0].mxu0 %v7451
      %v8271 = vpop.f32.mrb[0].mxu0
      %v8272 = vadd.f32 %v7887, %v8271
      %v8273 = vpop.f32.mrb[0].mxu0
      %8274 = vmatprep.mubr.f32.mxu0 %v7456
      %8275 = vmatmul.mubr.f32.gmra.mrb[0].mxu0 %v7455
      %v8276 = vpop.f32.mrb[0].mxu0
      %v8277 = vadd.f32 %v7892, %v8276
      %v8278 = vpop.f32.mrb[0].mxu0
      %8279 = vmatprep.mubr.f32.mxu0 %v7460
      %8280 = vmatmul.mubr.f32.gmra.mrb[0].mxu0 %v7459
      %v8281 = vpop.f32.mrb[0].mxu0
      %v8282 = vadd.f32 %v7897, %v8281
      %v8283 = vpop.f32.mrb[0].mxu0
      %8284 = vmatprep.mubr.f32.mxu0 %v7464
      %8285 = vmatmul.mubr.f32.gmra.mrb[0].mxu0 %v7463
      %v8286 = vpop.f32.mrb[0].mxu0
      %v8287 = vadd.f32 %v7902, %v8286
      %v8288 = vpop.f32.mrb[0].mxu0
      %8289 = vmatprep.mubr.f32.mxu0 %v7468
      %8290 = vmatmul.mubr.f32.gmra.mrb[0].mxu0 %v7467
      %v8291 = vpop.f32.mrb[0].mxu0
      %v8292 = vadd.f32 %v7907, %v8291
      %v8293 = vpop.f32.mrb[0].mxu0
      %8294 = vmatprep.mubr.f32.mxu0 %v7472
      %8295 = vmatmul.mubr.f32.gmra.mrb[0].mxu0 %v7471
      %v8296 = vpop.f32.mrb[0].mxu0
      %v8297 = vadd.f32 %v7912, %v8296
      %v8298 = vpop.f32.mrb[0].mxu0
      %8299 = vmatprep.mubr.f32.mxu0 %v7476
      %8300 = vmatmul.mubr.f32.gmra.mrb[0].mxu0 %v7475
      %v8301 = vpop.f32.mrb[0].mxu0
      %v8302 = vadd.f32 %v7917, %v8301
      %v8303 = vpop.f32.mrb[0].mxu0
      %8304 = vmatprep.mubr.f32.mxu0 %v7480
      %8305 = vmatmul.mubr.f32.gmra.mrb[0].mxu0 %v7479
      %v8306 = vpop.f32.mrb[0].mxu0
      %v8307 = vadd.f32 %v7922, %v8306
      %v8308 = vpop.f32.mrb[0].mxu0
      %8309 = vmatprep.mubr.f32.mxu0 %v7484
      %8310 = vmatmul.mubr.f32.gmra.mrb[0].mxu0 %v7483
      %v8311 = vpop.f32.mrb[0].mxu0
      %v8312 = vadd.f32 %v7927, %v8311
      %v8313 = vpop.f32.mrb[0].mxu0
      %8314 = vmatprep.mubr.f32.mxu0 %v7488
      %8315 = vmatmul.mubr.f32.gmra.mrb[0].mxu0 %v7487
      %v8316 = vpop.f32.mrb[0].mxu0
      %v8317 = vadd.f32 %v7932, %v8316
      %v8318 = vpop.f32.mrb[0].mxu0
      %8319 = vmatprep.mubr.f32.mxu0 %v7492
      %8320 = vmatmul.mubr.f32.gmra.mrb[0].mxu0 %v7491
      %v8321 = vpop.f32.mrb[0].mxu0
      %v8322 = vadd.f32 %v7937, %v8321
      %v8323 = vpop.f32.mrb[0].mxu0
      %8324 = vmatprep.mubr.f32.mxu0 %v7496
      %8325 = vmatmul.mubr.f32.gmra.mrb[0].mxu0 %v7495
      %v8326 = vpop.f32.mrb[0].mxu0
      %v8327 = vadd.f32 %v7942, %v8326
      %v8328 = vpop.f32.mrb[0].mxu0
      %8329 = vmatprep.mubr.f32.mxu0 %v7500
      %8330 = vmatmul.mubr.f32.gmra.mrb[0].mxu0 %v7499
      %v8331 = vpop.f32.mrb[0].mxu0
      %v8332 = vadd.f32 %v7947, %v8331
      %v8333 = vpop.f32.mrb[0].mxu0
      %8334 = vdwg.mxu0
      %v8335 = vsel %vm501, %v8017, 0.0
      %8336 = vadd.xlane.f32.xlu0 %v8335
      %v8337 = vpop.xlane.xlu0 %8336
      %v8338 = vsel %vm501, %v8022, 0.0
      %8339 = vadd.xlane.f32.xlu0 %v8338
      %v8340 = vpop.xlane.xlu0 %8339
      %v8341 = vsel %vm501, %v8027, 0.0
      %8342 = vadd.xlane.f32.xlu0 %v8341
      %v8343 = vpop.xlane.xlu0 %8342
      %v8344 = vsel %vm501, %v8032, 0.0
      %8345 = vadd.xlane.f32.xlu0 %v8344
      %v8346 = vpop.xlane.xlu0 %8345
      %v8347 = vsel %vm501, %v8037, 0.0
      %8348 = vadd.xlane.f32.xlu0 %v8347
      %v8349 = vpop.xlane.xlu0 %8348
      %v8350 = vsel %vm501, %v8042, 0.0
      %8351 = vadd.xlane.f32.xlu0 %v8350
      %v8352 = vpop.xlane.xlu0 %8351
      %v8353 = vsel %vm501, %v8047, 0.0
      %8354 = vadd.xlane.f32.xlu0 %v8353
      %v8355 = vpop.xlane.xlu0 %8354
      %v8356 = vsel %vm501, %v8052, 0.0
      %8357 = vadd.xlane.f32.xlu0 %v8356
      %v8358 = vpop.xlane.xlu0 %8357
      %v8359 = vsel %vm501, %v8057, 0.0
      %8360 = vadd.xlane.f32.xlu0 %v8359
      %v8361 = vpop.xlane.xlu0 %8360
      %v8362 = vsel %vm501, %v8062, 0.0
      %8363 = vadd.xlane.f32.xlu0 %v8362
      %v8364 = vpop.xlane.xlu0 %8363
      %v8365 = vsel %vm501, %v8067, 0.0
      %8366 = vadd.xlane.f32.xlu0 %v8365
      %v8367 = vpop.xlane.xlu0 %8366
      %v8368 = vsel %vm501, %v8072, 0.0
      %8369 = vadd.xlane.f32.xlu0 %v8368
      %v8370 = vpop.xlane.xlu0 %8369
      %v8371 = vsel %vm501, %v8077, 0.0
      %8372 = vadd.xlane.f32.xlu0 %v8371
      %v8373 = vpop.xlane.xlu0 %8372
      %v8374 = vsel %vm501, %v8082, 0.0
      %8375 = vadd.xlane.f32.xlu0 %v8374
      %v8376 = vpop.xlane.xlu0 %8375
      %v8377 = vsel %vm501, %v8087, 0.0
      %8378 = vadd.xlane.f32.xlu0 %v8377
      %v8379 = vpop.xlane.xlu0 %8378
      %v8380 = vsel %vm501, %v8092, 0.0
      %8381 = vadd.xlane.f32.xlu0 %v8380
      %v8382 = vpop.xlane.xlu0 %8381
      %v8383 = vsel %vm501, %v8097, 0.0
      %8384 = vadd.xlane.f32.xlu0 %v8383
      %v8385 = vpop.xlane.xlu0 %8384
      %v8386 = vsel %vm501, %v8102, 0.0
      %8387 = vadd.xlane.f32.xlu0 %v8386
      %v8388 = vpop.xlane.xlu0 %8387
      %v8389 = vsel %vm501, %v8107, 0.0
      %8390 = vadd.xlane.f32.xlu0 %v8389
      %v8391 = vpop.xlane.xlu0 %8390
      %v8392 = vsel %vm501, %v8112, 0.0
      %8393 = vadd.xlane.f32.xlu0 %v8392
      %v8394 = vpop.xlane.xlu0 %8393
      %v8395 = vsel %vm501, %v8117, 0.0
      %8396 = vadd.xlane.f32.xlu0 %v8395
      %v8397 = vpop.xlane.xlu0 %8396
      %v8398 = vsel %vm501, %v8122, 0.0
      %8399 = vadd.xlane.f32.xlu0 %v8398
      %v8400 = vpop.xlane.xlu0 %8399
      %v8401 = vsel %vm501, %v8127, 0.0
      %8402 = vadd.xlane.f32.xlu0 %v8401
      %v8403 = vpop.xlane.xlu0 %8402
      %v8404 = vsel %vm501, %v8132, 0.0
      %8405 = vadd.xlane.f32.xlu0 %v8404
      %v8406 = vpop.xlane.xlu0 %8405
      %v8407 = vsel %vm501, %v8137, 0.0
      %8408 = vadd.xlane.f32.xlu0 %v8407
      %v8409 = vpop.xlane.xlu0 %8408
      %v8410 = vsel %vm501, %v8142, 0.0
      %8411 = vadd.xlane.f32.xlu0 %v8410
      %v8412 = vpop.xlane.xlu0 %8411
      %v8413 = vsel %vm501, %v8147, 0.0
      %8414 = vadd.xlane.f32.xlu0 %v8413
      %v8415 = vpop.xlane.xlu0 %8414
      %v8416 = vsel %vm501, %v8152, 0.0
      %8417 = vadd.xlane.f32.xlu0 %v8416
      %v8418 = vpop.xlane.xlu0 %8417
      %v8419 = vsel %vm501, %v8157, 0.0
      %8420 = vadd.xlane.f32.xlu0 %v8419
      %v8421 = vpop.xlane.xlu0 %8420
      %v8422 = vsel %vm501, %v8162, 0.0
      %8423 = vadd.xlane.f32.xlu0 %v8422
      %v8424 = vpop.xlane.xlu0 %8423
      %v8425 = vsel %vm501, %v8167, 0.0
      %8426 = vadd.xlane.f32.xlu0 %v8425
      %v8427 = vpop.xlane.xlu0 %8426
      %v8428 = vsel %vm501, %v8172, 0.0
      %8429 = vadd.xlane.f32.xlu0 %v8428
      %v8430 = vpop.xlane.xlu0 %8429
      %v8431 = vsel %vm501, %v8177, 0.0
      %8432 = vadd.xlane.f32.xlu0 %v8431
      %v8433 = vpop.xlane.xlu0 %8432
      %v8434 = vsel %vm501, %v8182, 0.0
      %8435 = vadd.xlane.f32.xlu0 %v8434
      %v8436 = vpop.xlane.xlu0 %8435
      %v8437 = vsel %vm501, %v8187, 0.0
      %8438 = vadd.xlane.f32.xlu0 %v8437
      %v8439 = vpop.xlane.xlu0 %8438
      %v8440 = vsel %vm501, %v8192, 0.0
      %8441 = vadd.xlane.f32.xlu0 %v8440
      %v8442 = vpop.xlane.xlu0 %8441
      %v8443 = vsel %vm501, %v8197, 0.0
      %8444 = vadd.xlane.f32.xlu0 %v8443
      %v8445 = vpop.xlane.xlu0 %8444
      %v8446 = vsel %vm501, %v8202, 0.0
      %8447 = vadd.xlane.f32.xlu0 %v8446
      %v8448 = vpop.xlane.xlu0 %8447
      %v8449 = vsel %vm501, %v8207, 0.0
      %8450 = vadd.xlane.f32.xlu0 %v8449
      %v8451 = vpop.xlane.xlu0 %8450
      %v8452 = vsel %vm501, %v8212, 0.0
      %8453 = vadd.xlane.f32.xlu0 %v8452
      %v8454 = vpop.xlane.xlu0 %8453
      %v8455 = vsel %vm501, %v8217, 0.0
      %8456 = vadd.xlane.f32.xlu0 %v8455
      %v8457 = vpop.xlane.xlu0 %8456
      %v8458 = vsel %vm501, %v8222, 0.0
      %8459 = vadd.xlane.f32.xlu0 %v8458
      %v8460 = vpop.xlane.xlu0 %8459
      %v8461 = vsel %vm501, %v8227, 0.0
      %8462 = vadd.xlane.f32.xlu0 %v8461
      %v8463 = vpop.xlane.xlu0 %8462
      %v8464 = vsel %vm501, %v8232, 0.0
      %8465 = vadd.xlane.f32.xlu0 %v8464
      %v8466 = vpop.xlane.xlu0 %8465
      %v8467 = vsel %vm501, %v8237, 0.0
      %8468 = vadd.xlane.f32.xlu0 %v8467
      %v8469 = vpop.xlane.xlu0 %8468
      %v8470 = vsel %vm501, %v8242, 0.0
      %8471 = vadd.xlane.f32.xlu0 %v8470
      %v8472 = vpop.xlane.xlu0 %8471
      %v8473 = vsel %vm501, %v8247, 0.0
      %8474 = vadd.xlane.f32.xlu0 %v8473
      %v8475 = vpop.xlane.xlu0 %8474
      %v8476 = vsel %vm501, %v8252, 0.0
      %8477 = vadd.xlane.f32.xlu0 %v8476
      %v8478 = vpop.xlane.xlu0 %8477
      %v8479 = vsel %vm501, %v8257, 0.0
      %8480 = vadd.xlane.f32.xlu0 %v8479
      %v8481 = vpop.xlane.xlu0 %8480
      %v8482 = vsel %vm501, %v8262, 0.0
      %8483 = vadd.xlane.f32.xlu0 %v8482
      %v8484 = vpop.xlane.xlu0 %8483
      %v8485 = vsel %vm501, %v8267, 0.0
      %8486 = vadd.xlane.f32.xlu0 %v8485
      %v8487 = vpop.xlane.xlu0 %8486
      %v8488 = vsel %vm501, %v8272, 0.0
      %8489 = vadd.xlane.f32.xlu0 %v8488
      %v8490 = vpop.xlane.xlu0 %8489
      %v8491 = vsel %vm501, %v8277, 0.0
      %8492 = vadd.xlane.f32.xlu0 %v8491
      %v8493 = vpop.xlane.xlu0 %8492
      %v8494 = vsel %vm501, %v8282, 0.0
      %8495 = vadd.xlane.f32.xlu0 %v8494
      %v8496 = vpop.xlane.xlu0 %8495
      %v8497 = vsel %vm501, %v8287, 0.0
      %8498 = vadd.xlane.f32.xlu0 %v8497
      %v8499 = vpop.xlane.xlu0 %8498
      %v8500 = vsel %vm501, %v8292, 0.0
      %8501 = vadd.xlane.f32.xlu0 %v8500
      %v8502 = vpop.xlane.xlu0 %8501
      %v8503 = vsel %vm501, %v8297, 0.0
      %8504 = vadd.xlane.f32.xlu0 %v8503
      %v8505 = vpop.xlane.xlu0 %8504
      %v8506 = vsel %vm501, %v8302, 0.0
      %8507 = vadd.xlane.f32.xlu0 %v8506
      %v8508 = vpop.xlane.xlu0 %8507
      %v8509 = vsel %vm501, %v8307, 0.0
      %8510 = vadd.xlane.f32.xlu0 %v8509
      %v8511 = vpop.xlane.xlu0 %8510
      %v8512 = vsel %vm501, %v8312, 0.0
      %8513 = vadd.xlane.f32.xlu0 %v8512
      %v8514 = vpop.xlane.xlu0 %8513
      %v8515 = vsel %vm501, %v8317, 0.0
      %8516 = vadd.xlane.f32.xlu0 %v8515
      %v8517 = vpop.xlane.xlu0 %8516
      %v8518 = vsel %vm501, %v8322, 0.0
      %8519 = vadd.xlane.f32.xlu0 %v8518
      %v8520 = vpop.xlane.xlu0 %8519
      %v8521 = vsel %vm501, %v8327, 0.0
      %8522 = vadd.xlane.f32.xlu0 %v8521
      %v8523 = vpop.xlane.xlu0 %8522
      %v8524 = vsel %vm501, %v8332, 0.0
      %8525 = vadd.xlane.f32.xlu0 %v8524
      %v8526 = vpop.xlane.xlu0 %8525
      %v8527 = vmul.f32 %v8337, %v5482
      %v8528 = vmul.f32 %v8340, %v5482
      %v8529 = vmul.f32 %v8343, %v5482
      %v8530 = vmul.f32 %v8346, %v5482
      %v8531 = vmul.f32 %v8349, %v5482
      %v8532 = vmul.f32 %v8352, %v5482
      %v8533 = vmul.f32 %v8355, %v5482
      %v8534 = vmul.f32 %v8358, %v5482
      %v8535 = vmul.f32 %v8361, %v5482
      %v8536 = vmul.f32 %v8364, %v5482
      %v8537 = vmul.f32 %v8367, %v5482
      %v8538 = vmul.f32 %v8370, %v5482
      %v8539 = vmul.f32 %v8373, %v5482
      %v8540 = vmul.f32 %v8376, %v5482
      %v8541 = vmul.f32 %v8379, %v5482
      %v8542 = vmul.f32 %v8382, %v5482
      %v8543 = vmul.f32 %v8385, %v5482
      %v8544 = vmul.f32 %v8388, %v5482
      %v8545 = vmul.f32 %v8391, %v5482
      %v8546 = vmul.f32 %v8394, %v5482
      %v8547 = vmul.f32 %v8397, %v5482
      %v8548 = vmul.f32 %v8400, %v5482
      %v8549 = vmul.f32 %v8403, %v5482
      %v8550 = vmul.f32 %v8406, %v5482
      %v8551 = vmul.f32 %v8409, %v5482
      %v8552 = vmul.f32 %v8412, %v5482
      %v8553 = vmul.f32 %v8415, %v5482
      %v8554 = vmul.f32 %v8418, %v5482
      %v8555 = vmul.f32 %v8421, %v5482
      %v8556 = vmul.f32 %v8424, %v5482
      %v8557 = vmul.f32 %v8427, %v5482
      %v8558 = vmul.f32 %v8430, %v5482
      %v8559 = vmul.f32 %v8433, %v5482
      %v8560 = vmul.f32 %v8436, %v5482
      %v8561 = vmul.f32 %v8439, %v5482
      %v8562 = vmul.f32 %v8442, %v5482
      %v8563 = vmul.f32 %v8445, %v5482
      %v8564 = vmul.f32 %v8448, %v5482
      %v8565 = vmul.f32 %v8451, %v5482
      %v8566 = vmul.f32 %v8454, %v5482
      %v8567 = vmul.f32 %v8457, %v5482
      %v8568 = vmul.f32 %v8460, %v5482
      %v8569 = vmul.f32 %v8463, %v5482
      %v8570 = vmul.f32 %v8466, %v5482
      %v8571 = vmul.f32 %v8469, %v5482
      %v8572 = vmul.f32 %v8472, %v5482
      %v8573 = vmul.f32 %v8475, %v5482
      %v8574 = vmul.f32 %v8478, %v5482
      %v8575 = vmul.f32 %v8481, %v5482
      %v8576 = vmul.f32 %v8484, %v5482
      %v8577 = vmul.f32 %v8487, %v5482
      %v8578 = vmul.f32 %v8490, %v5482
      %v8579 = vmul.f32 %v8493, %v5482
      %v8580 = vmul.f32 %v8496, %v5482
      %v8581 = vmul.f32 %v8499, %v5482
      %v8582 = vmul.f32 %v8502, %v5482
      %v8583 = vmul.f32 %v8505, %v5482
      %v8584 = vmul.f32 %v8508, %v5482
      %v8585 = vmul.f32 %v8511, %v5482
      %v8586 = vmul.f32 %v8514, %v5482
      %v8587 = vmul.f32 %v8517, %v5482
      %v8588 = vmul.f32 %v8520, %v5482
      %v8589 = vmul.f32 %v8523, %v5482
      %v8590 = vmul.f32 %v8526, %v5482
      %v8591 = vsub.f32 %v8017, %v8527
      %v8592 = vsub.f32 %v8022, %v8528
      %v8593 = vsub.f32 %v8027, %v8529
      %v8594 = vsub.f32 %v8032, %v8530
      %v8595 = vsub.f32 %v8037, %v8531
      %v8596 = vsub.f32 %v8042, %v8532
      %v8597 = vsub.f32 %v8047, %v8533
      %v8598 = vsub.f32 %v8052, %v8534
      %v8599 = vsub.f32 %v8057, %v8535
      %v8600 = vsub.f32 %v8062, %v8536
      %v8601 = vsub.f32 %v8067, %v8537
      %v8602 = vsub.f32 %v8072, %v8538
      %v8603 = vsub.f32 %v8077, %v8539
      %v8604 = vsub.f32 %v8082, %v8540
      %v8605 = vsub.f32 %v8087, %v8541
      %v8606 = vsub.f32 %v8092, %v8542
      %v8607 = vsub.f32 %v8097, %v8543
      %v8608 = vsub.f32 %v8102, %v8544
      %v8609 = vsub.f32 %v8107, %v8545
      %v8610 = vsub.f32 %v8112, %v8546
      %v8611 = vsub.f32 %v8117, %v8547
      %v8612 = vsub.f32 %v8122, %v8548
      %v8613 = vsub.f32 %v8127, %v8549
      %v8614 = vsub.f32 %v8132, %v8550
      %v8615 = vsub.f32 %v8137, %v8551
      %v8616 = vsub.f32 %v8142, %v8552
      %v8617 = vsub.f32 %v8147, %v8553
      %v8618 = vsub.f32 %v8152, %v8554
      %v8619 = vsub.f32 %v8157, %v8555
      %v8620 = vsub.f32 %v8162, %v8556
      %v8621 = vsub.f32 %v8167, %v8557
      %v8622 = vsub.f32 %v8172, %v8558
      %v8623 = vsub.f32 %v8177, %v8559
      %v8624 = vsub.f32 %v8182, %v8560
      %v8625 = vsub.f32 %v8187, %v8561
      %v8626 = vsub.f32 %v8192, %v8562
      %v8627 = vsub.f32 %v8197, %v8563
      %v8628 = vsub.f32 %v8202, %v8564
      %v8629 = vsub.f32 %v8207, %v8565
      %v8630 = vsub.f32 %v8212, %v8566
      %v8631 = vsub.f32 %v8217, %v8567
      %v8632 = vsub.f32 %v8222, %v8568
      %v8633 = vsub.f32 %v8227, %v8569
      %v8634 = vsub.f32 %v8232, %v8570
      %v8635 = vsub.f32 %v8237, %v8571
      %v8636 = vsub.f32 %v8242, %v8572
      %v8637 = vsub.f32 %v8247, %v8573
      %v8638 = vsub.f32 %v8252, %v8574
      %v8639 = vsub.f32 %v8257, %v8575
      %v8640 = vsub.f32 %v8262, %v8576
      %v8641 = vsub.f32 %v8267, %v8577
      %v8642 = vsub.f32 %v8272, %v8578
      %v8643 = vsub.f32 %v8277, %v8579
      %v8644 = vsub.f32 %v8282, %v8580
      %v8645 = vsub.f32 %v8287, %v8581
      %v8646 = vsub.f32 %v8292, %v8582
      %v8647 = vsub.f32 %v8297, %v8583
      %v8648 = vsub.f32 %v8302, %v8584
      %v8649 = vsub.f32 %v8307, %v8585
      %v8650 = vsub.f32 %v8312, %v8586
      %v8651 = vsub.f32 %v8317, %v8587
      %v8652 = vsub.f32 %v8322, %v8588
      %v8653 = vsub.f32 %v8327, %v8589
      %v8654 = vsub.f32 %v8332, %v8590
      %v8655 = vmul.f32 %v8591, %v8591
      %v8656 = vmul.f32 %v8592, %v8592
      %v8657 = vmul.f32 %v8593, %v8593
      %v8658 = vmul.f32 %v8594, %v8594
      %v8659 = vmul.f32 %v8595, %v8595
      %v8660 = vmul.f32 %v8596, %v8596
      %v8661 = vmul.f32 %v8597, %v8597
      %v8662 = vmul.f32 %v8598, %v8598
      %v8663 = vmul.f32 %v8599, %v8599
      %v8664 = vmul.f32 %v8600, %v8600
      %v8665 = vmul.f32 %v8601, %v8601
      %v8666 = vmul.f32 %v8602, %v8602
      %v8667 = vmul.f32 %v8603, %v8603
      %v8668 = vmul.f32 %v8604, %v8604
      %v8669 = vmul.f32 %v8605, %v8605
      %v8670 = vmul.f32 %v8606, %v8606
      %v8671 = vmul.f32 %v8607, %v8607
      %v8672 = vmul.f32 %v8608, %v8608
      %v8673 = vmul.f32 %v8609, %v8609
      %v8674 = vmul.f32 %v8610, %v8610
      %v8675 = vmul.f32 %v8611, %v8611
      %v8676 = vmul.f32 %v8612, %v8612
      %v8677 = vmul.f32 %v8613, %v8613
      %v8678 = vmul.f32 %v8614, %v8614
      %v8679 = vmul.f32 %v8615, %v8615
      %v8680 = vmul.f32 %v8616, %v8616
      %v8681 = vmul.f32 %v8617, %v8617
      %v8682 = vmul.f32 %v8618, %v8618
      %v8683 = vmul.f32 %v8619, %v8619
      %v8684 = vmul.f32 %v8620, %v8620
      %v8685 = vmul.f32 %v8621, %v8621
      %v8686 = vmul.f32 %v8622, %v8622
      %v8687 = vmul.f32 %v8623, %v8623
      %v8688 = vmul.f32 %v8624, %v8624
      %v8689 = vmul.f32 %v8625, %v8625
      %v8690 = vmul.f32 %v8626, %v8626
      %v8691 = vmul.f32 %v8627, %v8627
      %v8692 = vmul.f32 %v8628, %v8628
      %v8693 = vmul.f32 %v8629, %v8629
      %v8694 = vmul.f32 %v8630, %v8630
      %v8695 = vmul.f32 %v8631, %v8631
      %v8696 = vmul.f32 %v8632, %v8632
      %v8697 = vmul.f32 %v8633, %v8633
      %v8698 = vmul.f32 %v8634, %v8634
      %v8699 = vmul.f32 %v8635, %v8635
      %v8700 = vmul.f32 %v8636, %v8636
      %v8701 = vmul.f32 %v8637, %v8637
      %v8702 = vmul.f32 %v8638, %v8638
      %v8703 = vmul.f32 %v8639, %v8639
      %v8704 = vmul.f32 %v8640, %v8640
      %v8705 = vmul.f32 %v8641, %v8641
      %v8706 = vmul.f32 %v8642, %v8642
      %v8707 = vmul.f32 %v8643, %v8643
      %v8708 = vmul.f32 %v8644, %v8644
      %v8709 = vmul.f32 %v8645, %v8645
      %v8710 = vmul.f32 %v8646, %v8646
      %v8711 = vmul.f32 %v8647, %v8647
      %v8712 = vmul.f32 %v8648, %v8648
      %v8713 = vmul.f32 %v8649, %v8649
      %v8714 = vmul.f32 %v8650, %v8650
      %v8715 = vmul.f32 %v8651, %v8651
      %v8716 = vmul.f32 %v8652, %v8652
      %v8717 = vmul.f32 %v8653, %v8653
      %v8718 = vmul.f32 %v8654, %v8654
      %v8719 = vsel %vm501, %v8655, 0.0
      %8720 = vadd.xlane.f32.xlu0 %v8719
      %v8721 = vpop.xlane.xlu0 %8720
      %v8722 = vsel %vm501, %v8656, 0.0
      %8723 = vadd.xlane.f32.xlu0 %v8722
      %v8724 = vpop.xlane.xlu0 %8723
      %v8725 = vsel %vm501, %v8657, 0.0
      %8726 = vadd.xlane.f32.xlu0 %v8725
      %v8727 = vpop.xlane.xlu0 %8726
      %v8728 = vsel %vm501, %v8658, 0.0
      %8729 = vadd.xlane.f32.xlu0 %v8728
      %v8730 = vpop.xlane.xlu0 %8729
      %v8731 = vsel %vm501, %v8659, 0.0
      %8732 = vadd.xlane.f32.xlu0 %v8731
      %v8733 = vpop.xlane.xlu0 %8732
      %v8734 = vsel %vm501, %v8660, 0.0
      %8735 = vadd.xlane.f32.xlu0 %v8734
      %v8736 = vpop.xlane.xlu0 %8735
      %v8737 = vsel %vm501, %v8661, 0.0
      %8738 = vadd.xlane.f32.xlu0 %v8737
      %v8739 = vpop.xlane.xlu0 %8738
      %v8740 = vsel %vm501, %v8662, 0.0
      %8741 = vadd.xlane.f32.xlu0 %v8740
      %v8742 = vpop.xlane.xlu0 %8741
      %v8743 = vsel %vm501, %v8663, 0.0
      %8744 = vadd.xlane.f32.xlu0 %v8743
      %v8745 = vpop.xlane.xlu0 %8744
      %v8746 = vsel %vm501, %v8664, 0.0
      %8747 = vadd.xlane.f32.xlu0 %v8746
      %v8748 = vpop.xlane.xlu0 %8747
      %v8749 = vsel %vm501, %v8665, 0.0
      %8750 = vadd.xlane.f32.xlu0 %v8749
      %v8751 = vpop.xlane.xlu0 %8750
      %v8752 = vsel %vm501, %v8666, 0.0
      %8753 = vadd.xlane.f32.xlu0 %v8752
      %v8754 = vpop.xlane.xlu0 %8753
      %v8755 = vsel %vm501, %v8667, 0.0
      %8756 = vadd.xlane.f32.xlu0 %v8755
      %v8757 = vpop.xlane.xlu0 %8756
      %v8758 = vsel %vm501, %v8668, 0.0
      %8759 = vadd.xlane.f32.xlu0 %v8758
      %v8760 = vpop.xlane.xlu0 %8759
      %v8761 = vsel %vm501, %v8669, 0.0
      %8762 = vadd.xlane.f32.xlu0 %v8761
      %v8763 = vpop.xlane.xlu0 %8762
      %v8764 = vsel %vm501, %v8670, 0.0
      %8765 = vadd.xlane.f32.xlu0 %v8764
      %v8766 = vpop.xlane.xlu0 %8765
      %v8767 = vsel %vm501, %v8671, 0.0
      %8768 = vadd.xlane.f32.xlu0 %v8767
      %v8769 = vpop.xlane.xlu0 %8768
      %v8770 = vsel %vm501, %v8672, 0.0
      %8771 = vadd.xlane.f32.xlu0 %v8770
      %v8772 = vpop.xlane.xlu0 %8771
      %v8773 = vsel %vm501, %v8673, 0.0
      %8774 = vadd.xlane.f32.xlu0 %v8773
      %v8775 = vpop.xlane.xlu0 %8774
      %v8776 = vsel %vm501, %v8674, 0.0
      %8777 = vadd.xlane.f32.xlu0 %v8776
      %v8778 = vpop.xlane.xlu0 %8777
      %v8779 = vsel %vm501, %v8675, 0.0
      %8780 = vadd.xlane.f32.xlu0 %v8779
      %v8781 = vpop.xlane.xlu0 %8780
      %v8782 = vsel %vm501, %v8676, 0.0
      %8783 = vadd.xlane.f32.xlu0 %v8782
      %v8784 = vpop.xlane.xlu0 %8783
      %v8785 = vsel %vm501, %v8677, 0.0
      %8786 = vadd.xlane.f32.xlu0 %v8785
      %v8787 = vpop.xlane.xlu0 %8786
      %v8788 = vsel %vm501, %v8678, 0.0
      %8789 = vadd.xlane.f32.xlu0 %v8788
      %v8790 = vpop.xlane.xlu0 %8789
      %v8791 = vsel %vm501, %v8679, 0.0
      %8792 = vadd.xlane.f32.xlu0 %v8791
      %v8793 = vpop.xlane.xlu0 %8792
      %v8794 = vsel %vm501, %v8680, 0.0
      %8795 = vadd.xlane.f32.xlu0 %v8794
      %v8796 = vpop.xlane.xlu0 %8795
      %v8797 = vsel %vm501, %v8681, 0.0
      %8798 = vadd.xlane.f32.xlu0 %v8797
      %v8799 = vpop.xlane.xlu0 %8798
      %v8800 = vsel %vm501, %v8682, 0.0
      %8801 = vadd.xlane.f32.xlu0 %v8800
      %v8802 = vpop.xlane.xlu0 %8801
      %v8803 = vsel %vm501, %v8683, 0.0
      %8804 = vadd.xlane.f32.xlu0 %v8803
      %v8805 = vpop.xlane.xlu0 %8804
      %v8806 = vsel %vm501, %v8684, 0.0
      %8807 = vadd.xlane.f32.xlu0 %v8806
      %v8808 = vpop.xlane.xlu0 %8807
      %v8809 = vsel %vm501, %v8685, 0.0
      %8810 = vadd.xlane.f32.xlu0 %v8809
      %v8811 = vpop.xlane.xlu0 %8810
      %v8812 = vsel %vm501, %v8686, 0.0
      %8813 = vadd.xlane.f32.xlu0 %v8812
      %v8814 = vpop.xlane.xlu0 %8813
      %v8815 = vsel %vm501, %v8687, 0.0
      %8816 = vadd.xlane.f32.xlu0 %v8815
      %v8817 = vpop.xlane.xlu0 %8816
      %v8818 = vsel %vm501, %v8688, 0.0
      %8819 = vadd.xlane.f32.xlu0 %v8818
      %v8820 = vpop.xlane.xlu0 %8819
      %v8821 = vsel %vm501, %v8689, 0.0
      %8822 = vadd.xlane.f32.xlu0 %v8821
      %v8823 = vpop.xlane.xlu0 %8822
      %v8824 = vsel %vm501, %v8690, 0.0
      %8825 = vadd.xlane.f32.xlu0 %v8824
      %v8826 = vpop.xlane.xlu0 %8825
      %v8827 = vsel %vm501, %v8691, 0.0
      %8828 = vadd.xlane.f32.xlu0 %v8827
      %v8829 = vpop.xlane.xlu0 %8828
      %v8830 = vsel %vm501, %v8692, 0.0
      %8831 = vadd.xlane.f32.xlu0 %v8830
      %v8832 = vpop.xlane.xlu0 %8831
      %v8833 = vsel %vm501, %v8693, 0.0
      %8834 = vadd.xlane.f32.xlu0 %v8833
      %v8835 = vpop.xlane.xlu0 %8834
      %v8836 = vsel %vm501, %v8694, 0.0
      %8837 = vadd.xlane.f32.xlu0 %v8836
      %v8838 = vpop.xlane.xlu0 %8837
      %v8839 = vsel %vm501, %v8695, 0.0
      %8840 = vadd.xlane.f32.xlu0 %v8839
      %v8841 = vpop.xlane.xlu0 %8840
      %v8842 = vsel %vm501, %v8696, 0.0
      %8843 = vadd.xlane.f32.xlu0 %v8842
      %v8844 = vpop.xlane.xlu0 %8843
      %v8845 = vsel %vm501, %v8697, 0.0
      %8846 = vadd.xlane.f32.xlu0 %v8845
      %v8847 = vpop.xlane.xlu0 %8846
      %v8848 = vsel %vm501, %v8698, 0.0
      %8849 = vadd.xlane.f32.xlu0 %v8848
      %v8850 = vpop.xlane.xlu0 %8849
      %v8851 = vsel %vm501, %v8699, 0.0
      %8852 = vadd.xlane.f32.xlu0 %v8851
      %v8853 = vpop.xlane.xlu0 %8852
      %v8854 = vsel %vm501, %v8700, 0.0
      %8855 = vadd.xlane.f32.xlu0 %v8854
      %v8856 = vpop.xlane.xlu0 %8855
      %v8857 = vsel %vm501, %v8701, 0.0
      %8858 = vadd.xlane.f32.xlu0 %v8857
      %v8859 = vpop.xlane.xlu0 %8858
      %v8860 = vsel %vm501, %v8702, 0.0
      %8861 = vadd.xlane.f32.xlu0 %v8860
      %v8862 = vpop.xlane.xlu0 %8861
      %v8863 = vsel %vm501, %v8703, 0.0
      %8864 = vadd.xlane.f32.xlu0 %v8863
      %v8865 = vpop.xlane.xlu0 %8864
      %v8866 = vsel %vm501, %v8704, 0.0
      %8867 = vadd.xlane.f32.xlu0 %v8866
      %v8868 = vpop.xlane.xlu0 %8867
      %v8869 = vsel %vm501, %v8705, 0.0
      %8870 = vadd.xlane.f32.xlu0 %v8869
      %v8871 = vpop.xlane.xlu0 %8870
      %v8872 = vsel %vm501, %v8706, 0.0
      %8873 = vadd.xlane.f32.xlu0 %v8872
      %v8874 = vpop.xlane.xlu0 %8873
      %v8875 = vsel %vm501, %v8707, 0.0
      %8876 = vadd.xlane.f32.xlu0 %v8875
      %v8877 = vpop.xlane.xlu0 %8876
      %v8878 = vsel %vm501, %v8708, 0.0
      %8879 = vadd.xlane.f32.xlu0 %v8878
      %v8880 = vpop.xlane.xlu0 %8879
      %v8881 = vsel %vm501, %v8709, 0.0
      %8882 = vadd.xlane.f32.xlu0 %v8881
      %v8883 = vpop.xlane.xlu0 %8882
      %v8884 = vsel %vm501, %v8710, 0.0
      %8885 = vadd.xlane.f32.xlu0 %v8884
      %v8886 = vpop.xlane.xlu0 %8885
      %v8887 = vsel %vm501, %v8711, 0.0
      %8888 = vadd.xlane.f32.xlu0 %v8887
      %v8889 = vpop.xlane.xlu0 %8888
      %v8890 = vsel %vm501, %v8712, 0.0
      %8891 = vadd.xlane.f32.xlu0 %v8890
      %v8892 = vpop.xlane.xlu0 %8891
      %v8893 = vsel %vm501, %v8713, 0.0
      %8894 = vadd.xlane.f32.xlu0 %v8893
      %v8895 = vpop.xlane.xlu0 %8894
      %v8896 = vsel %vm501, %v8714, 0.0
      %8897 = vadd.xlane.f32.xlu0 %v8896
      %v8898 = vpop.xlane.xlu0 %8897
      %v8899 = vsel %vm501, %v8715, 0.0
      %8900 = vadd.xlane.f32.xlu0 %v8899
      %v8901 = vpop.xlane.xlu0 %8900
      %v8902 = vsel %vm501, %v8716, 0.0
      %8903 = vadd.xlane.f32.xlu0 %v8902
      %v8904 = vpop.xlane.xlu0 %8903
      %v8905 = vsel %vm501, %v8717, 0.0
      %8906 = vadd.xlane.f32.xlu0 %v8905
      %v8907 = vpop.xlane.xlu0 %8906
      %v8908 = vsel %vm501, %v8718, 0.0
      %8909 = vadd.xlane.f32.xlu0 %v8908
      %v8910 = vpop.xlane.xlu0 %8909
      %v8911 = vmul.f32 %v8721, %v5482
      %v8912 = vmul.f32 %v8724, %v5482
      %v8913 = vmul.f32 %v8727, %v5482
      %v8914 = vmul.f32 %v8730, %v5482
      %v8915 = vmul.f32 %v8733, %v5482
      %v8916 = vmul.f32 %v8736, %v5482
      %v8917 = vmul.f32 %v8739, %v5482
      %v8918 = vmul.f32 %v8742, %v5482
      %v8919 = vmul.f32 %v8745, %v5482
      %v8920 = vmul.f32 %v8748, %v5482
      %v8921 = vmul.f32 %v8751, %v5482
      %v8922 = vmul.f32 %v8754, %v5482
      %v8923 = vmul.f32 %v8757, %v5482
      %v8924 = vmul.f32 %v8760, %v5482
      %v8925 = vmul.f32 %v8763, %v5482
      %v8926 = vmul.f32 %v8766, %v5482
      %v8927 = vmul.f32 %v8769, %v5482
      %v8928 = vmul.f32 %v8772, %v5482
      %v8929 = vmul.f32 %v8775, %v5482
      %v8930 = vmul.f32 %v8778, %v5482
      %v8931 = vmul.f32 %v8781, %v5482
      %v8932 = vmul.f32 %v8784, %v5482
      %v8933 = vmul.f32 %v8787, %v5482
      %v8934 = vmul.f32 %v8790, %v5482
      %v8935 = vmul.f32 %v8793, %v5482
      %v8936 = vmul.f32 %v8796, %v5482
      %v8937 = vmul.f32 %v8799, %v5482
      %v8938 = vmul.f32 %v8802, %v5482
      %v8939 = vmul.f32 %v8805, %v5482
      %v8940 = vmul.f32 %v8808, %v5482
      %v8941 = vmul.f32 %v8811, %v5482
      %v8942 = vmul.f32 %v8814, %v5482
      %v8943 = vmul.f32 %v8817, %v5482
      %v8944 = vmul.f32 %v8820, %v5482
      %v8945 = vmul.f32 %v8823, %v5482
      %v8946 = vmul.f32 %v8826, %v5482
      %v8947 = vmul.f32 %v8829, %v5482
      %v8948 = vmul.f32 %v8832, %v5482
      %v8949 = vmul.f32 %v8835, %v5482
      %v8950 = vmul.f32 %v8838, %v5482
      %v8951 = vmul.f32 %v8841, %v5482
      %v8952 = vmul.f32 %v8844, %v5482
      %v8953 = vmul.f32 %v8847, %v5482
      %v8954 = vmul.f32 %v8850, %v5482
      %v8955 = vmul.f32 %v8853, %v5482
      %v8956 = vmul.f32 %v8856, %v5482
      %v8957 = vmul.f32 %v8859, %v5482
      %v8958 = vmul.f32 %v8862, %v5482
      %v8959 = vmul.f32 %v8865, %v5482
      %v8960 = vmul.f32 %v8868, %v5482
      %v8961 = vmul.f32 %v8871, %v5482
      %v8962 = vmul.f32 %v8874, %v5482
      %v8963 = vmul.f32 %v8877, %v5482
      %v8964 = vmul.f32 %v8880, %v5482
      %v8965 = vmul.f32 %v8883, %v5482
      %v8966 = vmul.f32 %v8886, %v5482
      %v8967 = vmul.f32 %v8889, %v5482
      %v8968 = vmul.f32 %v8892, %v5482
      %v8969 = vmul.f32 %v8895, %v5482
      %v8970 = vmul.f32 %v8898, %v5482
      %v8971 = vmul.f32 %v8901, %v5482
      %v8972 = vmul.f32 %v8904, %v5482
      %v8973 = vmul.f32 %v8907, %v5482
      %v8974 = vmul.f32 %v8910, %v5482
      %v8975 = vadd.f32 %v8911, 1e-05
      %v8976 = vadd.f32 %v8912, 1e-05
      %v8977 = vadd.f32 %v8913, 1e-05
      %v8978 = vadd.f32 %v8914, 1e-05
      %v8979 = vadd.f32 %v8915, 1e-05
      %v8980 = vadd.f32 %v8916, 1e-05
      %v8981 = vadd.f32 %v8917, 1e-05
      %v8982 = vadd.f32 %v8918, 1e-05
      %v8983 = vadd.f32 %v8919, 1e-05
      %v8984 = vadd.f32 %v8920, 1e-05
      %v8985 = vadd.f32 %v8921, 1e-05
      %v8986 = vadd.f32 %v8922, 1e-05
      %v8987 = vadd.f32 %v8923, 1e-05
      %v8988 = vadd.f32 %v8924, 1e-05
      %v8989 = vadd.f32 %v8925, 1e-05
      %v8990 = vadd.f32 %v8926, 1e-05
      %v8991 = vadd.f32 %v8927, 1e-05
      %v8992 = vadd.f32 %v8928, 1e-05
      %v8993 = vadd.f32 %v8929, 1e-05
      %v8994 = vadd.f32 %v8930, 1e-05
      %v8995 = vadd.f32 %v8931, 1e-05
      %v8996 = vadd.f32 %v8932, 1e-05
      %v8997 = vadd.f32 %v8933, 1e-05
      %v8998 = vadd.f32 %v8934, 1e-05
      %v8999 = vadd.f32 %v8935, 1e-05
      %v9000 = vadd.f32 %v8936, 1e-05
      %v9001 = vadd.f32 %v8937, 1e-05
      %v9002 = vadd.f32 %v8938, 1e-05
      %v9003 = vadd.f32 %v8939, 1e-05
      %v9004 = vadd.f32 %v8940, 1e-05
      %v9005 = vadd.f32 %v8941, 1e-05
      %v9006 = vadd.f32 %v8942, 1e-05
      %v9007 = vadd.f32 %v8943, 1e-05
      %v9008 = vadd.f32 %v8944, 1e-05
      %v9009 = vadd.f32 %v8945, 1e-05
      %v9010 = vadd.f32 %v8946, 1e-05
      %v9011 = vadd.f32 %v8947, 1e-05
      %v9012 = vadd.f32 %v8948, 1e-05
      %v9013 = vadd.f32 %v8949, 1e-05
      %v9014 = vadd.f32 %v8950, 1e-05
      %v9015 = vadd.f32 %v8951, 1e-05
      %v9016 = vadd.f32 %v8952, 1e-05
      %v9017 = vadd.f32 %v8953, 1e-05
      %v9018 = vadd.f32 %v8954, 1e-05
      %v9019 = vadd.f32 %v8955, 1e-05
      %v9020 = vadd.f32 %v8956, 1e-05
      %v9021 = vadd.f32 %v8957, 1e-05
      %v9022 = vadd.f32 %v8958, 1e-05
      %v9023 = vadd.f32 %v8959, 1e-05
      %v9024 = vadd.f32 %v8960, 1e-05
      %v9025 = vadd.f32 %v8961, 1e-05
      %v9026 = vadd.f32 %v8962, 1e-05
      %v9027 = vadd.f32 %v8963, 1e-05
      %v9028 = vadd.f32 %v8964, 1e-05
      %v9029 = vadd.f32 %v8965, 1e-05
      %v9030 = vadd.f32 %v8966, 1e-05
      %v9031 = vadd.f32 %v8967, 1e-05
      %v9032 = vadd.f32 %v8968, 1e-05
      %v9033 = vadd.f32 %v8969, 1e-05
      %v9034 = vadd.f32 %v8970, 1e-05
      %v9035 = vadd.f32 %v8971, 1e-05
      %v9036 = vadd.f32 %v8972, 1e-05
      %v9037 = vadd.f32 %v8973, 1e-05
      %v9038 = vadd.f32 %v8974, 1e-05
      %v9039 = vrsqrt.pop %v8975
      %v9040 = vrsqrt.pop %v8976
      %v9041 = vrsqrt.pop %v8977
      %v9042 = vrsqrt.pop %v8978
      %v9043 = vrsqrt.pop %v8979
      %v9044 = vrsqrt.pop %v8980
      %v9045 = vrsqrt.pop %v8981
      %v9046 = vrsqrt.pop %v8982
      %v9047 = vrsqrt.pop %v8983
      %v9048 = vrsqrt.pop %v8984
      %v9049 = vrsqrt.pop %v8985
      %v9050 = vrsqrt.pop %v8986
      %v9051 = vrsqrt.pop %v8987
      %v9052 = vrsqrt.pop %v8988
      %v9053 = vrsqrt.pop %v8989
      %v9054 = vrsqrt.pop %v8990
      %v9055 = vrsqrt.pop %v8991
      %v9056 = vrsqrt.pop %v8992
      %v9057 = vrsqrt.pop %v8993
      %v9058 = vrsqrt.pop %v8994
      %v9059 = vrsqrt.pop %v8995
      %v9060 = vrsqrt.pop %v8996
      %v9061 = vrsqrt.pop %v8997
      %v9062 = vrsqrt.pop %v8998
      %v9063 = vrsqrt.pop %v8999
      %v9064 = vrsqrt.pop %v9000
      %v9065 = vrsqrt.pop %v9001
      %v9066 = vrsqrt.pop %v9002
      %v9067 = vrsqrt.pop %v9003
      %v9068 = vrsqrt.pop %v9004
      %v9069 = vrsqrt.pop %v9005
      %v9070 = vrsqrt.pop %v9006
      %v9071 = vrsqrt.pop %v9007
      %v9072 = vrsqrt.pop %v9008
      %v9073 = vrsqrt.pop %v9009
      %v9074 = vrsqrt.pop %v9010
      %v9075 = vrsqrt.pop %v9011
      %v9076 = vrsqrt.pop %v9012
      %v9077 = vrsqrt.pop %v9013
      %v9078 = vrsqrt.pop %v9014
      %v9079 = vrsqrt.pop %v9015
      %v9080 = vrsqrt.pop %v9016
      %v9081 = vrsqrt.pop %v9017
      %v9082 = vrsqrt.pop %v9018
      %v9083 = vrsqrt.pop %v9019
      %v9084 = vrsqrt.pop %v9020
      %v9085 = vrsqrt.pop %v9021
      %v9086 = vrsqrt.pop %v9022
      %v9087 = vrsqrt.pop %v9023
      %v9088 = vrsqrt.pop %v9024
      %v9089 = vrsqrt.pop %v9025
      %v9090 = vrsqrt.pop %v9026
      %v9091 = vrsqrt.pop %v9027
      %v9092 = vrsqrt.pop %v9028
      %v9093 = vrsqrt.pop %v9029
      %v9094 = vrsqrt.pop %v9030
      %v9095 = vrsqrt.pop %v9031
      %v9096 = vrsqrt.pop %v9032
      %v9097 = vrsqrt.pop %v9033
      %v9098 = vrsqrt.pop %v9034
      %v9099 = vrsqrt.pop %v9035
      %v9100 = vrsqrt.pop %v9036
      %v9101 = vrsqrt.pop %v9037
      %v9102 = vrsqrt.pop %v9038
      %v9103 = vmul.f32 %v8591, %v9039
      %v9104 = vmul.f32 %v8592, %v9040
      %v9105 = vmul.f32 %v8593, %v9041
      %v9106 = vmul.f32 %v8594, %v9042
      %v9107 = vmul.f32 %v8595, %v9043
      %v9108 = vmul.f32 %v8596, %v9044
      %v9109 = vmul.f32 %v8597, %v9045
      %v9110 = vmul.f32 %v8598, %v9046
      %v9111 = vmul.f32 %v8599, %v9047
      %v9112 = vmul.f32 %v8600, %v9048
      %v9113 = vmul.f32 %v8601, %v9049
      %v9114 = vmul.f32 %v8602, %v9050
      %v9115 = vmul.f32 %v8603, %v9051
      %v9116 = vmul.f32 %v8604, %v9052
      %v9117 = vmul.f32 %v8605, %v9053
      %v9118 = vmul.f32 %v8606, %v9054
      %v9119 = vmul.f32 %v8607, %v9055
      %v9120 = vmul.f32 %v8608, %v9056
      %v9121 = vmul.f32 %v8609, %v9057
      %v9122 = vmul.f32 %v8610, %v9058
      %v9123 = vmul.f32 %v8611, %v9059
      %v9124 = vmul.f32 %v8612, %v9060
      %v9125 = vmul.f32 %v8613, %v9061
      %v9126 = vmul.f32 %v8614, %v9062
      %v9127 = vmul.f32 %v8615, %v9063
      %v9128 = vmul.f32 %v8616, %v9064
      %v9129 = vmul.f32 %v8617, %v9065
      %v9130 = vmul.f32 %v8618, %v9066
      %v9131 = vmul.f32 %v8619, %v9067
      %v9132 = vmul.f32 %v8620, %v9068
      %v9133 = vmul.f32 %v8621, %v9069
      %v9134 = vmul.f32 %v8622, %v9070
      %v9135 = vmul.f32 %v8623, %v9071
      %v9136 = vmul.f32 %v8624, %v9072
      %v9137 = vmul.f32 %v8625, %v9073
      %v9138 = vmul.f32 %v8626, %v9074
      %v9139 = vmul.f32 %v8627, %v9075
      %v9140 = vmul.f32 %v8628, %v9076
      %v9141 = vmul.f32 %v8629, %v9077
      %v9142 = vmul.f32 %v8630, %v9078
      %v9143 = vmul.f32 %v8631, %v9079
      %v9144 = vmul.f32 %v8632, %v9080
      %v9145 = vmul.f32 %v8633, %v9081
      %v9146 = vmul.f32 %v8634, %v9082
      %v9147 = vmul.f32 %v8635, %v9083
      %v9148 = vmul.f32 %v8636, %v9084
      %v9149 = vmul.f32 %v8637, %v9085
      %v9150 = vmul.f32 %v8638, %v9086
      %v9151 = vmul.f32 %v8639, %v9087
      %v9152 = vmul.f32 %v8640, %v9088
      %v9153 = vmul.f32 %v8641, %v9089
      %v9154 = vmul.f32 %v8642, %v9090
      %v9155 = vmul.f32 %v8643, %v9091
      %v9156 = vmul.f32 %v8644, %v9092
      %v9157 = vmul.f32 %v8645, %v9093
      %v9158 = vmul.f32 %v8646, %v9094
      %v9159 = vmul.f32 %v8647, %v9095
      %v9160 = vmul.f32 %v8648, %v9096
      %v9161 = vmul.f32 %v8649, %v9097
      %v9162 = vmul.f32 %v8650, %v9098
      %v9163 = vmul.f32 %v8651, %v9099
      %v9164 = vmul.f32 %v8652, %v9100
      %v9165 = vmul.f32 %v8653, %v9101
      %v9166 = vmul.f32 %v8654, %v9102
      %9167 = vst.msk [vmem:[%s348] sm:$0xff] %vm501, %v9103
      %9168 = vst.msk [vmem:[%s348 + $0x8] sm:$0xff] %vm501, %v9104
      %9169 = vst.msk [vmem:[%s348 + $0x10] sm:$0xff] %vm501, %v9105
      %9170 = vst.msk [vmem:[%s348 + $0x18] sm:$0xff] %vm501, %v9106
      %9171 = vst.msk [vmem:[%s348 + $0x20] sm:$0xff] %vm501, %v9107
      %9172 = vst.msk [vmem:[%s348 + $0x28] sm:$0xff] %vm501, %v9108
      %9173 = vst.msk [vmem:[%s348 + $0x30] sm:$0xff] %vm501, %v9109
      %9174 = vst.msk [vmem:[%s348 + $0x38] sm:$0xff] %vm501, %v9110
      %9175 = vst.msk [vmem:[%s348 + $0x40] sm:$0xff] %vm501, %v9111
      %9176 = vst.msk [vmem:[%s348 + $0x48] sm:$0xff] %vm501, %v9112
      %9177 = vst.msk [vmem:[%s348 + $0x50] sm:$0xff] %vm501, %v9113
      %9178 = vst.msk [vmem:[%s348 + $0x58] sm:$0xff] %vm501, %v9114
      %9179 = vst.msk [vmem:[%s348 + $0x60] sm:$0xff] %vm501, %v9115
      %9180 = vst.msk [vmem:[%s348 + $0x68] sm:$0xff] %vm501, %v9116
      %9181 = vst.msk [vmem:[%s348 + $0x70] sm:$0xff] %vm501, %v9117
      %9182 = vst.msk [vmem:[%s348 + $0x78] sm:$0xff] %vm501, %v9118
      %9183 = vst.msk [vmem:[%s348 + $0x80] sm:$0xff] %vm501, %v9119
      %9184 = vst.msk [vmem:[%s348 + $0x88] sm:$0xff] %vm501, %v9120
      %9185 = vst.msk [vmem:[%s348 + $0x90] sm:$0xff] %vm501, %v9121
      %9186 = vst.msk [vmem:[%s348 + $0x98] sm:$0xff] %vm501, %v9122
      %9187 = vst.msk [vmem:[%s348 + $0xa0] sm:$0xff] %vm501, %v9123
      %9188 = vst.msk [vmem:[%s348 + $0xa8] sm:$0xff] %vm501, %v9124
      %9189 = vst.msk [vmem:[%s348 + $0xb0] sm:$0xff] %vm501, %v9125
      %9190 = vst.msk [vmem:[%s348 + $0xb8] sm:$0xff] %vm501, %v9126
      %9191 = vst.msk [vmem:[%s348 + $0xc0] sm:$0xff] %vm501, %v9127
      %9192 = vst.msk [vmem:[%s348 + $0xc8] sm:$0xff] %vm501, %v9128
      %9193 = vst.msk [vmem:[%s348 + $0xd0] sm:$0xff] %vm501, %v9129
      %9194 = vst.msk [vmem:[%s348 + $0xd8] sm:$0xff] %vm501, %v9130
      %9195 = vst.msk [vmem:[%s348 + $0xe0] sm:$0xff] %vm501, %v9131
      %9196 = vst.msk [vmem:[%s348 + $0xe8] sm:$0xff] %vm501, %v9132
      %9197 = vst.msk [vmem:[%s348 + $0xf0] sm:$0xff] %vm501, %v9133
      %9198 = vst.msk [vmem:[%s348 + $0xf8] sm:$0xff] %vm501, %v9134
      %9199 = vst.msk [vmem:[%s348 + $0x100] sm:$0xff] %vm501, %v9135
      %9200 = vst.msk [vmem:[%s348 + $0x108] sm:$0xff] %vm501, %v9136
      %9201 = vst.msk [vmem:[%s348 + $0x110] sm:$0xff] %vm501, %v9137
      %9202 = vst.msk [vmem:[%s348 + $0x118] sm:$0xff] %vm501, %v9138
      %9203 = vst.msk [vmem:[%s348 + $0x120] sm:$0xff] %vm501, %v9139
      %9204 = vst.msk [vmem:[%s348 + $0x128] sm:$0xff] %vm501, %v9140
      %9205 = vst.msk [vmem:[%s348 + $0x130] sm:$0xff] %vm501, %v9141
      %9206 = vst.msk [vmem:[%s348 + $0x138] sm:$0xff] %vm501, %v9142
      %9207 = vst.msk [vmem:[%s348 + $0x140] sm:$0xff] %vm501, %v9143
      %9208 = vst.msk [vmem:[%s348 + $0x148] sm:$0xff] %vm501, %v9144
      %9209 = vst.msk [vmem:[%s348 + $0x150] sm:$0xff] %vm501, %v9145
      %9210 = vst.msk [vmem:[%s348 + $0x158] sm:$0xff] %vm501, %v9146
      %9211 = vst.msk [vmem:[%s348 + $0x160] sm:$0xff] %vm501, %v9147
      %9212 = vst.msk [vmem:[%s348 + $0x168] sm:$0xff] %vm501, %v9148
      %9213 = vst.msk [vmem:[%s348 + $0x170] sm:$0xff] %vm501, %v9149
      %9214 = vst.msk [vmem:[%s348 + $0x178] sm:$0xff] %vm501, %v9150
      %9215 = vst.msk [vmem:[%s348 + $0x180] sm:$0xff] %vm501, %v9151
      %9216 = vst.msk [vmem:[%s348 + $0x188] sm:$0xff] %vm501, %v9152
      %9217 = vst.msk [vmem:[%s348 + $0x190] sm:$0xff] %vm501, %v9153
      %9218 = vst.msk [vmem:[%s348 + $0x198] sm:$0xff] %vm501, %v9154
      %9219 = vst.msk [vmem:[%s348 + $0x1a0] sm:$0xff] %vm501, %v9155
      %9220 = vst.msk [vmem:[%s348 + $0x1a8] sm:$0xff] %vm501, %v9156
      %9221 = vst.msk [vmem:[%s348 + $0x1b0] sm:$0xff] %vm501, %v9157
      %9222 = vst.msk [vmem:[%s348 + $0x1b8] sm:$0xff] %vm501, %v9158
      %9223 = vst.msk [vmem:[%s348 + $0x1c0] sm:$0xff] %vm501, %v9159
      %9224 = vst.msk [vmem:[%s348 + $0x1c8] sm:$0xff] %vm501, %v9160
      %9225 = vst.msk [vmem:[%s348 + $0x1d0] sm:$0xff] %vm501, %v9161
      %9226 = vst.msk [vmem:[%s348 + $0x1d8] sm:$0xff] %vm501, %v9162
      %9227 = vst.msk [vmem:[%s348 + $0x1e0] sm:$0xff] %vm501, %v9163
      %9228 = vst.msk [vmem:[%s348 + $0x1e8] sm:$0xff] %vm501, %v9164
      %9229 = vst.msk [vmem:[%s348 + $0x1f0] sm:$0xff] %vm501, %v9165
      %9230 = vst.msk [vmem:[%s348 + $0x1f8] sm:$0xff] %vm501, %v9166
      %s9231 = smul.u32 8, %s21
      %p9232 = scmp.lt.s32.totalorder %s9231, 15
      %s9233 = scalar_select %p9232, %s9231, 15
      %s9234 = smul.addr %s9233, 8
      %s9235 = smul.addr %s9234, 8
      %s9236 = scalar_lea.vmem %s8, %s9235
      %s9237 = smul.u32 8, %s21
      %p9238 = scmp.lt.s32.totalorder %s9237, 15
      %s9239 = scalar_select %p9238, %s9237, 15
      %s9240 = smul.addr %s9239, 8
      %s9241 = smul.addr %s9240, 8
      %s9242 = scalar_lea.vmem %s9, %s9241
      // Predicated region
      $region53: #{decoder_forward.1} parent=51 // pred_check
        %p9243 = pneg %p212
      $region54: #{decoder_forward.1} parent=51 // pred_check_branch
        %9245 = sbr.rel (%p9243) target = $region56
      $region55: #{decoder_forward.1} parent=51 // pred_region
        %s9246 = smul.u32 8, %s21
      $region56: #{decoder_forward.1} parent=51 // pred_fallthru
        _
      // Predicated region
      $region57: #{decoder_forward.1} parent=51 // pred_check
        %p9247 = pneg %p238
      $region58: #{decoder_forward.1} parent=51 // pred_check_branch
        %9249 = sbr.rel (%p9247) target = $region60
      $region59: #{decoder_forward.1} parent=51 // pred_region
        %s9250 = smul.u32 8, %s21
      $region60: #{decoder_forward.1} parent=51 // pred_fallthru
        _
    $region52: #{decoder_forward.1} parent=5 // pred_fallthru
      _
    %p9251 = scmp.le.s32.totalorder 2, %s16
    // Predicated region
    $region61: #{decoder_forward.1} parent=5 // pred_check
      %p9252 = pneg %p9251
    $region62: #{decoder_forward.1} parent=5 // pred_check_branch
      %9254 = sbr.rel (%p9252) target = $region64
    $region63: #{decoder_forward.1} parent=5 // pred_region
      %s9255 = ssub.s32 %s16, 2
      // Predicated region
      $region65: #{decoder_forward.1} parent=63 // pred_check
        %p9256 = pneg %p218
      $region66: #{decoder_forward.1} parent=63 // pred_check_branch
        %9258 = sbr.rel (%p9256) target = $region68
      $region67: #{decoder_forward.1} parent=63 // pred_region
        %s9259 = smul.u32 8, %s22
        %p9260 = scmp.lt.s32.totalorder %s9259, 15
        %s9261 = scalar_select %p9260, %s9259, 15
        %s9262 = smul.addr %s9261, 8
        %s9263 = smul.addr %s9262, 8
        %s9264 = scalar_lea.vmem %s8, %s9263
      $region68: #{decoder_forward.1} parent=63 // pred_fallthru
        _
      // Predicated region
      $region69: #{decoder_forward.1} parent=63 // pred_check
        %p9265 = pneg %p244
      $region70: #{decoder_forward.1} parent=63 // pred_check_branch
        %9267 = sbr.rel (%p9265) target = $region72
      $region71: #{decoder_forward.1} parent=63 // pred_region
        %s9268 = smul.u32 8, %s22
        %p9269 = scmp.lt.s32.totalorder %s9268, 15
        %s9270 = scalar_select %p9269, %s9268, 15
        %s9271 = smul.addr %s9270, 8
        %s9272 = smul.addr %s9271, 8
        %s9273 = scalar_lea.vmem %s9, %s9272
      $region72: #{decoder_forward.1} parent=63 // pred_fallthru
        _
    $region64: #{decoder_forward.1} parent=5 // pred_fallthru
      _
  $region6: #{decoder_forward.1} parent=0 // loop_footer
    %s20 = sadd.s32 1, %s16
  $region7: #{decoder_forward.1} parent=0 // loop_footer_branch
    %15 = sbr.rel target = $region3
  $region8: #{decoder_forward.1} parent=0 // loop_exit
    _

</llo_original>
